<compile_context>
chip_gen: v7x
topology: tpu7x:2x2x1
jax: 0.10.0
libtpu: 0.0.40
codegen_flags: <defaults>
</compile_context>

<pallas_src>
import functools

import numpy as np
import jax
import jax.numpy as jnp
from jax.experimental import pallas as pl
from jax.experimental.pallas import tpu as pltpu  # noqa: F401

# ----------------------------- config (small, consistent with the module) ---
IN_CH = 4          # exercises the `in_channels != 3` patch-embed branch
IMG = 16           # image_size
PATCH = 4          # patch size
EMBED = 16         # embed dim
DEPTHS = (2, 2)    # blocks per stage
HEADS = (2, 4)     # heads per stage
WINDOW = 2         # window size
MLP_RATIO = 4
POOL = "mean"      # pool_method
NUM_FEATURES = EMBED * 2 ** (len(DEPTHS) - 1)   # get_global_width()
LN_EPS = 1e-5
NEG_INF = -1e9     # cross-window pairs (exp underflows to exactly 0)

# order must match the positional unpacking inside _swin_forward_kernel
_BLOCK_KEYS = ("n1g", "n1b", "qkvw", "qkvb", "abias", "projw", "projb",
               "n2g", "n2b", "fc1w", "fc1b", "fc2w", "fc2b")


# ----------------------------- in-kernel helpers -----------------------------

def _layernorm(x, g, b):
    """Biased-variance LayerNorm over the last axis (matches nn.LayerNorm)."""
    mu = jnp.mean(x, axis=-1, keepdims=True)
    xc = x - mu
    var = jnp.mean(xc * xc, axis=-1, keepdims=True)
    return xc * jax.lax.rsqrt(var + LN_EPS) * g + b


def _mm(a, w):
    """MXU matmul: bf16 operands (weights pre-cast outside jit), f32 accum."""
    return jnp.dot(a.astype(jnp.bfloat16), w, preferred_element_type=jnp.float32)


def _gelu_erf(x):
    """Exact (erf) GELU; erf via Abramowitz&Stegun 7.1.26 (|err| < 1.5e-7),
    built from exp so it lowers on VPU+EUP without an erf primitive."""
    z = x * 0.7071067811865476
    a1, a2, a3, a4, a5 = (0.254829592, -0.284496736, 1.421413741,
                          -1.453152027, 1.061405429)
    pp = 0.3275911
    az = jnp.abs(z)
    t = 1.0 / (1.0 + pp * az)
    poly = ((((a5 * t + a4) * t + a3) * t + a2) * t + a1) * t
    erf_abs = 1.0 - poly * jnp.exp(-az * az)
    erf = jnp.where(z < 0.0, -erf_abs, erf_abs)
    return 0.5 * x * (1.0 + erf)


def _swin_block(x, bias, n1g, n1b, qkvw, qkvb, projw, projb,
                n2g, n2b, fc1w, fc1b, fc2w, fc2b, *, batch, hw, num_heads):
    """One Swin block: LN1 -> (bias-masked full) windowed MSA -> proj ->
    residual -> LN2 -> MLP (exact-erf GELU) -> residual.  All arrays live in
    registers/VMEM."""
    rows, C = x.shape
    hd = C // num_heads
    scale = float(hd) ** -0.5

    # --- attention branch ---
    xn = _layernorm(x, n1g, n1b)
    qkv = _mm(xn, qkvw) + qkvb                            # (rows, 3C) f32
    # TODO(synk): heads are looped statically (<=4) using single-batch-dim
    # einsums (the documented-safe Mosaic path); fold them into one
    # 'bhnd,bhmd->bhnm' einsum once multi-batch-dim dot_general lowering is
    # verified on Mosaic.
    head_outs = []
    for h in range(num_heads):
        q = qkv[:, h * hd:(h + 1) * hd].reshape(batch, hw, hd)
        k = qkv[:, C + h * hd:C + (h + 1) * hd].reshape(batch, hw, hd)
        v = qkv[:, 2 * C + h * hd:2 * C + (h + 1) * hd].reshape(batch, hw, hd)
        s = jnp.einsum("bnd,bmd->bnm",
                       q.astype(jnp.bfloat16), k.astype(jnp.bfloat16),
                       preferred_element_type=jnp.float32)
        s = s * scale + bias[h]          # (hw,hw) bias: implicit bcast over batch
        s = s - jnp.max(s, axis=-1, keepdims=True)
        p = jnp.exp(s)
        p = p * pl.reciprocal(jnp.sum(p, axis=-1, keepdims=True), approx=True)
        o = jnp.einsum("bnm,bmd->bnd",
                       p.astype(jnp.bfloat16), v.astype(jnp.bfloat16),
                       preferred_element_type=jnp.float32)
        head_outs.append(o.reshape(rows, hd))
    attn = head_outs[0] if num_heads == 1 else jnp.concatenate(head_outs, axis=-1)
    x = x + _mm(attn, projw) + projb                      # residual 1

    # --- MLP branch ---
    xn2 = _layernorm(x, n2g, n2b)
    hidden = _mm(xn2, fc1w) + fc1b
    hidden = _gelu_erf(hidden)
    return x + _mm(hidden, fc2w) + fc2b                   # residual 2


# ----------------------------- the single fused kernel -----------------------

def _swin_forward_kernel(*refs, batch, depths, stage_heads, stage_hw):
    tok_ref, pool_ref = refs[-2], refs[-1]
    it = iter(refs[:-2])

    def take(n):
        return [next(it) for _ in range(n)]

    # ---- patch embed: conv-as-matmul + bias + LayerNorm ----
    xp_ref, pe_w, pe_b, pe_g, pe_bn = take(5)
    x = jnp.dot(xp_ref[...], pe_w[...],
                preferred_element_type=jnp.float32) + pe_b[...]
    x = _layernorm(x, pe_g[...], pe_bn[...])              # (B*16, EMBED) f32

    for si in range(len(depths)):
        if si > 0:
            # ---- patch merging: exact 0/1 selection matmuls (timm x0..x3
            #      channel order) + LN + bias-free reduction matmul ----
            sel_ref, mg_g, mg_b, red_w = take(4)
            sel = sel_ref[...]                            # (4, rows_out, rows_in)
            x = jnp.concatenate(
                [jnp.dot(sel[g], x, preferred_element_type=jnp.float32)
                 for g in range(4)], axis=-1)
            x = _layernorm(x, mg_g[...], mg_b[...])
            x = _mm(x, red_w[...])
        # order must match _BLOCK_KEYS
        (n1g, n1b, qkvw, qkvb, abias, projw, projb,
         n2g, n2b, fc1w, fc1b, fc2w, fc2b) = take(13)
        for bi in range(depths[si]):
            x = _swin_block(x, abias[bi],
                            n1g[bi], n1b[bi], qkvw[bi], qkvb[bi],
                            projw[bi], projb[bi], n2g[bi], n2b[bi],
                            fc1w[bi], fc1b[bi], fc2w[bi], fc2b[bi],
                            batch=batch, hw=stage_hw[si],
                            num_heads=stage_heads[si])

    # ---- head: final LayerNorm + mean pool, two (tiny) outputs ----
    fin_g, fin_b = take(2)
    xn = _layernorm(x, fin_g[...], fin_b[...])
    tok_ref[...] = xn.astype(tok_ref.dtype)
    pool_ref[...] = jnp.mean(xn.reshape(batch, stage_hw[-1], xn.shape[-1]),
                             axis=1).astype(pool_ref.dtype)


# ----------------------------- trace-time / prep-time constants --------------

def relative_position_index(w):
    coords = np.stack(np.meshgrid(np.arange(w), np.arange(w), indexing="ij"))
    flat = coords.reshape(2, -1)                       # (2, N)
    rel = flat[:, :, None] - flat[:, None, :]          # (2, N, N)
    rel = rel.transpose(1, 2, 0).astype(np.int64)      # (N, N, 2)
    rel += w - 1
    rel[:, :, 0] *= 2 * w - 1
    return rel.sum(-1)                                 # (N, N)


def _full_attention_bias(H, W, window, shift, rel_idx, rpb, num_heads):
    """(heads, H*W, H*W) additive bias turning windowed (optionally shifted)
    attention into bias-masked full attention over each image's tokens."""
    hp, wp = np.meshgrid(np.arange(H), np.arange(W), indexing="ij")
    hp = hp.reshape(-1)
    wp = wp.reshape(-1)
    hr = (hp - shift) % H                              # position after roll(-shift)
    wr = (wp - shift) % W
    win = (hr // window) * (W // window) + (wr // window)      # window id
    iw = (hr % window) * window + (wr % window)                # in-window index
    same_win = win[:, None] == win[None, :]
    add = np.where(same_win, 0.0, NEG_INF).astype(np.float32)
    if shift > 0:
        # timm shift mask: region ids over the rolled layout, -100 across regions
        region = np.zeros((H, W), np.float32)
        cnt = 0
        for hs in (slice(0, -window), slice(-window, -shift), slice(-shift, None)):
            for ws in (slice(0, -window), slice(-window, -shift), slice(-shift, None)):
                region[hs, ws] = cnt
                cnt += 1
        reg = region[hr, wr]
        add = add + np.where((reg[:, None] == reg[None, :]) | ~same_win,
                             0.0, -100.0).astype(np.float32)
    hw = H * W
    gathered = rpb[rel_idx[iw[:, None], iw[None, :]].reshape(-1)]   # (hw*hw, heads)
    bias = gathered.reshape(hw, hw, num_heads).transpose(2, 0, 1)   # (heads,hw,hw)
    return (bias + jnp.asarray(add)).astype(jnp.float32)


def _merge_select(batch, H, W):
    """0/1 selection matrices implementing timm PatchMerging's x0..x3 gather."""
    Ho, Wo = H // 2, W // 2
    rows_in, rows_out = batch * H * W, batch * Ho * Wo
    sel = np.zeros((4, rows_out, rows_in), np.float32)
    for g, (dh, dw) in enumerate(((0, 0), (1, 0), (0, 1), (1, 1))):
        for b in range(batch):
            for h2 in range(Ho):
                for w2 in range(Wo):
                    ro = (b * Ho + h2) * Wo + w2
                    ri = (b * H + 2 * h2 + dh) * W + 2 * w2 + dw
                    sel[g, ro, ri] = 1.0
    return sel


def prepare_kernel_params(params):
    """One-time (outside jit) packaging: bf16 pre-cast matmul weights,
    (1, C)-shaped bias/LN rows, per-block stacked tensors and the fused
    additive attention biases (rel-pos + shift mask + cross-window mask)."""
    rel_idx = relative_position_index(WINDOW)
    pe = params["patch_embed"]
    kp = {
        "pe_w": pe["conv_w"].transpose(1, 2, 3, 0)
                 .reshape(IN_CH * PATCH * PATCH, EMBED).astype(jnp.bfloat16),
        "pe_b": pe["conv_b"].reshape(1, EMBED),
        "pe_g": pe["norm_g"].reshape(1, EMBED),
        "pe_bn": pe["norm_b"].reshape(1, EMBED),
        "stages": [],
    }
    H = W = IMG // PATCH
    C = EMBED
    for si, (stage_p, heads) in enumerate(zip(params["stages"], HEADS)):
        st = {}
        if si > 0:
            in_dim = C
            C *= 2
            H, W = H // 2, W // 2
            ds = stage_p["downsample"]
            st["mg_g"] = ds["norm_g"].reshape(1, 4 * in_dim)
            st["mg_b"] = ds["norm_b"].reshape(1, 4 * in_dim)
            st["red_w"] = ds["red_w"].astype(jnp.bfloat16)
        blocks = stage_p["blocks"]
        abias = []
        for bi, bp in enumerate(blocks):
            shift = 0 if bi % 2 == 0 else WINDOW // 2
            if min(H, W) <= WINDOW:        # timm: no shift when res <= window
                shift = 0
            abias.append(_full_attention_bias(H, W, WINDOW, shift, rel_idx,
                                              bp["rpb"], heads))
        st["abias"] = jnp.stack(abias)                     # (depth, heads, HW, HW)
        st["n1g"] = jnp.stack([bp["norm1_g"].reshape(1, C) for bp in blocks])
        st["n1b"] = jnp.stack([bp["norm1_b"].reshape(1, C) for bp in blocks])
        st["qkvw"] = jnp.stack([bp["qkv_w"].astype(jnp.bfloat16) for bp in blocks])
        st["qkvb"] = jnp.stack([bp["qkv_b"].reshape(1, 3 * C) for bp in blocks])
        st["projw"] = jnp.stack([bp["proj_w"].astype(jnp.bfloat16) for bp in blocks])
        st["projb"] = jnp.stack([bp["proj_b"].reshape(1, C) for bp in blocks])
        st["n2g"] = jnp.stack([bp["norm2_g"].reshape(1, C) for bp in blocks])
        st["n2b"] = jnp.stack([bp["norm2_b"].reshape(1, C) for bp in blocks])
        st["fc1w"] = jnp.stack([bp["fc1_w"].astype(jnp.bfloat16) for bp in blocks])
        st["fc1b"] = jnp.stack([bp["fc1_b"].reshape(1, MLP_RATIO * C) for bp in blocks])
        st["fc2w"] = jnp.stack([bp["fc2_w"].astype(jnp.bfloat16) for bp in blocks])
        st["fc2b"] = jnp.stack([bp["fc2_b"].reshape(1, C) for bp in blocks])
        kp["stages"].append(st)
    kp["fin_g"] = params["norm_g"].reshape(1, C)
    kp["fin_b"] = params["norm_b"].reshape(1, C)
    return kp


# ----------------------------- forward wrapper -------------------------------

def swin_forward(x_nchw, kparams, need_token=False):
    B = x_nchw.shape[0]
    ps = PATCH
    Hp = Wp = IMG // ps

    # stride==kernel conv as matmul: extract (c, kh, kw)-ordered patches.
    # (Only XLA op besides the final free reshape; touches the raw input once.)
    xp = x_nchw.reshape(B, IN_CH, Hp, ps, Wp, ps).transpose(0, 2, 4, 1, 3, 5)
    xp = xp.reshape(B * Hp * Wp, IN_CH * ps * ps).astype(jnp.bfloat16)

    inputs = [xp, kparams["pe_w"], kparams["pe_b"], kparams["pe_g"], kparams["pe_bn"]]
    H, W = Hp, Wp
    stage_hw = []
    for si, st in enumerate(kparams["stages"]):
        if si > 0:
            inputs += [jnp.asarray(_merge_select(B, H, W)),
                       st["mg_g"], st["mg_b"], st["red_w"]]
            H, W = H // 2, W // 2
        stage_hw.append(H * W)
        inputs += [st[k] for k in _BLOCK_KEYS]
    inputs += [kparams["fin_g"], kparams["fin_b"]]

    C_out = NUM_FEATURES
    ntok = stage_hw[-1]
    kernel = functools.partial(_swin_forward_kernel, batch=B, depths=DEPTHS,
                               stage_heads=HEADS, stage_hw=tuple(stage_hw))
    # One gridless pallas_call for the whole forward; everything fits in VMEM
    # on all generations (weights + activations << 1 MiB).
    tokens_flat, pooled = pl.pallas_call(
        kernel,
        out_shape=(jax.ShapeDtypeStruct((B * ntok, C_out), jnp.float32),
                   jax.ShapeDtypeStruct((B, C_out), jnp.float32)),
    )(*inputs)

    tokens = tokens_flat.reshape(B, ntok, C_out)          # x.view(B, -1, C)
    if POOL == "mean":
        global_x = pooled                                 # mean pool done in-kernel
    elif POOL == "max":
        global_x = jnp.max(tokens, axis=1)
    else:
        global_x = tokens[:, 0]
    return (global_x, tokens) if need_token else global_x


# ----------------------------- deterministic synthetic parameters ------------
# TODO(synk): timm pretrained weights / `load_from` checkpoints cannot be
# reproduced in-script; deterministic synthetic parameters are used instead.

def init_params(key):
    keys = iter(jax.random.split(key, 128))

    def rnd(shape, std=0.02):
        return jax.random.normal(next(keys), shape, jnp.float32) * std

    params = {
        "patch_embed": {
            "conv_w": rnd((EMBED, IN_CH, PATCH, PATCH)),
            "conv_b": rnd((EMBED,)),
            "norm_g": jnp.ones((EMBED,), jnp.float32),
            "norm_b": jnp.zeros((EMBED,), jnp.float32),
        }
    }
    stages = []
    dim = EMBED
    for si, (depth, heads) in enumerate(zip(DEPTHS, HEADS)):
        stage = {}
        if si > 0:
            in_dim = dim
            dim = dim * 2
            stage["downsample"] = {
                "norm_g": jnp.ones((4 * in_dim,), jnp.float32),
                "norm_b": jnp.zeros((4 * in_dim,), jnp.float32),
                "red_w": rnd((4 * in_dim, 2 * in_dim)),
            }
        blocks = []
        for _ in range(depth):
            blocks.append({
                "norm1_g": jnp.ones((dim,), jnp.float32),
                "norm1_b": jnp.zeros((dim,), jnp.float32),
                "qkv_w": rnd((dim, 3 * dim)),
                "qkv_b": rnd((3 * dim,)),
                "rpb": rnd(((2 * WINDOW - 1) ** 2, heads)),
                "proj_w": rnd((dim, dim)),
                "proj_b": rnd((dim,)),
                "norm2_g": jnp.ones((dim,), jnp.float32),
                "norm2_b": jnp.zeros((dim,), jnp.float32),
                "fc1_w": rnd((dim, MLP_RATIO * dim)),
                "fc1_b": rnd((MLP_RATIO * dim,)),
                "fc2_w": rnd((MLP_RATIO * dim, dim)),
                "fc2_b": rnd((dim,)),
            })
        stage["blocks"] = blocks
        stages.append(stage)
    params["stages"] = stages
    params["norm_g"] = jnp.ones((dim,), jnp.float32)
    params["norm_b"] = jnp.zeros((dim,), jnp.float32)
    return params


# ----------------------------- main -------------------------------------------

if __name__ == "__main__":
    key = jax.random.PRNGKey(0)
    pkey, xkey = jax.random.split(key)
    params = init_params(pkey)
    kparams = prepare_kernel_params(params)   # one-time: bf16 weights, fused biases

    # NCHW input, like the PyTorch module
    x = jax.random.normal(xkey, (2, IN_CH, IMG, IMG), jnp.float32)

    fwd = jax.jit(functools.partial(swin_forward, need_token=True))
    global_x, tokens = fwd(x, kparams)
    jax.block_until_ready((global_x, tokens))

    n_tokens = (IMG // PATCH // 2 ** (len(DEPTHS) - 1)) ** 2
    assert global_x.shape == (2, NUM_FEATURES), global_x.shape
    assert tokens.shape == (2, n_tokens, NUM_FEATURES), tokens.shape
    assert bool(jnp.all(jnp.isfinite(global_x)))
    assert bool(jnp.all(jnp.isfinite(tokens)))
    print("KERNEL_OK")
</pallas_src>

<mosaic_0001>
module attributes {stable_mosaic.version = 11 : i64} {
  func.func @_swin_forward_kernel(%arg0: memref<32x64xbf16, #tpu.memory_space<vmem>>, %arg1: memref<64x16xbf16, #tpu.memory_space<vmem>>, %arg2: memref<1x16xf32, #tpu.memory_space<vmem>>, %arg3: memref<1x16xf32, #tpu.memory_space<vmem>>, %arg4: memref<1x16xf32, #tpu.memory_space<vmem>>, %arg5: memref<2x1x16xf32, #tpu.memory_space<vmem>>, %arg6: memref<2x1x16xf32, #tpu.memory_space<vmem>>, %arg7: memref<2x16x48xbf16, #tpu.memory_space<vmem>>, %arg8: memref<2x1x48xf32, #tpu.memory_space<vmem>>, %arg9: memref<2x2x16x16xf32, #tpu.memory_space<vmem>>, %arg10: memref<2x16x16xbf16, #tpu.memory_space<vmem>>, %arg11: memref<2x1x16xf32, #tpu.memory_space<vmem>>, %arg12: memref<2x1x16xf32, #tpu.memory_space<vmem>>, %arg13: memref<2x1x16xf32, #tpu.memory_space<vmem>>, %arg14: memref<2x16x64xbf16, #tpu.memory_space<vmem>>, %arg15: memref<2x1x64xf32, #tpu.memory_space<vmem>>, %arg16: memref<2x64x16xbf16, #tpu.memory_space<vmem>>, %arg17: memref<2x1x16xf32, #tpu.memory_space<vmem>>, %arg18: memref<4x8x32xf32, #tpu.memory_space<vmem>>, %arg19: memref<1x64xf32, #tpu.memory_space<vmem>>, %arg20: memref<1x64xf32, #tpu.memory_space<vmem>>, %arg21: memref<64x32xbf16, #tpu.memory_space<vmem>>, %arg22: memref<2x1x32xf32, #tpu.memory_space<vmem>>, %arg23: memref<2x1x32xf32, #tpu.memory_space<vmem>>, %arg24: memref<2x32x96xbf16, #tpu.memory_space<vmem>>, %arg25: memref<2x1x96xf32, #tpu.memory_space<vmem>>, %arg26: memref<2x4x4x4xf32, #tpu.memory_space<vmem>>, %arg27: memref<2x32x32xbf16, #tpu.memory_space<vmem>>, %arg28: memref<2x1x32xf32, #tpu.memory_space<vmem>>, %arg29: memref<2x1x32xf32, #tpu.memory_space<vmem>>, %arg30: memref<2x1x32xf32, #tpu.memory_space<vmem>>, %arg31: memref<2x32x128xbf16, #tpu.memory_space<vmem>>, %arg32: memref<2x1x128xf32, #tpu.memory_space<vmem>>, %arg33: memref<2x128x32xbf16, #tpu.memory_space<vmem>>, %arg34: memref<2x1x32xf32, #tpu.memory_space<vmem>>, %arg35: memref<1x32xf32, #tpu.memory_space<vmem>>, %arg36: memref<1x32xf32, #tpu.memory_space<vmem>>, %arg37: memref<8x32xf32, #tpu.memory_space<vmem>>, %arg38: memref<2x32xf32, #tpu.memory_space<vmem>>) attributes {dimension_semantics = [], scalar_prefetch = 0 : i64, scratch_operands = 0 : i64, tpu.core_type = #tpu.core_type<tc>} {
    %c0 = arith.constant 0 : index
    %c0_0 = arith.constant 0 : index
    %0 = vector.load %arg0[%c0, %c0_0] : memref<32x64xbf16, #tpu.memory_space<vmem>>, vector<32x64xbf16>
    %c0_1 = arith.constant 0 : index
    %c0_2 = arith.constant 0 : index
    %1 = vector.load %arg1[%c0_1, %c0_2] : memref<64x16xbf16, #tpu.memory_space<vmem>>, vector<64x16xbf16>
    %cst = arith.constant dense<0.000000e+00> : vector<32x16xf32>
    %2 = tpu.matmul %0, %1, %cst {dimension_numbers = #tpu.dot_dimension_numbers<[1], [0], [0], [1], [0, 0, 1, 1], [], []>} : vector<32x64xbf16>, vector<64x16xbf16>, vector<32x16xf32> -> vector<32x16xf32>
    %c0_3 = arith.constant 0 : index
    %c0_4 = arith.constant 0 : index
    %3 = vector.load %arg2[%c0_3, %c0_4] : memref<1x16xf32, #tpu.memory_space<vmem>>, vector<1x16xf32>
    %4 = vector.broadcast %3 : vector<1x16xf32> to vector<32x16xf32>
    %5 = arith.addf %2, %4 : vector<32x16xf32>
    %c0_5 = arith.constant 0 : index
    %c0_6 = arith.constant 0 : index
    %6 = vector.load %arg3[%c0_5, %c0_6] : memref<1x16xf32, #tpu.memory_space<vmem>>, vector<1x16xf32>
    %c0_7 = arith.constant 0 : index
    %c0_8 = arith.constant 0 : index
    %7 = vector.load %arg4[%c0_7, %c0_8] : memref<1x16xf32, #tpu.memory_space<vmem>>, vector<1x16xf32>
    %cst_9 = arith.constant dense<0.000000e+00> : vector<32xf32>
    %8 = vector.multi_reduction <add>, %5, %cst_9 [1] : vector<32x16xf32> to vector<32xf32>
    %9 = vector.shape_cast %8 : vector<32xf32> to vector<32x1xf32>
    %cst_10 = arith.constant 1.600000e+01 : f32
    %10 = vector.broadcast %cst_10 : f32 to vector<32x1xf32>
    %11 = arith.divf %9, %10 : vector<32x1xf32>
    %12 = vector.broadcast %11 : vector<32x1xf32> to vector<32x16xf32>
    %13 = arith.subf %5, %12 : vector<32x16xf32>
    %14 = arith.mulf %13, %13 : vector<32x16xf32>
    %cst_11 = arith.constant dense<0.000000e+00> : vector<32xf32>
    %15 = vector.multi_reduction <add>, %14, %cst_11 [1] : vector<32x16xf32> to vector<32xf32>
    %16 = vector.shape_cast %15 : vector<32xf32> to vector<32x1xf32>
    %cst_12 = arith.constant 1.600000e+01 : f32
    %17 = vector.broadcast %cst_12 : f32 to vector<32x1xf32>
    %18 = arith.divf %16, %17 : vector<32x1xf32>
    %cst_13 = arith.constant 9.99999974E-6 : f32
    %19 = vector.broadcast %cst_13 : f32 to vector<32x1xf32>
    %20 = arith.addf %18, %19 : vector<32x1xf32>
    %21 = math.rsqrt %20 : vector<32x1xf32>
    %22 = vector.broadcast %21 : vector<32x1xf32> to vector<32x16xf32>
    %23 = arith.mulf %13, %22 : vector<32x16xf32>
    %24 = vector.broadcast %6 : vector<1x16xf32> to vector<32x16xf32>
    %25 = arith.mulf %23, %24 : vector<32x16xf32>
    %26 = vector.broadcast %7 : vector<1x16xf32> to vector<32x16xf32>
    %27 = arith.addf %25, %26 : vector<32x16xf32>
    %c0_14 = arith.constant 0 : index
    %c0_15 = arith.constant 0 : index
    %c0_16 = arith.constant 0 : index
    %c0_17 = arith.constant 0 : index
    %28 = vector.load %arg9[%c0_14, %c0_15, %c0_16, %c0_17] : memref<2x2x16x16xf32, #tpu.memory_space<vmem>>, vector<1x2x16x16xf32>
    %29 = vector.shape_cast %28 : vector<1x2x16x16xf32> to vector<2x16x16xf32>
    %c0_18 = arith.constant 0 : index
    %c0_19 = arith.constant 0 : index
    %c0_20 = arith.constant 0 : index
    %30 = vector.load %arg5[%c0_18, %c0_19, %c0_20] : memref<2x1x16xf32, #tpu.memory_space<vmem>>, vector<1x1x16xf32>
    %31 = vector.shape_cast %30 : vector<1x1x16xf32> to vector<1x16xf32>
    %c0_21 = arith.constant 0 : index
    %c0_22 = arith.constant 0 : index
    %c0_23 = arith.constant 0 : index
    %32 = vector.load %arg6[%c0_21, %c0_22, %c0_23] : memref<2x1x16xf32, #tpu.memory_space<vmem>>, vector<1x1x16xf32>
    %33 = vector.shape_cast %32 : vector<1x1x16xf32> to vector<1x16xf32>
    %c0_24 = arith.constant 0 : index
    %c0_25 = arith.constant 0 : index
    %c0_26 = arith.constant 0 : index
    %34 = vector.load %arg7[%c0_24, %c0_25, %c0_26] : memref<2x16x48xbf16, #tpu.memory_space<vmem>>, vector<1x16x48xbf16>
    %35 = vector.shape_cast %34 : vector<1x16x48xbf16> to vector<16x48xbf16>
    %c0_27 = arith.constant 0 : index
    %c0_28 = arith.constant 0 : index
    %c0_29 = arith.constant 0 : index
    %36 = vector.load %arg8[%c0_27, %c0_28, %c0_29] : memref<2x1x48xf32, #tpu.memory_space<vmem>>, vector<1x1x48xf32>
    %37 = vector.shape_cast %36 : vector<1x1x48xf32> to vector<1x48xf32>
    %c0_30 = arith.constant 0 : index
    %c0_31 = arith.constant 0 : index
    %c0_32 = arith.constant 0 : index
    %38 = vector.load %arg10[%c0_30, %c0_31, %c0_32] : memref<2x16x16xbf16, #tpu.memory_space<vmem>>, vector<1x16x16xbf16>
    %39 = vector.shape_cast %38 : vector<1x16x16xbf16> to vector<16x16xbf16>
    %c0_33 = arith.constant 0 : index
    %c0_34 = arith.constant 0 : index
    %c0_35 = arith.constant 0 : index
    %40 = vector.load %arg11[%c0_33, %c0_34, %c0_35] : memref<2x1x16xf32, #tpu.memory_space<vmem>>, vector<1x1x16xf32>
    %41 = vector.shape_cast %40 : vector<1x1x16xf32> to vector<1x16xf32>
    %c0_36 = arith.constant 0 : index
    %c0_37 = arith.constant 0 : index
    %c0_38 = arith.constant 0 : index
    %42 = vector.load %arg12[%c0_36, %c0_37, %c0_38] : memref<2x1x16xf32, #tpu.memory_space<vmem>>, vector<1x1x16xf32>
    %43 = vector.shape_cast %42 : vector<1x1x16xf32> to vector<1x16xf32>
    %c0_39 = arith.constant 0 : index
    %c0_40 = arith.constant 0 : index
    %c0_41 = arith.constant 0 : index
    %44 = vector.load %arg13[%c0_39, %c0_40, %c0_41] : memref<2x1x16xf32, #tpu.memory_space<vmem>>, vector<1x1x16xf32>
    %45 = vector.shape_cast %44 : vector<1x1x16xf32> to vector<1x16xf32>
    %c0_42 = arith.constant 0 : index
    %c0_43 = arith.constant 0 : index
    %c0_44 = arith.constant 0 : index
    %46 = vector.load %arg14[%c0_42, %c0_43, %c0_44] : memref<2x16x64xbf16, #tpu.memory_space<vmem>>, vector<1x16x64xbf16>
    %47 = vector.shape_cast %46 : vector<1x16x64xbf16> to vector<16x64xbf16>
    %c0_45 = arith.constant 0 : index
    %c0_46 = arith.constant 0 : index
    %c0_47 = arith.constant 0 : index
    %48 = vector.load %arg15[%c0_45, %c0_46, %c0_47] : memref<2x1x64xf32, #tpu.memory_space<vmem>>, vector<1x1x64xf32>
    %49 = vector.shape_cast %48 : vector<1x1x64xf32> to vector<1x64xf32>
    %c0_48 = arith.constant 0 : index
    %c0_49 = arith.constant 0 : index
    %c0_50 = arith.constant 0 : index
    %50 = vector.load %arg16[%c0_48, %c0_49, %c0_50] : memref<2x64x16xbf16, #tpu.memory_space<vmem>>, vector<1x64x16xbf16>
    %51 = vector.shape_cast %50 : vector<1x64x16xbf16> to vector<64x16xbf16>
    %c0_51 = arith.constant 0 : index
    %c0_52 = arith.constant 0 : index
    %c0_53 = arith.constant 0 : index
    %52 = vector.load %arg17[%c0_51, %c0_52, %c0_53] : memref<2x1x16xf32, #tpu.memory_space<vmem>>, vector<1x1x16xf32>
    %53 = vector.shape_cast %52 : vector<1x1x16xf32> to vector<1x16xf32>
    %cst_54 = arith.constant dense<0.000000e+00> : vector<32xf32>
    %54 = vector.multi_reduction <add>, %27, %cst_54 [1] : vector<32x16xf32> to vector<32xf32>
    %55 = vector.shape_cast %54 : vector<32xf32> to vector<32x1xf32>
    %cst_55 = arith.constant 1.600000e+01 : f32
    %56 = vector.broadcast %cst_55 : f32 to vector<32x1xf32>
    %57 = arith.divf %55, %56 : vector<32x1xf32>
    %58 = vector.broadcast %57 : vector<32x1xf32> to vector<32x16xf32>
    %59 = arith.subf %27, %58 : vector<32x16xf32>
    %60 = arith.mulf %59, %59 : vector<32x16xf32>
    %cst_56 = arith.constant dense<0.000000e+00> : vector<32xf32>
    %61 = vector.multi_reduction <add>, %60, %cst_56 [1] : vector<32x16xf32> to vector<32xf32>
    %62 = vector.shape_cast %61 : vector<32xf32> to vector<32x1xf32>
    %cst_57 = arith.constant 1.600000e+01 : f32
    %63 = vector.broadcast %cst_57 : f32 to vector<32x1xf32>
    %64 = arith.divf %62, %63 : vector<32x1xf32>
    %cst_58 = arith.constant 9.99999974E-6 : f32
    %65 = vector.broadcast %cst_58 : f32 to vector<32x1xf32>
    %66 = arith.addf %64, %65 : vector<32x1xf32>
    %67 = math.rsqrt %66 : vector<32x1xf32>
    %68 = vector.broadcast %67 : vector<32x1xf32> to vector<32x16xf32>
    %69 = arith.mulf %59, %68 : vector<32x16xf32>
    %70 = vector.broadcast %31 : vector<1x16xf32> to vector<32x16xf32>
    %71 = arith.mulf %69, %70 : vector<32x16xf32>
    %72 = vector.broadcast %33 : vector<1x16xf32> to vector<32x16xf32>
    %73 = arith.addf %71, %72 : vector<32x16xf32>
    %74 = arith.truncf %73 : vector<32x16xf32> to vector<32x16xbf16>
    %cst_59 = arith.constant dense<0.000000e+00> : vector<32x48xf32>
    %75 = tpu.matmul %74, %35, %cst_59 {dimension_numbers = #tpu.dot_dimension_numbers<[1], [0], [0], [1], [0, 0, 1, 1], [], []>} : vector<32x16xbf16>, vector<16x48xbf16>, vector<32x48xf32> -> vector<32x48xf32>
    %76 = vector.broadcast %37 : vector<1x48xf32> to vector<32x48xf32>
    %77 = arith.addf %75, %76 : vector<32x48xf32>
    %78 = vector.extract_strided_slice %77 {offsets = [0, 0], sizes = [32, 8], strides = [1, 1]} : vector<32x48xf32> to vector<32x8xf32>
    %79 = vector.shape_cast %78 : vector<32x8xf32> to vector<2x16x8xf32>
    %80 = vector.extract_strided_slice %77 {offsets = [0, 16], sizes = [32, 8], strides = [1, 1]} : vector<32x48xf32> to vector<32x8xf32>
    %81 = vector.shape_cast %80 : vector<32x8xf32> to vector<2x16x8xf32>
    %82 = vector.extract_strided_slice %77 {offsets = [0, 32], sizes = [32, 8], strides = [1, 1]} : vector<32x48xf32> to vector<32x8xf32>
    %83 = vector.shape_cast %82 : vector<32x8xf32> to vector<2x16x8xf32>
    %84 = arith.truncf %79 : vector<2x16x8xf32> to vector<2x16x8xbf16>
    %85 = arith.truncf %81 : vector<2x16x8xf32> to vector<2x16x8xbf16>
    "tpu.trace_start"() <{level = 10 : i32, message = "bnd,bmd->bnm"}> : () -> ()
    %cst_60 = arith.constant dense<0.000000e+00> : vector<2x16x16xf32>
    %86 = tpu.matmul %84, %85, %cst_60 {dimension_numbers = #tpu.dot_dimension_numbers<[2], [2], [1], [1], [0, 0, 0, 1, 1, 1], [0], [0]>} : vector<2x16x8xbf16>, vector<2x16x8xbf16>, vector<2x16x16xf32> -> vector<2x16x16xf32>
    "tpu.trace_stop"() : () -> ()
    %cst_61 = arith.constant 0.353553385 : f32
    %87 = vector.broadcast %cst_61 : f32 to vector<2x16x16xf32>
    %88 = arith.mulf %86, %87 : vector<2x16x16xf32>
    %89 = vector.extract_strided_slice %29 {offsets = [0, 0, 0], sizes = [1, 16, 16], strides = [1, 1, 1]} : vector<2x16x16xf32> to vector<1x16x16xf32>
    %90 = vector.shape_cast %89 : vector<1x16x16xf32> to vector<16x16xf32>
    %91 = vector.shape_cast %90 : vector<16x16xf32> to vector<1x16x16xf32>
    %92 = vector.broadcast %91 : vector<1x16x16xf32> to vector<2x16x16xf32>
    %93 = arith.addf %88, %92 : vector<2x16x16xf32>
    %cst_62 = arith.constant dense<0xFF800000> : vector<2x16xf32>
    %94 = vector.multi_reduction <maximumf>, %93, %cst_62 [2] : vector<2x16x16xf32> to vector<2x16xf32>
    %95 = vector.shape_cast %94 : vector<2x16xf32> to vector<2x16x1xf32>
    %96 = vector.broadcast %95 : vector<2x16x1xf32> to vector<2x16x16xf32>
    %97 = arith.subf %93, %96 : vector<2x16x16xf32>
    %98 = math.exp %97 : vector<2x16x16xf32>
    %cst_63 = arith.constant dense<0.000000e+00> : vector<2x16xf32>
    %99 = vector.multi_reduction <add>, %98, %cst_63 [2] : vector<2x16x16xf32> to vector<2x16xf32>
    %100 = vector.shape_cast %99 : vector<2x16xf32> to vector<2x16x1xf32>
    %101 = tpu.reciprocal %100 {approx = true} : vector<2x16x1xf32> -> vector<2x16x1xf32>
    %102 = vector.broadcast %101 : vector<2x16x1xf32> to vector<2x16x16xf32>
    %103 = arith.mulf %98, %102 : vector<2x16x16xf32>
    %104 = arith.truncf %103 : vector<2x16x16xf32> to vector<2x16x16xbf16>
    %105 = arith.truncf %83 : vector<2x16x8xf32> to vector<2x16x8xbf16>
    "tpu.trace_start"() <{level = 10 : i32, message = "bnm,bmd->bnd"}> : () -> ()
    %cst_64 = arith.constant dense<0.000000e+00> : vector<2x16x8xf32>
    %106 = tpu.matmul %104, %105, %cst_64 {dimension_numbers = #tpu.dot_dimension_numbers<[2], [1], [1], [2], [0, 0, 0, 1, 1, 2], [0], [0]>} : vector<2x16x16xbf16>, vector<2x16x8xbf16>, vector<2x16x8xf32> -> vector<2x16x8xf32>
    "tpu.trace_stop"() : () -> ()
    %107 = vector.shape_cast %106 : vector<2x16x8xf32> to vector<32x8xf32>
    %108 = vector.extract_strided_slice %77 {offsets = [0, 8], sizes = [32, 8], strides = [1, 1]} : vector<32x48xf32> to vector<32x8xf32>
    %109 = vector.shape_cast %108 : vector<32x8xf32> to vector<2x16x8xf32>
    %110 = vector.extract_strided_slice %77 {offsets = [0, 24], sizes = [32, 8], strides = [1, 1]} : vector<32x48xf32> to vector<32x8xf32>
    %111 = vector.shape_cast %110 : vector<32x8xf32> to vector<2x16x8xf32>
    %112 = vector.extract_strided_slice %77 {offsets = [0, 40], sizes = [32, 8], strides = [1, 1]} : vector<32x48xf32> to vector<32x8xf32>
    %113 = vector.shape_cast %112 : vector<32x8xf32> to vector<2x16x8xf32>
    %114 = arith.truncf %109 : vector<2x16x8xf32> to vector<2x16x8xbf16>
    %115 = arith.truncf %111 : vector<2x16x8xf32> to vector<2x16x8xbf16>
    "tpu.trace_start"() <{level = 10 : i32, message = "bnd,bmd->bnm"}> : () -> ()
    %cst_65 = arith.constant dense<0.000000e+00> : vector<2x16x16xf32>
    %116 = tpu.matmul %114, %115, %cst_65 {dimension_numbers = #tpu.dot_dimension_numbers<[2], [2], [1], [1], [0, 0, 0, 1, 1, 1], [0], [0]>} : vector<2x16x8xbf16>, vector<2x16x8xbf16>, vector<2x16x16xf32> -> vector<2x16x16xf32>
    "tpu.trace_stop"() : () -> ()
    %cst_66 = arith.constant 0.353553385 : f32
    %117 = vector.broadcast %cst_66 : f32 to vector<2x16x16xf32>
    %118 = arith.mulf %116, %117 : vector<2x16x16xf32>
    %119 = vector.extract_strided_slice %29 {offsets = [1, 0, 0], sizes = [1, 16, 16], strides = [1, 1, 1]} : vector<2x16x16xf32> to vector<1x16x16xf32>
    %120 = vector.shape_cast %119 : vector<1x16x16xf32> to vector<16x16xf32>
    %121 = vector.shape_cast %120 : vector<16x16xf32> to vector<1x16x16xf32>
    %122 = vector.broadcast %121 : vector<1x16x16xf32> to vector<2x16x16xf32>
    %123 = arith.addf %118, %122 : vector<2x16x16xf32>
    %cst_67 = arith.constant dense<0xFF800000> : vector<2x16xf32>
    %124 = vector.multi_reduction <maximumf>, %123, %cst_67 [2] : vector<2x16x16xf32> to vector<2x16xf32>
    %125 = vector.shape_cast %124 : vector<2x16xf32> to vector<2x16x1xf32>
    %126 = vector.broadcast %125 : vector<2x16x1xf32> to vector<2x16x16xf32>
    %127 = arith.subf %123, %126 : vector<2x16x16xf32>
    %128 = math.exp %127 : vector<2x16x16xf32>
    %cst_68 = arith.constant dense<0.000000e+00> : vector<2x16xf32>
    %129 = vector.multi_reduction <add>, %128, %cst_68 [2] : vector<2x16x16xf32> to vector<2x16xf32>
    %130 = vector.shape_cast %129 : vector<2x16xf32> to vector<2x16x1xf32>
    %131 = tpu.reciprocal %130 {approx = true} : vector<2x16x1xf32> -> vector<2x16x1xf32>
    %132 = vector.broadcast %131 : vector<2x16x1xf32> to vector<2x16x16xf32>
    %133 = arith.mulf %128, %132 : vector<2x16x16xf32>
    %134 = arith.truncf %133 : vector<2x16x16xf32> to vector<2x16x16xbf16>
    %135 = arith.truncf %113 : vector<2x16x8xf32> to vector<2x16x8xbf16>
    "tpu.trace_start"() <{level = 10 : i32, message = "bnm,bmd->bnd"}> : () -> ()
    %cst_69 = arith.constant dense<0.000000e+00> : vector<2x16x8xf32>
    %136 = tpu.matmul %134, %135, %cst_69 {dimension_numbers = #tpu.dot_dimension_numbers<[2], [1], [1], [2], [0, 0, 0, 1, 1, 2], [0], [0]>} : vector<2x16x16xbf16>, vector<2x16x8xbf16>, vector<2x16x8xf32> -> vector<2x16x8xf32>
    "tpu.trace_stop"() : () -> ()
    %137 = vector.shape_cast %136 : vector<2x16x8xf32> to vector<32x8xf32>
    %138 = tpu.concatenate %107, %137 in 1 : vector<32x8xf32>, vector<32x8xf32> -> vector<32x16xf32>
    %139 = arith.truncf %138 : vector<32x16xf32> to vector<32x16xbf16>
    %cst_70 = arith.constant dense<0.000000e+00> : vector<32x16xf32>
    %140 = tpu.matmul %139, %39, %cst_70 {dimension_numbers = #tpu.dot_dimension_numbers<[1], [0], [0], [1], [0, 0, 1, 1], [], []>} : vector<32x16xbf16>, vector<16x16xbf16>, vector<32x16xf32> -> vector<32x16xf32>
    %141 = arith.addf %27, %140 : vector<32x16xf32>
    %142 = vector.broadcast %41 : vector<1x16xf32> to vector<32x16xf32>
    %143 = arith.addf %141, %142 : vector<32x16xf32>
    %cst_71 = arith.constant dense<0.000000e+00> : vector<32xf32>
    %144 = vector.multi_reduction <add>, %143, %cst_71 [1] : vector<32x16xf32> to vector<32xf32>
    %145 = vector.shape_cast %144 : vector<32xf32> to vector<32x1xf32>
    %cst_72 = arith.constant 1.600000e+01 : f32
    %146 = vector.broadcast %cst_72 : f32 to vector<32x1xf32>
    %147 = arith.divf %145, %146 : vector<32x1xf32>
    %148 = vector.broadcast %147 : vector<32x1xf32> to vector<32x16xf32>
    %149 = arith.subf %143, %148 : vector<32x16xf32>
    %150 = arith.mulf %149, %149 : vector<32x16xf32>
    %cst_73 = arith.constant dense<0.000000e+00> : vector<32xf32>
    %151 = vector.multi_reduction <add>, %150, %cst_73 [1] : vector<32x16xf32> to vector<32xf32>
    %152 = vector.shape_cast %151 : vector<32xf32> to vector<32x1xf32>
    %cst_74 = arith.constant 1.600000e+01 : f32
    %153 = vector.broadcast %cst_74 : f32 to vector<32x1xf32>
    %154 = arith.divf %152, %153 : vector<32x1xf32>
    %cst_75 = arith.constant 9.99999974E-6 : f32
    %155 = vector.broadcast %cst_75 : f32 to vector<32x1xf32>
    %156 = arith.addf %154, %155 : vector<32x1xf32>
    %157 = math.rsqrt %156 : vector<32x1xf32>
    %158 = vector.broadcast %157 : vector<32x1xf32> to vector<32x16xf32>
    %159 = arith.mulf %149, %158 : vector<32x16xf32>
    %160 = vector.broadcast %43 : vector<1x16xf32> to vector<32x16xf32>
    %161 = arith.mulf %159, %160 : vector<32x16xf32>
    %162 = vector.broadcast %45 : vector<1x16xf32> to vector<32x16xf32>
    %163 = arith.addf %161, %162 : vector<32x16xf32>
    %164 = arith.truncf %163 : vector<32x16xf32> to vector<32x16xbf16>
    %cst_76 = arith.constant dense<0.000000e+00> : vector<32x64xf32>
    %165 = tpu.matmul %164, %47, %cst_76 {dimension_numbers = #tpu.dot_dimension_numbers<[1], [0], [0], [1], [0, 0, 1, 1], [], []>} : vector<32x16xbf16>, vector<16x64xbf16>, vector<32x64xf32> -> vector<32x64xf32>
    %166 = vector.broadcast %49 : vector<1x64xf32> to vector<32x64xf32>
    %167 = arith.addf %165, %166 : vector<32x64xf32>
    %cst_77 = arith.constant 0.707106769 : f32
    %168 = vector.broadcast %cst_77 : f32 to vector<32x64xf32>
    %169 = arith.mulf %167, %168 : vector<32x64xf32>
    %170 = math.absf %169 : vector<32x64xf32>
    %cst_78 = arith.constant 0.327591091 : f32
    %171 = vector.broadcast %cst_78 : f32 to vector<32x64xf32>
    %172 = arith.mulf %171, %170 : vector<32x64xf32>
    %cst_79 = arith.constant 1.000000e+00 : f32
    %173 = vector.broadcast %cst_79 : f32 to vector<32x64xf32>
    %174 = arith.addf %173, %172 : vector<32x64xf32>
    %cst_80 = arith.constant 1.000000e+00 : f32
    %175 = vector.broadcast %cst_80 : f32 to vector<32x64xf32>
    %176 = arith.divf %175, %174 : vector<32x64xf32>
    %cst_81 = arith.constant 1.06140542 : f32
    %177 = vector.broadcast %cst_81 : f32 to vector<32x64xf32>
    %178 = arith.mulf %177, %176 : vector<32x64xf32>
    %cst_82 = arith.constant -1.45315206 : f32
    %179 = vector.broadcast %cst_82 : f32 to vector<32x64xf32>
    %180 = arith.addf %178, %179 : vector<32x64xf32>
    %181 = arith.mulf %180, %176 : vector<32x64xf32>
    %cst_83 = arith.constant 1.42141378 : f32
    %182 = vector.broadcast %cst_83 : f32 to vector<32x64xf32>
    %183 = arith.addf %181, %182 : vector<32x64xf32>
    %184 = arith.mulf %183, %176 : vector<32x64xf32>
    %cst_84 = arith.constant -0.284496725 : f32
    %185 = vector.broadcast %cst_84 : f32 to vector<32x64xf32>
    %186 = arith.addf %184, %185 : vector<32x64xf32>
    %187 = arith.mulf %186, %176 : vector<32x64xf32>
    %cst_85 = arith.constant 0.254829586 : f32
    %188 = vector.broadcast %cst_85 : f32 to vector<32x64xf32>
    %189 = arith.addf %187, %188 : vector<32x64xf32>
    %190 = arith.mulf %189, %176 : vector<32x64xf32>
    %cst_86 = arith.constant 0.000000e+00 : f32
    %191 = vector.broadcast %cst_86 : f32 to vector<32x64xf32>
    %192 = arith.subf %191, %170 : vector<32x64xf32>
    %193 = arith.mulf %192, %170 : vector<32x64xf32>
    %194 = math.exp %193 : vector<32x64xf32>
    %195 = arith.mulf %190, %194 : vector<32x64xf32>
    %cst_87 = arith.constant 1.000000e+00 : f32
    %196 = vector.broadcast %cst_87 : f32 to vector<32x64xf32>
    %197 = arith.subf %196, %195 : vector<32x64xf32>
    %cst_88 = arith.constant 0.000000e+00 : f32
    %198 = vector.broadcast %cst_88 : f32 to vector<32x64xf32>
    %199 = arith.cmpf olt, %169, %198 : vector<32x64xf32>
    %cst_89 = arith.constant 0.000000e+00 : f32
    %200 = vector.broadcast %cst_89 : f32 to vector<32x64xf32>
    %201 = arith.subf %200, %197 : vector<32x64xf32>
    %202 = arith.select %199, %201, %197 : vector<32x64xi1>, vector<32x64xf32>
    %cst_90 = arith.constant 5.000000e-01 : f32
    %203 = vector.broadcast %cst_90 : f32 to vector<32x64xf32>
    %204 = arith.mulf %203, %167 : vector<32x64xf32>
    %cst_91 = arith.constant 1.000000e+00 : f32
    %205 = vector.broadcast %cst_91 : f32 to vector<32x64xf32>
    %206 = arith.addf %205, %202 : vector<32x64xf32>
    %207 = arith.mulf %204, %206 : vector<32x64xf32>
    %208 = arith.truncf %207 : vector<32x64xf32> to vector<32x64xbf16>
    %cst_92 = arith.constant dense<0.000000e+00> : vector<32x16xf32>
    %209 = tpu.matmul %208, %51, %cst_92 {dimension_numbers = #tpu.dot_dimension_numbers<[1], [0], [0], [1], [0, 0, 1, 1], [], []>} : vector<32x64xbf16>, vector<64x16xbf16>, vector<32x16xf32> -> vector<32x16xf32>
    %210 = arith.addf %143, %209 : vector<32x16xf32>
    %211 = vector.broadcast %53 : vector<1x16xf32> to vector<32x16xf32>
    %212 = arith.addf %210, %211 : vector<32x16xf32>
    %c1 = arith.constant 1 : index
    %c0_93 = arith.constant 0 : index
    %c0_94 = arith.constant 0 : index
    %c0_95 = arith.constant 0 : index
    %213 = vector.load %arg9[%c1, %c0_93, %c0_94, %c0_95] : memref<2x2x16x16xf32, #tpu.memory_space<vmem>>, vector<1x2x16x16xf32>
    %214 = vector.shape_cast %213 : vector<1x2x16x16xf32> to vector<2x16x16xf32>
    %c1_96 = arith.constant 1 : index
    %c0_97 = arith.constant 0 : index
    %c0_98 = arith.constant 0 : index
    %215 = vector.load %arg5[%c1_96, %c0_97, %c0_98] : memref<2x1x16xf32, #tpu.memory_space<vmem>>, vector<1x1x16xf32>
    %216 = vector.shape_cast %215 : vector<1x1x16xf32> to vector<1x16xf32>
    %c1_99 = arith.constant 1 : index
    %c0_100 = arith.constant 0 : index
    %c0_101 = arith.constant 0 : index
    %217 = vector.load %arg6[%c1_99, %c0_100, %c0_101] : memref<2x1x16xf32, #tpu.memory_space<vmem>>, vector<1x1x16xf32>
    %218 = vector.shape_cast %217 : vector<1x1x16xf32> to vector<1x16xf32>
    %c1_102 = arith.constant 1 : index
    %c0_103 = arith.constant 0 : index
    %c0_104 = arith.constant 0 : index
    %219 = vector.load %arg7[%c1_102, %c0_103, %c0_104] : memref<2x16x48xbf16, #tpu.memory_space<vmem>>, vector<1x16x48xbf16>
    %220 = vector.shape_cast %219 : vector<1x16x48xbf16> to vector<16x48xbf16>
    %c1_105 = arith.constant 1 : index
    %c0_106 = arith.constant 0 : index
    %c0_107 = arith.constant 0 : index
    %221 = vector.load %arg8[%c1_105, %c0_106, %c0_107] : memref<2x1x48xf32, #tpu.memory_space<vmem>>, vector<1x1x48xf32>
    %222 = vector.shape_cast %221 : vector<1x1x48xf32> to vector<1x48xf32>
    %c1_108 = arith.constant 1 : index
    %c0_109 = arith.constant 0 : index
    %c0_110 = arith.constant 0 : index
    %223 = vector.load %arg10[%c1_108, %c0_109, %c0_110] : memref<2x16x16xbf16, #tpu.memory_space<vmem>>, vector<1x16x16xbf16>
    %224 = vector.shape_cast %223 : vector<1x16x16xbf16> to vector<16x16xbf16>
    %c1_111 = arith.constant 1 : index
    %c0_112 = arith.constant 0 : index
    %c0_113 = arith.constant 0 : index
    %225 = vector.load %arg11[%c1_111, %c0_112, %c0_113] : memref<2x1x16xf32, #tpu.memory_space<vmem>>, vector<1x1x16xf32>
    %226 = vector.shape_cast %225 : vector<1x1x16xf32> to vector<1x16xf32>
    %c1_114 = arith.constant 1 : index
    %c0_115 = arith.constant 0 : index
    %c0_116 = arith.constant 0 : index
    %227 = vector.load %arg12[%c1_114, %c0_115, %c0_116] : memref<2x1x16xf32, #tpu.memory_space<vmem>>, vector<1x1x16xf32>
    %228 = vector.shape_cast %227 : vector<1x1x16xf32> to vector<1x16xf32>
    %c1_117 = arith.constant 1 : index
    %c0_118 = arith.constant 0 : index
    %c0_119 = arith.constant 0 : index
    %229 = vector.load %arg13[%c1_117, %c0_118, %c0_119] : memref<2x1x16xf32, #tpu.memory_space<vmem>>, vector<1x1x16xf32>
    %230 = vector.shape_cast %229 : vector<1x1x16xf32> to vector<1x16xf32>
    %c1_120 = arith.constant 1 : index
    %c0_121 = arith.constant 0 : index
    %c0_122 = arith.constant 0 : index
    %231 = vector.load %arg14[%c1_120, %c0_121, %c0_122] : memref<2x16x64xbf16, #tpu.memory_space<vmem>>, vector<1x16x64xbf16>
    %232 = vector.shape_cast %231 : vector<1x16x64xbf16> to vector<16x64xbf16>
    %c1_123 = arith.constant 1 : index
    %c0_124 = arith.constant 0 : index
    %c0_125 = arith.constant 0 : index
    %233 = vector.load %arg15[%c1_123, %c0_124, %c0_125] : memref<2x1x64xf32, #tpu.memory_space<vmem>>, vector<1x1x64xf32>
    %234 = vector.shape_cast %233 : vector<1x1x64xf32> to vector<1x64xf32>
    %c1_126 = arith.constant 1 : index
    %c0_127 = arith.constant 0 : index
    %c0_128 = arith.constant 0 : index
    %235 = vector.load %arg16[%c1_126, %c0_127, %c0_128] : memref<2x64x16xbf16, #tpu.memory_space<vmem>>, vector<1x64x16xbf16>
    %236 = vector.shape_cast %235 : vector<1x64x16xbf16> to vector<64x16xbf16>
    %c1_129 = arith.constant 1 : index
    %c0_130 = arith.constant 0 : index
    %c0_131 = arith.constant 0 : index
    %237 = vector.load %arg17[%c1_129, %c0_130, %c0_131] : memref<2x1x16xf32, #tpu.memory_space<vmem>>, vector<1x1x16xf32>
    %238 = vector.shape_cast %237 : vector<1x1x16xf32> to vector<1x16xf32>
    %cst_132 = arith.constant dense<0.000000e+00> : vector<32xf32>
    %239 = vector.multi_reduction <add>, %212, %cst_132 [1] : vector<32x16xf32> to vector<32xf32>
    %240 = vector.shape_cast %239 : vector<32xf32> to vector<32x1xf32>
    %cst_133 = arith.constant 1.600000e+01 : f32
    %241 = vector.broadcast %cst_133 : f32 to vector<32x1xf32>
    %242 = arith.divf %240, %241 : vector<32x1xf32>
    %243 = vector.broadcast %242 : vector<32x1xf32> to vector<32x16xf32>
    %244 = arith.subf %212, %243 : vector<32x16xf32>
    %245 = arith.mulf %244, %244 : vector<32x16xf32>
    %cst_134 = arith.constant dense<0.000000e+00> : vector<32xf32>
    %246 = vector.multi_reduction <add>, %245, %cst_134 [1] : vector<32x16xf32> to vector<32xf32>
    %247 = vector.shape_cast %246 : vector<32xf32> to vector<32x1xf32>
    %cst_135 = arith.constant 1.600000e+01 : f32
    %248 = vector.broadcast %cst_135 : f32 to vector<32x1xf32>
    %249 = arith.divf %247, %248 : vector<32x1xf32>
    %cst_136 = arith.constant 9.99999974E-6 : f32
    %250 = vector.broadcast %cst_136 : f32 to vector<32x1xf32>
    %251 = arith.addf %249, %250 : vector<32x1xf32>
    %252 = math.rsqrt %251 : vector<32x1xf32>
    %253 = vector.broadcast %252 : vector<32x1xf32> to vector<32x16xf32>
    %254 = arith.mulf %244, %253 : vector<32x16xf32>
    %255 = vector.broadcast %216 : vector<1x16xf32> to vector<32x16xf32>
    %256 = arith.mulf %254, %255 : vector<32x16xf32>
    %257 = vector.broadcast %218 : vector<1x16xf32> to vector<32x16xf32>
    %258 = arith.addf %256, %257 : vector<32x16xf32>
    %259 = arith.truncf %258 : vector<32x16xf32> to vector<32x16xbf16>
    %cst_137 = arith.constant dense<0.000000e+00> : vector<32x48xf32>
    %260 = tpu.matmul %259, %220, %cst_137 {dimension_numbers = #tpu.dot_dimension_numbers<[1], [0], [0], [1], [0, 0, 1, 1], [], []>} : vector<32x16xbf16>, vector<16x48xbf16>, vector<32x48xf32> -> vector<32x48xf32>
    %261 = vector.broadcast %222 : vector<1x48xf32> to vector<32x48xf32>
    %262 = arith.addf %260, %261 : vector<32x48xf32>
    %263 = vector.extract_strided_slice %262 {offsets = [0, 0], sizes = [32, 8], strides = [1, 1]} : vector<32x48xf32> to vector<32x8xf32>
    %264 = vector.shape_cast %263 : vector<32x8xf32> to vector<2x16x8xf32>
    %265 = vector.extract_strided_slice %262 {offsets = [0, 16], sizes = [32, 8], strides = [1, 1]} : vector<32x48xf32> to vector<32x8xf32>
    %266 = vector.shape_cast %265 : vector<32x8xf32> to vector<2x16x8xf32>
    %267 = vector.extract_strided_slice %262 {offsets = [0, 32], sizes = [32, 8], strides = [1, 1]} : vector<32x48xf32> to vector<32x8xf32>
    %268 = vector.shape_cast %267 : vector<32x8xf32> to vector<2x16x8xf32>
    %269 = arith.truncf %264 : vector<2x16x8xf32> to vector<2x16x8xbf16>
    %270 = arith.truncf %266 : vector<2x16x8xf32> to vector<2x16x8xbf16>
    "tpu.trace_start"() <{level = 10 : i32, message = "bnd,bmd->bnm"}> : () -> ()
    %cst_138 = arith.constant dense<0.000000e+00> : vector<2x16x16xf32>
    %271 = tpu.matmul %269, %270, %cst_138 {dimension_numbers = #tpu.dot_dimension_numbers<[2], [2], [1], [1], [0, 0, 0, 1, 1, 1], [0], [0]>} : vector<2x16x8xbf16>, vector<2x16x8xbf16>, vector<2x16x16xf32> -> vector<2x16x16xf32>
    "tpu.trace_stop"() : () -> ()
    %cst_139 = arith.constant 0.353553385 : f32
    %272 = vector.broadcast %cst_139 : f32 to vector<2x16x16xf32>
    %273 = arith.mulf %271, %272 : vector<2x16x16xf32>
    %274 = vector.extract_strided_slice %214 {offsets = [0, 0, 0], sizes = [1, 16, 16], strides = [1, 1, 1]} : vector<2x16x16xf32> to vector<1x16x16xf32>
    %275 = vector.shape_cast %274 : vector<1x16x16xf32> to vector<16x16xf32>
    %276 = vector.shape_cast %275 : vector<16x16xf32> to vector<1x16x16xf32>
    %277 = vector.broadcast %276 : vector<1x16x16xf32> to vector<2x16x16xf32>
    %278 = arith.addf %273, %277 : vector<2x16x16xf32>
    %cst_140 = arith.constant dense<0xFF800000> : vector<2x16xf32>
    %279 = vector.multi_reduction <maximumf>, %278, %cst_140 [2] : vector<2x16x16xf32> to vector<2x16xf32>
    %280 = vector.shape_cast %279 : vector<2x16xf32> to vector<2x16x1xf32>
    %281 = vector.broadcast %280 : vector<2x16x1xf32> to vector<2x16x16xf32>
    %282 = arith.subf %278, %281 : vector<2x16x16xf32>
    %283 = math.exp %282 : vector<2x16x16xf32>
    %cst_141 = arith.constant dense<0.000000e+00> : vector<2x16xf32>
    %284 = vector.multi_reduction <add>, %283, %cst_141 [2] : vector<2x16x16xf32> to vector<2x16xf32>
    %285 = vector.shape_cast %284 : vector<2x16xf32> to vector<2x16x1xf32>
    %286 = tpu.reciprocal %285 {approx = true} : vector<2x16x1xf32> -> vector<2x16x1xf32>
    %287 = vector.broadcast %286 : vector<2x16x1xf32> to vector<2x16x16xf32>
    %288 = arith.mulf %283, %287 : vector<2x16x16xf32>
    %289 = arith.truncf %288 : vector<2x16x16xf32> to vector<2x16x16xbf16>
    %290 = arith.truncf %268 : vector<2x16x8xf32> to vector<2x16x8xbf16>
    "tpu.trace_start"() <{level = 10 : i32, message = "bnm,bmd->bnd"}> : () -> ()
    %cst_142 = arith.constant dense<0.000000e+00> : vector<2x16x8xf32>
    %291 = tpu.matmul %289, %290, %cst_142 {dimension_numbers = #tpu.dot_dimension_numbers<[2], [1], [1], [2], [0, 0, 0, 1, 1, 2], [0], [0]>} : vector<2x16x16xbf16>, vector<2x16x8xbf16>, vector<2x16x8xf32> -> vector<2x16x8xf32>
    "tpu.trace_stop"() : () -> ()
    %292 = vector.shape_cast %291 : vector<2x16x8xf32> to vector<32x8xf32>
    %293 = vector.extract_strided_slice %262 {offsets = [0, 8], sizes = [32, 8], strides = [1, 1]} : vector<32x48xf32> to vector<32x8xf32>
    %294 = vector.shape_cast %293 : vector<32x8xf32> to vector<2x16x8xf32>
    %295 = vector.extract_strided_slice %262 {offsets = [0, 24], sizes = [32, 8], strides = [1, 1]} : vector<32x48xf32> to vector<32x8xf32>
    %296 = vector.shape_cast %295 : vector<32x8xf32> to vector<2x16x8xf32>
    %297 = vector.extract_strided_slice %262 {offsets = [0, 40], sizes = [32, 8], strides = [1, 1]} : vector<32x48xf32> to vector<32x8xf32>
    %298 = vector.shape_cast %297 : vector<32x8xf32> to vector<2x16x8xf32>
    %299 = arith.truncf %294 : vector<2x16x8xf32> to vector<2x16x8xbf16>
    %300 = arith.truncf %296 : vector<2x16x8xf32> to vector<2x16x8xbf16>
    "tpu.trace_start"() <{level = 10 : i32, message = "bnd,bmd->bnm"}> : () -> ()
    %cst_143 = arith.constant dense<0.000000e+00> : vector<2x16x16xf32>
    %301 = tpu.matmul %299, %300, %cst_143 {dimension_numbers = #tpu.dot_dimension_numbers<[2], [2], [1], [1], [0, 0, 0, 1, 1, 1], [0], [0]>} : vector<2x16x8xbf16>, vector<2x16x8xbf16>, vector<2x16x16xf32> -> vector<2x16x16xf32>
    "tpu.trace_stop"() : () -> ()
    %cst_144 = arith.constant 0.353553385 : f32
    %302 = vector.broadcast %cst_144 : f32 to vector<2x16x16xf32>
    %303 = arith.mulf %301, %302 : vector<2x16x16xf32>
    %304 = vector.extract_strided_slice %214 {offsets = [1, 0, 0], sizes = [1, 16, 16], strides = [1, 1, 1]} : vector<2x16x16xf32> to vector<1x16x16xf32>
    %305 = vector.shape_cast %304 : vector<1x16x16xf32> to vector<16x16xf32>
    %306 = vector.shape_cast %305 : vector<16x16xf32> to vector<1x16x16xf32>
    %307 = vector.broadcast %306 : vector<1x16x16xf32> to vector<2x16x16xf32>
    %308 = arith.addf %303, %307 : vector<2x16x16xf32>
    %cst_145 = arith.constant dense<0xFF800000> : vector<2x16xf32>
    %309 = vector.multi_reduction <maximumf>, %308, %cst_145 [2] : vector<2x16x16xf32> to vector<2x16xf32>
    %310 = vector.shape_cast %309 : vector<2x16xf32> to vector<2x16x1xf32>
    %311 = vector.broadcast %310 : vector<2x16x1xf32> to vector<2x16x16xf32>
    %312 = arith.subf %308, %311 : vector<2x16x16xf32>
    %313 = math.exp %312 : vector<2x16x16xf32>
    %cst_146 = arith.constant dense<0.000000e+00> : vector<2x16xf32>
    %314 = vector.multi_reduction <add>, %313, %cst_146 [2] : vector<2x16x16xf32> to vector<2x16xf32>
    %315 = vector.shape_cast %314 : vector<2x16xf32> to vector<2x16x1xf32>
    %316 = tpu.reciprocal %315 {approx = true} : vector<2x16x1xf32> -> vector<2x16x1xf32>
    %317 = vector.broadcast %316 : vector<2x16x1xf32> to vector<2x16x16xf32>
    %318 = arith.mulf %313, %317 : vector<2x16x16xf32>
    %319 = arith.truncf %318 : vector<2x16x16xf32> to vector<2x16x16xbf16>
    %320 = arith.truncf %298 : vector<2x16x8xf32> to vector<2x16x8xbf16>
    "tpu.trace_start"() <{level = 10 : i32, message = "bnm,bmd->bnd"}> : () -> ()
    %cst_147 = arith.constant dense<0.000000e+00> : vector<2x16x8xf32>
    %321 = tpu.matmul %319, %320, %cst_147 {dimension_numbers = #tpu.dot_dimension_numbers<[2], [1], [1], [2], [0, 0, 0, 1, 1, 2], [0], [0]>} : vector<2x16x16xbf16>, vector<2x16x8xbf16>, vector<2x16x8xf32> -> vector<2x16x8xf32>
    "tpu.trace_stop"() : () -> ()
    %322 = vector.shape_cast %321 : vector<2x16x8xf32> to vector<32x8xf32>
    %323 = tpu.concatenate %292, %322 in 1 : vector<32x8xf32>, vector<32x8xf32> -> vector<32x16xf32>
    %324 = arith.truncf %323 : vector<32x16xf32> to vector<32x16xbf16>
    %cst_148 = arith.constant dense<0.000000e+00> : vector<32x16xf32>
    %325 = tpu.matmul %324, %224, %cst_148 {dimension_numbers = #tpu.dot_dimension_numbers<[1], [0], [0], [1], [0, 0, 1, 1], [], []>} : vector<32x16xbf16>, vector<16x16xbf16>, vector<32x16xf32> -> vector<32x16xf32>
    %326 = arith.addf %212, %325 : vector<32x16xf32>
    %327 = vector.broadcast %226 : vector<1x16xf32> to vector<32x16xf32>
    %328 = arith.addf %326, %327 : vector<32x16xf32>
    %cst_149 = arith.constant dense<0.000000e+00> : vector<32xf32>
    %329 = vector.multi_reduction <add>, %328, %cst_149 [1] : vector<32x16xf32> to vector<32xf32>
    %330 = vector.shape_cast %329 : vector<32xf32> to vector<32x1xf32>
    %cst_150 = arith.constant 1.600000e+01 : f32
    %331 = vector.broadcast %cst_150 : f32 to vector<32x1xf32>
    %332 = arith.divf %330, %331 : vector<32x1xf32>
    %333 = vector.broadcast %332 : vector<32x1xf32> to vector<32x16xf32>
    %334 = arith.subf %328, %333 : vector<32x16xf32>
    %335 = arith.mulf %334, %334 : vector<32x16xf32>
    %cst_151 = arith.constant dense<0.000000e+00> : vector<32xf32>
    %336 = vector.multi_reduction <add>, %335, %cst_151 [1] : vector<32x16xf32> to vector<32xf32>
    %337 = vector.shape_cast %336 : vector<32xf32> to vector<32x1xf32>
    %cst_152 = arith.constant 1.600000e+01 : f32
    %338 = vector.broadcast %cst_152 : f32 to vector<32x1xf32>
    %339 = arith.divf %337, %338 : vector<32x1xf32>
    %cst_153 = arith.constant 9.99999974E-6 : f32
    %340 = vector.broadcast %cst_153 : f32 to vector<32x1xf32>
    %341 = arith.addf %339, %340 : vector<32x1xf32>
    %342 = math.rsqrt %341 : vector<32x1xf32>
    %343 = vector.broadcast %342 : vector<32x1xf32> to vector<32x16xf32>
    %344 = arith.mulf %334, %343 : vector<32x16xf32>
    %345 = vector.broadcast %228 : vector<1x16xf32> to vector<32x16xf32>
    %346 = arith.mulf %344, %345 : vector<32x16xf32>
    %347 = vector.broadcast %230 : vector<1x16xf32> to vector<32x16xf32>
    %348 = arith.addf %346, %347 : vector<32x16xf32>
    %349 = arith.truncf %348 : vector<32x16xf32> to vector<32x16xbf16>
    %cst_154 = arith.constant dense<0.000000e+00> : vector<32x64xf32>
    %350 = tpu.matmul %349, %232, %cst_154 {dimension_numbers = #tpu.dot_dimension_numbers<[1], [0], [0], [1], [0, 0, 1, 1], [], []>} : vector<32x16xbf16>, vector<16x64xbf16>, vector<32x64xf32> -> vector<32x64xf32>
    %351 = vector.broadcast %234 : vector<1x64xf32> to vector<32x64xf32>
    %352 = arith.addf %350, %351 : vector<32x64xf32>
    %cst_155 = arith.constant 0.707106769 : f32
    %353 = vector.broadcast %cst_155 : f32 to vector<32x64xf32>
    %354 = arith.mulf %352, %353 : vector<32x64xf32>
    %355 = math.absf %354 : vector<32x64xf32>
    %cst_156 = arith.constant 0.327591091 : f32
    %356 = vector.broadcast %cst_156 : f32 to vector<32x64xf32>
    %357 = arith.mulf %356, %355 : vector<32x64xf32>
    %cst_157 = arith.constant 1.000000e+00 : f32
    %358 = vector.broadcast %cst_157 : f32 to vector<32x64xf32>
    %359 = arith.addf %358, %357 : vector<32x64xf32>
    %cst_158 = arith.constant 1.000000e+00 : f32
    %360 = vector.broadcast %cst_158 : f32 to vector<32x64xf32>
    %361 = arith.divf %360, %359 : vector<32x64xf32>
    %cst_159 = arith.constant 1.06140542 : f32
    %362 = vector.broadcast %cst_159 : f32 to vector<32x64xf32>
    %363 = arith.mulf %362, %361 : vector<32x64xf32>
    %cst_160 = arith.constant -1.45315206 : f32
    %364 = vector.broadcast %cst_160 : f32 to vector<32x64xf32>
    %365 = arith.addf %363, %364 : vector<32x64xf32>
    %366 = arith.mulf %365, %361 : vector<32x64xf32>
    %cst_161 = arith.constant 1.42141378 : f32
    %367 = vector.broadcast %cst_161 : f32 to vector<32x64xf32>
    %368 = arith.addf %366, %367 : vector<32x64xf32>
    %369 = arith.mulf %368, %361 : vector<32x64xf32>
    %cst_162 = arith.constant -0.284496725 : f32
    %370 = vector.broadcast %cst_162 : f32 to vector<32x64xf32>
    %371 = arith.addf %369, %370 : vector<32x64xf32>
    %372 = arith.mulf %371, %361 : vector<32x64xf32>
    %cst_163 = arith.constant 0.254829586 : f32
    %373 = vector.broadcast %cst_163 : f32 to vector<32x64xf32>
    %374 = arith.addf %372, %373 : vector<32x64xf32>
    %375 = arith.mulf %374, %361 : vector<32x64xf32>
    %cst_164 = arith.constant 0.000000e+00 : f32
    %376 = vector.broadcast %cst_164 : f32 to vector<32x64xf32>
    %377 = arith.subf %376, %355 : vector<32x64xf32>
    %378 = arith.mulf %377, %355 : vector<32x64xf32>
    %379 = math.exp %378 : vector<32x64xf32>
    %380 = arith.mulf %375, %379 : vector<32x64xf32>
    %cst_165 = arith.constant 1.000000e+00 : f32
    %381 = vector.broadcast %cst_165 : f32 to vector<32x64xf32>
    %382 = arith.subf %381, %380 : vector<32x64xf32>
    %cst_166 = arith.constant 0.000000e+00 : f32
    %383 = vector.broadcast %cst_166 : f32 to vector<32x64xf32>
    %384 = arith.cmpf olt, %354, %383 : vector<32x64xf32>
    %cst_167 = arith.constant 0.000000e+00 : f32
    %385 = vector.broadcast %cst_167 : f32 to vector<32x64xf32>
    %386 = arith.subf %385, %382 : vector<32x64xf32>
    %387 = arith.select %384, %386, %382 : vector<32x64xi1>, vector<32x64xf32>
    %cst_168 = arith.constant 5.000000e-01 : f32
    %388 = vector.broadcast %cst_168 : f32 to vector<32x64xf32>
    %389 = arith.mulf %388, %352 : vector<32x64xf32>
    %cst_169 = arith.constant 1.000000e+00 : f32
    %390 = vector.broadcast %cst_169 : f32 to vector<32x64xf32>
    %391 = arith.addf %390, %387 : vector<32x64xf32>
    %392 = arith.mulf %389, %391 : vector<32x64xf32>
    %393 = arith.truncf %392 : vector<32x64xf32> to vector<32x64xbf16>
    %cst_170 = arith.constant dense<0.000000e+00> : vector<32x16xf32>
    %394 = tpu.matmul %393, %236, %cst_170 {dimension_numbers = #tpu.dot_dimension_numbers<[1], [0], [0], [1], [0, 0, 1, 1], [], []>} : vector<32x64xbf16>, vector<64x16xbf16>, vector<32x16xf32> -> vector<32x16xf32>
    %395 = arith.addf %328, %394 : vector<32x16xf32>
    %396 = vector.broadcast %238 : vector<1x16xf32> to vector<32x16xf32>
    %397 = arith.addf %395, %396 : vector<32x16xf32>
    %c0_171 = arith.constant 0 : index
    %c0_172 = arith.constant 0 : index
    %c0_173 = arith.constant 0 : index
    %398 = vector.load %arg18[%c0_171, %c0_172, %c0_173] : memref<4x8x32xf32, #tpu.memory_space<vmem>>, vector<4x8x32xf32>
    %399 = vector.extract_strided_slice %398 {offsets = [0, 0, 0], sizes = [1, 8, 32], strides = [1, 1, 1]} : vector<4x8x32xf32> to vector<1x8x32xf32>
    %400 = vector.shape_cast %399 : vector<1x8x32xf32> to vector<8x32xf32>
    %cst_174 = arith.constant dense<0.000000e+00> : vector<8x16xf32>
    %401 = tpu.matmul %400, %397, %cst_174 {dimension_numbers = #tpu.dot_dimension_numbers<[1], [0], [0], [1], [0, 0, 1, 1], [], []>} : vector<8x32xf32>, vector<32x16xf32>, vector<8x16xf32> -> vector<8x16xf32>
    %402 = vector.extract_strided_slice %398 {offsets = [1, 0, 0], sizes = [1, 8, 32], strides = [1, 1, 1]} : vector<4x8x32xf32> to vector<1x8x32xf32>
    %403 = vector.shape_cast %402 : vector<1x8x32xf32> to vector<8x32xf32>
    %cst_175 = arith.constant dense<0.000000e+00> : vector<8x16xf32>
    %404 = tpu.matmul %403, %397, %cst_175 {dimension_numbers = #tpu.dot_dimension_numbers<[1], [0], [0], [1], [0, 0, 1, 1], [], []>} : vector<8x32xf32>, vector<32x16xf32>, vector<8x16xf32> -> vector<8x16xf32>
    %405 = vector.extract_strided_slice %398 {offsets = [2, 0, 0], sizes = [1, 8, 32], strides = [1, 1, 1]} : vector<4x8x32xf32> to vector<1x8x32xf32>
    %406 = vector.shape_cast %405 : vector<1x8x32xf32> to vector<8x32xf32>
    %cst_176 = arith.constant dense<0.000000e+00> : vector<8x16xf32>
    %407 = tpu.matmul %406, %397, %cst_176 {dimension_numbers = #tpu.dot_dimension_numbers<[1], [0], [0], [1], [0, 0, 1, 1], [], []>} : vector<8x32xf32>, vector<32x16xf32>, vector<8x16xf32> -> vector<8x16xf32>
    %408 = vector.extract_strided_slice %398 {offsets = [3, 0, 0], sizes = [1, 8, 32], strides = [1, 1, 1]} : vector<4x8x32xf32> to vector<1x8x32xf32>
    %409 = vector.shape_cast %408 : vector<1x8x32xf32> to vector<8x32xf32>
    %cst_177 = arith.constant dense<0.000000e+00> : vector<8x16xf32>
    %410 = tpu.matmul %409, %397, %cst_177 {dimension_numbers = #tpu.dot_dimension_numbers<[1], [0], [0], [1], [0, 0, 1, 1], [], []>} : vector<8x32xf32>, vector<32x16xf32>, vector<8x16xf32> -> vector<8x16xf32>
    %411 = tpu.concatenate %401, %404, %407, %410 in 1 : vector<8x16xf32>, vector<8x16xf32>, vector<8x16xf32>, vector<8x16xf32> -> vector<8x64xf32>
    %c0_178 = arith.constant 0 : index
    %c0_179 = arith.constant 0 : index
    %412 = vector.load %arg19[%c0_178, %c0_179] : memref<1x64xf32, #tpu.memory_space<vmem>>, vector<1x64xf32>
    %c0_180 = arith.constant 0 : index
    %c0_181 = arith.constant 0 : index
    %413 = vector.load %arg20[%c0_180, %c0_181] : memref<1x64xf32, #tpu.memory_space<vmem>>, vector<1x64xf32>
    %cst_182 = arith.constant dense<0.000000e+00> : vector<8xf32>
    %414 = vector.multi_reduction <add>, %411, %cst_182 [1] : vector<8x64xf32> to vector<8xf32>
    %415 = vector.shape_cast %414 : vector<8xf32> to vector<8x1xf32>
    %cst_183 = arith.constant 6.400000e+01 : f32
    %416 = vector.broadcast %cst_183 : f32 to vector<8x1xf32>
    %417 = arith.divf %415, %416 : vector<8x1xf32>
    %418 = vector.broadcast %417 : vector<8x1xf32> to vector<8x64xf32>
    %419 = arith.subf %411, %418 : vector<8x64xf32>
    %420 = arith.mulf %419, %419 : vector<8x64xf32>
    %cst_184 = arith.constant dense<0.000000e+00> : vector<8xf32>
    %421 = vector.multi_reduction <add>, %420, %cst_184 [1] : vector<8x64xf32> to vector<8xf32>
    %422 = vector.shape_cast %421 : vector<8xf32> to vector<8x1xf32>
    %cst_185 = arith.constant 6.400000e+01 : f32
    %423 = vector.broadcast %cst_185 : f32 to vector<8x1xf32>
    %424 = arith.divf %422, %423 : vector<8x1xf32>
    %cst_186 = arith.constant 9.99999974E-6 : f32
    %425 = vector.broadcast %cst_186 : f32 to vector<8x1xf32>
    %426 = arith.addf %424, %425 : vector<8x1xf32>
    %427 = math.rsqrt %426 : vector<8x1xf32>
    %428 = vector.broadcast %427 : vector<8x1xf32> to vector<8x64xf32>
    %429 = arith.mulf %419, %428 : vector<8x64xf32>
    %430 = vector.broadcast %412 : vector<1x64xf32> to vector<8x64xf32>
    %431 = arith.mulf %429, %430 : vector<8x64xf32>
    %432 = vector.broadcast %413 : vector<1x64xf32> to vector<8x64xf32>
    %433 = arith.addf %431, %432 : vector<8x64xf32>
    %c0_187 = arith.constant 0 : index
    %c0_188 = arith.constant 0 : index
    %434 = vector.load %arg21[%c0_187, %c0_188] : memref<64x32xbf16, #tpu.memory_space<vmem>>, vector<64x32xbf16>
    %435 = arith.truncf %433 : vector<8x64xf32> to vector<8x64xbf16>
    %cst_189 = arith.constant dense<0.000000e+00> : vector<8x32xf32>
    %436 = tpu.matmul %435, %434, %cst_189 {dimension_numbers = #tpu.dot_dimension_numbers<[1], [0], [0], [1], [0, 0, 1, 1], [], []>} : vector<8x64xbf16>, vector<64x32xbf16>, vector<8x32xf32> -> vector<8x32xf32>
    %c0_190 = arith.constant 0 : index
    %c0_191 = arith.constant 0 : index
    %c0_192 = arith.constant 0 : index
    %c0_193 = arith.constant 0 : index
    %437 = vector.load %arg26[%c0_190, %c0_191, %c0_192, %c0_193] : memref<2x4x4x4xf32, #tpu.memory_space<vmem>>, vector<1x4x4x4xf32>
    %438 = vector.shape_cast %437 : vector<1x4x4x4xf32> to vector<4x4x4xf32>
    %c0_194 = arith.constant 0 : index
    %c0_195 = arith.constant 0 : index
    %c0_196 = arith.constant 0 : index
    %439 = vector.load %arg22[%c0_194, %c0_195, %c0_196] : memref<2x1x32xf32, #tpu.memory_space<vmem>>, vector<1x1x32xf32>
    %440 = vector.shape_cast %439 : vector<1x1x32xf32> to vector<1x32xf32>
    %c0_197 = arith.constant 0 : index
    %c0_198 = arith.constant 0 : index
    %c0_199 = arith.constant 0 : index
    %441 = vector.load %arg23[%c0_197, %c0_198, %c0_199] : memref<2x1x32xf32, #tpu.memory_space<vmem>>, vector<1x1x32xf32>
    %442 = vector.shape_cast %441 : vector<1x1x32xf32> to vector<1x32xf32>
    %c0_200 = arith.constant 0 : index
    %c0_201 = arith.constant 0 : index
    %c0_202 = arith.constant 0 : index
    %443 = vector.load %arg24[%c0_200, %c0_201, %c0_202] : memref<2x32x96xbf16, #tpu.memory_space<vmem>>, vector<1x32x96xbf16>
    %444 = vector.shape_cast %443 : vector<1x32x96xbf16> to vector<32x96xbf16>
    %c0_203 = arith.constant 0 : index
    %c0_204 = arith.constant 0 : index
    %c0_205 = arith.constant 0 : index
    %445 = vector.load %arg25[%c0_203, %c0_204, %c0_205] : memref<2x1x96xf32, #tpu.memory_space<vmem>>, vector<1x1x96xf32>
    %446 = vector.shape_cast %445 : vector<1x1x96xf32> to vector<1x96xf32>
    %c0_206 = arith.constant 0 : index
    %c0_207 = arith.constant 0 : index
    %c0_208 = arith.constant 0 : index
    %447 = vector.load %arg27[%c0_206, %c0_207, %c0_208] : memref<2x32x32xbf16, #tpu.memory_space<vmem>>, vector<1x32x32xbf16>
    %448 = vector.shape_cast %447 : vector<1x32x32xbf16> to vector<32x32xbf16>
    %c0_209 = arith.constant 0 : index
    %c0_210 = arith.constant 0 : index
    %c0_211 = arith.constant 0 : index
    %449 = vector.load %arg28[%c0_209, %c0_210, %c0_211] : memref<2x1x32xf32, #tpu.memory_space<vmem>>, vector<1x1x32xf32>
    %450 = vector.shape_cast %449 : vector<1x1x32xf32> to vector<1x32xf32>
    %c0_212 = arith.constant 0 : index
    %c0_213 = arith.constant 0 : index
    %c0_214 = arith.constant 0 : index
    %451 = vector.load %arg29[%c0_212, %c0_213, %c0_214] : memref<2x1x32xf32, #tpu.memory_space<vmem>>, vector<1x1x32xf32>
    %452 = vector.shape_cast %451 : vector<1x1x32xf32> to vector<1x32xf32>
    %c0_215 = arith.constant 0 : index
    %c0_216 = arith.constant 0 : index
    %c0_217 = arith.constant 0 : index
    %453 = vector.load %arg30[%c0_215, %c0_216, %c0_217] : memref<2x1x32xf32, #tpu.memory_space<vmem>>, vector<1x1x32xf32>
    %454 = vector.shape_cast %453 : vector<1x1x32xf32> to vector<1x32xf32>
    %c0_218 = arith.constant 0 : index
    %c0_219 = arith.constant 0 : index
    %c0_220 = arith.constant 0 : index
    %455 = vector.load %arg31[%c0_218, %c0_219, %c0_220] : memref<2x32x128xbf16, #tpu.memory_space<vmem>>, vector<1x32x128xbf16>
    %456 = vector.shape_cast %455 : vector<1x32x128xbf16> to vector<32x128xbf16>
    %c0_221 = arith.constant 0 : index
    %c0_222 = arith.constant 0 : index
    %c0_223 = arith.constant 0 : index
    %457 = vector.load %arg32[%c0_221, %c0_222, %c0_223] : memref<2x1x128xf32, #tpu.memory_space<vmem>>, vector<1x1x128xf32>
    %458 = vector.shape_cast %457 : vector<1x1x128xf32> to vector<1x128xf32>
    %c0_224 = arith.constant 0 : index
    %c0_225 = arith.constant 0 : index
    %c0_226 = arith.constant 0 : index
    %459 = vector.load %arg33[%c0_224, %c0_225, %c0_226] : memref<2x128x32xbf16, #tpu.memory_space<vmem>>, vector<1x128x32xbf16>
    %460 = vector.shape_cast %459 : vector<1x128x32xbf16> to vector<128x32xbf16>
    %c0_227 = arith.constant 0 : index
    %c0_228 = arith.constant 0 : index
    %c0_229 = arith.constant 0 : index
    %461 = vector.load %arg34[%c0_227, %c0_228, %c0_229] : memref<2x1x32xf32, #tpu.memory_space<vmem>>, vector<1x1x32xf32>
    %462 = vector.shape_cast %461 : vector<1x1x32xf32> to vector<1x32xf32>
    %cst_230 = arith.constant dense<0.000000e+00> : vector<8xf32>
    %463 = vector.multi_reduction <add>, %436, %cst_230 [1] : vector<8x32xf32> to vector<8xf32>
    %464 = vector.shape_cast %463 : vector<8xf32> to vector<8x1xf32>
    %cst_231 = arith.constant 3.200000e+01 : f32
    %465 = vector.broadcast %cst_231 : f32 to vector<8x1xf32>
    %466 = arith.divf %464, %465 : vector<8x1xf32>
    %467 = vector.broadcast %466 : vector<8x1xf32> to vector<8x32xf32>
    %468 = arith.subf %436, %467 : vector<8x32xf32>
    %469 = arith.mulf %468, %468 : vector<8x32xf32>
    %cst_232 = arith.constant dense<0.000000e+00> : vector<8xf32>
    %470 = vector.multi_reduction <add>, %469, %cst_232 [1] : vector<8x32xf32> to vector<8xf32>
    %471 = vector.shape_cast %470 : vector<8xf32> to vector<8x1xf32>
    %cst_233 = arith.constant 3.200000e+01 : f32
    %472 = vector.broadcast %cst_233 : f32 to vector<8x1xf32>
    %473 = arith.divf %471, %472 : vector<8x1xf32>
    %cst_234 = arith.constant 9.99999974E-6 : f32
    %474 = vector.broadcast %cst_234 : f32 to vector<8x1xf32>
    %475 = arith.addf %473, %474 : vector<8x1xf32>
    %476 = math.rsqrt %475 : vector<8x1xf32>
    %477 = vector.broadcast %476 : vector<8x1xf32> to vector<8x32xf32>
    %478 = arith.mulf %468, %477 : vector<8x32xf32>
    %479 = vector.broadcast %440 : vector<1x32xf32> to vector<8x32xf32>
    %480 = arith.mulf %478, %479 : vector<8x32xf32>
    %481 = vector.broadcast %442 : vector<1x32xf32> to vector<8x32xf32>
    %482 = arith.addf %480, %481 : vector<8x32xf32>
    %483 = arith.truncf %482 : vector<8x32xf32> to vector<8x32xbf16>
    %cst_235 = arith.constant dense<0.000000e+00> : vector<8x96xf32>
    %484 = tpu.matmul %483, %444, %cst_235 {dimension_numbers = #tpu.dot_dimension_numbers<[1], [0], [0], [1], [0, 0, 1, 1], [], []>} : vector<8x32xbf16>, vector<32x96xbf16>, vector<8x96xf32> -> vector<8x96xf32>
    %485 = vector.broadcast %446 : vector<1x96xf32> to vector<8x96xf32>
    %486 = arith.addf %484, %485 : vector<8x96xf32>
    %487 = vector.extract_strided_slice %486 {offsets = [0, 0], sizes = [8, 8], strides = [1, 1]} : vector<8x96xf32> to vector<8x8xf32>
    %488 = vector.shape_cast %487 : vector<8x8xf32> to vector<2x4x8xf32>
    %489 = vector.extract_strided_slice %486 {offsets = [0, 32], sizes = [8, 8], strides = [1, 1]} : vector<8x96xf32> to vector<8x8xf32>
    %490 = vector.shape_cast %489 : vector<8x8xf32> to vector<2x4x8xf32>
    %491 = vector.extract_strided_slice %486 {offsets = [0, 64], sizes = [8, 8], strides = [1, 1]} : vector<8x96xf32> to vector<8x8xf32>
    %492 = vector.shape_cast %491 : vector<8x8xf32> to vector<2x4x8xf32>
    %493 = arith.truncf %488 : vector<2x4x8xf32> to vector<2x4x8xbf16>
    %494 = arith.truncf %490 : vector<2x4x8xf32> to vector<2x4x8xbf16>
    "tpu.trace_start"() <{level = 10 : i32, message = "bnd,bmd->bnm"}> : () -> ()
    %cst_236 = arith.constant dense<0.000000e+00> : vector<2x4x4xf32>
    %495 = tpu.matmul %493, %494, %cst_236 {dimension_numbers = #tpu.dot_dimension_numbers<[2], [2], [1], [1], [0, 0, 0, 1, 1, 1], [0], [0]>} : vector<2x4x8xbf16>, vector<2x4x8xbf16>, vector<2x4x4xf32> -> vector<2x4x4xf32>
    "tpu.trace_stop"() : () -> ()
    %cst_237 = arith.constant 0.353553385 : f32
    %496 = vector.broadcast %cst_237 : f32 to vector<2x4x4xf32>
    %497 = arith.mulf %495, %496 : vector<2x4x4xf32>
    %498 = vector.extract_strided_slice %438 {offsets = [0, 0, 0], sizes = [1, 4, 4], strides = [1, 1, 1]} : vector<4x4x4xf32> to vector<1x4x4xf32>
    %499 = vector.shape_cast %498 : vector<1x4x4xf32> to vector<4x4xf32>
    %500 = vector.shape_cast %499 : vector<4x4xf32> to vector<1x4x4xf32>
    %501 = vector.broadcast %500 : vector<1x4x4xf32> to vector<2x4x4xf32>
    %502 = arith.addf %497, %501 : vector<2x4x4xf32>
    %cst_238 = arith.constant dense<0xFF800000> : vector<2x4xf32>
    %503 = vector.multi_reduction <maximumf>, %502, %cst_238 [2] : vector<2x4x4xf32> to vector<2x4xf32>
    %504 = vector.shape_cast %503 : vector<2x4xf32> to vector<2x4x1xf32>
    %505 = vector.broadcast %504 : vector<2x4x1xf32> to vector<2x4x4xf32>
    %506 = arith.subf %502, %505 : vector<2x4x4xf32>
    %507 = math.exp %506 : vector<2x4x4xf32>
    %cst_239 = arith.constant dense<0.000000e+00> : vector<2x4xf32>
    %508 = vector.multi_reduction <add>, %507, %cst_239 [2] : vector<2x4x4xf32> to vector<2x4xf32>
    %509 = vector.shape_cast %508 : vector<2x4xf32> to vector<2x4x1xf32>
    %510 = tpu.reciprocal %509 {approx = true} : vector<2x4x1xf32> -> vector<2x4x1xf32>
    %511 = vector.broadcast %510 : vector<2x4x1xf32> to vector<2x4x4xf32>
    %512 = arith.mulf %507, %511 : vector<2x4x4xf32>
    %513 = arith.truncf %512 : vector<2x4x4xf32> to vector<2x4x4xbf16>
    %514 = arith.truncf %492 : vector<2x4x8xf32> to vector<2x4x8xbf16>
    "tpu.trace_start"() <{level = 10 : i32, message = "bnm,bmd->bnd"}> : () -> ()
    %cst_240 = arith.constant dense<0.000000e+00> : vector<2x4x8xf32>
    %515 = tpu.matmul %513, %514, %cst_240 {dimension_numbers = #tpu.dot_dimension_numbers<[2], [1], [1], [2], [0, 0, 0, 1, 1, 2], [0], [0]>} : vector<2x4x4xbf16>, vector<2x4x8xbf16>, vector<2x4x8xf32> -> vector<2x4x8xf32>
    "tpu.trace_stop"() : () -> ()
    %516 = vector.shape_cast %515 : vector<2x4x8xf32> to vector<8x8xf32>
    %517 = vector.extract_strided_slice %486 {offsets = [0, 8], sizes = [8, 8], strides = [1, 1]} : vector<8x96xf32> to vector<8x8xf32>
    %518 = vector.shape_cast %517 : vector<8x8xf32> to vector<2x4x8xf32>
    %519 = vector.extract_strided_slice %486 {offsets = [0, 40], sizes = [8, 8], strides = [1, 1]} : vector<8x96xf32> to vector<8x8xf32>
    %520 = vector.shape_cast %519 : vector<8x8xf32> to vector<2x4x8xf32>
    %521 = vector.extract_strided_slice %486 {offsets = [0, 72], sizes = [8, 8], strides = [1, 1]} : vector<8x96xf32> to vector<8x8xf32>
    %522 = vector.shape_cast %521 : vector<8x8xf32> to vector<2x4x8xf32>
    %523 = arith.truncf %518 : vector<2x4x8xf32> to vector<2x4x8xbf16>
    %524 = arith.truncf %520 : vector<2x4x8xf32> to vector<2x4x8xbf16>
    "tpu.trace_start"() <{level = 10 : i32, message = "bnd,bmd->bnm"}> : () -> ()
    %cst_241 = arith.constant dense<0.000000e+00> : vector<2x4x4xf32>
    %525 = tpu.matmul %523, %524, %cst_241 {dimension_numbers = #tpu.dot_dimension_numbers<[2], [2], [1], [1], [0, 0, 0, 1, 1, 1], [0], [0]>} : vector<2x4x8xbf16>, vector<2x4x8xbf16>, vector<2x4x4xf32> -> vector<2x4x4xf32>
    "tpu.trace_stop"() : () -> ()
    %cst_242 = arith.constant 0.353553385 : f32
    %526 = vector.broadcast %cst_242 : f32 to vector<2x4x4xf32>
    %527 = arith.mulf %525, %526 : vector<2x4x4xf32>
    %528 = vector.extract_strided_slice %438 {offsets = [1, 0, 0], sizes = [1, 4, 4], strides = [1, 1, 1]} : vector<4x4x4xf32> to vector<1x4x4xf32>
    %529 = vector.shape_cast %528 : vector<1x4x4xf32> to vector<4x4xf32>
    %530 = vector.shape_cast %529 : vector<4x4xf32> to vector<1x4x4xf32>
    %531 = vector.broadcast %530 : vector<1x4x4xf32> to vector<2x4x4xf32>
    %532 = arith.addf %527, %531 : vector<2x4x4xf32>
    %cst_243 = arith.constant dense<0xFF800000> : vector<2x4xf32>
    %533 = vector.multi_reduction <maximumf>, %532, %cst_243 [2] : vector<2x4x4xf32> to vector<2x4xf32>
    %534 = vector.shape_cast %533 : vector<2x4xf32> to vector<2x4x1xf32>
    %535 = vector.broadcast %534 : vector<2x4x1xf32> to vector<2x4x4xf32>
    %536 = arith.subf %532, %535 : vector<2x4x4xf32>
    %537 = math.exp %536 : vector<2x4x4xf32>
    %cst_244 = arith.constant dense<0.000000e+00> : vector<2x4xf32>
    %538 = vector.multi_reduction <add>, %537, %cst_244 [2] : vector<2x4x4xf32> to vector<2x4xf32>
    %539 = vector.shape_cast %538 : vector<2x4xf32> to vector<2x4x1xf32>
    %540 = tpu.reciprocal %539 {approx = true} : vector<2x4x1xf32> -> vector<2x4x1xf32>
    %541 = vector.broadcast %540 : vector<2x4x1xf32> to vector<2x4x4xf32>
    %542 = arith.mulf %537, %541 : vector<2x4x4xf32>
    %543 = arith.truncf %542 : vector<2x4x4xf32> to vector<2x4x4xbf16>
    %544 = arith.truncf %522 : vector<2x4x8xf32> to vector<2x4x8xbf16>
    "tpu.trace_start"() <{level = 10 : i32, message = "bnm,bmd->bnd"}> : () -> ()
    %cst_245 = arith.constant dense<0.000000e+00> : vector<2x4x8xf32>
    %545 = tpu.matmul %543, %544, %cst_245 {dimension_numbers = #tpu.dot_dimension_numbers<[2], [1], [1], [2], [0, 0, 0, 1, 1, 2], [0], [0]>} : vector<2x4x4xbf16>, vector<2x4x8xbf16>, vector<2x4x8xf32> -> vector<2x4x8xf32>
    "tpu.trace_stop"() : () -> ()
    %546 = vector.shape_cast %545 : vector<2x4x8xf32> to vector<8x8xf32>
    %547 = vector.extract_strided_slice %486 {offsets = [0, 16], sizes = [8, 8], strides = [1, 1]} : vector<8x96xf32> to vector<8x8xf32>
    %548 = vector.shape_cast %547 : vector<8x8xf32> to vector<2x4x8xf32>
    %549 = vector.extract_strided_slice %486 {offsets = [0, 48], sizes = [8, 8], strides = [1, 1]} : vector<8x96xf32> to vector<8x8xf32>
    %550 = vector.shape_cast %549 : vector<8x8xf32> to vector<2x4x8xf32>
    %551 = vector.extract_strided_slice %486 {offsets = [0, 80], sizes = [8, 8], strides = [1, 1]} : vector<8x96xf32> to vector<8x8xf32>
    %552 = vector.shape_cast %551 : vector<8x8xf32> to vector<2x4x8xf32>
    %553 = arith.truncf %548 : vector<2x4x8xf32> to vector<2x4x8xbf16>
    %554 = arith.truncf %550 : vector<2x4x8xf32> to vector<2x4x8xbf16>
    "tpu.trace_start"() <{level = 10 : i32, message = "bnd,bmd->bnm"}> : () -> ()
    %cst_246 = arith.constant dense<0.000000e+00> : vector<2x4x4xf32>
    %555 = tpu.matmul %553, %554, %cst_246 {dimension_numbers = #tpu.dot_dimension_numbers<[2], [2], [1], [1], [0, 0, 0, 1, 1, 1], [0], [0]>} : vector<2x4x8xbf16>, vector<2x4x8xbf16>, vector<2x4x4xf32> -> vector<2x4x4xf32>
    "tpu.trace_stop"() : () -> ()
    %cst_247 = arith.constant 0.353553385 : f32
    %556 = vector.broadcast %cst_247 : f32 to vector<2x4x4xf32>
    %557 = arith.mulf %555, %556 : vector<2x4x4xf32>
    %558 = vector.extract_strided_slice %438 {offsets = [2, 0, 0], sizes = [1, 4, 4], strides = [1, 1, 1]} : vector<4x4x4xf32> to vector<1x4x4xf32>
    %559 = vector.shape_cast %558 : vector<1x4x4xf32> to vector<4x4xf32>
    %560 = vector.shape_cast %559 : vector<4x4xf32> to vector<1x4x4xf32>
    %561 = vector.broadcast %560 : vector<1x4x4xf32> to vector<2x4x4xf32>
    %562 = arith.addf %557, %561 : vector<2x4x4xf32>
    %cst_248 = arith.constant dense<0xFF800000> : vector<2x4xf32>
    %563 = vector.multi_reduction <maximumf>, %562, %cst_248 [2] : vector<2x4x4xf32> to vector<2x4xf32>
    %564 = vector.shape_cast %563 : vector<2x4xf32> to vector<2x4x1xf32>
    %565 = vector.broadcast %564 : vector<2x4x1xf32> to vector<2x4x4xf32>
    %566 = arith.subf %562, %565 : vector<2x4x4xf32>
    %567 = math.exp %566 : vector<2x4x4xf32>
    %cst_249 = arith.constant dense<0.000000e+00> : vector<2x4xf32>
    %568 = vector.multi_reduction <add>, %567, %cst_249 [2] : vector<2x4x4xf32> to vector<2x4xf32>
    %569 = vector.shape_cast %568 : vector<2x4xf32> to vector<2x4x1xf32>
    %570 = tpu.reciprocal %569 {approx = true} : vector<2x4x1xf32> -> vector<2x4x1xf32>
    %571 = vector.broadcast %570 : vector<2x4x1xf32> to vector<2x4x4xf32>
    %572 = arith.mulf %567, %571 : vector<2x4x4xf32>
    %573 = arith.truncf %572 : vector<2x4x4xf32> to vector<2x4x4xbf16>
    %574 = arith.truncf %552 : vector<2x4x8xf32> to vector<2x4x8xbf16>
    "tpu.trace_start"() <{level = 10 : i32, message = "bnm,bmd->bnd"}> : () -> ()
    %cst_250 = arith.constant dense<0.000000e+00> : vector<2x4x8xf32>
    %575 = tpu.matmul %573, %574, %cst_250 {dimension_numbers = #tpu.dot_dimension_numbers<[2], [1], [1], [2], [0, 0, 0, 1, 1, 2], [0], [0]>} : vector<2x4x4xbf16>, vector<2x4x8xbf16>, vector<2x4x8xf32> -> vector<2x4x8xf32>
    "tpu.trace_stop"() : () -> ()
    %576 = vector.shape_cast %575 : vector<2x4x8xf32> to vector<8x8xf32>
    %577 = vector.extract_strided_slice %486 {offsets = [0, 24], sizes = [8, 8], strides = [1, 1]} : vector<8x96xf32> to vector<8x8xf32>
    %578 = vector.shape_cast %577 : vector<8x8xf32> to vector<2x4x8xf32>
    %579 = vector.extract_strided_slice %486 {offsets = [0, 56], sizes = [8, 8], strides = [1, 1]} : vector<8x96xf32> to vector<8x8xf32>
    %580 = vector.shape_cast %579 : vector<8x8xf32> to vector<2x4x8xf32>
    %581 = vector.extract_strided_slice %486 {offsets = [0, 88], sizes = [8, 8], strides = [1, 1]} : vector<8x96xf32> to vector<8x8xf32>
    %582 = vector.shape_cast %581 : vector<8x8xf32> to vector<2x4x8xf32>
    %583 = arith.truncf %578 : vector<2x4x8xf32> to vector<2x4x8xbf16>
    %584 = arith.truncf %580 : vector<2x4x8xf32> to vector<2x4x8xbf16>
    "tpu.trace_start"() <{level = 10 : i32, message = "bnd,bmd->bnm"}> : () -> ()
    %cst_251 = arith.constant dense<0.000000e+00> : vector<2x4x4xf32>
    %585 = tpu.matmul %583, %584, %cst_251 {dimension_numbers = #tpu.dot_dimension_numbers<[2], [2], [1], [1], [0, 0, 0, 1, 1, 1], [0], [0]>} : vector<2x4x8xbf16>, vector<2x4x8xbf16>, vector<2x4x4xf32> -> vector<2x4x4xf32>
    "tpu.trace_stop"() : () -> ()
    %cst_252 = arith.constant 0.353553385 : f32
    %586 = vector.broadcast %cst_252 : f32 to vector<2x4x4xf32>
    %587 = arith.mulf %585, %586 : vector<2x4x4xf32>
    %588 = vector.extract_strided_slice %438 {offsets = [3, 0, 0], sizes = [1, 4, 4], strides = [1, 1, 1]} : vector<4x4x4xf32> to vector<1x4x4xf32>
    %589 = vector.shape_cast %588 : vector<1x4x4xf32> to vector<4x4xf32>
    %590 = vector.shape_cast %589 : vector<4x4xf32> to vector<1x4x4xf32>
    %591 = vector.broadcast %590 : vector<1x4x4xf32> to vector<2x4x4xf32>
    %592 = arith.addf %587, %591 : vector<2x4x4xf32>
    %cst_253 = arith.constant dense<0xFF800000> : vector<2x4xf32>
    %593 = vector.multi_reduction <maximumf>, %592, %cst_253 [2] : vector<2x4x4xf32> to vector<2x4xf32>
    %594 = vector.shape_cast %593 : vector<2x4xf32> to vector<2x4x1xf32>
    %595 = vector.broadcast %594 : vector<2x4x1xf32> to vector<2x4x4xf32>
    %596 = arith.subf %592, %595 : vector<2x4x4xf32>
    %597 = math.exp %596 : vector<2x4x4xf32>
    %cst_254 = arith.constant dense<0.000000e+00> : vector<2x4xf32>
    %598 = vector.multi_reduction <add>, %597, %cst_254 [2] : vector<2x4x4xf32> to vector<2x4xf32>
    %599 = vector.shape_cast %598 : vector<2x4xf32> to vector<2x4x1xf32>
    %600 = tpu.reciprocal %599 {approx = true} : vector<2x4x1xf32> -> vector<2x4x1xf32>
    %601 = vector.broadcast %600 : vector<2x4x1xf32> to vector<2x4x4xf32>
    %602 = arith.mulf %597, %601 : vector<2x4x4xf32>
    %603 = arith.truncf %602 : vector<2x4x4xf32> to vector<2x4x4xbf16>
    %604 = arith.truncf %582 : vector<2x4x8xf32> to vector<2x4x8xbf16>
    "tpu.trace_start"() <{level = 10 : i32, message = "bnm,bmd->bnd"}> : () -> ()
    %cst_255 = arith.constant dense<0.000000e+00> : vector<2x4x8xf32>
    %605 = tpu.matmul %603, %604, %cst_255 {dimension_numbers = #tpu.dot_dimension_numbers<[2], [1], [1], [2], [0, 0, 0, 1, 1, 2], [0], [0]>} : vector<2x4x4xbf16>, vector<2x4x8xbf16>, vector<2x4x8xf32> -> vector<2x4x8xf32>
    "tpu.trace_stop"() : () -> ()
    %606 = vector.shape_cast %605 : vector<2x4x8xf32> to vector<8x8xf32>
    %607 = tpu.concatenate %516, %546, %576, %606 in 1 : vector<8x8xf32>, vector<8x8xf32>, vector<8x8xf32>, vector<8x8xf32> -> vector<8x32xf32>
    %608 = arith.truncf %607 : vector<8x32xf32> to vector<8x32xbf16>
    %cst_256 = arith.constant dense<0.000000e+00> : vector<8x32xf32>
    %609 = tpu.matmul %608, %448, %cst_256 {dimension_numbers = #tpu.dot_dimension_numbers<[1], [0], [0], [1], [0, 0, 1, 1], [], []>} : vector<8x32xbf16>, vector<32x32xbf16>, vector<8x32xf32> -> vector<8x32xf32>
    %610 = arith.addf %436, %609 : vector<8x32xf32>
    %611 = vector.broadcast %450 : vector<1x32xf32> to vector<8x32xf32>
    %612 = arith.addf %610, %611 : vector<8x32xf32>
    %cst_257 = arith.constant dense<0.000000e+00> : vector<8xf32>
    %613 = vector.multi_reduction <add>, %612, %cst_257 [1] : vector<8x32xf32> to vector<8xf32>
    %614 = vector.shape_cast %613 : vector<8xf32> to vector<8x1xf32>
    %cst_258 = arith.constant 3.200000e+01 : f32
    %615 = vector.broadcast %cst_258 : f32 to vector<8x1xf32>
    %616 = arith.divf %614, %615 : vector<8x1xf32>
    %617 = vector.broadcast %616 : vector<8x1xf32> to vector<8x32xf32>
    %618 = arith.subf %612, %617 : vector<8x32xf32>
    %619 = arith.mulf %618, %618 : vector<8x32xf32>
    %cst_259 = arith.constant dense<0.000000e+00> : vector<8xf32>
    %620 = vector.multi_reduction <add>, %619, %cst_259 [1] : vector<8x32xf32> to vector<8xf32>
    %621 = vector.shape_cast %620 : vector<8xf32> to vector<8x1xf32>
    %cst_260 = arith.constant 3.200000e+01 : f32
    %622 = vector.broadcast %cst_260 : f32 to vector<8x1xf32>
    %623 = arith.divf %621, %622 : vector<8x1xf32>
    %cst_261 = arith.constant 9.99999974E-6 : f32
    %624 = vector.broadcast %cst_261 : f32 to vector<8x1xf32>
    %625 = arith.addf %623, %624 : vector<8x1xf32>
    %626 = math.rsqrt %625 : vector<8x1xf32>
    %627 = vector.broadcast %626 : vector<8x1xf32> to vector<8x32xf32>
    %628 = arith.mulf %618, %627 : vector<8x32xf32>
    %629 = vector.broadcast %452 : vector<1x32xf32> to vector<8x32xf32>
    %630 = arith.mulf %628, %629 : vector<8x32xf32>
    %631 = vector.broadcast %454 : vector<1x32xf32> to vector<8x32xf32>
    %632 = arith.addf %630, %631 : vector<8x32xf32>
    %633 = arith.truncf %632 : vector<8x32xf32> to vector<8x32xbf16>
    %cst_262 = arith.constant dense<0.000000e+00> : vector<8x128xf32>
    %634 = tpu.matmul %633, %456, %cst_262 {dimension_numbers = #tpu.dot_dimension_numbers<[1], [0], [0], [1], [0, 0, 1, 1], [], []>} : vector<8x32xbf16>, vector<32x128xbf16>, vector<8x128xf32> -> vector<8x128xf32>
    %635 = vector.broadcast %458 : vector<1x128xf32> to vector<8x128xf32>
    %636 = arith.addf %634, %635 : vector<8x128xf32>
    %cst_263 = arith.constant 0.707106769 : f32
    %637 = vector.broadcast %cst_263 : f32 to vector<8x128xf32>
    %638 = arith.mulf %636, %637 : vector<8x128xf32>
    %639 = math.absf %638 : vector<8x128xf32>
    %cst_264 = arith.constant 0.327591091 : f32
    %640 = vector.broadcast %cst_264 : f32 to vector<8x128xf32>
    %641 = arith.mulf %640, %639 : vector<8x128xf32>
    %cst_265 = arith.constant 1.000000e+00 : f32
    %642 = vector.broadcast %cst_265 : f32 to vector<8x128xf32>
    %643 = arith.addf %642, %641 : vector<8x128xf32>
    %cst_266 = arith.constant 1.000000e+00 : f32
    %644 = vector.broadcast %cst_266 : f32 to vector<8x128xf32>
    %645 = arith.divf %644, %643 : vector<8x128xf32>
    %cst_267 = arith.constant 1.06140542 : f32
    %646 = vector.broadcast %cst_267 : f32 to vector<8x128xf32>
    %647 = arith.mulf %646, %645 : vector<8x128xf32>
    %cst_268 = arith.constant -1.45315206 : f32
    %648 = vector.broadcast %cst_268 : f32 to vector<8x128xf32>
    %649 = arith.addf %647, %648 : vector<8x128xf32>
    %650 = arith.mulf %649, %645 : vector<8x128xf32>
    %cst_269 = arith.constant 1.42141378 : f32
    %651 = vector.broadcast %cst_269 : f32 to vector<8x128xf32>
    %652 = arith.addf %650, %651 : vector<8x128xf32>
    %653 = arith.mulf %652, %645 : vector<8x128xf32>
    %cst_270 = arith.constant -0.284496725 : f32
    %654 = vector.broadcast %cst_270 : f32 to vector<8x128xf32>
    %655 = arith.addf %653, %654 : vector<8x128xf32>
    %656 = arith.mulf %655, %645 : vector<8x128xf32>
    %cst_271 = arith.constant 0.254829586 : f32
    %657 = vector.broadcast %cst_271 : f32 to vector<8x128xf32>
    %658 = arith.addf %656, %657 : vector<8x128xf32>
    %659 = arith.mulf %658, %645 : vector<8x128xf32>
    %cst_272 = arith.constant 0.000000e+00 : f32
    %660 = vector.broadcast %cst_272 : f32 to vector<8x128xf32>
    %661 = arith.subf %660, %639 : vector<8x128xf32>
    %662 = arith.mulf %661, %639 : vector<8x128xf32>
    %663 = math.exp %662 : vector<8x128xf32>
    %664 = arith.mulf %659, %663 : vector<8x128xf32>
    %cst_273 = arith.constant 1.000000e+00 : f32
    %665 = vector.broadcast %cst_273 : f32 to vector<8x128xf32>
    %666 = arith.subf %665, %664 : vector<8x128xf32>
    %cst_274 = arith.constant 0.000000e+00 : f32
    %667 = vector.broadcast %cst_274 : f32 to vector<8x128xf32>
    %668 = arith.cmpf olt, %638, %667 : vector<8x128xf32>
    %cst_275 = arith.constant 0.000000e+00 : f32
    %669 = vector.broadcast %cst_275 : f32 to vector<8x128xf32>
    %670 = arith.subf %669, %666 : vector<8x128xf32>
    %671 = arith.select %668, %670, %666 : vector<8x128xi1>, vector<8x128xf32>
    %cst_276 = arith.constant 5.000000e-01 : f32
    %672 = vector.broadcast %cst_276 : f32 to vector<8x128xf32>
    %673 = arith.mulf %672, %636 : vector<8x128xf32>
    %cst_277 = arith.constant 1.000000e+00 : f32
    %674 = vector.broadcast %cst_277 : f32 to vector<8x128xf32>
    %675 = arith.addf %674, %671 : vector<8x128xf32>
    %676 = arith.mulf %673, %675 : vector<8x128xf32>
    %677 = arith.truncf %676 : vector<8x128xf32> to vector<8x128xbf16>
    %cst_278 = arith.constant dense<0.000000e+00> : vector<8x32xf32>
    %678 = tpu.matmul %677, %460, %cst_278 {dimension_numbers = #tpu.dot_dimension_numbers<[1], [0], [0], [1], [0, 0, 1, 1], [], []>} : vector<8x128xbf16>, vector<128x32xbf16>, vector<8x32xf32> -> vector<8x32xf32>
    %679 = arith.addf %612, %678 : vector<8x32xf32>
    %680 = vector.broadcast %462 : vector<1x32xf32> to vector<8x32xf32>
    %681 = arith.addf %679, %680 : vector<8x32xf32>
    %c1_279 = arith.constant 1 : index
    %c0_280 = arith.constant 0 : index
    %c0_281 = arith.constant 0 : index
    %c0_282 = arith.constant 0 : index
    %682 = vector.load %arg26[%c1_279, %c0_280, %c0_281, %c0_282] : memref<2x4x4x4xf32, #tpu.memory_space<vmem>>, vector<1x4x4x4xf32>
    %683 = vector.shape_cast %682 : vector<1x4x4x4xf32> to vector<4x4x4xf32>
    %c1_283 = arith.constant 1 : index
    %c0_284 = arith.constant 0 : index
    %c0_285 = arith.constant 0 : index
    %684 = vector.load %arg22[%c1_283, %c0_284, %c0_285] : memref<2x1x32xf32, #tpu.memory_space<vmem>>, vector<1x1x32xf32>
    %685 = vector.shape_cast %684 : vector<1x1x32xf32> to vector<1x32xf32>
    %c1_286 = arith.constant 1 : index
    %c0_287 = arith.constant 0 : index
    %c0_288 = arith.constant 0 : index
    %686 = vector.load %arg23[%c1_286, %c0_287, %c0_288] : memref<2x1x32xf32, #tpu.memory_space<vmem>>, vector<1x1x32xf32>
    %687 = vector.shape_cast %686 : vector<1x1x32xf32> to vector<1x32xf32>
    %c1_289 = arith.constant 1 : index
    %c0_290 = arith.constant 0 : index
    %c0_291 = arith.constant 0 : index
    %688 = vector.load %arg24[%c1_289, %c0_290, %c0_291] : memref<2x32x96xbf16, #tpu.memory_space<vmem>>, vector<1x32x96xbf16>
    %689 = vector.shape_cast %688 : vector<1x32x96xbf16> to vector<32x96xbf16>
    %c1_292 = arith.constant 1 : index
    %c0_293 = arith.constant 0 : index
    %c0_294 = arith.constant 0 : index
    %690 = vector.load %arg25[%c1_292, %c0_293, %c0_294] : memref<2x1x96xf32, #tpu.memory_space<vmem>>, vector<1x1x96xf32>
    %691 = vector.shape_cast %690 : vector<1x1x96xf32> to vector<1x96xf32>
    %c1_295 = arith.constant 1 : index
    %c0_296 = arith.constant 0 : index
    %c0_297 = arith.constant 0 : index
    %692 = vector.load %arg27[%c1_295, %c0_296, %c0_297] : memref<2x32x32xbf16, #tpu.memory_space<vmem>>, vector<1x32x32xbf16>
    %693 = vector.shape_cast %692 : vector<1x32x32xbf16> to vector<32x32xbf16>
    %c1_298 = arith.constant 1 : index
    %c0_299 = arith.constant 0 : index
    %c0_300 = arith.constant 0 : index
    %694 = vector.load %arg28[%c1_298, %c0_299, %c0_300] : memref<2x1x32xf32, #tpu.memory_space<vmem>>, vector<1x1x32xf32>
    %695 = vector.shape_cast %694 : vector<1x1x32xf32> to vector<1x32xf32>
    %c1_301 = arith.constant 1 : index
    %c0_302 = arith.constant 0 : index
    %c0_303 = arith.constant 0 : index
    %696 = vector.load %arg29[%c1_301, %c0_302, %c0_303] : memref<2x1x32xf32, #tpu.memory_space<vmem>>, vector<1x1x32xf32>
    %697 = vector.shape_cast %696 : vector<1x1x32xf32> to vector<1x32xf32>
    %c1_304 = arith.constant 1 : index
    %c0_305 = arith.constant 0 : index
    %c0_306 = arith.constant 0 : index
    %698 = vector.load %arg30[%c1_304, %c0_305, %c0_306] : memref<2x1x32xf32, #tpu.memory_space<vmem>>, vector<1x1x32xf32>
    %699 = vector.shape_cast %698 : vector<1x1x32xf32> to vector<1x32xf32>
    %c1_307 = arith.constant 1 : index
    %c0_308 = arith.constant 0 : index
    %c0_309 = arith.constant 0 : index
    %700 = vector.load %arg31[%c1_307, %c0_308, %c0_309] : memref<2x32x128xbf16, #tpu.memory_space<vmem>>, vector<1x32x128xbf16>
    %701 = vector.shape_cast %700 : vector<1x32x128xbf16> to vector<32x128xbf16>
    %c1_310 = arith.constant 1 : index
    %c0_311 = arith.constant 0 : index
    %c0_312 = arith.constant 0 : index
    %702 = vector.load %arg32[%c1_310, %c0_311, %c0_312] : memref<2x1x128xf32, #tpu.memory_space<vmem>>, vector<1x1x128xf32>
    %703 = vector.shape_cast %702 : vector<1x1x128xf32> to vector<1x128xf32>
    %c1_313 = arith.constant 1 : index
    %c0_314 = arith.constant 0 : index
    %c0_315 = arith.constant 0 : index
    %704 = vector.load %arg33[%c1_313, %c0_314, %c0_315] : memref<2x128x32xbf16, #tpu.memory_space<vmem>>, vector<1x128x32xbf16>
    %705 = vector.shape_cast %704 : vector<1x128x32xbf16> to vector<128x32xbf16>
    %c1_316 = arith.constant 1 : index
    %c0_317 = arith.constant 0 : index
    %c0_318 = arith.constant 0 : index
    %706 = vector.load %arg34[%c1_316, %c0_317, %c0_318] : memref<2x1x32xf32, #tpu.memory_space<vmem>>, vector<1x1x32xf32>
    %707 = vector.shape_cast %706 : vector<1x1x32xf32> to vector<1x32xf32>
    %cst_319 = arith.constant dense<0.000000e+00> : vector<8xf32>
    %708 = vector.multi_reduction <add>, %681, %cst_319 [1] : vector<8x32xf32> to vector<8xf32>
    %709 = vector.shape_cast %708 : vector<8xf32> to vector<8x1xf32>
    %cst_320 = arith.constant 3.200000e+01 : f32
    %710 = vector.broadcast %cst_320 : f32 to vector<8x1xf32>
    %711 = arith.divf %709, %710 : vector<8x1xf32>
    %712 = vector.broadcast %711 : vector<8x1xf32> to vector<8x32xf32>
    %713 = arith.subf %681, %712 : vector<8x32xf32>
    %714 = arith.mulf %713, %713 : vector<8x32xf32>
    %cst_321 = arith.constant dense<0.000000e+00> : vector<8xf32>
    %715 = vector.multi_reduction <add>, %714, %cst_321 [1] : vector<8x32xf32> to vector<8xf32>
    %716 = vector.shape_cast %715 : vector<8xf32> to vector<8x1xf32>
    %cst_322 = arith.constant 3.200000e+01 : f32
    %717 = vector.broadcast %cst_322 : f32 to vector<8x1xf32>
    %718 = arith.divf %716, %717 : vector<8x1xf32>
    %cst_323 = arith.constant 9.99999974E-6 : f32
    %719 = vector.broadcast %cst_323 : f32 to vector<8x1xf32>
    %720 = arith.addf %718, %719 : vector<8x1xf32>
    %721 = math.rsqrt %720 : vector<8x1xf32>
    %722 = vector.broadcast %721 : vector<8x1xf32> to vector<8x32xf32>
    %723 = arith.mulf %713, %722 : vector<8x32xf32>
    %724 = vector.broadcast %685 : vector<1x32xf32> to vector<8x32xf32>
    %725 = arith.mulf %723, %724 : vector<8x32xf32>
    %726 = vector.broadcast %687 : vector<1x32xf32> to vector<8x32xf32>
    %727 = arith.addf %725, %726 : vector<8x32xf32>
    %728 = arith.truncf %727 : vector<8x32xf32> to vector<8x32xbf16>
    %cst_324 = arith.constant dense<0.000000e+00> : vector<8x96xf32>
    %729 = tpu.matmul %728, %689, %cst_324 {dimension_numbers = #tpu.dot_dimension_numbers<[1], [0], [0], [1], [0, 0, 1, 1], [], []>} : vector<8x32xbf16>, vector<32x96xbf16>, vector<8x96xf32> -> vector<8x96xf32>
    %730 = vector.broadcast %691 : vector<1x96xf32> to vector<8x96xf32>
    %731 = arith.addf %729, %730 : vector<8x96xf32>
    %732 = vector.extract_strided_slice %731 {offsets = [0, 0], sizes = [8, 8], strides = [1, 1]} : vector<8x96xf32> to vector<8x8xf32>
    %733 = vector.shape_cast %732 : vector<8x8xf32> to vector<2x4x8xf32>
    %734 = vector.extract_strided_slice %731 {offsets = [0, 32], sizes = [8, 8], strides = [1, 1]} : vector<8x96xf32> to vector<8x8xf32>
    %735 = vector.shape_cast %734 : vector<8x8xf32> to vector<2x4x8xf32>
    %736 = vector.extract_strided_slice %731 {offsets = [0, 64], sizes = [8, 8], strides = [1, 1]} : vector<8x96xf32> to vector<8x8xf32>
    %737 = vector.shape_cast %736 : vector<8x8xf32> to vector<2x4x8xf32>
    %738 = arith.truncf %733 : vector<2x4x8xf32> to vector<2x4x8xbf16>
    %739 = arith.truncf %735 : vector<2x4x8xf32> to vector<2x4x8xbf16>
    "tpu.trace_start"() <{level = 10 : i32, message = "bnd,bmd->bnm"}> : () -> ()
    %cst_325 = arith.constant dense<0.000000e+00> : vector<2x4x4xf32>
    %740 = tpu.matmul %738, %739, %cst_325 {dimension_numbers = #tpu.dot_dimension_numbers<[2], [2], [1], [1], [0, 0, 0, 1, 1, 1], [0], [0]>} : vector<2x4x8xbf16>, vector<2x4x8xbf16>, vector<2x4x4xf32> -> vector<2x4x4xf32>
    "tpu.trace_stop"() : () -> ()
    %cst_326 = arith.constant 0.353553385 : f32
    %741 = vector.broadcast %cst_326 : f32 to vector<2x4x4xf32>
    %742 = arith.mulf %740, %741 : vector<2x4x4xf32>
    %743 = vector.extract_strided_slice %683 {offsets = [0, 0, 0], sizes = [1, 4, 4], strides = [1, 1, 1]} : vector<4x4x4xf32> to vector<1x4x4xf32>
    %744 = vector.shape_cast %743 : vector<1x4x4xf32> to vector<4x4xf32>
    %745 = vector.shape_cast %744 : vector<4x4xf32> to vector<1x4x4xf32>
    %746 = vector.broadcast %745 : vector<1x4x4xf32> to vector<2x4x4xf32>
    %747 = arith.addf %742, %746 : vector<2x4x4xf32>
    %cst_327 = arith.constant dense<0xFF800000> : vector<2x4xf32>
    %748 = vector.multi_reduction <maximumf>, %747, %cst_327 [2] : vector<2x4x4xf32> to vector<2x4xf32>
    %749 = vector.shape_cast %748 : vector<2x4xf32> to vector<2x4x1xf32>
    %750 = vector.broadcast %749 : vector<2x4x1xf32> to vector<2x4x4xf32>
    %751 = arith.subf %747, %750 : vector<2x4x4xf32>
    %752 = math.exp %751 : vector<2x4x4xf32>
    %cst_328 = arith.constant dense<0.000000e+00> : vector<2x4xf32>
    %753 = vector.multi_reduction <add>, %752, %cst_328 [2] : vector<2x4x4xf32> to vector<2x4xf32>
    %754 = vector.shape_cast %753 : vector<2x4xf32> to vector<2x4x1xf32>
    %755 = tpu.reciprocal %754 {approx = true} : vector<2x4x1xf32> -> vector<2x4x1xf32>
    %756 = vector.broadcast %755 : vector<2x4x1xf32> to vector<2x4x4xf32>
    %757 = arith.mulf %752, %756 : vector<2x4x4xf32>
    %758 = arith.truncf %757 : vector<2x4x4xf32> to vector<2x4x4xbf16>
    %759 = arith.truncf %737 : vector<2x4x8xf32> to vector<2x4x8xbf16>
    "tpu.trace_start"() <{level = 10 : i32, message = "bnm,bmd->bnd"}> : () -> ()
    %cst_329 = arith.constant dense<0.000000e+00> : vector<2x4x8xf32>
    %760 = tpu.matmul %758, %759, %cst_329 {dimension_numbers = #tpu.dot_dimension_numbers<[2], [1], [1], [2], [0, 0, 0, 1, 1, 2], [0], [0]>} : vector<2x4x4xbf16>, vector<2x4x8xbf16>, vector<2x4x8xf32> -> vector<2x4x8xf32>
    "tpu.trace_stop"() : () -> ()
    %761 = vector.shape_cast %760 : vector<2x4x8xf32> to vector<8x8xf32>
    %762 = vector.extract_strided_slice %731 {offsets = [0, 8], sizes = [8, 8], strides = [1, 1]} : vector<8x96xf32> to vector<8x8xf32>
    %763 = vector.shape_cast %762 : vector<8x8xf32> to vector<2x4x8xf32>
    %764 = vector.extract_strided_slice %731 {offsets = [0, 40], sizes = [8, 8], strides = [1, 1]} : vector<8x96xf32> to vector<8x8xf32>
    %765 = vector.shape_cast %764 : vector<8x8xf32> to vector<2x4x8xf32>
    %766 = vector.extract_strided_slice %731 {offsets = [0, 72], sizes = [8, 8], strides = [1, 1]} : vector<8x96xf32> to vector<8x8xf32>
    %767 = vector.shape_cast %766 : vector<8x8xf32> to vector<2x4x8xf32>
    %768 = arith.truncf %763 : vector<2x4x8xf32> to vector<2x4x8xbf16>
    %769 = arith.truncf %765 : vector<2x4x8xf32> to vector<2x4x8xbf16>
    "tpu.trace_start"() <{level = 10 : i32, message = "bnd,bmd->bnm"}> : () -> ()
    %cst_330 = arith.constant dense<0.000000e+00> : vector<2x4x4xf32>
    %770 = tpu.matmul %768, %769, %cst_330 {dimension_numbers = #tpu.dot_dimension_numbers<[2], [2], [1], [1], [0, 0, 0, 1, 1, 1], [0], [0]>} : vector<2x4x8xbf16>, vector<2x4x8xbf16>, vector<2x4x4xf32> -> vector<2x4x4xf32>
    "tpu.trace_stop"() : () -> ()
    %cst_331 = arith.constant 0.353553385 : f32
    %771 = vector.broadcast %cst_331 : f32 to vector<2x4x4xf32>
    %772 = arith.mulf %770, %771 : vector<2x4x4xf32>
    %773 = vector.extract_strided_slice %683 {offsets = [1, 0, 0], sizes = [1, 4, 4], strides = [1, 1, 1]} : vector<4x4x4xf32> to vector<1x4x4xf32>
    %774 = vector.shape_cast %773 : vector<1x4x4xf32> to vector<4x4xf32>
    %775 = vector.shape_cast %774 : vector<4x4xf32> to vector<1x4x4xf32>
    %776 = vector.broadcast %775 : vector<1x4x4xf32> to vector<2x4x4xf32>
    %777 = arith.addf %772, %776 : vector<2x4x4xf32>
    %cst_332 = arith.constant dense<0xFF800000> : vector<2x4xf32>
    %778 = vector.multi_reduction <maximumf>, %777, %cst_332 [2] : vector<2x4x4xf32> to vector<2x4xf32>
    %779 = vector.shape_cast %778 : vector<2x4xf32> to vector<2x4x1xf32>
    %780 = vector.broadcast %779 : vector<2x4x1xf32> to vector<2x4x4xf32>
    %781 = arith.subf %777, %780 : vector<2x4x4xf32>
    %782 = math.exp %781 : vector<2x4x4xf32>
    %cst_333 = arith.constant dense<0.000000e+00> : vector<2x4xf32>
    %783 = vector.multi_reduction <add>, %782, %cst_333 [2] : vector<2x4x4xf32> to vector<2x4xf32>
    %784 = vector.shape_cast %783 : vector<2x4xf32> to vector<2x4x1xf32>
    %785 = tpu.reciprocal %784 {approx = true} : vector<2x4x1xf32> -> vector<2x4x1xf32>
    %786 = vector.broadcast %785 : vector<2x4x1xf32> to vector<2x4x4xf32>
    %787 = arith.mulf %782, %786 : vector<2x4x4xf32>
    %788 = arith.truncf %787 : vector<2x4x4xf32> to vector<2x4x4xbf16>
    %789 = arith.truncf %767 : vector<2x4x8xf32> to vector<2x4x8xbf16>
    "tpu.trace_start"() <{level = 10 : i32, message = "bnm,bmd->bnd"}> : () -> ()
    %cst_334 = arith.constant dense<0.000000e+00> : vector<2x4x8xf32>
    %790 = tpu.matmul %788, %789, %cst_334 {dimension_numbers = #tpu.dot_dimension_numbers<[2], [1], [1], [2], [0, 0, 0, 1, 1, 2], [0], [0]>} : vector<2x4x4xbf16>, vector<2x4x8xbf16>, vector<2x4x8xf32> -> vector<2x4x8xf32>
    "tpu.trace_stop"() : () -> ()
    %791 = vector.shape_cast %790 : vector<2x4x8xf32> to vector<8x8xf32>
    %792 = vector.extract_strided_slice %731 {offsets = [0, 16], sizes = [8, 8], strides = [1, 1]} : vector<8x96xf32> to vector<8x8xf32>
    %793 = vector.shape_cast %792 : vector<8x8xf32> to vector<2x4x8xf32>
    %794 = vector.extract_strided_slice %731 {offsets = [0, 48], sizes = [8, 8], strides = [1, 1]} : vector<8x96xf32> to vector<8x8xf32>
    %795 = vector.shape_cast %794 : vector<8x8xf32> to vector<2x4x8xf32>
    %796 = vector.extract_strided_slice %731 {offsets = [0, 80], sizes = [8, 8], strides = [1, 1]} : vector<8x96xf32> to vector<8x8xf32>
    %797 = vector.shape_cast %796 : vector<8x8xf32> to vector<2x4x8xf32>
    %798 = arith.truncf %793 : vector<2x4x8xf32> to vector<2x4x8xbf16>
    %799 = arith.truncf %795 : vector<2x4x8xf32> to vector<2x4x8xbf16>
    "tpu.trace_start"() <{level = 10 : i32, message = "bnd,bmd->bnm"}> : () -> ()
    %cst_335 = arith.constant dense<0.000000e+00> : vector<2x4x4xf32>
    %800 = tpu.matmul %798, %799, %cst_335 {dimension_numbers = #tpu.dot_dimension_numbers<[2], [2], [1], [1], [0, 0, 0, 1, 1, 1], [0], [0]>} : vector<2x4x8xbf16>, vector<2x4x8xbf16>, vector<2x4x4xf32> -> vector<2x4x4xf32>
    "tpu.trace_stop"() : () -> ()
    %cst_336 = arith.constant 0.353553385 : f32
    %801 = vector.broadcast %cst_336 : f32 to vector<2x4x4xf32>
    %802 = arith.mulf %800, %801 : vector<2x4x4xf32>
    %803 = vector.extract_strided_slice %683 {offsets = [2, 0, 0], sizes = [1, 4, 4], strides = [1, 1, 1]} : vector<4x4x4xf32> to vector<1x4x4xf32>
    %804 = vector.shape_cast %803 : vector<1x4x4xf32> to vector<4x4xf32>
    %805 = vector.shape_cast %804 : vector<4x4xf32> to vector<1x4x4xf32>
    %806 = vector.broadcast %805 : vector<1x4x4xf32> to vector<2x4x4xf32>
    %807 = arith.addf %802, %806 : vector<2x4x4xf32>
    %cst_337 = arith.constant dense<0xFF800000> : vector<2x4xf32>
    %808 = vector.multi_reduction <maximumf>, %807, %cst_337 [2] : vector<2x4x4xf32> to vector<2x4xf32>
    %809 = vector.shape_cast %808 : vector<2x4xf32> to vector<2x4x1xf32>
    %810 = vector.broadcast %809 : vector<2x4x1xf32> to vector<2x4x4xf32>
    %811 = arith.subf %807, %810 : vector<2x4x4xf32>
    %812 = math.exp %811 : vector<2x4x4xf32>
    %cst_338 = arith.constant dense<0.000000e+00> : vector<2x4xf32>
    %813 = vector.multi_reduction <add>, %812, %cst_338 [2] : vector<2x4x4xf32> to vector<2x4xf32>
    %814 = vector.shape_cast %813 : vector<2x4xf32> to vector<2x4x1xf32>
    %815 = tpu.reciprocal %814 {approx = true} : vector<2x4x1xf32> -> vector<2x4x1xf32>
    %816 = vector.broadcast %815 : vector<2x4x1xf32> to vector<2x4x4xf32>
    %817 = arith.mulf %812, %816 : vector<2x4x4xf32>
    %818 = arith.truncf %817 : vector<2x4x4xf32> to vector<2x4x4xbf16>
    %819 = arith.truncf %797 : vector<2x4x8xf32> to vector<2x4x8xbf16>
    "tpu.trace_start"() <{level = 10 : i32, message = "bnm,bmd->bnd"}> : () -> ()
    %cst_339 = arith.constant dense<0.000000e+00> : vector<2x4x8xf32>
    %820 = tpu.matmul %818, %819, %cst_339 {dimension_numbers = #tpu.dot_dimension_numbers<[2], [1], [1], [2], [0, 0, 0, 1, 1, 2], [0], [0]>} : vector<2x4x4xbf16>, vector<2x4x8xbf16>, vector<2x4x8xf32> -> vector<2x4x8xf32>
    "tpu.trace_stop"() : () -> ()
    %821 = vector.shape_cast %820 : vector<2x4x8xf32> to vector<8x8xf32>
    %822 = vector.extract_strided_slice %731 {offsets = [0, 24], sizes = [8, 8], strides = [1, 1]} : vector<8x96xf32> to vector<8x8xf32>
    %823 = vector.shape_cast %822 : vector<8x8xf32> to vector<2x4x8xf32>
    %824 = vector.extract_strided_slice %731 {offsets = [0, 56], sizes = [8, 8], strides = [1, 1]} : vector<8x96xf32> to vector<8x8xf32>
    %825 = vector.shape_cast %824 : vector<8x8xf32> to vector<2x4x8xf32>
    %826 = vector.extract_strided_slice %731 {offsets = [0, 88], sizes = [8, 8], strides = [1, 1]} : vector<8x96xf32> to vector<8x8xf32>
    %827 = vector.shape_cast %826 : vector<8x8xf32> to vector<2x4x8xf32>
    %828 = arith.truncf %823 : vector<2x4x8xf32> to vector<2x4x8xbf16>
    %829 = arith.truncf %825 : vector<2x4x8xf32> to vector<2x4x8xbf16>
    "tpu.trace_start"() <{level = 10 : i32, message = "bnd,bmd->bnm"}> : () -> ()
    %cst_340 = arith.constant dense<0.000000e+00> : vector<2x4x4xf32>
    %830 = tpu.matmul %828, %829, %cst_340 {dimension_numbers = #tpu.dot_dimension_numbers<[2], [2], [1], [1], [0, 0, 0, 1, 1, 1], [0], [0]>} : vector<2x4x8xbf16>, vector<2x4x8xbf16>, vector<2x4x4xf32> -> vector<2x4x4xf32>
    "tpu.trace_stop"() : () -> ()
    %cst_341 = arith.constant 0.353553385 : f32
    %831 = vector.broadcast %cst_341 : f32 to vector<2x4x4xf32>
    %832 = arith.mulf %830, %831 : vector<2x4x4xf32>
    %833 = vector.extract_strided_slice %683 {offsets = [3, 0, 0], sizes = [1, 4, 4], strides = [1, 1, 1]} : vector<4x4x4xf32> to vector<1x4x4xf32>
    %834 = vector.shape_cast %833 : vector<1x4x4xf32> to vector<4x4xf32>
    %835 = vector.shape_cast %834 : vector<4x4xf32> to vector<1x4x4xf32>
    %836 = vector.broadcast %835 : vector<1x4x4xf32> to vector<2x4x4xf32>
    %837 = arith.addf %832, %836 : vector<2x4x4xf32>
    %cst_342 = arith.constant dense<0xFF800000> : vector<2x4xf32>
    %838 = vector.multi_reduction <maximumf>, %837, %cst_342 [2] : vector<2x4x4xf32> to vector<2x4xf32>
    %839 = vector.shape_cast %838 : vector<2x4xf32> to vector<2x4x1xf32>
    %840 = vector.broadcast %839 : vector<2x4x1xf32> to vector<2x4x4xf32>
    %841 = arith.subf %837, %840 : vector<2x4x4xf32>
    %842 = math.exp %841 : vector<2x4x4xf32>
    %cst_343 = arith.constant dense<0.000000e+00> : vector<2x4xf32>
    %843 = vector.multi_reduction <add>, %842, %cst_343 [2] : vector<2x4x4xf32> to vector<2x4xf32>
    %844 = vector.shape_cast %843 : vector<2x4xf32> to vector<2x4x1xf32>
    %845 = tpu.reciprocal %844 {approx = true} : vector<2x4x1xf32> -> vector<2x4x1xf32>
    %846 = vector.broadcast %845 : vector<2x4x1xf32> to vector<2x4x4xf32>
    %847 = arith.mulf %842, %846 : vector<2x4x4xf32>
    %848 = arith.truncf %847 : vector<2x4x4xf32> to vector<2x4x4xbf16>
    %849 = arith.truncf %827 : vector<2x4x8xf32> to vector<2x4x8xbf16>
    "tpu.trace_start"() <{level = 10 : i32, message = "bnm,bmd->bnd"}> : () -> ()
    %cst_344 = arith.constant dense<0.000000e+00> : vector<2x4x8xf32>
    %850 = tpu.matmul %848, %849, %cst_344 {dimension_numbers = #tpu.dot_dimension_numbers<[2], [1], [1], [2], [0, 0, 0, 1, 1, 2], [0], [0]>} : vector<2x4x4xbf16>, vector<2x4x8xbf16>, vector<2x4x8xf32> -> vector<2x4x8xf32>
    "tpu.trace_stop"() : () -> ()
    %851 = vector.shape_cast %850 : vector<2x4x8xf32> to vector<8x8xf32>
    %852 = tpu.concatenate %761, %791, %821, %851 in 1 : vector<8x8xf32>, vector<8x8xf32>, vector<8x8xf32>, vector<8x8xf32> -> vector<8x32xf32>
    %853 = arith.truncf %852 : vector<8x32xf32> to vector<8x32xbf16>
    %cst_345 = arith.constant dense<0.000000e+00> : vector<8x32xf32>
    %854 = tpu.matmul %853, %693, %cst_345 {dimension_numbers = #tpu.dot_dimension_numbers<[1], [0], [0], [1], [0, 0, 1, 1], [], []>} : vector<8x32xbf16>, vector<32x32xbf16>, vector<8x32xf32> -> vector<8x32xf32>
    %855 = arith.addf %681, %854 : vector<8x32xf32>
    %856 = vector.broadcast %695 : vector<1x32xf32> to vector<8x32xf32>
    %857 = arith.addf %855, %856 : vector<8x32xf32>
    %cst_346 = arith.constant dense<0.000000e+00> : vector<8xf32>
    %858 = vector.multi_reduction <add>, %857, %cst_346 [1] : vector<8x32xf32> to vector<8xf32>
    %859 = vector.shape_cast %858 : vector<8xf32> to vector<8x1xf32>
    %cst_347 = arith.constant 3.200000e+01 : f32
    %860 = vector.broadcast %cst_347 : f32 to vector<8x1xf32>
    %861 = arith.divf %859, %860 : vector<8x1xf32>
    %862 = vector.broadcast %861 : vector<8x1xf32> to vector<8x32xf32>
    %863 = arith.subf %857, %862 : vector<8x32xf32>
    %864 = arith.mulf %863, %863 : vector<8x32xf32>
    %cst_348 = arith.constant dense<0.000000e+00> : vector<8xf32>
    %865 = vector.multi_reduction <add>, %864, %cst_348 [1] : vector<8x32xf32> to vector<8xf32>
    %866 = vector.shape_cast %865 : vector<8xf32> to vector<8x1xf32>
    %cst_349 = arith.constant 3.200000e+01 : f32
    %867 = vector.broadcast %cst_349 : f32 to vector<8x1xf32>
    %868 = arith.divf %866, %867 : vector<8x1xf32>
    %cst_350 = arith.constant 9.99999974E-6 : f32
    %869 = vector.broadcast %cst_350 : f32 to vector<8x1xf32>
    %870 = arith.addf %868, %869 : vector<8x1xf32>
    %871 = math.rsqrt %870 : vector<8x1xf32>
    %872 = vector.broadcast %871 : vector<8x1xf32> to vector<8x32xf32>
    %873 = arith.mulf %863, %872 : vector<8x32xf32>
    %874 = vector.broadcast %697 : vector<1x32xf32> to vector<8x32xf32>
    %875 = arith.mulf %873, %874 : vector<8x32xf32>
    %876 = vector.broadcast %699 : vector<1x32xf32> to vector<8x32xf32>
    %877 = arith.addf %875, %876 : vector<8x32xf32>
    %878 = arith.truncf %877 : vector<8x32xf32> to vector<8x32xbf16>
    %cst_351 = arith.constant dense<0.000000e+00> : vector<8x128xf32>
    %879 = tpu.matmul %878, %701, %cst_351 {dimension_numbers = #tpu.dot_dimension_numbers<[1], [0], [0], [1], [0, 0, 1, 1], [], []>} : vector<8x32xbf16>, vector<32x128xbf16>, vector<8x128xf32> -> vector<8x128xf32>
    %880 = vector.broadcast %703 : vector<1x128xf32> to vector<8x128xf32>
    %881 = arith.addf %879, %880 : vector<8x128xf32>
    %cst_352 = arith.constant 0.707106769 : f32
    %882 = vector.broadcast %cst_352 : f32 to vector<8x128xf32>
    %883 = arith.mulf %881, %882 : vector<8x128xf32>
    %884 = math.absf %883 : vector<8x128xf32>
    %cst_353 = arith.constant 0.327591091 : f32
    %885 = vector.broadcast %cst_353 : f32 to vector<8x128xf32>
    %886 = arith.mulf %885, %884 : vector<8x128xf32>
    %cst_354 = arith.constant 1.000000e+00 : f32
    %887 = vector.broadcast %cst_354 : f32 to vector<8x128xf32>
    %888 = arith.addf %887, %886 : vector<8x128xf32>
    %cst_355 = arith.constant 1.000000e+00 : f32
    %889 = vector.broadcast %cst_355 : f32 to vector<8x128xf32>
    %890 = arith.divf %889, %888 : vector<8x128xf32>
    %cst_356 = arith.constant 1.06140542 : f32
    %891 = vector.broadcast %cst_356 : f32 to vector<8x128xf32>
    %892 = arith.mulf %891, %890 : vector<8x128xf32>
    %cst_357 = arith.constant -1.45315206 : f32
    %893 = vector.broadcast %cst_357 : f32 to vector<8x128xf32>
    %894 = arith.addf %892, %893 : vector<8x128xf32>
    %895 = arith.mulf %894, %890 : vector<8x128xf32>
    %cst_358 = arith.constant 1.42141378 : f32
    %896 = vector.broadcast %cst_358 : f32 to vector<8x128xf32>
    %897 = arith.addf %895, %896 : vector<8x128xf32>
    %898 = arith.mulf %897, %890 : vector<8x128xf32>
    %cst_359 = arith.constant -0.284496725 : f32
    %899 = vector.broadcast %cst_359 : f32 to vector<8x128xf32>
    %900 = arith.addf %898, %899 : vector<8x128xf32>
    %901 = arith.mulf %900, %890 : vector<8x128xf32>
    %cst_360 = arith.constant 0.254829586 : f32
    %902 = vector.broadcast %cst_360 : f32 to vector<8x128xf32>
    %903 = arith.addf %901, %902 : vector<8x128xf32>
    %904 = arith.mulf %903, %890 : vector<8x128xf32>
    %cst_361 = arith.constant 0.000000e+00 : f32
    %905 = vector.broadcast %cst_361 : f32 to vector<8x128xf32>
    %906 = arith.subf %905, %884 : vector<8x128xf32>
    %907 = arith.mulf %906, %884 : vector<8x128xf32>
    %908 = math.exp %907 : vector<8x128xf32>
    %909 = arith.mulf %904, %908 : vector<8x128xf32>
    %cst_362 = arith.constant 1.000000e+00 : f32
    %910 = vector.broadcast %cst_362 : f32 to vector<8x128xf32>
    %911 = arith.subf %910, %909 : vector<8x128xf32>
    %cst_363 = arith.constant 0.000000e+00 : f32
    %912 = vector.broadcast %cst_363 : f32 to vector<8x128xf32>
    %913 = arith.cmpf olt, %883, %912 : vector<8x128xf32>
    %cst_364 = arith.constant 0.000000e+00 : f32
    %914 = vector.broadcast %cst_364 : f32 to vector<8x128xf32>
    %915 = arith.subf %914, %911 : vector<8x128xf32>
    %916 = arith.select %913, %915, %911 : vector<8x128xi1>, vector<8x128xf32>
    %cst_365 = arith.constant 5.000000e-01 : f32
    %917 = vector.broadcast %cst_365 : f32 to vector<8x128xf32>
    %918 = arith.mulf %917, %881 : vector<8x128xf32>
    %cst_366 = arith.constant 1.000000e+00 : f32
    %919 = vector.broadcast %cst_366 : f32 to vector<8x128xf32>
    %920 = arith.addf %919, %916 : vector<8x128xf32>
    %921 = arith.mulf %918, %920 : vector<8x128xf32>
    %922 = arith.truncf %921 : vector<8x128xf32> to vector<8x128xbf16>
    %cst_367 = arith.constant dense<0.000000e+00> : vector<8x32xf32>
    %923 = tpu.matmul %922, %705, %cst_367 {dimension_numbers = #tpu.dot_dimension_numbers<[1], [0], [0], [1], [0, 0, 1, 1], [], []>} : vector<8x128xbf16>, vector<128x32xbf16>, vector<8x32xf32> -> vector<8x32xf32>
    %924 = arith.addf %857, %923 : vector<8x32xf32>
    %925 = vector.broadcast %707 : vector<1x32xf32> to vector<8x32xf32>
    %926 = arith.addf %924, %925 : vector<8x32xf32>
    %c0_368 = arith.constant 0 : index
    %c0_369 = arith.constant 0 : index
    %927 = vector.load %arg35[%c0_368, %c0_369] : memref<1x32xf32, #tpu.memory_space<vmem>>, vector<1x32xf32>
    %c0_370 = arith.constant 0 : index
    %c0_371 = arith.constant 0 : index
    %928 = vector.load %arg36[%c0_370, %c0_371] : memref<1x32xf32, #tpu.memory_space<vmem>>, vector<1x32xf32>
    %cst_372 = arith.constant dense<0.000000e+00> : vector<8xf32>
    %929 = vector.multi_reduction <add>, %926, %cst_372 [1] : vector<8x32xf32> to vector<8xf32>
    %930 = vector.shape_cast %929 : vector<8xf32> to vector<8x1xf32>
    %cst_373 = arith.constant 3.200000e+01 : f32
    %931 = vector.broadcast %cst_373 : f32 to vector<8x1xf32>
    %932 = arith.divf %930, %931 : vector<8x1xf32>
    %933 = vector.broadcast %932 : vector<8x1xf32> to vector<8x32xf32>
    %934 = arith.subf %926, %933 : vector<8x32xf32>
    %935 = arith.mulf %934, %934 : vector<8x32xf32>
    %cst_374 = arith.constant dense<0.000000e+00> : vector<8xf32>
    %936 = vector.multi_reduction <add>, %935, %cst_374 [1] : vector<8x32xf32> to vector<8xf32>
    %937 = vector.shape_cast %936 : vector<8xf32> to vector<8x1xf32>
    %cst_375 = arith.constant 3.200000e+01 : f32
    %938 = vector.broadcast %cst_375 : f32 to vector<8x1xf32>
    %939 = arith.divf %937, %938 : vector<8x1xf32>
    %cst_376 = arith.constant 9.99999974E-6 : f32
    %940 = vector.broadcast %cst_376 : f32 to vector<8x1xf32>
    %941 = arith.addf %939, %940 : vector<8x1xf32>
    %942 = math.rsqrt %941 : vector<8x1xf32>
    %943 = vector.broadcast %942 : vector<8x1xf32> to vector<8x32xf32>
    %944 = arith.mulf %934, %943 : vector<8x32xf32>
    %945 = vector.broadcast %927 : vector<1x32xf32> to vector<8x32xf32>
    %946 = arith.mulf %944, %945 : vector<8x32xf32>
    %947 = vector.broadcast %928 : vector<1x32xf32> to vector<8x32xf32>
    %948 = arith.addf %946, %947 : vector<8x32xf32>
    %c0_377 = arith.constant 0 : index
    %c0_378 = arith.constant 0 : index
    %949 = vector.load %arg37[%c0_377, %c0_378] : memref<8x32xf32, #tpu.memory_space<vmem>>, vector<8x32xf32>
    tpu.vector_store %arg37[%c0_377, %c0_378], %948 {strides = array<i32>} : memref<8x32xf32, #tpu.memory_space<vmem>>, vector<8x32xf32>,
    %950 = vector.shape_cast %948 : vector<8x32xf32> to vector<2x4x32xf32>
    %cst_379 = arith.constant dense<0.000000e+00> : vector<2x32xf32>
    %951 = vector.multi_reduction <add>, %950, %cst_379 [1] : vector<2x4x32xf32> to vector<2x32xf32>
    %cst_380 = arith.constant 4.000000e+00 : f32
    %952 = vector.broadcast %cst_380 : f32 to vector<2x32xf32>
    %953 = arith.divf %951, %952 : vector<2x32xf32>
    %c0_381 = arith.constant 0 : index
    %c0_382 = arith.constant 0 : index
    %954 = vector.load %arg38[%c0_381, %c0_382] : memref<2x32xf32, #tpu.memory_space<vmem>>, vector<2x32xf32>
    tpu.vector_store %arg38[%c0_381, %c0_382], %953 {strides = array<i32>} : memref<2x32xf32, #tpu.memory_space<vmem>>, vector<2x32xf32>,
    return
  }
}

</mosaic_0001>

<llo_original>
// kernel: swin_forward.1
$region0: #{swin_forward.1}
  #allocation0 [shape = 'u32[]', space=smem, size = 0x4, offset = 0x4, fixed_abs, tag = 'smem constant byte address 0x4 - core index']
  #allocation1 [shape = 'u32[144,128]{1,0:T(1,128)}', space=vmem, size = 0x12000, scoped, tag = 'internal scratch']
  %s0 = inlined_call_operand.smem [shape: u32[39], index: -1, kind: input, shape index: {}]
  %s1 = sld [smem:[%s0]]
  %s2 = scalar_lea.smem %s0, 1
  %s3 = sld [smem:[%s2]]
  %s4 = scalar_lea.smem %s0, 2
  %s5 = sld [smem:[%s4]]
  %s6 = scalar_lea.smem %s0, 3
  %s7 = sld [smem:[%s6]]
  %s8 = scalar_lea.smem %s0, 4
  %s9 = sld [smem:[%s8]]
  %s10 = scalar_lea.smem %s0, 5
  %s11 = sld [smem:[%s10]]
  %s12 = scalar_lea.smem %s0, 6
  %s13 = sld [smem:[%s12]]
  %s14 = scalar_lea.smem %s0, 7
  %s15 = sld [smem:[%s14]]
  %s16 = scalar_lea.smem %s0, 8
  %s17 = sld [smem:[%s16]]
  %s18 = scalar_lea.smem %s0, 9
  %s19 = sld [smem:[%s18]]
  %s20 = scalar_lea.smem %s0, 10
  %s21 = sld [smem:[%s20]]
  %s22 = scalar_lea.smem %s0, 11
  %s23 = sld [smem:[%s22]]
  %s24 = scalar_lea.smem %s0, 12
  %s25 = sld [smem:[%s24]]
  %s26 = scalar_lea.smem %s0, 13
  %s27 = sld [smem:[%s26]]
  %s28 = scalar_lea.smem %s0, 14
  %s29 = sld [smem:[%s28]]
  %s30 = scalar_lea.smem %s0, 15
  %s31 = sld [smem:[%s30]]
  %s32 = scalar_lea.smem %s0, 16
  %s33 = sld [smem:[%s32]]
  %s34 = scalar_lea.smem %s0, 17
  %s35 = sld [smem:[%s34]]
  %s36 = scalar_lea.smem %s0, 18
  %s37 = sld [smem:[%s36]]
  %s38 = scalar_lea.smem %s0, 19
  %s39 = sld [smem:[%s38]]
  %s40 = scalar_lea.smem %s0, 20
  %s41 = sld [smem:[%s40]]
  %s42 = scalar_lea.smem %s0, 21
  %s43 = sld [smem:[%s42]]
  %s44 = scalar_lea.smem %s0, 22
  %s45 = sld [smem:[%s44]]
  %s46 = scalar_lea.smem %s0, 23
  %s47 = sld [smem:[%s46]]
  %s48 = scalar_lea.smem %s0, 24
  %s49 = sld [smem:[%s48]]
  %s50 = scalar_lea.smem %s0, 25
  %s51 = sld [smem:[%s50]]
  %s52 = scalar_lea.smem %s0, 26
  %s53 = sld [smem:[%s52]]
  %s54 = scalar_lea.smem %s0, 27
  %s55 = sld [smem:[%s54]]
  %s56 = scalar_lea.smem %s0, 28
  %s57 = sld [smem:[%s56]]
  %s58 = scalar_lea.smem %s0, 29
  %s59 = sld [smem:[%s58]]
  %s60 = scalar_lea.smem %s0, 30
  %s61 = sld [smem:[%s60]]
  %s62 = scalar_lea.smem %s0, 31
  %s63 = sld [smem:[%s62]]
  %s64 = scalar_lea.smem %s0, 32
  %s65 = sld [smem:[%s64]]
  %s66 = scalar_lea.smem %s0, 33
  %s67 = sld [smem:[%s66]]
  %s68 = scalar_lea.smem %s0, 34
  %s69 = sld [smem:[%s68]]
  %s70 = scalar_lea.smem %s0, 35
  %s71 = sld [smem:[%s70]]
  %s72 = scalar_lea.smem %s0, 36
  %s73 = sld [smem:[%s72]]
  %s74 = scalar_lea.smem %s0, 37
  %s75 = sld [smem:[%s74]]
  %s76 = scalar_lea.smem %s0, 38
  %s77 = sld [smem:[%s76]]
  %78 = xla_tuple %s75, %s77
  %s79 = sld [smem:[#allocation0]]
  $region166: #{swin_forward.1} parent=0
    _
  %s81 = ssub.s32 1, %s79
  %s82 = scalar_select 0, %s81, %s79
  $region1: #{swin_forward.1} parent=0
    #allocation2 [shape = 'u8[4096]{0}', space=vmem, size = 0x1000, scoped, tag = 'output window, operand 0, single buffered']
    #allocation3 [shape = 's32[1]{0}', space=sflag, size = 0x4, scoped, tag = 'scoped memory for swin_forward.1']
    #allocation4 [shape = 'u8[1024]{0}', space=vmem, size = 0x400, scoped, tag = 'output window, operand 1, single buffered']
    #allocation5 [shape = 's32[1]{0}', space=sflag, size = 0x4, scoped, tag = 'scoped memory for swin_forward.1']
    %83 = vsyncpa [#allocation3], 0
    %84 = vsyncpa [#allocation5], 0
    // Predicated region
    $region2: #{swin_forward.1} parent=1 // pred_check
      _
    $region3: #{swin_forward.1} parent=1 // pred_check_branch
      %86 = sbr.rel (0) target = $region5
    $region4: #{swin_forward.1} parent=1 // pred_region
      _
    $region5: #{swin_forward.1} parent=1 // pred_fallthru
      _
    // Predicated region
    $region6: #{swin_forward.1} parent=1 // pred_check
      _
    $region7: #{swin_forward.1} parent=1 // pred_check_branch
      %88 = sbr.rel (0) target = $region9
    $region8: #{swin_forward.1} parent=1 // pred_region
      _
    $region9: #{swin_forward.1} parent=1 // pred_fallthru
      _
    // Predicated region
    $region10: #{swin_forward.1} parent=1 // pred_check
      _
    $region11: #{swin_forward.1} parent=1 // pred_check_branch
      %90 = sbr.rel (0) target = $region13
    $region12: #{swin_forward.1} parent=1 // pred_region
      _
    $region13: #{swin_forward.1} parent=1 // pred_fallthru
      _
    // Predicated region
    $region14: #{swin_forward.1} parent=1 // pred_check
      _
    $region15: #{swin_forward.1} parent=1 // pred_check_branch
      %92 = sbr.rel (0) target = $region17
    $region16: #{swin_forward.1} parent=1 // pred_region
      _
    $region17: #{swin_forward.1} parent=1 // pred_fallthru
      _
    // Predicated region
    $region18: #{swin_forward.1} parent=1 // pred_check
      _
    $region19: #{swin_forward.1} parent=1 // pred_check_branch
      %94 = sbr.rel (0) target = $region21
    $region20: #{swin_forward.1} parent=1 // pred_region
      _
    $region21: #{swin_forward.1} parent=1 // pred_fallthru
      _
    // Predicated region
    $region22: #{swin_forward.1} parent=1 // pred_check
      _
    $region23: #{swin_forward.1} parent=1 // pred_check_branch
      %96 = sbr.rel (0) target = $region25
    $region24: #{swin_forward.1} parent=1 // pred_region
      _
    $region25: #{swin_forward.1} parent=1 // pred_fallthru
      _
    // Predicated region
    $region26: #{swin_forward.1} parent=1 // pred_check
      _
    $region27: #{swin_forward.1} parent=1 // pred_check_branch
      %98 = sbr.rel (0) target = $region29
    $region28: #{swin_forward.1} parent=1 // pred_region
      _
    $region29: #{swin_forward.1} parent=1 // pred_fallthru
      _
    // Predicated region
    $region30: #{swin_forward.1} parent=1 // pred_check
      _
    $region31: #{swin_forward.1} parent=1 // pred_check_branch
      %100 = sbr.rel (0) target = $region33
    $region32: #{swin_forward.1} parent=1 // pred_region
      _
    $region33: #{swin_forward.1} parent=1 // pred_fallthru
      _
    // Predicated region
    $region34: #{swin_forward.1} parent=1 // pred_check
      _
    $region35: #{swin_forward.1} parent=1 // pred_check_branch
      %102 = sbr.rel (0) target = $region37
    $region36: #{swin_forward.1} parent=1 // pred_region
      _
    $region37: #{swin_forward.1} parent=1 // pred_fallthru
      _
    // Predicated region
    $region38: #{swin_forward.1} parent=1 // pred_check
      _
    $region39: #{swin_forward.1} parent=1 // pred_check_branch
      %104 = sbr.rel (0) target = $region41
    $region40: #{swin_forward.1} parent=1 // pred_region
      _
    $region41: #{swin_forward.1} parent=1 // pred_fallthru
      _
    // Predicated region
    $region42: #{swin_forward.1} parent=1 // pred_check
      _
    $region43: #{swin_forward.1} parent=1 // pred_check_branch
      %106 = sbr.rel (0) target = $region45
    $region44: #{swin_forward.1} parent=1 // pred_region
      _
    $region45: #{swin_forward.1} parent=1 // pred_fallthru
      _
    // Predicated region
    $region46: #{swin_forward.1} parent=1 // pred_check
      _
    $region47: #{swin_forward.1} parent=1 // pred_check_branch
      %108 = sbr.rel (0) target = $region49
    $region48: #{swin_forward.1} parent=1 // pred_region
      _
    $region49: #{swin_forward.1} parent=1 // pred_fallthru
      _
    // Predicated region
    $region50: #{swin_forward.1} parent=1 // pred_check
      _
    $region51: #{swin_forward.1} parent=1 // pred_check_branch
      %110 = sbr.rel (0) target = $region53
    $region52: #{swin_forward.1} parent=1 // pred_region
      _
    $region53: #{swin_forward.1} parent=1 // pred_fallthru
      _
    // Predicated region
    $region54: #{swin_forward.1} parent=1 // pred_check
      _
    $region55: #{swin_forward.1} parent=1 // pred_check_branch
      %112 = sbr.rel (0) target = $region57
    $region56: #{swin_forward.1} parent=1 // pred_region
      _
    $region57: #{swin_forward.1} parent=1 // pred_fallthru
      _
    // Predicated region
    $region58: #{swin_forward.1} parent=1 // pred_check
      _
    $region59: #{swin_forward.1} parent=1 // pred_check_branch
      %114 = sbr.rel (0) target = $region61
    $region60: #{swin_forward.1} parent=1 // pred_region
      _
    $region61: #{swin_forward.1} parent=1 // pred_fallthru
      _
    // Predicated region
    $region62: #{swin_forward.1} parent=1 // pred_check
      _
    $region63: #{swin_forward.1} parent=1 // pred_check_branch
      %116 = sbr.rel (0) target = $region65
    $region64: #{swin_forward.1} parent=1 // pred_region
      _
    $region65: #{swin_forward.1} parent=1 // pred_fallthru
      _
    // Predicated region
    $region66: #{swin_forward.1} parent=1 // pred_check
      _
    $region67: #{swin_forward.1} parent=1 // pred_check_branch
      %118 = sbr.rel (0) target = $region69
    $region68: #{swin_forward.1} parent=1 // pred_region
      _
    $region69: #{swin_forward.1} parent=1 // pred_fallthru
      _
    // Predicated region
    $region70: #{swin_forward.1} parent=1 // pred_check
      _
    $region71: #{swin_forward.1} parent=1 // pred_check_branch
      %120 = sbr.rel (0) target = $region73
    $region72: #{swin_forward.1} parent=1 // pred_region
      _
    $region73: #{swin_forward.1} parent=1 // pred_fallthru
      _
    // Predicated region
    $region74: #{swin_forward.1} parent=1 // pred_check
      _
    $region75: #{swin_forward.1} parent=1 // pred_check_branch
      %122 = sbr.rel (0) target = $region77
    $region76: #{swin_forward.1} parent=1 // pred_region
      _
    $region77: #{swin_forward.1} parent=1 // pred_fallthru
      _
    // Predicated region
    $region78: #{swin_forward.1} parent=1 // pred_check
      _
    $region79: #{swin_forward.1} parent=1 // pred_check_branch
      %124 = sbr.rel (0) target = $region81
    $region80: #{swin_forward.1} parent=1 // pred_region
      _
    $region81: #{swin_forward.1} parent=1 // pred_fallthru
      _
    // Predicated region
    $region82: #{swin_forward.1} parent=1 // pred_check
      _
    $region83: #{swin_forward.1} parent=1 // pred_check_branch
      %126 = sbr.rel (0) target = $region85
    $region84: #{swin_forward.1} parent=1 // pred_region
      _
    $region85: #{swin_forward.1} parent=1 // pred_fallthru
      _
    // Predicated region
    $region86: #{swin_forward.1} parent=1 // pred_check
      _
    $region87: #{swin_forward.1} parent=1 // pred_check_branch
      %128 = sbr.rel (0) target = $region89
    $region88: #{swin_forward.1} parent=1 // pred_region
      _
    $region89: #{swin_forward.1} parent=1 // pred_fallthru
      _
    // Predicated region
    $region90: #{swin_forward.1} parent=1 // pred_check
      _
    $region91: #{swin_forward.1} parent=1 // pred_check_branch
      %130 = sbr.rel (0) target = $region93
    $region92: #{swin_forward.1} parent=1 // pred_region
      _
    $region93: #{swin_forward.1} parent=1 // pred_fallthru
      _
    // Predicated region
    $region94: #{swin_forward.1} parent=1 // pred_check
      _
    $region95: #{swin_forward.1} parent=1 // pred_check_branch
      %132 = sbr.rel (0) target = $region97
    $region96: #{swin_forward.1} parent=1 // pred_region
      _
    $region97: #{swin_forward.1} parent=1 // pred_fallthru
      _
    // Predicated region
    $region98: #{swin_forward.1} parent=1 // pred_check
      _
    $region99: #{swin_forward.1} parent=1 // pred_check_branch
      %134 = sbr.rel (0) target = $region101
    $region100: #{swin_forward.1} parent=1 // pred_region
      _
    $region101: #{swin_forward.1} parent=1 // pred_fallthru
      _
    // Predicated region
    $region102: #{swin_forward.1} parent=1 // pred_check
      _
    $region103: #{swin_forward.1} parent=1 // pred_check_branch
      %136 = sbr.rel (0) target = $region105
    $region104: #{swin_forward.1} parent=1 // pred_region
      _
    $region105: #{swin_forward.1} parent=1 // pred_fallthru
      _
    // Predicated region
    $region106: #{swin_forward.1} parent=1 // pred_check
      _
    $region107: #{swin_forward.1} parent=1 // pred_check_branch
      %138 = sbr.rel (0) target = $region109
    $region108: #{swin_forward.1} parent=1 // pred_region
      _
    $region109: #{swin_forward.1} parent=1 // pred_fallthru
      _
    // Predicated region
    $region110: #{swin_forward.1} parent=1 // pred_check
      _
    $region111: #{swin_forward.1} parent=1 // pred_check_branch
      %140 = sbr.rel (0) target = $region113
    $region112: #{swin_forward.1} parent=1 // pred_region
      _
    $region113: #{swin_forward.1} parent=1 // pred_fallthru
      _
    // Predicated region
    $region114: #{swin_forward.1} parent=1 // pred_check
      _
    $region115: #{swin_forward.1} parent=1 // pred_check_branch
      %142 = sbr.rel (0) target = $region117
    $region116: #{swin_forward.1} parent=1 // pred_region
      _
    $region117: #{swin_forward.1} parent=1 // pred_fallthru
      _
    // Predicated region
    $region118: #{swin_forward.1} parent=1 // pred_check
      _
    $region119: #{swin_forward.1} parent=1 // pred_check_branch
      %144 = sbr.rel (0) target = $region121
    $region120: #{swin_forward.1} parent=1 // pred_region
      _
    $region121: #{swin_forward.1} parent=1 // pred_fallthru
      _
    // Predicated region
    $region122: #{swin_forward.1} parent=1 // pred_check
      _
    $region123: #{swin_forward.1} parent=1 // pred_check_branch
      %146 = sbr.rel (0) target = $region125
    $region124: #{swin_forward.1} parent=1 // pred_region
      _
    $region125: #{swin_forward.1} parent=1 // pred_fallthru
      _
    // Predicated region
    $region126: #{swin_forward.1} parent=1 // pred_check
      _
    $region127: #{swin_forward.1} parent=1 // pred_check_branch
      %148 = sbr.rel (0) target = $region129
    $region128: #{swin_forward.1} parent=1 // pred_region
      _
    $region129: #{swin_forward.1} parent=1 // pred_fallthru
      _
    // Predicated region
    $region130: #{swin_forward.1} parent=1 // pred_check
      _
    $region131: #{swin_forward.1} parent=1 // pred_check_branch
      %150 = sbr.rel (0) target = $region133
    $region132: #{swin_forward.1} parent=1 // pred_region
      _
    $region133: #{swin_forward.1} parent=1 // pred_fallthru
      _
    // Predicated region
    $region134: #{swin_forward.1} parent=1 // pred_check
      _
    $region135: #{swin_forward.1} parent=1 // pred_check_branch
      %152 = sbr.rel (0) target = $region137
    $region136: #{swin_forward.1} parent=1 // pred_region
      _
    $region137: #{swin_forward.1} parent=1 // pred_fallthru
      _
    // Predicated region
    $region138: #{swin_forward.1} parent=1 // pred_check
      _
    $region139: #{swin_forward.1} parent=1 // pred_check_branch
      %154 = sbr.rel (0) target = $region141
    $region140: #{swin_forward.1} parent=1 // pred_region
      _
    $region141: #{swin_forward.1} parent=1 // pred_fallthru
      _
    // Predicated region
    $region142: #{swin_forward.1} parent=1 // pred_check
      _
    $region143: #{swin_forward.1} parent=1 // pred_check_branch
      %156 = sbr.rel (0) target = $region145
    $region144: #{swin_forward.1} parent=1 // pred_region
      _
    $region145: #{swin_forward.1} parent=1 // pred_fallthru
      _
    // Predicated region
    $region146: #{swin_forward.1} parent=1 // pred_check
      _
    $region147: #{swin_forward.1} parent=1 // pred_check_branch
      %158 = sbr.rel (0) target = $region149
    $region148: #{swin_forward.1} parent=1 // pred_region
      _
    $region149: #{swin_forward.1} parent=1 // pred_fallthru
      _
    %v160 = vld [vmem:[%s1] sm:$0xf]
    %v161 = vld [vmem:[%s1 + $0x4] sm:$0xf]
    %v162 = vld [vmem:[%s1 + $0x8] sm:$0xf]
    %v163 = vld [vmem:[%s1 + $0xc] sm:$0xf]
    %v164 = vld [vmem:[%s3] sm:$0xf]
    %v165 = vld [vmem:[%s3 + $0x4] sm:$0xf]
    %v166 = vld [vmem:[%s3 + $0x8] sm:$0xf]
    %v167 = vld [vmem:[%s3 + $0xc] sm:$0xf]
    %v168 = vld [vmem:[%s3 + $0x10] sm:$0xf]
    %v169 = vld [vmem:[%s3 + $0x14] sm:$0xf]
    %v170 = vld [vmem:[%s3 + $0x18] sm:$0xf]
    %v171 = vld [vmem:[%s3 + $0x1c] sm:$0xf]
    %v172 = vld [vmem:[%s5] sm:$0x1]
    %v174 = vlaneseq
    %v175 = vshrl.u32 %v174, 7
    %v176 = vsub.s32 0, %v175
    %v177 = vrot.slane %v172, %v176
    %v183 = vunpack.c.l.b16 %v160
    %v184 = vunpack.c.l.b16 %v161
    %v185 = vunpack.c.l.b16 %v162
    %v186 = vunpack.c.l.b16 %v163
    %v187 = vpack.c.b16 %v184, %v183
    %v188 = vpack.c.b16 %v186, %v185
    %v197 = vunpack.c.l.b16 %v164
    %v198 = vunpack.c.l.b16 %v165
    %v199 = vunpack.c.l.b16 %v166
    %v200 = vunpack.c.l.b16 %v167
    %v201 = vunpack.c.l.b16 %v168
    %v202 = vunpack.c.l.b16 %v169
    %v203 = vunpack.c.l.b16 %v170
    %v204 = vunpack.c.l.b16 %v171
    %v205 = vpack.c.b16 %v198, %v197
    %v206 = vpack.c.b16 %v200, %v199
    %v207 = vpack.c.b16 %v202, %v201
    %v208 = vpack.c.b16 %v204, %v203
    %vm213 = vcmask 523264
    %v215 = vsel %vm213, %v187, 0
    %v218 = vsel %vm213, %v188, 0
    %220 = vmatprep.subr.bf16.mxu0 0
    %221 = vmatpush1.bf16.msra.mxu0 %v205
    %222 = vmatprep.subr.bf16.mxu0 0
    %223 = vmatpush1.bf16.msra.mxu0 %v206
    %224 = vmatprep.subr.bf16.mxu0 0
    %225 = vmatpush1.bf16.msra.mxu0 %v207
    %226 = vmatprep.subr.bf16.mxu0 0
    %227 = vmatpush1.bf16.msra.mxu0 %v208
    %228 = vmatprep.subr.bf16.mxu0 0
    %229 = vmatpush1.bf16.msra.mxu0 0
    %230 = vmatprep.subr.bf16.mxu0 0
    %231 = vmatpush1.bf16.msra.mxu0 0
    %232 = vmatprep.subr.bf16.mxu0 0
    %233 = vmatpush1.bf16.msra.mxu0 0
    %234 = vmatprep.subr.bf16.mxu0 0
    %235 = vmatpush1.bf16.msra.mxu0 0
    %236 = vmatprep.subr.bf16.mxu0 0
    %237 = vmatpush1.bf16.msra.mxu0 0
    %238 = vmatprep.subr.bf16.mxu0 0
    %239 = vmatpush1.bf16.msra.mxu0 0
    %240 = vmatprep.subr.bf16.mxu0 0
    %241 = vmatpush1.bf16.msra.mxu0 0
    %242 = vmatprep.subr.bf16.mxu0 0
    %243 = vmatpush1.bf16.msra.mxu0 0
    %244 = vmatprep.subr.bf16.mxu0 0
    %245 = vmatpush1.bf16.msra.mxu0 0
    %246 = vmatprep.subr.bf16.mxu0 0
    %247 = vmatpush1.bf16.msra.mxu0 0
    %248 = vmatprep.subr.bf16.mxu0 0
    %249 = vmatpush1.bf16.msra.mxu0 0
    %250 = vmatprep.subr.bf16.mxu0 0
    %251 = vmatpush1.bf16.msra.mxu0 0
    %252 = vmatprep.mubr.bf16.mxu0 0
    %253 = vmatmul.mubr.bf16.gmra.mrb[0].mxu0 %v215
    %v254 = vpop.f32.mrb[0].mxu0
    %v255 = vadd.f32 %v177, %v254
    %v256 = vpop.f32.mrb[0].mxu0
    %v257 = vpop.f32.mrb[0].mxu0
    %v258 = vadd.f32 %v177, %v257
    %v259 = vpop.f32.mrb[0].mxu0
    %260 = vmatprep.mubr.bf16.mxu0 0
    %261 = vmatmul.mubr.bf16.gmra.mrb[0].mxu0 %v218
    %v262 = vpop.f32.mrb[0].mxu0
    %v263 = vadd.f32 %v177, %v262
    %v264 = vpop.f32.mrb[0].mxu0
    %v265 = vpop.f32.mrb[0].mxu0
    %v266 = vadd.f32 %v177, %v265
    %v267 = vpop.f32.mrb[0].mxu0
    %268 = vdwg.mxu0
    %v269 = vld [vmem:[%s7] sm:$0x1]
    %v270 = vld [vmem:[%s9] sm:$0x1]
    %vm271 = vcmask 130048
    %v272 = vsel %vm271, %v255, 0.0
    %273 = vadd.xlane.f32.xlu0 %v272
    %v274 = vpop.xlane.xlu0 %273
    %v275 = vsel %vm271, %v258, 0.0
    %276 = vadd.xlane.f32.xlu0 %v275
    %v277 = vpop.xlane.xlu0 %276
    %v278 = vsel %vm271, %v263, 0.0
    %279 = vadd.xlane.f32.xlu0 %v278
    %v280 = vpop.xlane.xlu0 %279
    %v281 = vsel %vm271, %v266, 0.0
    %282 = vadd.xlane.f32.xlu0 %v281
    %v283 = vpop.xlane.xlu0 %282
    %v284 = vrcp.pop 16.0
    %v285 = vmul.f32 %v274, %v284
    %v286 = vmul.f32 %v277, %v284
    %v287 = vmul.f32 %v280, %v284
    %v288 = vmul.f32 %v283, %v284
    %v289 = vsub.f32 %v255, %v285
    %v290 = vsub.f32 %v258, %v286
    %v291 = vsub.f32 %v263, %v287
    %v292 = vsub.f32 %v266, %v288
    %v293 = vmul.f32 %v289, %v289
    %v294 = vmul.f32 %v290, %v290
    %v295 = vmul.f32 %v291, %v291
    %v296 = vmul.f32 %v292, %v292
    %v297 = vsel %vm271, %v293, 0.0
    %298 = vadd.xlane.f32.xlu0 %v297
    %v299 = vpop.xlane.xlu0 %298
    %v300 = vsel %vm271, %v294, 0.0
    %301 = vadd.xlane.f32.xlu0 %v300
    %v302 = vpop.xlane.xlu0 %301
    %v303 = vsel %vm271, %v295, 0.0
    %304 = vadd.xlane.f32.xlu0 %v303
    %v305 = vpop.xlane.xlu0 %304
    %v306 = vsel %vm271, %v296, 0.0
    %307 = vadd.xlane.f32.xlu0 %v306
    %v308 = vpop.xlane.xlu0 %307
    %v309 = vmul.f32 %v299, %v284
    %v310 = vmul.f32 %v302, %v284
    %v311 = vmul.f32 %v305, %v284
    %v312 = vmul.f32 %v308, %v284
    %v313 = vadd.f32 %v309, 1e-05
    %v314 = vadd.f32 %v310, 1e-05
    %v315 = vadd.f32 %v311, 1e-05
    %v316 = vadd.f32 %v312, 1e-05
    %v317 = vrsqrt.pop %v313
    %v318 = vrsqrt.pop %v314
    %v319 = vrsqrt.pop %v315
    %v320 = vrsqrt.pop %v316
    %v321 = vmul.f32 %v289, %v317
    %v322 = vmul.f32 %v290, %v318
    %v323 = vmul.f32 %v291, %v319
    %v324 = vmul.f32 %v292, %v320
    %v326 = vlaneseq
    %v327 = vshrl.u32 %v326, 7
    %v328 = vsub.s32 0, %v327
    %v329 = vrot.slane %v269, %v328
    %v331 = vmul.f32 %v321, %v329
    %v332 = vmul.f32 %v322, %v329
    %v333 = vmul.f32 %v323, %v329
    %v334 = vmul.f32 %v324, %v329
    %v336 = vlaneseq
    %v337 = vshrl.u32 %v336, 7
    %v338 = vsub.s32 0, %v337
    %v339 = vrot.slane %v270, %v338
    %v341 = vadd.f32 %v331, %v339
    %v342 = vadd.f32 %v332, %v339
    %v343 = vadd.f32 %v333, %v339
    %v344 = vadd.f32 %v334, %v339
    %v345 = vld [vmem:[%s19] sm:$0xff]
    %v346 = vld [vmem:[%s19 + $0x8] sm:$0xff]
    %v347 = vld [vmem:[%s19 + $0x10] sm:$0xff]
    %v348 = vld [vmem:[%s19 + $0x18] sm:$0xff]
    %v349 = vld [vmem:[%s11] sm:$0x1]
    %v350 = vld [vmem:[%s13] sm:$0x1]
    %v351 = vld [vmem:[%s15] sm:$0xf]
    %v352 = vld [vmem:[%s15 + $0x4] sm:$0xf]
    %v353 = vld [vmem:[%s17] sm:$0x1]
    %v354 = vld [vmem:[%s21] sm:$0xf]
    %v355 = vld [vmem:[%s21 + $0x4] sm:$0xf]
    %v356 = vld [vmem:[%s23] sm:$0x1]
    %v357 = vld [vmem:[%s25] sm:$0x1]
    %v358 = vld [vmem:[%s27] sm:$0x1]
    %v359 = vld [vmem:[%s29] sm:$0xf]
    %v360 = vld [vmem:[%s29 + $0x4] sm:$0xf]
    %v361 = vld [vmem:[%s31] sm:$0x1]
    %v362 = vld [vmem:[%s33] sm:$0xf]
    %v363 = vld [vmem:[%s33 + $0x4] sm:$0xf]
    %v364 = vld [vmem:[%s33 + $0x8] sm:$0xf]
    %v365 = vld [vmem:[%s33 + $0xc] sm:$0xf]
    %v366 = vld [vmem:[%s33 + $0x10] sm:$0xf]
    %v367 = vld [vmem:[%s33 + $0x14] sm:$0xf]
    %v368 = vld [vmem:[%s33 + $0x18] sm:$0xf]
    %v369 = vld [vmem:[%s33 + $0x1c] sm:$0xf]
    %v370 = vld [vmem:[%s35] sm:$0x1]
    %v371 = vsel %vm271, %v341, 0.0
    %372 = vadd.xlane.f32.xlu0 %v371
    %v373 = vpop.xlane.xlu0 %372
    %v374 = vsel %vm271, %v342, 0.0
    %375 = vadd.xlane.f32.xlu0 %v374
    %v376 = vpop.xlane.xlu0 %375
    %v377 = vsel %vm271, %v343, 0.0
    %378 = vadd.xlane.f32.xlu0 %v377
    %v379 = vpop.xlane.xlu0 %378
    %v380 = vsel %vm271, %v344, 0.0
    %381 = vadd.xlane.f32.xlu0 %v380
    %v382 = vpop.xlane.xlu0 %381
    %v383 = vmul.f32 %v373, %v284
    %v384 = vmul.f32 %v376, %v284
    %v385 = vmul.f32 %v379, %v284
    %v386 = vmul.f32 %v382, %v284
    %v387 = vsub.f32 %v341, %v383
    %v388 = vsub.f32 %v342, %v384
    %v389 = vsub.f32 %v343, %v385
    %v390 = vsub.f32 %v344, %v386
    %v391 = vmul.f32 %v387, %v387
    %v392 = vmul.f32 %v388, %v388
    %v393 = vmul.f32 %v389, %v389
    %v394 = vmul.f32 %v390, %v390
    %v395 = vsel %vm271, %v391, 0.0
    %396 = vadd.xlane.f32.xlu0 %v395
    %v397 = vpop.xlane.xlu0 %396
    %v398 = vsel %vm271, %v392, 0.0
    %399 = vadd.xlane.f32.xlu0 %v398
    %v400 = vpop.xlane.xlu0 %399
    %v401 = vsel %vm271, %v393, 0.0
    %402 = vadd.xlane.f32.xlu0 %v401
    %v403 = vpop.xlane.xlu0 %402
    %v404 = vsel %vm271, %v394, 0.0
    %405 = vadd.xlane.f32.xlu0 %v404
    %v406 = vpop.xlane.xlu0 %405
    %v407 = vmul.f32 %v397, %v284
    %v408 = vmul.f32 %v400, %v284
    %v409 = vmul.f32 %v403, %v284
    %v410 = vmul.f32 %v406, %v284
    %v411 = vadd.f32 %v407, 1e-05
    %v412 = vadd.f32 %v408, 1e-05
    %v413 = vadd.f32 %v409, 1e-05
    %v414 = vadd.f32 %v410, 1e-05
    %v415 = vrsqrt.pop %v411
    %v416 = vrsqrt.pop %v412
    %v417 = vrsqrt.pop %v413
    %v418 = vrsqrt.pop %v414
    %v419 = vmul.f32 %v387, %v415
    %v420 = vmul.f32 %v388, %v416
    %v421 = vmul.f32 %v389, %v417
    %v422 = vmul.f32 %v390, %v418
    %v424 = vlaneseq
    %v425 = vshrl.u32 %v424, 7
    %v426 = vsub.s32 0, %v425
    %v427 = vrot.slane %v349, %v426
    %v429 = vmul.f32 %v419, %v427
    %v430 = vmul.f32 %v420, %v427
    %v431 = vmul.f32 %v421, %v427
    %v432 = vmul.f32 %v422, %v427
    %v434 = vlaneseq
    %v435 = vshrl.u32 %v434, 7
    %v436 = vsub.s32 0, %v435
    %v437 = vrot.slane %v350, %v436
    %v439 = vadd.f32 %v429, %v437
    %v440 = vadd.f32 %v430, %v437
    %v441 = vadd.f32 %v431, %v437
    %v442 = vadd.f32 %v432, %v437
    %v443 = vpack.c.bf16 %v440, %v439
    %v444 = vpack.c.bf16 %v442, %v441
    %v446 = vlaneseq
    %v447 = vshrl.u32 %v446, 7
    %v448 = vsub.s32 0, %v447
    %v449 = vrot.slane %v353, %v448
    %v453 = vunpack.c.l.b16 %v351
    %v454 = vunpack.c.l.b16 %v352
    %v455 = vpack.c.b16 %v454, %v453
    %v458 = vsel %vm271, %v443, 0
    %v461 = vsel %vm271, %v444, 0
    %463 = vmatprep.subr.bf16.mxu0 0
    %464 = vmatpush1.bf16.msra.mxu0 %v455
    %465 = vmatprep.subr.bf16.mxu0 0
    %466 = vmatpush1.bf16.msra.mxu0 0
    %467 = vmatprep.subr.bf16.mxu0 0
    %468 = vmatpush1.bf16.msra.mxu0 0
    %469 = vmatprep.subr.bf16.mxu0 0
    %470 = vmatpush1.bf16.msra.mxu0 0
    %471 = vmatprep.subr.bf16.mxu0 0
    %472 = vmatpush1.bf16.msra.mxu0 0
    %473 = vmatprep.subr.bf16.mxu0 0
    %474 = vmatpush1.bf16.msra.mxu0 0
    %475 = vmatprep.subr.bf16.mxu0 0
    %476 = vmatpush1.bf16.msra.mxu0 0
    %477 = vmatprep.subr.bf16.mxu0 0
    %478 = vmatpush1.bf16.msra.mxu0 0
    %479 = vmatprep.subr.bf16.mxu0 0
    %480 = vmatpush1.bf16.msra.mxu0 0
    %481 = vmatprep.subr.bf16.mxu0 0
    %482 = vmatpush1.bf16.msra.mxu0 0
    %483 = vmatprep.subr.bf16.mxu0 0
    %484 = vmatpush1.bf16.msra.mxu0 0
    %485 = vmatprep.subr.bf16.mxu0 0
    %486 = vmatpush1.bf16.msra.mxu0 0
    %487 = vmatprep.subr.bf16.mxu0 0
    %488 = vmatpush1.bf16.msra.mxu0 0
    %489 = vmatprep.subr.bf16.mxu0 0
    %490 = vmatpush1.bf16.msra.mxu0 0
    %491 = vmatprep.subr.bf16.mxu0 0
    %492 = vmatpush1.bf16.msra.mxu0 0
    %493 = vmatprep.subr.bf16.mxu0 0
    %494 = vmatpush1.bf16.msra.mxu0 0
    %495 = vmatprep.mubr.bf16.mxu0 0
    %496 = vmatmul.mubr.bf16.gmra.mrb[0].mxu0 %v458
    %v497 = vpop.f32.mrb[0].mxu0
    %v498 = vadd.f32 %v449, %v497
    %v499 = vpop.f32.mrb[0].mxu0
    %v500 = vpop.f32.mrb[0].mxu0
    %v501 = vadd.f32 %v449, %v500
    %v502 = vpop.f32.mrb[0].mxu0
    %503 = vmatprep.mubr.bf16.mxu0 0
    %504 = vmatmul.mubr.bf16.gmra.mrb[0].mxu0 %v461
    %v505 = vpop.f32.mrb[0].mxu0
    %v506 = vadd.f32 %v449, %v505
    %v507 = vpop.f32.mrb[0].mxu0
    %v508 = vpop.f32.mrb[0].mxu0
    %v509 = vadd.f32 %v449, %v508
    %v510 = vpop.f32.mrb[0].mxu0
    %511 = vdwg.mxu0
    %v512 = vpack.c.bf16 %v501, %v498
    %v513 = vpack.c.bf16 %v509, %v506
    %515 = vrot.lane.b32.xlu0 %v512, 112
    %v516 = vpop.permute.xlu0 %515
    %vm517 = vcmask 64512
    %v519 = vsel %vm517, %v512, 0
    %v522 = vsel %vm517, %v516, 0
    %524 = vmatprep.subr.bf16.mxu0 0
    %525 = vmatpush1.bf16.xpose.msra.mxu0 %v522
    %526 = vmatprep.subr.bf16.mxu0 0
    %527 = vmatpush1.bf16.xpose.msra.mxu0 0
    %528 = vmatprep.subr.bf16.mxu0 0
    %529 = vmatpush1.bf16.xpose.msra.mxu0 0
    %530 = vmatprep.subr.bf16.mxu0 0
    %531 = vmatpush1.bf16.xpose.msra.mxu0 0
    %532 = vmatprep.subr.bf16.mxu0 0
    %533 = vmatpush1.bf16.xpose.msra.mxu0 0
    %534 = vmatprep.subr.bf16.mxu0 0
    %535 = vmatpush1.bf16.xpose.msra.mxu0 0
    %536 = vmatprep.subr.bf16.mxu0 0
    %537 = vmatpush1.bf16.xpose.msra.mxu0 0
    %538 = vmatprep.subr.bf16.mxu0 0
    %539 = vmatpush1.bf16.xpose.msra.mxu0 0
    %540 = vmatprep.subr.bf16.mxu0 0
    %541 = vmatpush1.bf16.xpose.msra.mxu0 0
    %542 = vmatprep.subr.bf16.mxu0 0
    %543 = vmatpush1.bf16.xpose.msra.mxu0 0
    %544 = vmatprep.subr.bf16.mxu0 0
    %545 = vmatpush1.bf16.xpose.msra.mxu0 0
    %546 = vmatprep.subr.bf16.mxu0 0
    %547 = vmatpush1.bf16.xpose.msra.mxu0 0
    %548 = vmatprep.subr.bf16.mxu0 0
    %549 = vmatpush1.bf16.xpose.msra.mxu0 0
    %550 = vmatprep.subr.bf16.mxu0 0
    %551 = vmatpush1.bf16.xpose.msra.mxu0 0
    %552 = vmatprep.subr.bf16.mxu0 0
    %553 = vmatpush1.bf16.xpose.msra.mxu0 0
    %554 = vmatprep.subr.bf16.mxu0 0
    %555 = vmatpush1.bf16.xpose.msra.mxu0 0
    %556 = vmatprep.mubr.bf16.mxu0 0
    %557 = vmatmul.mubr.bf16.gmra.mrb[0].mxu0 %v519
    %v558 = vpop.f32.mrb[0].mxu0
    %v559 = vadd.f32 0.0, %v558
    %v560 = vpop.f32.mrb[0].mxu0
    %v561 = vpop.f32.mrb[0].mxu0
    %v562 = vadd.f32 0.0, %v561
    %v563 = vpop.f32.mrb[0].mxu0
    %564 = vdwg.mxu0
    %566 = vrot.lane.b32.xlu0 %v513, 112
    %v567 = vpop.permute.xlu0 %566
    %v569 = vsel %vm517, %v513, 0
    %v572 = vsel %vm517, %v567, 0
    %574 = vmatprep.subr.bf16.mxu0 0
    %575 = vmatpush1.bf16.xpose.msra.mxu0 %v572
    %576 = vmatprep.subr.bf16.mxu0 0
    %577 = vmatpush1.bf16.xpose.msra.mxu0 0
    %578 = vmatprep.subr.bf16.mxu0 0
    %579 = vmatpush1.bf16.xpose.msra.mxu0 0
    %580 = vmatprep.subr.bf16.mxu0 0
    %581 = vmatpush1.bf16.xpose.msra.mxu0 0
    %582 = vmatprep.subr.bf16.mxu0 0
    %583 = vmatpush1.bf16.xpose.msra.mxu0 0
    %584 = vmatprep.subr.bf16.mxu0 0
    %585 = vmatpush1.bf16.xpose.msra.mxu0 0
    %586 = vmatprep.subr.bf16.mxu0 0
    %587 = vmatpush1.bf16.xpose.msra.mxu0 0
    %588 = vmatprep.subr.bf16.mxu0 0
    %589 = vmatpush1.bf16.xpose.msra.mxu0 0
    %590 = vmatprep.subr.bf16.mxu0 0
    %591 = vmatpush1.bf16.xpose.msra.mxu0 0
    %592 = vmatprep.subr.bf16.mxu0 0
    %593 = vmatpush1.bf16.xpose.msra.mxu0 0
    %594 = vmatprep.subr.bf16.mxu0 0
    %595 = vmatpush1.bf16.xpose.msra.mxu0 0
    %596 = vmatprep.subr.bf16.mxu0 0
    %597 = vmatpush1.bf16.xpose.msra.mxu0 0
    %598 = vmatprep.subr.bf16.mxu0 0
    %599 = vmatpush1.bf16.xpose.msra.mxu0 0
    %600 = vmatprep.subr.bf16.mxu0 0
    %601 = vmatpush1.bf16.xpose.msra.mxu0 0
    %602 = vmatprep.subr.bf16.mxu0 0
    %603 = vmatpush1.bf16.xpose.msra.mxu0 0
    %604 = vmatprep.subr.bf16.mxu0 0
    %605 = vmatpush1.bf16.xpose.msra.mxu0 0
    %606 = vmatprep.mubr.bf16.mxu0 0
    %607 = vmatmul.mubr.bf16.gmra.mrb[0].mxu0 %v569
    %v608 = vpop.f32.mrb[0].mxu0
    %v609 = vadd.f32 0.0, %v608
    %v610 = vpop.f32.mrb[0].mxu0
    %v611 = vpop.f32.mrb[0].mxu0
    %v612 = vadd.f32 0.0, %v611
    %v613 = vpop.f32.mrb[0].mxu0
    %614 = vdwg.mxu0
    %v615 = vmul.f32 %v559, 0.35355338
    %v616 = vmul.f32 %v562, 0.35355338
    %v617 = vmul.f32 %v609, 0.35355338
    %v618 = vmul.f32 %v612, 0.35355338
    %v619 = vadd.f32 %v615, %v345
    %v620 = vadd.f32 %v616, %v346
    %v621 = vadd.f32 %v617, %v345
    %v622 = vadd.f32 %v618, %v346
    %v623 = vsel %vm271, %v619, -inf
    %624 = vmax.xlane.f32.xlu0 %v623
    %v625 = vpop.xlane.xlu0 %624
    %v626 = vsel %vm271, %v620, -inf
    %627 = vmax.xlane.f32.xlu0 %v626
    %v628 = vpop.xlane.xlu0 %627
    %v629 = vsel %vm271, %v621, -inf
    %630 = vmax.xlane.f32.xlu0 %v629
    %v631 = vpop.xlane.xlu0 %630
    %v632 = vsel %vm271, %v622, -inf
    %633 = vmax.xlane.f32.xlu0 %v632
    %v634 = vpop.xlane.xlu0 %633
    %v635 = vsub.f32 %v619, %v625
    %v636 = vsub.f32 %v620, %v628
    %v637 = vsub.f32 %v621, %v631
    %v638 = vsub.f32 %v622, %v634
    %v639 = vmul.f32 %v635, 1.442695
    %v640 = vpow.pop %v639
    %v641 = vmul.f32 %v636, 1.442695
    %v642 = vpow.pop %v641
    %v643 = vmul.f32 %v637, 1.442695
    %v644 = vpow.pop %v643
    %v645 = vmul.f32 %v638, 1.442695
    %v646 = vpow.pop %v645
    %v647 = vsel %vm271, %v640, 0.0
    %648 = vadd.xlane.f32.xlu0 %v647
    %v649 = vpop.xlane.xlu0 %648
    %v650 = vsel %vm271, %v642, 0.0
    %651 = vadd.xlane.f32.xlu0 %v650
    %v652 = vpop.xlane.xlu0 %651
    %v653 = vsel %vm271, %v644, 0.0
    %654 = vadd.xlane.f32.xlu0 %v653
    %v655 = vpop.xlane.xlu0 %654
    %v656 = vsel %vm271, %v646, 0.0
    %657 = vadd.xlane.f32.xlu0 %v656
    %v658 = vpop.xlane.xlu0 %657
    %v659 = vrcp.pop %v649
    %v660 = vrcp.pop %v652
    %v661 = vrcp.pop %v655
    %v662 = vrcp.pop %v658
    %v663 = vmul.f32 %v640, %v659
    %v664 = vmul.f32 %v642, %v660
    %v665 = vmul.f32 %v644, %v661
    %v666 = vmul.f32 %v646, %v662
    %v667 = vpack.c.bf16 %v664, %v663
    %v668 = vpack.c.bf16 %v666, %v665
    %669 = vrot.lane.b32.xlu0 %v512, 96
    %v670 = vpop.permute.xlu0 %669
    %v673 = vsel %vm271, %v667, 0
    %675 = vmatprep.subr.bf16.mxu0 0
    %676 = vmatpush1.bf16.msra.mxu0 %v670
    %677 = vmatprep.subr.bf16.mxu0 0
    %678 = vmatpush1.bf16.msra.mxu0 0
    %679 = vmatprep.subr.bf16.mxu0 0
    %680 = vmatpush1.bf16.msra.mxu0 0
    %681 = vmatprep.subr.bf16.mxu0 0
    %682 = vmatpush1.bf16.msra.mxu0 0
    %683 = vmatprep.subr.bf16.mxu0 0
    %684 = vmatpush1.bf16.msra.mxu0 0
    %685 = vmatprep.subr.bf16.mxu0 0
    %686 = vmatpush1.bf16.msra.mxu0 0
    %687 = vmatprep.subr.bf16.mxu0 0
    %688 = vmatpush1.bf16.msra.mxu0 0
    %689 = vmatprep.subr.bf16.mxu0 0
    %690 = vmatpush1.bf16.msra.mxu0 0
    %691 = vmatprep.subr.bf16.mxu0 0
    %692 = vmatpush1.bf16.msra.mxu0 0
    %693 = vmatprep.subr.bf16.mxu0 0
    %694 = vmatpush1.bf16.msra.mxu0 0
    %695 = vmatprep.subr.bf16.mxu0 0
    %696 = vmatpush1.bf16.msra.mxu0 0
    %697 = vmatprep.subr.bf16.mxu0 0
    %698 = vmatpush1.bf16.msra.mxu0 0
    %699 = vmatprep.subr.bf16.mxu0 0
    %700 = vmatpush1.bf16.msra.mxu0 0
    %701 = vmatprep.subr.bf16.mxu0 0
    %702 = vmatpush1.bf16.msra.mxu0 0
    %703 = vmatprep.subr.bf16.mxu0 0
    %704 = vmatpush1.bf16.msra.mxu0 0
    %705 = vmatprep.subr.bf16.mxu0 0
    %706 = vmatpush1.bf16.msra.mxu0 0
    %707 = vmatprep.mubr.bf16.mxu0 0
    %708 = vmatmul.mubr.bf16.gmra.mrb[0].mxu0 %v673
    %v709 = vpop.f32.mrb[0].mxu0
    %v710 = vadd.f32 0.0, %v709
    %v711 = vpop.f32.mrb[0].mxu0
    %v712 = vpop.f32.mrb[0].mxu0
    %v713 = vadd.f32 0.0, %v712
    %v714 = vpop.f32.mrb[0].mxu0
    %715 = vdwg.mxu0
    %716 = vrot.lane.b32.xlu0 %v513, 96
    %v717 = vpop.permute.xlu0 %716
    %v720 = vsel %vm271, %v668, 0
    %722 = vmatprep.subr.bf16.mxu0 0
    %723 = vmatpush1.bf16.msra.mxu0 %v717
    %724 = vmatprep.subr.bf16.mxu0 0
    %725 = vmatpush1.bf16.msra.mxu0 0
    %726 = vmatprep.subr.bf16.mxu0 0
    %727 = vmatpush1.bf16.msra.mxu0 0
    %728 = vmatprep.subr.bf16.mxu0 0
    %729 = vmatpush1.bf16.msra.mxu0 0
    %730 = vmatprep.subr.bf16.mxu0 0
    %731 = vmatpush1.bf16.msra.mxu0 0
    %732 = vmatprep.subr.bf16.mxu0 0
    %733 = vmatpush1.bf16.msra.mxu0 0
    %734 = vmatprep.subr.bf16.mxu0 0
    %735 = vmatpush1.bf16.msra.mxu0 0
    %736 = vmatprep.subr.bf16.mxu0 0
    %737 = vmatpush1.bf16.msra.mxu0 0
    %738 = vmatprep.subr.bf16.mxu0 0
    %739 = vmatpush1.bf16.msra.mxu0 0
    %740 = vmatprep.subr.bf16.mxu0 0
    %741 = vmatpush1.bf16.msra.mxu0 0
    %742 = vmatprep.subr.bf16.mxu0 0
    %743 = vmatpush1.bf16.msra.mxu0 0
    %744 = vmatprep.subr.bf16.mxu0 0
    %745 = vmatpush1.bf16.msra.mxu0 0
    %746 = vmatprep.subr.bf16.mxu0 0
    %747 = vmatpush1.bf16.msra.mxu0 0
    %748 = vmatprep.subr.bf16.mxu0 0
    %749 = vmatpush1.bf16.msra.mxu0 0
    %750 = vmatprep.subr.bf16.mxu0 0
    %751 = vmatpush1.bf16.msra.mxu0 0
    %752 = vmatprep.subr.bf16.mxu0 0
    %753 = vmatpush1.bf16.msra.mxu0 0
    %754 = vmatprep.mubr.bf16.mxu0 0
    %755 = vmatmul.mubr.bf16.gmra.mrb[0].mxu0 %v720
    %v756 = vpop.f32.mrb[0].mxu0
    %v757 = vadd.f32 0.0, %v756
    %v758 = vpop.f32.mrb[0].mxu0
    %v759 = vpop.f32.mrb[0].mxu0
    %v760 = vadd.f32 0.0, %v759
    %v761 = vpop.f32.mrb[0].mxu0
    %762 = vdwg.mxu0
    %763 = vrot.lane.b32.xlu0 %v512, 120
    %v764 = vpop.permute.xlu0 %763
    %765 = vrot.lane.b32.xlu0 %v512, 104
    %v766 = vpop.permute.xlu0 %765
    %v768 = vsel %vm517, %v764, 0
    %v771 = vsel %vm517, %v766, 0
    %773 = vmatprep.subr.bf16.mxu0 0
    %774 = vmatpush1.bf16.xpose.msra.mxu0 %v771
    %775 = vmatprep.subr.bf16.mxu0 0
    %776 = vmatpush1.bf16.xpose.msra.mxu0 0
    %777 = vmatprep.subr.bf16.mxu0 0
    %778 = vmatpush1.bf16.xpose.msra.mxu0 0
    %779 = vmatprep.subr.bf16.mxu0 0
    %780 = vmatpush1.bf16.xpose.msra.mxu0 0
    %781 = vmatprep.subr.bf16.mxu0 0
    %782 = vmatpush1.bf16.xpose.msra.mxu0 0
    %783 = vmatprep.subr.bf16.mxu0 0
    %784 = vmatpush1.bf16.xpose.msra.mxu0 0
    %785 = vmatprep.subr.bf16.mxu0 0
    %786 = vmatpush1.bf16.xpose.msra.mxu0 0
    %787 = vmatprep.subr.bf16.mxu0 0
    %788 = vmatpush1.bf16.xpose.msra.mxu0 0
    %789 = vmatprep.subr.bf16.mxu0 0
    %790 = vmatpush1.bf16.xpose.msra.mxu0 0
    %791 = vmatprep.subr.bf16.mxu0 0
    %792 = vmatpush1.bf16.xpose.msra.mxu0 0
    %793 = vmatprep.subr.bf16.mxu0 0
    %794 = vmatpush1.bf16.xpose.msra.mxu0 0
    %795 = vmatprep.subr.bf16.mxu0 0
    %796 = vmatpush1.bf16.xpose.msra.mxu0 0
    %797 = vmatprep.subr.bf16.mxu0 0
    %798 = vmatpush1.bf16.xpose.msra.mxu0 0
    %799 = vmatprep.subr.bf16.mxu0 0
    %800 = vmatpush1.bf16.xpose.msra.mxu0 0
    %801 = vmatprep.subr.bf16.mxu0 0
    %802 = vmatpush1.bf16.xpose.msra.mxu0 0
    %803 = vmatprep.subr.bf16.mxu0 0
    %804 = vmatpush1.bf16.xpose.msra.mxu0 0
    %805 = vmatprep.mubr.bf16.mxu0 0
    %806 = vmatmul.mubr.bf16.gmra.mrb[0].mxu0 %v768
    %v807 = vpop.f32.mrb[0].mxu0
    %v808 = vadd.f32 0.0, %v807
    %v809 = vpop.f32.mrb[0].mxu0
    %v810 = vpop.f32.mrb[0].mxu0
    %v811 = vadd.f32 0.0, %v810
    %v812 = vpop.f32.mrb[0].mxu0
    %813 = vdwg.mxu0
    %814 = vrot.lane.b32.xlu0 %v513, 120
    %v815 = vpop.permute.xlu0 %814
    %816 = vrot.lane.b32.xlu0 %v513, 104
    %v817 = vpop.permute.xlu0 %816
    %v819 = vsel %vm517, %v815, 0
    %v822 = vsel %vm517, %v817, 0
    %824 = vmatprep.subr.bf16.mxu0 0
    %825 = vmatpush1.bf16.xpose.msra.mxu0 %v822
    %826 = vmatprep.subr.bf16.mxu0 0
    %827 = vmatpush1.bf16.xpose.msra.mxu0 0
    %828 = vmatprep.subr.bf16.mxu0 0
    %829 = vmatpush1.bf16.xpose.msra.mxu0 0
    %830 = vmatprep.subr.bf16.mxu0 0
    %831 = vmatpush1.bf16.xpose.msra.mxu0 0
    %832 = vmatprep.subr.bf16.mxu0 0
    %833 = vmatpush1.bf16.xpose.msra.mxu0 0
    %834 = vmatprep.subr.bf16.mxu0 0
    %835 = vmatpush1.bf16.xpose.msra.mxu0 0
    %836 = vmatprep.subr.bf16.mxu0 0
    %837 = vmatpush1.bf16.xpose.msra.mxu0 0
    %838 = vmatprep.subr.bf16.mxu0 0
    %839 = vmatpush1.bf16.xpose.msra.mxu0 0
    %840 = vmatprep.subr.bf16.mxu0 0
    %841 = vmatpush1.bf16.xpose.msra.mxu0 0
    %842 = vmatprep.subr.bf16.mxu0 0
    %843 = vmatpush1.bf16.xpose.msra.mxu0 0
    %844 = vmatprep.subr.bf16.mxu0 0
    %845 = vmatpush1.bf16.xpose.msra.mxu0 0
    %846 = vmatprep.subr.bf16.mxu0 0
    %847 = vmatpush1.bf16.xpose.msra.mxu0 0
    %848 = vmatprep.subr.bf16.mxu0 0
    %849 = vmatpush1.bf16.xpose.msra.mxu0 0
    %850 = vmatprep.subr.bf16.mxu0 0
    %851 = vmatpush1.bf16.xpose.msra.mxu0 0
    %852 = vmatprep.subr.bf16.mxu0 0
    %853 = vmatpush1.bf16.xpose.msra.mxu0 0
    %854 = vmatprep.subr.bf16.mxu0 0
    %855 = vmatpush1.bf16.xpose.msra.mxu0 0
    %856 = vmatprep.mubr.bf16.mxu0 0
    %857 = vmatmul.mubr.bf16.gmra.mrb[0].mxu0 %v819
    %v858 = vpop.f32.mrb[0].mxu0
    %v859 = vadd.f32 0.0, %v858
    %v860 = vpop.f32.mrb[0].mxu0
    %v861 = vpop.f32.mrb[0].mxu0
    %v862 = vadd.f32 0.0, %v861
    %v863 = vpop.f32.mrb[0].mxu0
    %864 = vdwg.mxu0
    %v865 = vmul.f32 %v808, 0.35355338
    %v866 = vmul.f32 %v811, 0.35355338
    %v867 = vmul.f32 %v859, 0.35355338
    %v868 = vmul.f32 %v862, 0.35355338
    %v869 = vadd.f32 %v865, %v347
    %v870 = vadd.f32 %v866, %v348
    %v871 = vadd.f32 %v867, %v347
    %v872 = vadd.f32 %v868, %v348
    %v873 = vsel %vm271, %v869, -inf
    %874 = vmax.xlane.f32.xlu0 %v873
    %v875 = vpop.xlane.xlu0 %874
    %v876 = vsel %vm271, %v870, -inf
    %877 = vmax.xlane.f32.xlu0 %v876
    %v878 = vpop.xlane.xlu0 %877
    %v879 = vsel %vm271, %v871, -inf
    %880 = vmax.xlane.f32.xlu0 %v879
    %v881 = vpop.xlane.xlu0 %880
    %v882 = vsel %vm271, %v872, -inf
    %883 = vmax.xlane.f32.xlu0 %v882
    %v884 = vpop.xlane.xlu0 %883
    %v885 = vsub.f32 %v869, %v875
    %v886 = vsub.f32 %v870, %v878
    %v887 = vsub.f32 %v871, %v881
    %v888 = vsub.f32 %v872, %v884
    %v889 = vmul.f32 %v885, 1.442695
    %v890 = vpow.pop %v889
    %v891 = vmul.f32 %v886, 1.442695
    %v892 = vpow.pop %v891
    %v893 = vmul.f32 %v887, 1.442695
    %v894 = vpow.pop %v893
    %v895 = vmul.f32 %v888, 1.442695
    %v896 = vpow.pop %v895
    %v897 = vsel %vm271, %v890, 0.0
    %898 = vadd.xlane.f32.xlu0 %v897
    %v899 = vpop.xlane.xlu0 %898
    %v900 = vsel %vm271, %v892, 0.0
    %901 = vadd.xlane.f32.xlu0 %v900
    %v902 = vpop.xlane.xlu0 %901
    %v903 = vsel %vm271, %v894, 0.0
    %904 = vadd.xlane.f32.xlu0 %v903
    %v905 = vpop.xlane.xlu0 %904
    %v906 = vsel %vm271, %v896, 0.0
    %907 = vadd.xlane.f32.xlu0 %v906
    %v908 = vpop.xlane.xlu0 %907
    %v909 = vrcp.pop %v899
    %v910 = vrcp.pop %v902
    %v911 = vrcp.pop %v905
    %v912 = vrcp.pop %v908
    %v913 = vmul.f32 %v890, %v909
    %v914 = vmul.f32 %v892, %v910
    %v915 = vmul.f32 %v894, %v911
    %v916 = vmul.f32 %v896, %v912
    %v917 = vpack.c.bf16 %v914, %v913
    %v918 = vpack.c.bf16 %v916, %v915
    %919 = vrot.lane.b32.xlu0 %v512, 88
    %v920 = vpop.permute.xlu0 %919
    %v923 = vsel %vm271, %v917, 0
    %925 = vmatprep.subr.bf16.mxu0 0
    %926 = vmatpush1.bf16.msra.mxu0 %v920
    %927 = vmatprep.subr.bf16.mxu0 0
    %928 = vmatpush1.bf16.msra.mxu0 0
    %929 = vmatprep.subr.bf16.mxu0 0
    %930 = vmatpush1.bf16.msra.mxu0 0
    %931 = vmatprep.subr.bf16.mxu0 0
    %932 = vmatpush1.bf16.msra.mxu0 0
    %933 = vmatprep.subr.bf16.mxu0 0
    %934 = vmatpush1.bf16.msra.mxu0 0
    %935 = vmatprep.subr.bf16.mxu0 0
    %936 = vmatpush1.bf16.msra.mxu0 0
    %937 = vmatprep.subr.bf16.mxu0 0
    %938 = vmatpush1.bf16.msra.mxu0 0
    %939 = vmatprep.subr.bf16.mxu0 0
    %940 = vmatpush1.bf16.msra.mxu0 0
    %941 = vmatprep.subr.bf16.mxu0 0
    %942 = vmatpush1.bf16.msra.mxu0 0
    %943 = vmatprep.subr.bf16.mxu0 0
    %944 = vmatpush1.bf16.msra.mxu0 0
    %945 = vmatprep.subr.bf16.mxu0 0
    %946 = vmatpush1.bf16.msra.mxu0 0
    %947 = vmatprep.subr.bf16.mxu0 0
    %948 = vmatpush1.bf16.msra.mxu0 0
    %949 = vmatprep.subr.bf16.mxu0 0
    %950 = vmatpush1.bf16.msra.mxu0 0
    %951 = vmatprep.subr.bf16.mxu0 0
    %952 = vmatpush1.bf16.msra.mxu0 0
    %953 = vmatprep.subr.bf16.mxu0 0
    %954 = vmatpush1.bf16.msra.mxu0 0
    %955 = vmatprep.subr.bf16.mxu0 0
    %956 = vmatpush1.bf16.msra.mxu0 0
    %957 = vmatprep.mubr.bf16.mxu0 0
    %958 = vmatmul.mubr.bf16.gmra.mrb[0].mxu0 %v923
    %v959 = vpop.f32.mrb[0].mxu0
    %v960 = vadd.f32 0.0, %v959
    %v961 = vpop.f32.mrb[0].mxu0
    %v962 = vpop.f32.mrb[0].mxu0
    %v963 = vadd.f32 0.0, %v962
    %v964 = vpop.f32.mrb[0].mxu0
    %965 = vdwg.mxu0
    %966 = vrot.lane.b32.xlu0 %v513, 88
    %v967 = vpop.permute.xlu0 %966
    %v970 = vsel %vm271, %v918, 0
    %972 = vmatprep.subr.bf16.mxu0 0
    %973 = vmatpush1.bf16.msra.mxu0 %v967
    %974 = vmatprep.subr.bf16.mxu0 0
    %975 = vmatpush1.bf16.msra.mxu0 0
    %976 = vmatprep.subr.bf16.mxu0 0
    %977 = vmatpush1.bf16.msra.mxu0 0
    %978 = vmatprep.subr.bf16.mxu0 0
    %979 = vmatpush1.bf16.msra.mxu0 0
    %980 = vmatprep.subr.bf16.mxu0 0
    %981 = vmatpush1.bf16.msra.mxu0 0
    %982 = vmatprep.subr.bf16.mxu0 0
    %983 = vmatpush1.bf16.msra.mxu0 0
    %984 = vmatprep.subr.bf16.mxu0 0
    %985 = vmatpush1.bf16.msra.mxu0 0
    %986 = vmatprep.subr.bf16.mxu0 0
    %987 = vmatpush1.bf16.msra.mxu0 0
    %988 = vmatprep.subr.bf16.mxu0 0
    %989 = vmatpush1.bf16.msra.mxu0 0
    %990 = vmatprep.subr.bf16.mxu0 0
    %991 = vmatpush1.bf16.msra.mxu0 0
    %992 = vmatprep.subr.bf16.mxu0 0
    %993 = vmatpush1.bf16.msra.mxu0 0
    %994 = vmatprep.subr.bf16.mxu0 0
    %995 = vmatpush1.bf16.msra.mxu0 0
    %996 = vmatprep.subr.bf16.mxu0 0
    %997 = vmatpush1.bf16.msra.mxu0 0
    %998 = vmatprep.subr.bf16.mxu0 0
    %999 = vmatpush1.bf16.msra.mxu0 0
    %1000 = vmatprep.subr.bf16.mxu0 0
    %1001 = vmatpush1.bf16.msra.mxu0 0
    %1002 = vmatprep.subr.bf16.mxu0 0
    %1003 = vmatpush1.bf16.msra.mxu0 0
    %1004 = vmatprep.mubr.bf16.mxu0 0
    %1005 = vmatmul.mubr.bf16.gmra.mrb[0].mxu0 %v970
    %v1006 = vpop.f32.mrb[0].mxu0
    %v1007 = vadd.f32 0.0, %v1006
    %v1008 = vpop.f32.mrb[0].mxu0
    %v1009 = vpop.f32.mrb[0].mxu0
    %v1010 = vadd.f32 0.0, %v1009
    %v1011 = vpop.f32.mrb[0].mxu0
    %1012 = vdwg.mxu0
    %1017 = vrot.lane.b32.xlu0 %v960, 8
    %v1018 = vpop.permute.xlu0 %1017
    %1019 = vrot.lane.b32.xlu0 %v963, 8
    %v1020 = vpop.permute.xlu0 %1019
    %1021 = vrot.lane.b32.xlu0 %v1007, 8
    %v1022 = vpop.permute.xlu0 %1021
    %1023 = vrot.lane.b32.xlu0 %v1010, 8
    %v1024 = vpop.permute.xlu0 %1023
    %v1029 = vsel %vm517, %v710, %v1018
    %v1030 = vsel %vm517, %v713, %v1020
    %v1031 = vsel %vm517, %v757, %v1022
    %v1032 = vsel %vm517, %v760, %v1024
    %v1033 = vpack.c.bf16 %v1030, %v1029
    %v1034 = vpack.c.bf16 %v1032, %v1031
    %v1037 = vunpack.c.l.b16 %v354
    %v1038 = vunpack.c.l.b16 %v355
    %v1039 = vpack.c.b16 %v1038, %v1037
    %v1042 = vsel %vm271, %v1033, 0
    %v1045 = vsel %vm271, %v1034, 0
    %1047 = vmatprep.subr.bf16.mxu0 0
    %1048 = vmatpush1.bf16.msra.mxu0 %v1039
    %1049 = vmatprep.subr.bf16.mxu0 0
    %1050 = vmatpush1.bf16.msra.mxu0 0
    %1051 = vmatprep.subr.bf16.mxu0 0
    %1052 = vmatpush1.bf16.msra.mxu0 0
    %1053 = vmatprep.subr.bf16.mxu0 0
    %1054 = vmatpush1.bf16.msra.mxu0 0
    %1055 = vmatprep.subr.bf16.mxu0 0
    %1056 = vmatpush1.bf16.msra.mxu0 0
    %1057 = vmatprep.subr.bf16.mxu0 0
    %1058 = vmatpush1.bf16.msra.mxu0 0
    %1059 = vmatprep.subr.bf16.mxu0 0
    %1060 = vmatpush1.bf16.msra.mxu0 0
    %1061 = vmatprep.subr.bf16.mxu0 0
    %1062 = vmatpush1.bf16.msra.mxu0 0
    %1063 = vmatprep.subr.bf16.mxu0 0
    %1064 = vmatpush1.bf16.msra.mxu0 0
    %1065 = vmatprep.subr.bf16.mxu0 0
    %1066 = vmatpush1.bf16.msra.mxu0 0
    %1067 = vmatprep.subr.bf16.mxu0 0
    %1068 = vmatpush1.bf16.msra.mxu0 0
    %1069 = vmatprep.subr.bf16.mxu0 0
    %1070 = vmatpush1.bf16.msra.mxu0 0
    %1071 = vmatprep.subr.bf16.mxu0 0
    %1072 = vmatpush1.bf16.msra.mxu0 0
    %1073 = vmatprep.subr.bf16.mxu0 0
    %1074 = vmatpush1.bf16.msra.mxu0 0
    %1075 = vmatprep.subr.bf16.mxu0 0
    %1076 = vmatpush1.bf16.msra.mxu0 0
    %1077 = vmatprep.subr.bf16.mxu0 0
    %1078 = vmatpush1.bf16.msra.mxu0 0
    %1079 = vmatprep.mubr.bf16.mxu0 0
    %1080 = vmatmul.mubr.bf16.gmra.mrb[0].mxu0 %v1042
    %v1081 = vpop.f32.mrb[0].mxu0
    %v1082 = vadd.f32 0.0, %v1081
    %v1083 = vpop.f32.mrb[0].mxu0
    %v1084 = vpop.f32.mrb[0].mxu0
    %v1085 = vadd.f32 0.0, %v1084
    %v1086 = vpop.f32.mrb[0].mxu0
    %1087 = vmatprep.mubr.bf16.mxu0 0
    %1088 = vmatmul.mubr.bf16.gmra.mrb[0].mxu0 %v1045
    %v1089 = vpop.f32.mrb[0].mxu0
    %v1090 = vadd.f32 0.0, %v1089
    %v1091 = vpop.f32.mrb[0].mxu0
    %v1092 = vpop.f32.mrb[0].mxu0
    %v1093 = vadd.f32 0.0, %v1092
    %v1094 = vpop.f32.mrb[0].mxu0
    %1095 = vdwg.mxu0
    %v1096 = vadd.f32 %v341, %v1082
    %v1097 = vadd.f32 %v342, %v1085
    %v1098 = vadd.f32 %v343, %v1090
    %v1099 = vadd.f32 %v344, %v1093
    %v1101 = vlaneseq
    %v1102 = vshrl.u32 %v1101, 7
    %v1103 = vsub.s32 0, %v1102
    %v1104 = vrot.slane %v356, %v1103
    %v1106 = vadd.f32 %v1096, %v1104
    %v1107 = vadd.f32 %v1097, %v1104
    %v1108 = vadd.f32 %v1098, %v1104
    %v1109 = vadd.f32 %v1099, %v1104
    %v1110 = vsel %vm271, %v1106, 0.0
    %1111 = vadd.xlane.f32.xlu0 %v1110
    %v1112 = vpop.xlane.xlu0 %1111
    %v1113 = vsel %vm271, %v1107, 0.0
    %1114 = vadd.xlane.f32.xlu0 %v1113
    %v1115 = vpop.xlane.xlu0 %1114
    %v1116 = vsel %vm271, %v1108, 0.0
    %1117 = vadd.xlane.f32.xlu0 %v1116
    %v1118 = vpop.xlane.xlu0 %1117
    %v1119 = vsel %vm271, %v1109, 0.0
    %1120 = vadd.xlane.f32.xlu0 %v1119
    %v1121 = vpop.xlane.xlu0 %1120
    %v1122 = vmul.f32 %v1112, %v284
    %v1123 = vmul.f32 %v1115, %v284
    %v1124 = vmul.f32 %v1118, %v284
    %v1125 = vmul.f32 %v1121, %v284
    %v1126 = vsub.f32 %v1106, %v1122
    %v1127 = vsub.f32 %v1107, %v1123
    %v1128 = vsub.f32 %v1108, %v1124
    %v1129 = vsub.f32 %v1109, %v1125
    %v1130 = vmul.f32 %v1126, %v1126
    %v1131 = vmul.f32 %v1127, %v1127
    %v1132 = vmul.f32 %v1128, %v1128
    %v1133 = vmul.f32 %v1129, %v1129
    %v1134 = vsel %vm271, %v1130, 0.0
    %1135 = vadd.xlane.f32.xlu0 %v1134
    %v1136 = vpop.xlane.xlu0 %1135
    %v1137 = vsel %vm271, %v1131, 0.0
    %1138 = vadd.xlane.f32.xlu0 %v1137
    %v1139 = vpop.xlane.xlu0 %1138
    %v1140 = vsel %vm271, %v1132, 0.0
    %1141 = vadd.xlane.f32.xlu0 %v1140
    %v1142 = vpop.xlane.xlu0 %1141
    %v1143 = vsel %vm271, %v1133, 0.0
    %1144 = vadd.xlane.f32.xlu0 %v1143
    %v1145 = vpop.xlane.xlu0 %1144
    %v1146 = vmul.f32 %v1136, %v284
    %v1147 = vmul.f32 %v1139, %v284
    %v1148 = vmul.f32 %v1142, %v284
    %v1149 = vmul.f32 %v1145, %v284
    %v1150 = vadd.f32 %v1146, 1e-05
    %v1151 = vadd.f32 %v1147, 1e-05
    %v1152 = vadd.f32 %v1148, 1e-05
    %v1153 = vadd.f32 %v1149, 1e-05
    %v1154 = vrsqrt.pop %v1150
    %v1155 = vrsqrt.pop %v1151
    %v1156 = vrsqrt.pop %v1152
    %v1157 = vrsqrt.pop %v1153
    %v1158 = vmul.f32 %v1126, %v1154
    %v1159 = vmul.f32 %v1127, %v1155
    %v1160 = vmul.f32 %v1128, %v1156
    %v1161 = vmul.f32 %v1129, %v1157
    %v1163 = vlaneseq
    %v1164 = vshrl.u32 %v1163, 7
    %v1165 = vsub.s32 0, %v1164
    %v1166 = vrot.slane %v357, %v1165
    %v1168 = vmul.f32 %v1158, %v1166
    %v1169 = vmul.f32 %v1159, %v1166
    %v1170 = vmul.f32 %v1160, %v1166
    %v1171 = vmul.f32 %v1161, %v1166
    %v1173 = vlaneseq
    %v1174 = vshrl.u32 %v1173, 7
    %v1175 = vsub.s32 0, %v1174
    %v1176 = vrot.slane %v358, %v1175
    %v1178 = vadd.f32 %v1168, %v1176
    %v1179 = vadd.f32 %v1169, %v1176
    %v1180 = vadd.f32 %v1170, %v1176
    %v1181 = vadd.f32 %v1171, %v1176
    %v1182 = vpack.c.bf16 %v1179, %v1178
    %v1183 = vpack.c.bf16 %v1181, %v1180
    %v1185 = vlaneseq
    %v1186 = vshrl.u32 %v1185, 7
    %v1187 = vsub.s32 0, %v1186
    %v1188 = vrot.slane %v361, %v1187
    %v1192 = vunpack.c.l.b16 %v359
    %v1193 = vunpack.c.l.b16 %v360
    %v1194 = vpack.c.b16 %v1193, %v1192
    %v1197 = vsel %vm271, %v1182, 0
    %v1200 = vsel %vm271, %v1183, 0
    %1202 = vmatprep.subr.bf16.mxu0 0
    %1203 = vmatpush1.bf16.msra.mxu0 %v1194
    %1204 = vmatprep.subr.bf16.mxu0 0
    %1205 = vmatpush1.bf16.msra.mxu0 0
    %1206 = vmatprep.subr.bf16.mxu0 0
    %1207 = vmatpush1.bf16.msra.mxu0 0
    %1208 = vmatprep.subr.bf16.mxu0 0
    %1209 = vmatpush1.bf16.msra.mxu0 0
    %1210 = vmatprep.subr.bf16.mxu0 0
    %1211 = vmatpush1.bf16.msra.mxu0 0
    %1212 = vmatprep.subr.bf16.mxu0 0
    %1213 = vmatpush1.bf16.msra.mxu0 0
    %1214 = vmatprep.subr.bf16.mxu0 0
    %1215 = vmatpush1.bf16.msra.mxu0 0
    %1216 = vmatprep.subr.bf16.mxu0 0
    %1217 = vmatpush1.bf16.msra.mxu0 0
    %1218 = vmatprep.subr.bf16.mxu0 0
    %1219 = vmatpush1.bf16.msra.mxu0 0
    %1220 = vmatprep.subr.bf16.mxu0 0
    %1221 = vmatpush1.bf16.msra.mxu0 0
    %1222 = vmatprep.subr.bf16.mxu0 0
    %1223 = vmatpush1.bf16.msra.mxu0 0
    %1224 = vmatprep.subr.bf16.mxu0 0
    %1225 = vmatpush1.bf16.msra.mxu0 0
    %1226 = vmatprep.subr.bf16.mxu0 0
    %1227 = vmatpush1.bf16.msra.mxu0 0
    %1228 = vmatprep.subr.bf16.mxu0 0
    %1229 = vmatpush1.bf16.msra.mxu0 0
    %1230 = vmatprep.subr.bf16.mxu0 0
    %1231 = vmatpush1.bf16.msra.mxu0 0
    %1232 = vmatprep.subr.bf16.mxu0 0
    %1233 = vmatpush1.bf16.msra.mxu0 0
    %1234 = vmatprep.mubr.bf16.mxu0 0
    %1235 = vmatmul.mubr.bf16.gmra.mrb[0].mxu0 %v1197
    %v1236 = vpop.f32.mrb[0].mxu0
    %v1237 = vadd.f32 %v1188, %v1236
    %v1238 = vpop.f32.mrb[0].mxu0
    %v1239 = vpop.f32.mrb[0].mxu0
    %v1240 = vadd.f32 %v1188, %v1239
    %v1241 = vpop.f32.mrb[0].mxu0
    %1242 = vmatprep.mubr.bf16.mxu0 0
    %1243 = vmatmul.mubr.bf16.gmra.mrb[0].mxu0 %v1200
    %v1244 = vpop.f32.mrb[0].mxu0
    %v1245 = vadd.f32 %v1188, %v1244
    %v1246 = vpop.f32.mrb[0].mxu0
    %v1247 = vpop.f32.mrb[0].mxu0
    %v1248 = vadd.f32 %v1188, %v1247
    %v1249 = vpop.f32.mrb[0].mxu0
    %1250 = vdwg.mxu0
    %v1251 = vmul.f32 %v1237, 0.70710677
    %v1252 = vmul.f32 %v1240, 0.70710677
    %v1253 = vmul.f32 %v1245, 0.70710677
    %v1254 = vmul.f32 %v1248, 0.70710677
    %v1255 = vand.u32 2147483647, %v1251
    %v1256 = vand.u32 2147483647, %v1252
    %v1257 = vand.u32 2147483647, %v1253
    %v1258 = vand.u32 2147483647, %v1254
    %v1259 = vmul.f32 %v1255, 0.3275911
    %v1260 = vmul.f32 %v1256, 0.3275911
    %v1261 = vmul.f32 %v1257, 0.3275911
    %v1262 = vmul.f32 %v1258, 0.3275911
    %v1263 = vadd.f32 %v1259, 1.0
    %v1264 = vadd.f32 %v1260, 1.0
    %v1265 = vadd.f32 %v1261, 1.0
    %v1266 = vadd.f32 %v1262, 1.0
    %v1267 = vrcp.pop %v1263
    %v1268 = vmul.f32 1.0, %v1267
    %v1269 = vrcp.pop %v1264
    %v1270 = vmul.f32 1.0, %v1269
    %v1271 = vrcp.pop %v1265
    %v1272 = vmul.f32 1.0, %v1271
    %v1273 = vrcp.pop %v1266
    %v1274 = vmul.f32 1.0, %v1273
    %v1275 = vmul.f32 %v1268, 1.0614054
    %v1276 = vmul.f32 %v1270, 1.0614054
    %v1277 = vmul.f32 %v1272, 1.0614054
    %v1278 = vmul.f32 %v1274, 1.0614054
    %v1279 = vadd.f32 %v1275, -1.4531521
    %v1280 = vadd.f32 %v1276, -1.4531521
    %v1281 = vadd.f32 %v1277, -1.4531521
    %v1282 = vadd.f32 %v1278, -1.4531521
    %v1283 = vmul.f32 %v1279, %v1268
    %v1284 = vmul.f32 %v1280, %v1270
    %v1285 = vmul.f32 %v1281, %v1272
    %v1286 = vmul.f32 %v1282, %v1274
    %v1287 = vadd.f32 %v1283, 1.4214138
    %v1288 = vadd.f32 %v1284, 1.4214138
    %v1289 = vadd.f32 %v1285, 1.4214138
    %v1290 = vadd.f32 %v1286, 1.4214138
    %v1291 = vmul.f32 %v1287, %v1268
    %v1292 = vmul.f32 %v1288, %v1270
    %v1293 = vmul.f32 %v1289, %v1272
    %v1294 = vmul.f32 %v1290, %v1274
    %v1295 = vadd.f32 %v1291, -0.28449672
    %v1296 = vadd.f32 %v1292, -0.28449672
    %v1297 = vadd.f32 %v1293, -0.28449672
    %v1298 = vadd.f32 %v1294, -0.28449672
    %v1299 = vmul.f32 %v1295, %v1268
    %v1300 = vmul.f32 %v1296, %v1270
    %v1301 = vmul.f32 %v1297, %v1272
    %v1302 = vmul.f32 %v1298, %v1274
    %v1303 = vadd.f32 %v1299, 0.2548296
    %v1304 = vadd.f32 %v1300, 0.2548296
    %v1305 = vadd.f32 %v1301, 0.2548296
    %v1306 = vadd.f32 %v1302, 0.2548296
    %v1307 = vmul.f32 %v1303, %v1268
    %v1308 = vmul.f32 %v1304, %v1270
    %v1309 = vmul.f32 %v1305, %v1272
    %v1310 = vmul.f32 %v1306, %v1274
    %v1311 = vsub.f32 0.0, %v1255
    %v1312 = vsub.f32 0.0, %v1256
    %v1313 = vsub.f32 0.0, %v1257
    %v1314 = vsub.f32 0.0, %v1258
    %v1315 = vmul.f32 %v1311, %v1255
    %v1316 = vmul.f32 %v1312, %v1256
    %v1317 = vmul.f32 %v1313, %v1257
    %v1318 = vmul.f32 %v1314, %v1258
    %v1319 = vmul.f32 %v1315, 1.442695
    %v1320 = vpow.pop %v1319
    %v1321 = vmul.f32 %v1316, 1.442695
    %v1322 = vpow.pop %v1321
    %v1323 = vmul.f32 %v1317, 1.442695
    %v1324 = vpow.pop %v1323
    %v1325 = vmul.f32 %v1318, 1.442695
    %v1326 = vpow.pop %v1325
    %v1327 = vmul.f32 %v1307, %v1320
    %v1328 = vmul.f32 %v1308, %v1322
    %v1329 = vmul.f32 %v1309, %v1324
    %v1330 = vmul.f32 %v1310, %v1326
    %v1331 = vsub.f32 1.0, %v1327
    %v1332 = vsub.f32 1.0, %v1328
    %v1333 = vsub.f32 1.0, %v1329
    %v1334 = vsub.f32 1.0, %v1330
    %vm1335 = vcmp.lt.f32.partialorder %v1251, 0.0
    %vm1336 = vcmp.lt.f32.partialorder %v1252, 0.0
    %vm1337 = vcmp.lt.f32.partialorder %v1253, 0.0
    %vm1338 = vcmp.lt.f32.partialorder %v1254, 0.0
    %v1339 = vsub.f32 0.0, %v1331
    %v1340 = vsub.f32 0.0, %v1332
    %v1341 = vsub.f32 0.0, %v1333
    %v1342 = vsub.f32 0.0, %v1334
    %v1343 = vsel %vm1335, %v1339, %v1331
    %v1344 = vsel %vm1336, %v1340, %v1332
    %v1345 = vsel %vm1337, %v1341, %v1333
    %v1346 = vsel %vm1338, %v1342, %v1334
    %v1347 = vmul.f32 %v1237, 0.5
    %v1348 = vmul.f32 %v1240, 0.5
    %v1349 = vmul.f32 %v1245, 0.5
    %v1350 = vmul.f32 %v1248, 0.5
    %v1351 = vadd.f32 %v1343, 1.0
    %v1352 = vadd.f32 %v1344, 1.0
    %v1353 = vadd.f32 %v1345, 1.0
    %v1354 = vadd.f32 %v1346, 1.0
    %v1355 = vmul.f32 %v1347, %v1351
    %v1356 = vmul.f32 %v1348, %v1352
    %v1357 = vmul.f32 %v1349, %v1353
    %v1358 = vmul.f32 %v1350, %v1354
    %v1359 = vpack.c.bf16 %v1356, %v1355
    %v1360 = vpack.c.bf16 %v1358, %v1357
    %v1369 = vunpack.c.l.b16 %v362
    %v1370 = vunpack.c.l.b16 %v363
    %v1371 = vunpack.c.l.b16 %v364
    %v1372 = vunpack.c.l.b16 %v365
    %v1373 = vunpack.c.l.b16 %v366
    %v1374 = vunpack.c.l.b16 %v367
    %v1375 = vunpack.c.l.b16 %v368
    %v1376 = vunpack.c.l.b16 %v369
    %v1377 = vpack.c.b16 %v1370, %v1369
    %v1378 = vpack.c.b16 %v1372, %v1371
    %v1379 = vpack.c.b16 %v1374, %v1373
    %v1380 = vpack.c.b16 %v1376, %v1375
    %v1386 = vsel %vm213, %v1359, 0
    %v1389 = vsel %vm213, %v1360, 0
    %1391 = vmatprep.subr.bf16.mxu0 0
    %1392 = vmatpush1.bf16.msra.mxu0 %v1377
    %1393 = vmatprep.subr.bf16.mxu0 0
    %1394 = vmatpush1.bf16.msra.mxu0 %v1378
    %1395 = vmatprep.subr.bf16.mxu0 0
    %1396 = vmatpush1.bf16.msra.mxu0 %v1379
    %1397 = vmatprep.subr.bf16.mxu0 0
    %1398 = vmatpush1.bf16.msra.mxu0 %v1380
    %1399 = vmatprep.subr.bf16.mxu0 0
    %1400 = vmatpush1.bf16.msra.mxu0 0
    %1401 = vmatprep.subr.bf16.mxu0 0
    %1402 = vmatpush1.bf16.msra.mxu0 0
    %1403 = vmatprep.subr.bf16.mxu0 0
    %1404 = vmatpush1.bf16.msra.mxu0 0
    %1405 = vmatprep.subr.bf16.mxu0 0
    %1406 = vmatpush1.bf16.msra.mxu0 0
    %1407 = vmatprep.subr.bf16.mxu0 0
    %1408 = vmatpush1.bf16.msra.mxu0 0
    %1409 = vmatprep.subr.bf16.mxu0 0
    %1410 = vmatpush1.bf16.msra.mxu0 0
    %1411 = vmatprep.subr.bf16.mxu0 0
    %1412 = vmatpush1.bf16.msra.mxu0 0
    %1413 = vmatprep.subr.bf16.mxu0 0
    %1414 = vmatpush1.bf16.msra.mxu0 0
    %1415 = vmatprep.subr.bf16.mxu0 0
    %1416 = vmatpush1.bf16.msra.mxu0 0
    %1417 = vmatprep.subr.bf16.mxu0 0
    %1418 = vmatpush1.bf16.msra.mxu0 0
    %1419 = vmatprep.subr.bf16.mxu0 0
    %1420 = vmatpush1.bf16.msra.mxu0 0
    %1421 = vmatprep.subr.bf16.mxu0 0
    %1422 = vmatpush1.bf16.msra.mxu0 0
    %1423 = vmatprep.mubr.bf16.mxu0 0
    %1424 = vmatmul.mubr.bf16.gmra.mrb[0].mxu0 %v1386
    %v1425 = vpop.f32.mrb[0].mxu0
    %v1426 = vadd.f32 0.0, %v1425
    %v1427 = vpop.f32.mrb[0].mxu0
    %v1428 = vpop.f32.mrb[0].mxu0
    %v1429 = vadd.f32 0.0, %v1428
    %v1430 = vpop.f32.mrb[0].mxu0
    %1431 = vmatprep.mubr.bf16.mxu0 0
    %1432 = vmatmul.mubr.bf16.gmra.mrb[0].mxu0 %v1389
    %v1433 = vpop.f32.mrb[0].mxu0
    %v1434 = vadd.f32 0.0, %v1433
    %v1435 = vpop.f32.mrb[0].mxu0
    %v1436 = vpop.f32.mrb[0].mxu0
    %v1437 = vadd.f32 0.0, %v1436
    %v1438 = vpop.f32.mrb[0].mxu0
    %1439 = vdwg.mxu0
    %v1440 = vadd.f32 %v1106, %v1426
    %v1441 = vadd.f32 %v1107, %v1429
    %v1442 = vadd.f32 %v1108, %v1434
    %v1443 = vadd.f32 %v1109, %v1437
    %v1445 = vlaneseq
    %v1446 = vshrl.u32 %v1445, 7
    %v1447 = vsub.s32 0, %v1446
    %v1448 = vrot.slane %v370, %v1447
    %v1450 = vadd.f32 %v1440, %v1448
    %v1451 = vadd.f32 %v1441, %v1448
    %v1452 = vadd.f32 %v1442, %v1448
    %v1453 = vadd.f32 %v1443, %v1448
    %s1454 = scalar_lea.vmem %s19, 32
    %v1455 = vld [vmem:[%s1454] sm:$0xff]
    %v1456 = vld [vmem:[%s1454 + $0x8] sm:$0xff]
    %v1457 = vld [vmem:[%s1454 + $0x10] sm:$0xff]
    %v1458 = vld [vmem:[%s1454 + $0x18] sm:$0xff]
    %s1459 = scalar_lea.vmem %s11, 1
    %v1460 = vld [vmem:[%s1459] sm:$0x1]
    %s1461 = scalar_lea.vmem %s13, 1
    %v1462 = vld [vmem:[%s1461] sm:$0x1]
    %s1463 = scalar_lea.vmem %s15, 8
    %v1464 = vld [vmem:[%s1463] sm:$0xf]
    %v1465 = vld [vmem:[%s1463 + $0x4] sm:$0xf]
    %s1466 = scalar_lea.vmem %s17, 1
    %v1467 = vld [vmem:[%s1466] sm:$0x1]
    %s1468 = scalar_lea.vmem %s21, 8
    %v1469 = vld [vmem:[%s1468] sm:$0xf]
    %v1470 = vld [vmem:[%s1468 + $0x4] sm:$0xf]
    %s1471 = scalar_lea.vmem %s23, 1
    %v1472 = vld [vmem:[%s1471] sm:$0x1]
    %s1473 = scalar_lea.vmem %s25, 1
    %v1474 = vld [vmem:[%s1473] sm:$0x1]
    %s1475 = scalar_lea.vmem %s27, 1
    %v1476 = vld [vmem:[%s1475] sm:$0x1]
    %s1477 = scalar_lea.vmem %s29, 8
    %v1478 = vld [vmem:[%s1477] sm:$0xf]
    %v1479 = vld [vmem:[%s1477 + $0x4] sm:$0xf]
    %s1480 = scalar_lea.vmem %s31, 1
    %v1481 = vld [vmem:[%s1480] sm:$0x1]
    %s1482 = scalar_lea.vmem %s33, 32
    %v1483 = vld [vmem:[%s1482] sm:$0xf]
    %v1484 = vld [vmem:[%s1482 + $0x4] sm:$0xf]
    %v1485 = vld [vmem:[%s1482 + $0x8] sm:$0xf]
    %v1486 = vld [vmem:[%s1482 + $0xc] sm:$0xf]
    %v1487 = vld [vmem:[%s1482 + $0x10] sm:$0xf]
    %v1488 = vld [vmem:[%s1482 + $0x14] sm:$0xf]
    %v1489 = vld [vmem:[%s1482 + $0x18] sm:$0xf]
    %v1490 = vld [vmem:[%s1482 + $0x1c] sm:$0xf]
    %s1491 = scalar_lea.vmem %s35, 1
    %v1492 = vld [vmem:[%s1491] sm:$0x1]
    %v1493 = vsel %vm271, %v1450, 0.0
    %1494 = vadd.xlane.f32.xlu0 %v1493
    %v1495 = vpop.xlane.xlu0 %1494
    %v1496 = vsel %vm271, %v1451, 0.0
    %1497 = vadd.xlane.f32.xlu0 %v1496
    %v1498 = vpop.xlane.xlu0 %1497
    %v1499 = vsel %vm271, %v1452, 0.0
    %1500 = vadd.xlane.f32.xlu0 %v1499
    %v1501 = vpop.xlane.xlu0 %1500
    %v1502 = vsel %vm271, %v1453, 0.0
    %1503 = vadd.xlane.f32.xlu0 %v1502
    %v1504 = vpop.xlane.xlu0 %1503
    %v1505 = vmul.f32 %v1495, %v284
    %v1506 = vmul.f32 %v1498, %v284
    %v1507 = vmul.f32 %v1501, %v284
    %v1508 = vmul.f32 %v1504, %v284
    %v1509 = vsub.f32 %v1450, %v1505
    %v1510 = vsub.f32 %v1451, %v1506
    %v1511 = vsub.f32 %v1452, %v1507
    %v1512 = vsub.f32 %v1453, %v1508
    %v1513 = vmul.f32 %v1509, %v1509
    %v1514 = vmul.f32 %v1510, %v1510
    %v1515 = vmul.f32 %v1511, %v1511
    %v1516 = vmul.f32 %v1512, %v1512
    %v1517 = vsel %vm271, %v1513, 0.0
    %1518 = vadd.xlane.f32.xlu0 %v1517
    %v1519 = vpop.xlane.xlu0 %1518
    %v1520 = vsel %vm271, %v1514, 0.0
    %1521 = vadd.xlane.f32.xlu0 %v1520
    %v1522 = vpop.xlane.xlu0 %1521
    %v1523 = vsel %vm271, %v1515, 0.0
    %1524 = vadd.xlane.f32.xlu0 %v1523
    %v1525 = vpop.xlane.xlu0 %1524
    %v1526 = vsel %vm271, %v1516, 0.0
    %1527 = vadd.xlane.f32.xlu0 %v1526
    %v1528 = vpop.xlane.xlu0 %1527
    %v1529 = vmul.f32 %v1519, %v284
    %v1530 = vmul.f32 %v1522, %v284
    %v1531 = vmul.f32 %v1525, %v284
    %v1532 = vmul.f32 %v1528, %v284
    %v1533 = vadd.f32 %v1529, 1e-05
    %v1534 = vadd.f32 %v1530, 1e-05
    %v1535 = vadd.f32 %v1531, 1e-05
    %v1536 = vadd.f32 %v1532, 1e-05
    %v1537 = vrsqrt.pop %v1533
    %v1538 = vrsqrt.pop %v1534
    %v1539 = vrsqrt.pop %v1535
    %v1540 = vrsqrt.pop %v1536
    %v1541 = vmul.f32 %v1509, %v1537
    %v1542 = vmul.f32 %v1510, %v1538
    %v1543 = vmul.f32 %v1511, %v1539
    %v1544 = vmul.f32 %v1512, %v1540
    %v1546 = vlaneseq
    %v1547 = vshrl.u32 %v1546, 7
    %v1548 = vsub.s32 0, %v1547
    %v1549 = vrot.slane %v1460, %v1548
    %v1551 = vmul.f32 %v1541, %v1549
    %v1552 = vmul.f32 %v1542, %v1549
    %v1553 = vmul.f32 %v1543, %v1549
    %v1554 = vmul.f32 %v1544, %v1549
    %v1556 = vlaneseq
    %v1557 = vshrl.u32 %v1556, 7
    %v1558 = vsub.s32 0, %v1557
    %v1559 = vrot.slane %v1462, %v1558
    %v1561 = vadd.f32 %v1551, %v1559
    %v1562 = vadd.f32 %v1552, %v1559
    %v1563 = vadd.f32 %v1553, %v1559
    %v1564 = vadd.f32 %v1554, %v1559
    %v1565 = vpack.c.bf16 %v1562, %v1561
    %v1566 = vpack.c.bf16 %v1564, %v1563
    %v1568 = vlaneseq
    %v1569 = vshrl.u32 %v1568, 7
    %v1570 = vsub.s32 0, %v1569
    %v1571 = vrot.slane %v1467, %v1570
    %v1575 = vunpack.c.l.b16 %v1464
    %v1576 = vunpack.c.l.b16 %v1465
    %v1577 = vpack.c.b16 %v1576, %v1575
    %v1580 = vsel %vm271, %v1565, 0
    %v1583 = vsel %vm271, %v1566, 0
    %1585 = vmatprep.subr.bf16.mxu0 0
    %1586 = vmatpush1.bf16.msra.mxu0 %v1577
    %1587 = vmatprep.subr.bf16.mxu0 0
    %1588 = vmatpush1.bf16.msra.mxu0 0
    %1589 = vmatprep.subr.bf16.mxu0 0
    %1590 = vmatpush1.bf16.msra.mxu0 0
    %1591 = vmatprep.subr.bf16.mxu0 0
    %1592 = vmatpush1.bf16.msra.mxu0 0
    %1593 = vmatprep.subr.bf16.mxu0 0
    %1594 = vmatpush1.bf16.msra.mxu0 0
    %1595 = vmatprep.subr.bf16.mxu0 0
    %1596 = vmatpush1.bf16.msra.mxu0 0
    %1597 = vmatprep.subr.bf16.mxu0 0
    %1598 = vmatpush1.bf16.msra.mxu0 0
    %1599 = vmatprep.subr.bf16.mxu0 0
    %1600 = vmatpush1.bf16.msra.mxu0 0
    %1601 = vmatprep.subr.bf16.mxu0 0
    %1602 = vmatpush1.bf16.msra.mxu0 0
    %1603 = vmatprep.subr.bf16.mxu0 0
    %1604 = vmatpush1.bf16.msra.mxu0 0
    %1605 = vmatprep.subr.bf16.mxu0 0
    %1606 = vmatpush1.bf16.msra.mxu0 0
    %1607 = vmatprep.subr.bf16.mxu0 0
    %1608 = vmatpush1.bf16.msra.mxu0 0
    %1609 = vmatprep.subr.bf16.mxu0 0
    %1610 = vmatpush1.bf16.msra.mxu0 0
    %1611 = vmatprep.subr.bf16.mxu0 0
    %1612 = vmatpush1.bf16.msra.mxu0 0
    %1613 = vmatprep.subr.bf16.mxu0 0
    %1614 = vmatpush1.bf16.msra.mxu0 0
    %1615 = vmatprep.subr.bf16.mxu0 0
    %1616 = vmatpush1.bf16.msra.mxu0 0
    %1617 = vmatprep.mubr.bf16.mxu0 0
    %1618 = vmatmul.mubr.bf16.gmra.mrb[0].mxu0 %v1580
    %v1619 = vpop.f32.mrb[0].mxu0
    %v1620 = vadd.f32 %v1571, %v1619
    %v1621 = vpop.f32.mrb[0].mxu0
    %v1622 = vpop.f32.mrb[0].mxu0
    %v1623 = vadd.f32 %v1571, %v1622
    %v1624 = vpop.f32.mrb[0].mxu0
    %1625 = vmatprep.mubr.bf16.mxu0 0
    %1626 = vmatmul.mubr.bf16.gmra.mrb[0].mxu0 %v1583
    %v1627 = vpop.f32.mrb[0].mxu0
    %v1628 = vadd.f32 %v1571, %v1627
    %v1629 = vpop.f32.mrb[0].mxu0
    %v1630 = vpop.f32.mrb[0].mxu0
    %v1631 = vadd.f32 %v1571, %v1630
    %v1632 = vpop.f32.mrb[0].mxu0
    %1633 = vdwg.mxu0
    %v1634 = vpack.c.bf16 %v1623, %v1620
    %v1635 = vpack.c.bf16 %v1631, %v1628
    %1637 = vrot.lane.b32.xlu0 %v1634, 112
    %v1638 = vpop.permute.xlu0 %1637
    %v1640 = vsel %vm517, %v1634, 0
    %v1643 = vsel %vm517, %v1638, 0
    %1645 = vmatprep.subr.bf16.mxu0 0
    %1646 = vmatpush1.bf16.xpose.msra.mxu0 %v1643
    %1647 = vmatprep.subr.bf16.mxu0 0
    %1648 = vmatpush1.bf16.xpose.msra.mxu0 0
    %1649 = vmatprep.subr.bf16.mxu0 0
    %1650 = vmatpush1.bf16.xpose.msra.mxu0 0
    %1651 = vmatprep.subr.bf16.mxu0 0
    %1652 = vmatpush1.bf16.xpose.msra.mxu0 0
    %1653 = vmatprep.subr.bf16.mxu0 0
    %1654 = vmatpush1.bf16.xpose.msra.mxu0 0
    %1655 = vmatprep.subr.bf16.mxu0 0
    %1656 = vmatpush1.bf16.xpose.msra.mxu0 0
    %1657 = vmatprep.subr.bf16.mxu0 0
    %1658 = vmatpush1.bf16.xpose.msra.mxu0 0
    %1659 = vmatprep.subr.bf16.mxu0 0
    %1660 = vmatpush1.bf16.xpose.msra.mxu0 0
    %1661 = vmatprep.subr.bf16.mxu0 0
    %1662 = vmatpush1.bf16.xpose.msra.mxu0 0
    %1663 = vmatprep.subr.bf16.mxu0 0
    %1664 = vmatpush1.bf16.xpose.msra.mxu0 0
    %1665 = vmatprep.subr.bf16.mxu0 0
    %1666 = vmatpush1.bf16.xpose.msra.mxu0 0
    %1667 = vmatprep.subr.bf16.mxu0 0
    %1668 = vmatpush1.bf16.xpose.msra.mxu0 0
    %1669 = vmatprep.subr.bf16.mxu0 0
    %1670 = vmatpush1.bf16.xpose.msra.mxu0 0
    %1671 = vmatprep.subr.bf16.mxu0 0
    %1672 = vmatpush1.bf16.xpose.msra.mxu0 0
    %1673 = vmatprep.subr.bf16.mxu0 0
    %1674 = vmatpush1.bf16.xpose.msra.mxu0 0
    %1675 = vmatprep.subr.bf16.mxu0 0
    %1676 = vmatpush1.bf16.xpose.msra.mxu0 0
    %1677 = vmatprep.mubr.bf16.mxu0 0
    %1678 = vmatmul.mubr.bf16.gmra.mrb[0].mxu0 %v1640
    %v1679 = vpop.f32.mrb[0].mxu0
    %v1680 = vadd.f32 0.0, %v1679
    %v1681 = vpop.f32.mrb[0].mxu0
    %v1682 = vpop.f32.mrb[0].mxu0
    %v1683 = vadd.f32 0.0, %v1682
    %v1684 = vpop.f32.mrb[0].mxu0
    %1685 = vdwg.mxu0
    %1687 = vrot.lane.b32.xlu0 %v1635, 112
    %v1688 = vpop.permute.xlu0 %1687
    %v1690 = vsel %vm517, %v1635, 0
    %v1693 = vsel %vm517, %v1688, 0
    %1695 = vmatprep.subr.bf16.mxu0 0
    %1696 = vmatpush1.bf16.xpose.msra.mxu0 %v1693
    %1697 = vmatprep.subr.bf16.mxu0 0
    %1698 = vmatpush1.bf16.xpose.msra.mxu0 0
    %1699 = vmatprep.subr.bf16.mxu0 0
    %1700 = vmatpush1.bf16.xpose.msra.mxu0 0
    %1701 = vmatprep.subr.bf16.mxu0 0
    %1702 = vmatpush1.bf16.xpose.msra.mxu0 0
    %1703 = vmatprep.subr.bf16.mxu0 0
    %1704 = vmatpush1.bf16.xpose.msra.mxu0 0
    %1705 = vmatprep.subr.bf16.mxu0 0
    %1706 = vmatpush1.bf16.xpose.msra.mxu0 0
    %1707 = vmatprep.subr.bf16.mxu0 0
    %1708 = vmatpush1.bf16.xpose.msra.mxu0 0
    %1709 = vmatprep.subr.bf16.mxu0 0
    %1710 = vmatpush1.bf16.xpose.msra.mxu0 0
    %1711 = vmatprep.subr.bf16.mxu0 0
    %1712 = vmatpush1.bf16.xpose.msra.mxu0 0
    %1713 = vmatprep.subr.bf16.mxu0 0
    %1714 = vmatpush1.bf16.xpose.msra.mxu0 0
    %1715 = vmatprep.subr.bf16.mxu0 0
    %1716 = vmatpush1.bf16.xpose.msra.mxu0 0
    %1717 = vmatprep.subr.bf16.mxu0 0
    %1718 = vmatpush1.bf16.xpose.msra.mxu0 0
    %1719 = vmatprep.subr.bf16.mxu0 0
    %1720 = vmatpush1.bf16.xpose.msra.mxu0 0
    %1721 = vmatprep.subr.bf16.mxu0 0
    %1722 = vmatpush1.bf16.xpose.msra.mxu0 0
    %1723 = vmatprep.subr.bf16.mxu0 0
    %1724 = vmatpush1.bf16.xpose.msra.mxu0 0
    %1725 = vmatprep.subr.bf16.mxu0 0
    %1726 = vmatpush1.bf16.xpose.msra.mxu0 0
    %1727 = vmatprep.mubr.bf16.mxu0 0
    %1728 = vmatmul.mubr.bf16.gmra.mrb[0].mxu0 %v1690
    %v1729 = vpop.f32.mrb[0].mxu0
    %v1730 = vadd.f32 0.0, %v1729
    %v1731 = vpop.f32.mrb[0].mxu0
    %v1732 = vpop.f32.mrb[0].mxu0
    %v1733 = vadd.f32 0.0, %v1732
    %v1734 = vpop.f32.mrb[0].mxu0
    %1735 = vdwg.mxu0
    %v1736 = vmul.f32 %v1680, 0.35355338
    %v1737 = vmul.f32 %v1683, 0.35355338
    %v1738 = vmul.f32 %v1730, 0.35355338
    %v1739 = vmul.f32 %v1733, 0.35355338
    %v1740 = vadd.f32 %v1736, %v1455
    %v1741 = vadd.f32 %v1737, %v1456
    %v1742 = vadd.f32 %v1738, %v1455
    %v1743 = vadd.f32 %v1739, %v1456
    %v1744 = vsel %vm271, %v1740, -inf
    %1745 = vmax.xlane.f32.xlu0 %v1744
    %v1746 = vpop.xlane.xlu0 %1745
    %v1747 = vsel %vm271, %v1741, -inf
    %1748 = vmax.xlane.f32.xlu0 %v1747
    %v1749 = vpop.xlane.xlu0 %1748
    %v1750 = vsel %vm271, %v1742, -inf
    %1751 = vmax.xlane.f32.xlu0 %v1750
    %v1752 = vpop.xlane.xlu0 %1751
    %v1753 = vsel %vm271, %v1743, -inf
    %1754 = vmax.xlane.f32.xlu0 %v1753
    %v1755 = vpop.xlane.xlu0 %1754
    %v1756 = vsub.f32 %v1740, %v1746
    %v1757 = vsub.f32 %v1741, %v1749
    %v1758 = vsub.f32 %v1742, %v1752
    %v1759 = vsub.f32 %v1743, %v1755
    %v1760 = vmul.f32 %v1756, 1.442695
    %v1761 = vpow.pop %v1760
    %v1762 = vmul.f32 %v1757, 1.442695
    %v1763 = vpow.pop %v1762
    %v1764 = vmul.f32 %v1758, 1.442695
    %v1765 = vpow.pop %v1764
    %v1766 = vmul.f32 %v1759, 1.442695
    %v1767 = vpow.pop %v1766
    %v1768 = vsel %vm271, %v1761, 0.0
    %1769 = vadd.xlane.f32.xlu0 %v1768
    %v1770 = vpop.xlane.xlu0 %1769
    %v1771 = vsel %vm271, %v1763, 0.0
    %1772 = vadd.xlane.f32.xlu0 %v1771
    %v1773 = vpop.xlane.xlu0 %1772
    %v1774 = vsel %vm271, %v1765, 0.0
    %1775 = vadd.xlane.f32.xlu0 %v1774
    %v1776 = vpop.xlane.xlu0 %1775
    %v1777 = vsel %vm271, %v1767, 0.0
    %1778 = vadd.xlane.f32.xlu0 %v1777
    %v1779 = vpop.xlane.xlu0 %1778
    %v1780 = vrcp.pop %v1770
    %v1781 = vrcp.pop %v1773
    %v1782 = vrcp.pop %v1776
    %v1783 = vrcp.pop %v1779
    %v1784 = vmul.f32 %v1761, %v1780
    %v1785 = vmul.f32 %v1763, %v1781
    %v1786 = vmul.f32 %v1765, %v1782
    %v1787 = vmul.f32 %v1767, %v1783
    %v1788 = vpack.c.bf16 %v1785, %v1784
    %v1789 = vpack.c.bf16 %v1787, %v1786
    %1790 = vrot.lane.b32.xlu0 %v1634, 96
    %v1791 = vpop.permute.xlu0 %1790
    %v1794 = vsel %vm271, %v1788, 0
    %1796 = vmatprep.subr.bf16.mxu0 0
    %1797 = vmatpush1.bf16.msra.mxu0 %v1791
    %1798 = vmatprep.subr.bf16.mxu0 0
    %1799 = vmatpush1.bf16.msra.mxu0 0
    %1800 = vmatprep.subr.bf16.mxu0 0
    %1801 = vmatpush1.bf16.msra.mxu0 0
    %1802 = vmatprep.subr.bf16.mxu0 0
    %1803 = vmatpush1.bf16.msra.mxu0 0
    %1804 = vmatprep.subr.bf16.mxu0 0
    %1805 = vmatpush1.bf16.msra.mxu0 0
    %1806 = vmatprep.subr.bf16.mxu0 0
    %1807 = vmatpush1.bf16.msra.mxu0 0
    %1808 = vmatprep.subr.bf16.mxu0 0
    %1809 = vmatpush1.bf16.msra.mxu0 0
    %1810 = vmatprep.subr.bf16.mxu0 0
    %1811 = vmatpush1.bf16.msra.mxu0 0
    %1812 = vmatprep.subr.bf16.mxu0 0
    %1813 = vmatpush1.bf16.msra.mxu0 0
    %1814 = vmatprep.subr.bf16.mxu0 0
    %1815 = vmatpush1.bf16.msra.mxu0 0
    %1816 = vmatprep.subr.bf16.mxu0 0
    %1817 = vmatpush1.bf16.msra.mxu0 0
    %1818 = vmatprep.subr.bf16.mxu0 0
    %1819 = vmatpush1.bf16.msra.mxu0 0
    %1820 = vmatprep.subr.bf16.mxu0 0
    %1821 = vmatpush1.bf16.msra.mxu0 0
    %1822 = vmatprep.subr.bf16.mxu0 0
    %1823 = vmatpush1.bf16.msra.mxu0 0
    %1824 = vmatprep.subr.bf16.mxu0 0
    %1825 = vmatpush1.bf16.msra.mxu0 0
    %1826 = vmatprep.subr.bf16.mxu0 0
    %1827 = vmatpush1.bf16.msra.mxu0 0
    %1828 = vmatprep.mubr.bf16.mxu0 0
    %1829 = vmatmul.mubr.bf16.gmra.mrb[0].mxu0 %v1794
    %v1830 = vpop.f32.mrb[0].mxu0
    %v1831 = vadd.f32 0.0, %v1830
    %v1832 = vpop.f32.mrb[0].mxu0
    %v1833 = vpop.f32.mrb[0].mxu0
    %v1834 = vadd.f32 0.0, %v1833
    %v1835 = vpop.f32.mrb[0].mxu0
    %1836 = vdwg.mxu0
    %1837 = vrot.lane.b32.xlu0 %v1635, 96
    %v1838 = vpop.permute.xlu0 %1837
    %v1841 = vsel %vm271, %v1789, 0
    %1843 = vmatprep.subr.bf16.mxu0 0
    %1844 = vmatpush1.bf16.msra.mxu0 %v1838
    %1845 = vmatprep.subr.bf16.mxu0 0
    %1846 = vmatpush1.bf16.msra.mxu0 0
    %1847 = vmatprep.subr.bf16.mxu0 0
    %1848 = vmatpush1.bf16.msra.mxu0 0
    %1849 = vmatprep.subr.bf16.mxu0 0
    %1850 = vmatpush1.bf16.msra.mxu0 0
    %1851 = vmatprep.subr.bf16.mxu0 0
    %1852 = vmatpush1.bf16.msra.mxu0 0
    %1853 = vmatprep.subr.bf16.mxu0 0
    %1854 = vmatpush1.bf16.msra.mxu0 0
    %1855 = vmatprep.subr.bf16.mxu0 0
    %1856 = vmatpush1.bf16.msra.mxu0 0
    %1857 = vmatprep.subr.bf16.mxu0 0
    %1858 = vmatpush1.bf16.msra.mxu0 0
    %1859 = vmatprep.subr.bf16.mxu0 0
    %1860 = vmatpush1.bf16.msra.mxu0 0
    %1861 = vmatprep.subr.bf16.mxu0 0
    %1862 = vmatpush1.bf16.msra.mxu0 0
    %1863 = vmatprep.subr.bf16.mxu0 0
    %1864 = vmatpush1.bf16.msra.mxu0 0
    %1865 = vmatprep.subr.bf16.mxu0 0
    %1866 = vmatpush1.bf16.msra.mxu0 0
    %1867 = vmatprep.subr.bf16.mxu0 0
    %1868 = vmatpush1.bf16.msra.mxu0 0
    %1869 = vmatprep.subr.bf16.mxu0 0
    %1870 = vmatpush1.bf16.msra.mxu0 0
    %1871 = vmatprep.subr.bf16.mxu0 0
    %1872 = vmatpush1.bf16.msra.mxu0 0
    %1873 = vmatprep.subr.bf16.mxu0 0
    %1874 = vmatpush1.bf16.msra.mxu0 0
    %1875 = vmatprep.mubr.bf16.mxu0 0
    %1876 = vmatmul.mubr.bf16.gmra.mrb[0].mxu0 %v1841
    %v1877 = vpop.f32.mrb[0].mxu0
    %v1878 = vadd.f32 0.0, %v1877
    %v1879 = vpop.f32.mrb[0].mxu0
    %v1880 = vpop.f32.mrb[0].mxu0
    %v1881 = vadd.f32 0.0, %v1880
    %v1882 = vpop.f32.mrb[0].mxu0
    %1883 = vdwg.mxu0
    %1884 = vrot.lane.b32.xlu0 %v1634, 120
    %v1885 = vpop.permute.xlu0 %1884
    %1886 = vrot.lane.b32.xlu0 %v1634, 104
    %v1887 = vpop.permute.xlu0 %1886
    %v1889 = vsel %vm517, %v1885, 0
    %v1892 = vsel %vm517, %v1887, 0
    %1894 = vmatprep.subr.bf16.mxu0 0
    %1895 = vmatpush1.bf16.xpose.msra.mxu0 %v1892
    %1896 = vmatprep.subr.bf16.mxu0 0
    %1897 = vmatpush1.bf16.xpose.msra.mxu0 0
    %1898 = vmatprep.subr.bf16.mxu0 0
    %1899 = vmatpush1.bf16.xpose.msra.mxu0 0
    %1900 = vmatprep.subr.bf16.mxu0 0
    %1901 = vmatpush1.bf16.xpose.msra.mxu0 0
    %1902 = vmatprep.subr.bf16.mxu0 0
    %1903 = vmatpush1.bf16.xpose.msra.mxu0 0
    %1904 = vmatprep.subr.bf16.mxu0 0
    %1905 = vmatpush1.bf16.xpose.msra.mxu0 0
    %1906 = vmatprep.subr.bf16.mxu0 0
    %1907 = vmatpush1.bf16.xpose.msra.mxu0 0
    %1908 = vmatprep.subr.bf16.mxu0 0
    %1909 = vmatpush1.bf16.xpose.msra.mxu0 0
    %1910 = vmatprep.subr.bf16.mxu0 0
    %1911 = vmatpush1.bf16.xpose.msra.mxu0 0
    %1912 = vmatprep.subr.bf16.mxu0 0
    %1913 = vmatpush1.bf16.xpose.msra.mxu0 0
    %1914 = vmatprep.subr.bf16.mxu0 0
    %1915 = vmatpush1.bf16.xpose.msra.mxu0 0
    %1916 = vmatprep.subr.bf16.mxu0 0
    %1917 = vmatpush1.bf16.xpose.msra.mxu0 0
    %1918 = vmatprep.subr.bf16.mxu0 0
    %1919 = vmatpush1.bf16.xpose.msra.mxu0 0
    %1920 = vmatprep.subr.bf16.mxu0 0
    %1921 = vmatpush1.bf16.xpose.msra.mxu0 0
    %1922 = vmatprep.subr.bf16.mxu0 0
    %1923 = vmatpush1.bf16.xpose.msra.mxu0 0
    %1924 = vmatprep.subr.bf16.mxu0 0
    %1925 = vmatpush1.bf16.xpose.msra.mxu0 0
    %1926 = vmatprep.mubr.bf16.mxu0 0
    %1927 = vmatmul.mubr.bf16.gmra.mrb[0].mxu0 %v1889
    %v1928 = vpop.f32.mrb[0].mxu0
    %v1929 = vadd.f32 0.0, %v1928
    %v1930 = vpop.f32.mrb[0].mxu0
    %v1931 = vpop.f32.mrb[0].mxu0
    %v1932 = vadd.f32 0.0, %v1931
    %v1933 = vpop.f32.mrb[0].mxu0
    %1934 = vdwg.mxu0
    %1935 = vrot.lane.b32.xlu0 %v1635, 120
    %v1936 = vpop.permute.xlu0 %1935
    %1937 = vrot.lane.b32.xlu0 %v1635, 104
    %v1938 = vpop.permute.xlu0 %1937
    %v1940 = vsel %vm517, %v1936, 0
    %v1943 = vsel %vm517, %v1938, 0
    %1945 = vmatprep.subr.bf16.mxu0 0
    %1946 = vmatpush1.bf16.xpose.msra.mxu0 %v1943
    %1947 = vmatprep.subr.bf16.mxu0 0
    %1948 = vmatpush1.bf16.xpose.msra.mxu0 0
    %1949 = vmatprep.subr.bf16.mxu0 0
    %1950 = vmatpush1.bf16.xpose.msra.mxu0 0
    %1951 = vmatprep.subr.bf16.mxu0 0
    %1952 = vmatpush1.bf16.xpose.msra.mxu0 0
    %1953 = vmatprep.subr.bf16.mxu0 0
    %1954 = vmatpush1.bf16.xpose.msra.mxu0 0
    %1955 = vmatprep.subr.bf16.mxu0 0
    %1956 = vmatpush1.bf16.xpose.msra.mxu0 0
    %1957 = vmatprep.subr.bf16.mxu0 0
    %1958 = vmatpush1.bf16.xpose.msra.mxu0 0
    %1959 = vmatprep.subr.bf16.mxu0 0
    %1960 = vmatpush1.bf16.xpose.msra.mxu0 0
    %1961 = vmatprep.subr.bf16.mxu0 0
    %1962 = vmatpush1.bf16.xpose.msra.mxu0 0
    %1963 = vmatprep.subr.bf16.mxu0 0
    %1964 = vmatpush1.bf16.xpose.msra.mxu0 0
    %1965 = vmatprep.subr.bf16.mxu0 0
    %1966 = vmatpush1.bf16.xpose.msra.mxu0 0
    %1967 = vmatprep.subr.bf16.mxu0 0
    %1968 = vmatpush1.bf16.xpose.msra.mxu0 0
    %1969 = vmatprep.subr.bf16.mxu0 0
    %1970 = vmatpush1.bf16.xpose.msra.mxu0 0
    %1971 = vmatprep.subr.bf16.mxu0 0
    %1972 = vmatpush1.bf16.xpose.msra.mxu0 0
    %1973 = vmatprep.subr.bf16.mxu0 0
    %1974 = vmatpush1.bf16.xpose.msra.mxu0 0
    %1975 = vmatprep.subr.bf16.mxu0 0
    %1976 = vmatpush1.bf16.xpose.msra.mxu0 0
    %1977 = vmatprep.mubr.bf16.mxu0 0
    %1978 = vmatmul.mubr.bf16.gmra.mrb[0].mxu0 %v1940
    %v1979 = vpop.f32.mrb[0].mxu0
    %v1980 = vadd.f32 0.0, %v1979
    %v1981 = vpop.f32.mrb[0].mxu0
    %v1982 = vpop.f32.mrb[0].mxu0
    %v1983 = vadd.f32 0.0, %v1982
    %v1984 = vpop.f32.mrb[0].mxu0
    %1985 = vdwg.mxu0
    %v1986 = vmul.f32 %v1929, 0.35355338
    %v1987 = vmul.f32 %v1932, 0.35355338
    %v1988 = vmul.f32 %v1980, 0.35355338
    %v1989 = vmul.f32 %v1983, 0.35355338
    %v1990 = vadd.f32 %v1986, %v1457
    %v1991 = vadd.f32 %v1987, %v1458
    %v1992 = vadd.f32 %v1988, %v1457
    %v1993 = vadd.f32 %v1989, %v1458
    %v1994 = vsel %vm271, %v1990, -inf
    %1995 = vmax.xlane.f32.xlu0 %v1994
    %v1996 = vpop.xlane.xlu0 %1995
    %v1997 = vsel %vm271, %v1991, -inf
    %1998 = vmax.xlane.f32.xlu0 %v1997
    %v1999 = vpop.xlane.xlu0 %1998
    %v2000 = vsel %vm271, %v1992, -inf
    %2001 = vmax.xlane.f32.xlu0 %v2000
    %v2002 = vpop.xlane.xlu0 %2001
    %v2003 = vsel %vm271, %v1993, -inf
    %2004 = vmax.xlane.f32.xlu0 %v2003
    %v2005 = vpop.xlane.xlu0 %2004
    %v2006 = vsub.f32 %v1990, %v1996
    %v2007 = vsub.f32 %v1991, %v1999
    %v2008 = vsub.f32 %v1992, %v2002
    %v2009 = vsub.f32 %v1993, %v2005
    %v2010 = vmul.f32 %v2006, 1.442695
    %v2011 = vpow.pop %v2010
    %v2012 = vmul.f32 %v2007, 1.442695
    %v2013 = vpow.pop %v2012
    %v2014 = vmul.f32 %v2008, 1.442695
    %v2015 = vpow.pop %v2014
    %v2016 = vmul.f32 %v2009, 1.442695
    %v2017 = vpow.pop %v2016
    %v2018 = vsel %vm271, %v2011, 0.0
    %2019 = vadd.xlane.f32.xlu0 %v2018
    %v2020 = vpop.xlane.xlu0 %2019
    %v2021 = vsel %vm271, %v2013, 0.0
    %2022 = vadd.xlane.f32.xlu0 %v2021
    %v2023 = vpop.xlane.xlu0 %2022
    %v2024 = vsel %vm271, %v2015, 0.0
    %2025 = vadd.xlane.f32.xlu0 %v2024
    %v2026 = vpop.xlane.xlu0 %2025
    %v2027 = vsel %vm271, %v2017, 0.0
    %2028 = vadd.xlane.f32.xlu0 %v2027
    %v2029 = vpop.xlane.xlu0 %2028
    %v2030 = vrcp.pop %v2020
    %v2031 = vrcp.pop %v2023
    %v2032 = vrcp.pop %v2026
    %v2033 = vrcp.pop %v2029
    %v2034 = vmul.f32 %v2011, %v2030
    %v2035 = vmul.f32 %v2013, %v2031
    %v2036 = vmul.f32 %v2015, %v2032
    %v2037 = vmul.f32 %v2017, %v2033
    %v2038 = vpack.c.bf16 %v2035, %v2034
    %v2039 = vpack.c.bf16 %v2037, %v2036
    %2040 = vrot.lane.b32.xlu0 %v1634, 88
    %v2041 = vpop.permute.xlu0 %2040
    %v2044 = vsel %vm271, %v2038, 0
    %2046 = vmatprep.subr.bf16.mxu0 0
    %2047 = vmatpush1.bf16.msra.mxu0 %v2041
    %2048 = vmatprep.subr.bf16.mxu0 0
    %2049 = vmatpush1.bf16.msra.mxu0 0
    %2050 = vmatprep.subr.bf16.mxu0 0
    %2051 = vmatpush1.bf16.msra.mxu0 0
    %2052 = vmatprep.subr.bf16.mxu0 0
    %2053 = vmatpush1.bf16.msra.mxu0 0
    %2054 = vmatprep.subr.bf16.mxu0 0
    %2055 = vmatpush1.bf16.msra.mxu0 0
    %2056 = vmatprep.subr.bf16.mxu0 0
    %2057 = vmatpush1.bf16.msra.mxu0 0
    %2058 = vmatprep.subr.bf16.mxu0 0
    %2059 = vmatpush1.bf16.msra.mxu0 0
    %2060 = vmatprep.subr.bf16.mxu0 0
    %2061 = vmatpush1.bf16.msra.mxu0 0
    %2062 = vmatprep.subr.bf16.mxu0 0
    %2063 = vmatpush1.bf16.msra.mxu0 0
    %2064 = vmatprep.subr.bf16.mxu0 0
    %2065 = vmatpush1.bf16.msra.mxu0 0
    %2066 = vmatprep.subr.bf16.mxu0 0
    %2067 = vmatpush1.bf16.msra.mxu0 0
    %2068 = vmatprep.subr.bf16.mxu0 0
    %2069 = vmatpush1.bf16.msra.mxu0 0
    %2070 = vmatprep.subr.bf16.mxu0 0
    %2071 = vmatpush1.bf16.msra.mxu0 0
    %2072 = vmatprep.subr.bf16.mxu0 0
    %2073 = vmatpush1.bf16.msra.mxu0 0
    %2074 = vmatprep.subr.bf16.mxu0 0
    %2075 = vmatpush1.bf16.msra.mxu0 0
    %2076 = vmatprep.subr.bf16.mxu0 0
    %2077 = vmatpush1.bf16.msra.mxu0 0
    %2078 = vmatprep.mubr.bf16.mxu0 0
    %2079 = vmatmul.mubr.bf16.gmra.mrb[0].mxu0 %v2044
    %v2080 = vpop.f32.mrb[0].mxu0
    %v2081 = vadd.f32 0.0, %v2080
    %v2082 = vpop.f32.mrb[0].mxu0
    %v2083 = vpop.f32.mrb[0].mxu0
    %v2084 = vadd.f32 0.0, %v2083
    %v2085 = vpop.f32.mrb[0].mxu0
    %2086 = vdwg.mxu0
    %2087 = vrot.lane.b32.xlu0 %v1635, 88
    %v2088 = vpop.permute.xlu0 %2087
    %v2091 = vsel %vm271, %v2039, 0
    %2093 = vmatprep.subr.bf16.mxu0 0
    %2094 = vmatpush1.bf16.msra.mxu0 %v2088
    %2095 = vmatprep.subr.bf16.mxu0 0
    %2096 = vmatpush1.bf16.msra.mxu0 0
    %2097 = vmatprep.subr.bf16.mxu0 0
    %2098 = vmatpush1.bf16.msra.mxu0 0
    %2099 = vmatprep.subr.bf16.mxu0 0
    %2100 = vmatpush1.bf16.msra.mxu0 0
    %2101 = vmatprep.subr.bf16.mxu0 0
    %2102 = vmatpush1.bf16.msra.mxu0 0
    %2103 = vmatprep.subr.bf16.mxu0 0
    %2104 = vmatpush1.bf16.msra.mxu0 0
    %2105 = vmatprep.subr.bf16.mxu0 0
    %2106 = vmatpush1.bf16.msra.mxu0 0
    %2107 = vmatprep.subr.bf16.mxu0 0
    %2108 = vmatpush1.bf16.msra.mxu0 0
    %2109 = vmatprep.subr.bf16.mxu0 0
    %2110 = vmatpush1.bf16.msra.mxu0 0
    %2111 = vmatprep.subr.bf16.mxu0 0
    %2112 = vmatpush1.bf16.msra.mxu0 0
    %2113 = vmatprep.subr.bf16.mxu0 0
    %2114 = vmatpush1.bf16.msra.mxu0 0
    %2115 = vmatprep.subr.bf16.mxu0 0
    %2116 = vmatpush1.bf16.msra.mxu0 0
    %2117 = vmatprep.subr.bf16.mxu0 0
    %2118 = vmatpush1.bf16.msra.mxu0 0
    %2119 = vmatprep.subr.bf16.mxu0 0
    %2120 = vmatpush1.bf16.msra.mxu0 0
    %2121 = vmatprep.subr.bf16.mxu0 0
    %2122 = vmatpush1.bf16.msra.mxu0 0
    %2123 = vmatprep.subr.bf16.mxu0 0
    %2124 = vmatpush1.bf16.msra.mxu0 0
    %2125 = vmatprep.mubr.bf16.mxu0 0
    %2126 = vmatmul.mubr.bf16.gmra.mrb[0].mxu0 %v2091
    %v2127 = vpop.f32.mrb[0].mxu0
    %v2128 = vadd.f32 0.0, %v2127
    %v2129 = vpop.f32.mrb[0].mxu0
    %v2130 = vpop.f32.mrb[0].mxu0
    %v2131 = vadd.f32 0.0, %v2130
    %v2132 = vpop.f32.mrb[0].mxu0
    %2133 = vdwg.mxu0
    %2138 = vrot.lane.b32.xlu0 %v2081, 8
    %v2139 = vpop.permute.xlu0 %2138
    %2140 = vrot.lane.b32.xlu0 %v2084, 8
    %v2141 = vpop.permute.xlu0 %2140
    %2142 = vrot.lane.b32.xlu0 %v2128, 8
    %v2143 = vpop.permute.xlu0 %2142
    %2144 = vrot.lane.b32.xlu0 %v2131, 8
    %v2145 = vpop.permute.xlu0 %2144
    %v2150 = vsel %vm517, %v1831, %v2139
    %v2151 = vsel %vm517, %v1834, %v2141
    %v2152 = vsel %vm517, %v1878, %v2143
    %v2153 = vsel %vm517, %v1881, %v2145
    %v2154 = vpack.c.bf16 %v2151, %v2150
    %v2155 = vpack.c.bf16 %v2153, %v2152
    %v2158 = vunpack.c.l.b16 %v1469
    %v2159 = vunpack.c.l.b16 %v1470
    %v2160 = vpack.c.b16 %v2159, %v2158
    %v2163 = vsel %vm271, %v2154, 0
    %v2166 = vsel %vm271, %v2155, 0
    %2168 = vmatprep.subr.bf16.mxu0 0
    %2169 = vmatpush1.bf16.msra.mxu0 %v2160
    %2170 = vmatprep.subr.bf16.mxu0 0
    %2171 = vmatpush1.bf16.msra.mxu0 0
    %2172 = vmatprep.subr.bf16.mxu0 0
    %2173 = vmatpush1.bf16.msra.mxu0 0
    %2174 = vmatprep.subr.bf16.mxu0 0
    %2175 = vmatpush1.bf16.msra.mxu0 0
    %2176 = vmatprep.subr.bf16.mxu0 0
    %2177 = vmatpush1.bf16.msra.mxu0 0
    %2178 = vmatprep.subr.bf16.mxu0 0
    %2179 = vmatpush1.bf16.msra.mxu0 0
    %2180 = vmatprep.subr.bf16.mxu0 0
    %2181 = vmatpush1.bf16.msra.mxu0 0
    %2182 = vmatprep.subr.bf16.mxu0 0
    %2183 = vmatpush1.bf16.msra.mxu0 0
    %2184 = vmatprep.subr.bf16.mxu0 0
    %2185 = vmatpush1.bf16.msra.mxu0 0
    %2186 = vmatprep.subr.bf16.mxu0 0
    %2187 = vmatpush1.bf16.msra.mxu0 0
    %2188 = vmatprep.subr.bf16.mxu0 0
    %2189 = vmatpush1.bf16.msra.mxu0 0
    %2190 = vmatprep.subr.bf16.mxu0 0
    %2191 = vmatpush1.bf16.msra.mxu0 0
    %2192 = vmatprep.subr.bf16.mxu0 0
    %2193 = vmatpush1.bf16.msra.mxu0 0
    %2194 = vmatprep.subr.bf16.mxu0 0
    %2195 = vmatpush1.bf16.msra.mxu0 0
    %2196 = vmatprep.subr.bf16.mxu0 0
    %2197 = vmatpush1.bf16.msra.mxu0 0
    %2198 = vmatprep.subr.bf16.mxu0 0
    %2199 = vmatpush1.bf16.msra.mxu0 0
    %2200 = vmatprep.mubr.bf16.mxu0 0
    %2201 = vmatmul.mubr.bf16.gmra.mrb[0].mxu0 %v2163
    %v2202 = vpop.f32.mrb[0].mxu0
    %v2203 = vadd.f32 0.0, %v2202
    %v2204 = vpop.f32.mrb[0].mxu0
    %v2205 = vpop.f32.mrb[0].mxu0
    %v2206 = vadd.f32 0.0, %v2205
    %v2207 = vpop.f32.mrb[0].mxu0
    %2208 = vmatprep.mubr.bf16.mxu0 0
    %2209 = vmatmul.mubr.bf16.gmra.mrb[0].mxu0 %v2166
    %v2210 = vpop.f32.mrb[0].mxu0
    %v2211 = vadd.f32 0.0, %v2210
    %v2212 = vpop.f32.mrb[0].mxu0
    %v2213 = vpop.f32.mrb[0].mxu0
    %v2214 = vadd.f32 0.0, %v2213
    %v2215 = vpop.f32.mrb[0].mxu0
    %2216 = vdwg.mxu0
    %v2217 = vadd.f32 %v1450, %v2203
    %v2218 = vadd.f32 %v1451, %v2206
    %v2219 = vadd.f32 %v1452, %v2211
    %v2220 = vadd.f32 %v1453, %v2214
    %v2222 = vlaneseq
    %v2223 = vshrl.u32 %v2222, 7
    %v2224 = vsub.s32 0, %v2223
    %v2225 = vrot.slane %v1472, %v2224
    %v2227 = vadd.f32 %v2217, %v2225
    %v2228 = vadd.f32 %v2218, %v2225
    %v2229 = vadd.f32 %v2219, %v2225
    %v2230 = vadd.f32 %v2220, %v2225
    %v2231 = vsel %vm271, %v2227, 0.0
    %2232 = vadd.xlane.f32.xlu0 %v2231
    %v2233 = vpop.xlane.xlu0 %2232
    %v2234 = vsel %vm271, %v2228, 0.0
    %2235 = vadd.xlane.f32.xlu0 %v2234
    %v2236 = vpop.xlane.xlu0 %2235
    %v2237 = vsel %vm271, %v2229, 0.0
    %2238 = vadd.xlane.f32.xlu0 %v2237
    %v2239 = vpop.xlane.xlu0 %2238
    %v2240 = vsel %vm271, %v2230, 0.0
    %2241 = vadd.xlane.f32.xlu0 %v2240
    %v2242 = vpop.xlane.xlu0 %2241
    %v2243 = vmul.f32 %v2233, %v284
    %v2244 = vmul.f32 %v2236, %v284
    %v2245 = vmul.f32 %v2239, %v284
    %v2246 = vmul.f32 %v2242, %v284
    %v2247 = vsub.f32 %v2227, %v2243
    %v2248 = vsub.f32 %v2228, %v2244
    %v2249 = vsub.f32 %v2229, %v2245
    %v2250 = vsub.f32 %v2230, %v2246
    %v2251 = vmul.f32 %v2247, %v2247
    %v2252 = vmul.f32 %v2248, %v2248
    %v2253 = vmul.f32 %v2249, %v2249
    %v2254 = vmul.f32 %v2250, %v2250
    %v2255 = vsel %vm271, %v2251, 0.0
    %2256 = vadd.xlane.f32.xlu0 %v2255
    %v2257 = vpop.xlane.xlu0 %2256
    %v2258 = vsel %vm271, %v2252, 0.0
    %2259 = vadd.xlane.f32.xlu0 %v2258
    %v2260 = vpop.xlane.xlu0 %2259
    %v2261 = vsel %vm271, %v2253, 0.0
    %2262 = vadd.xlane.f32.xlu0 %v2261
    %v2263 = vpop.xlane.xlu0 %2262
    %v2264 = vsel %vm271, %v2254, 0.0
    %2265 = vadd.xlane.f32.xlu0 %v2264
    %v2266 = vpop.xlane.xlu0 %2265
    %v2267 = vmul.f32 %v2257, %v284
    %v2268 = vmul.f32 %v2260, %v284
    %v2269 = vmul.f32 %v2263, %v284
    %v2270 = vmul.f32 %v2266, %v284
    %v2271 = vadd.f32 %v2267, 1e-05
    %v2272 = vadd.f32 %v2268, 1e-05
    %v2273 = vadd.f32 %v2269, 1e-05
    %v2274 = vadd.f32 %v2270, 1e-05
    %v2275 = vrsqrt.pop %v2271
    %v2276 = vrsqrt.pop %v2272
    %v2277 = vrsqrt.pop %v2273
    %v2278 = vrsqrt.pop %v2274
    %v2279 = vmul.f32 %v2247, %v2275
    %v2280 = vmul.f32 %v2248, %v2276
    %v2281 = vmul.f32 %v2249, %v2277
    %v2282 = vmul.f32 %v2250, %v2278
    %v2284 = vlaneseq
    %v2285 = vshrl.u32 %v2284, 7
    %v2286 = vsub.s32 0, %v2285
    %v2287 = vrot.slane %v1474, %v2286
    %v2289 = vmul.f32 %v2279, %v2287
    %v2290 = vmul.f32 %v2280, %v2287
    %v2291 = vmul.f32 %v2281, %v2287
    %v2292 = vmul.f32 %v2282, %v2287
    %v2294 = vlaneseq
    %v2295 = vshrl.u32 %v2294, 7
    %v2296 = vsub.s32 0, %v2295
    %v2297 = vrot.slane %v1476, %v2296
    %v2299 = vadd.f32 %v2289, %v2297
    %v2300 = vadd.f32 %v2290, %v2297
    %v2301 = vadd.f32 %v2291, %v2297
    %v2302 = vadd.f32 %v2292, %v2297
    %v2303 = vpack.c.bf16 %v2300, %v2299
    %v2304 = vpack.c.bf16 %v2302, %v2301
    %v2306 = vlaneseq
    %v2307 = vshrl.u32 %v2306, 7
    %v2308 = vsub.s32 0, %v2307
    %v2309 = vrot.slane %v1481, %v2308
    %v2313 = vunpack.c.l.b16 %v1478
    %v2314 = vunpack.c.l.b16 %v1479
    %v2315 = vpack.c.b16 %v2314, %v2313
    %v2318 = vsel %vm271, %v2303, 0
    %v2321 = vsel %vm271, %v2304, 0
    %2323 = vmatprep.subr.bf16.mxu0 0
    %2324 = vmatpush1.bf16.msra.mxu0 %v2315
    %2325 = vmatprep.subr.bf16.mxu0 0
    %2326 = vmatpush1.bf16.msra.mxu0 0
    %2327 = vmatprep.subr.bf16.mxu0 0
    %2328 = vmatpush1.bf16.msra.mxu0 0
    %2329 = vmatprep.subr.bf16.mxu0 0
    %2330 = vmatpush1.bf16.msra.mxu0 0
    %2331 = vmatprep.subr.bf16.mxu0 0
    %2332 = vmatpush1.bf16.msra.mxu0 0
    %2333 = vmatprep.subr.bf16.mxu0 0
    %2334 = vmatpush1.bf16.msra.mxu0 0
    %2335 = vmatprep.subr.bf16.mxu0 0
    %2336 = vmatpush1.bf16.msra.mxu0 0
    %2337 = vmatprep.subr.bf16.mxu0 0
    %2338 = vmatpush1.bf16.msra.mxu0 0
    %2339 = vmatprep.subr.bf16.mxu0 0
    %2340 = vmatpush1.bf16.msra.mxu0 0
    %2341 = vmatprep.subr.bf16.mxu0 0
    %2342 = vmatpush1.bf16.msra.mxu0 0
    %2343 = vmatprep.subr.bf16.mxu0 0
    %2344 = vmatpush1.bf16.msra.mxu0 0
    %2345 = vmatprep.subr.bf16.mxu0 0
    %2346 = vmatpush1.bf16.msra.mxu0 0
    %2347 = vmatprep.subr.bf16.mxu0 0
    %2348 = vmatpush1.bf16.msra.mxu0 0
    %2349 = vmatprep.subr.bf16.mxu0 0
    %2350 = vmatpush1.bf16.msra.mxu0 0
    %2351 = vmatprep.subr.bf16.mxu0 0
    %2352 = vmatpush1.bf16.msra.mxu0 0
    %2353 = vmatprep.subr.bf16.mxu0 0
    %2354 = vmatpush1.bf16.msra.mxu0 0
    %2355 = vmatprep.mubr.bf16.mxu0 0
    %2356 = vmatmul.mubr.bf16.gmra.mrb[0].mxu0 %v2318
    %v2357 = vpop.f32.mrb[0].mxu0
    %v2358 = vadd.f32 %v2309, %v2357
    %v2359 = vpop.f32.mrb[0].mxu0
    %v2360 = vpop.f32.mrb[0].mxu0
    %v2361 = vadd.f32 %v2309, %v2360
    %v2362 = vpop.f32.mrb[0].mxu0
    %2363 = vmatprep.mubr.bf16.mxu0 0
    %2364 = vmatmul.mubr.bf16.gmra.mrb[0].mxu0 %v2321
    %v2365 = vpop.f32.mrb[0].mxu0
    %v2366 = vadd.f32 %v2309, %v2365
    %v2367 = vpop.f32.mrb[0].mxu0
    %v2368 = vpop.f32.mrb[0].mxu0
    %v2369 = vadd.f32 %v2309, %v2368
    %v2370 = vpop.f32.mrb[0].mxu0
    %2371 = vdwg.mxu0
    %v2372 = vmul.f32 %v2358, 0.70710677
    %v2373 = vmul.f32 %v2361, 0.70710677
    %v2374 = vmul.f32 %v2366, 0.70710677
    %v2375 = vmul.f32 %v2369, 0.70710677
    %v2376 = vand.u32 2147483647, %v2372
    %v2377 = vand.u32 2147483647, %v2373
    %v2378 = vand.u32 2147483647, %v2374
    %v2379 = vand.u32 2147483647, %v2375
    %v2380 = vmul.f32 %v2376, 0.3275911
    %v2381 = vmul.f32 %v2377, 0.3275911
    %v2382 = vmul.f32 %v2378, 0.3275911
    %v2383 = vmul.f32 %v2379, 0.3275911
    %v2384 = vadd.f32 %v2380, 1.0
    %v2385 = vadd.f32 %v2381, 1.0
    %v2386 = vadd.f32 %v2382, 1.0
    %v2387 = vadd.f32 %v2383, 1.0
    %v2388 = vrcp.pop %v2384
    %v2389 = vmul.f32 1.0, %v2388
    %v2390 = vrcp.pop %v2385
    %v2391 = vmul.f32 1.0, %v2390
    %v2392 = vrcp.pop %v2386
    %v2393 = vmul.f32 1.0, %v2392
    %v2394 = vrcp.pop %v2387
    %v2395 = vmul.f32 1.0, %v2394
    %v2396 = vmul.f32 %v2389, 1.0614054
    %v2397 = vmul.f32 %v2391, 1.0614054
    %v2398 = vmul.f32 %v2393, 1.0614054
    %v2399 = vmul.f32 %v2395, 1.0614054
    %v2400 = vadd.f32 %v2396, -1.4531521
    %v2401 = vadd.f32 %v2397, -1.4531521
    %v2402 = vadd.f32 %v2398, -1.4531521
    %v2403 = vadd.f32 %v2399, -1.4531521
    %v2404 = vmul.f32 %v2400, %v2389
    %v2405 = vmul.f32 %v2401, %v2391
    %v2406 = vmul.f32 %v2402, %v2393
    %v2407 = vmul.f32 %v2403, %v2395
    %v2408 = vadd.f32 %v2404, 1.4214138
    %v2409 = vadd.f32 %v2405, 1.4214138
    %v2410 = vadd.f32 %v2406, 1.4214138
    %v2411 = vadd.f32 %v2407, 1.4214138
    %v2412 = vmul.f32 %v2408, %v2389
    %v2413 = vmul.f32 %v2409, %v2391
    %v2414 = vmul.f32 %v2410, %v2393
    %v2415 = vmul.f32 %v2411, %v2395
    %v2416 = vadd.f32 %v2412, -0.28449672
    %v2417 = vadd.f32 %v2413, -0.28449672
    %v2418 = vadd.f32 %v2414, -0.28449672
    %v2419 = vadd.f32 %v2415, -0.28449672
    %v2420 = vmul.f32 %v2416, %v2389
    %v2421 = vmul.f32 %v2417, %v2391
    %v2422 = vmul.f32 %v2418, %v2393
    %v2423 = vmul.f32 %v2419, %v2395
    %v2424 = vadd.f32 %v2420, 0.2548296
    %v2425 = vadd.f32 %v2421, 0.2548296
    %v2426 = vadd.f32 %v2422, 0.2548296
    %v2427 = vadd.f32 %v2423, 0.2548296
    %v2428 = vmul.f32 %v2424, %v2389
    %v2429 = vmul.f32 %v2425, %v2391
    %v2430 = vmul.f32 %v2426, %v2393
    %v2431 = vmul.f32 %v2427, %v2395
    %v2432 = vsub.f32 0.0, %v2376
    %v2433 = vsub.f32 0.0, %v2377
    %v2434 = vsub.f32 0.0, %v2378
    %v2435 = vsub.f32 0.0, %v2379
    %v2436 = vmul.f32 %v2432, %v2376
    %v2437 = vmul.f32 %v2433, %v2377
    %v2438 = vmul.f32 %v2434, %v2378
    %v2439 = vmul.f32 %v2435, %v2379
    %v2440 = vmul.f32 %v2436, 1.442695
    %v2441 = vpow.pop %v2440
    %v2442 = vmul.f32 %v2437, 1.442695
    %v2443 = vpow.pop %v2442
    %v2444 = vmul.f32 %v2438, 1.442695
    %v2445 = vpow.pop %v2444
    %v2446 = vmul.f32 %v2439, 1.442695
    %v2447 = vpow.pop %v2446
    %v2448 = vmul.f32 %v2428, %v2441
    %v2449 = vmul.f32 %v2429, %v2443
    %v2450 = vmul.f32 %v2430, %v2445
    %v2451 = vmul.f32 %v2431, %v2447
    %v2452 = vsub.f32 1.0, %v2448
    %v2453 = vsub.f32 1.0, %v2449
    %v2454 = vsub.f32 1.0, %v2450
    %v2455 = vsub.f32 1.0, %v2451
    %vm2456 = vcmp.lt.f32.partialorder %v2372, 0.0
    %vm2457 = vcmp.lt.f32.partialorder %v2373, 0.0
    %vm2458 = vcmp.lt.f32.partialorder %v2374, 0.0
    %vm2459 = vcmp.lt.f32.partialorder %v2375, 0.0
    %v2460 = vsub.f32 0.0, %v2452
    %v2461 = vsub.f32 0.0, %v2453
    %v2462 = vsub.f32 0.0, %v2454
    %v2463 = vsub.f32 0.0, %v2455
    %v2464 = vsel %vm2456, %v2460, %v2452
    %v2465 = vsel %vm2457, %v2461, %v2453
    %v2466 = vsel %vm2458, %v2462, %v2454
    %v2467 = vsel %vm2459, %v2463, %v2455
    %v2468 = vmul.f32 %v2358, 0.5
    %v2469 = vmul.f32 %v2361, 0.5
    %v2470 = vmul.f32 %v2366, 0.5
    %v2471 = vmul.f32 %v2369, 0.5
    %v2472 = vadd.f32 %v2464, 1.0
    %v2473 = vadd.f32 %v2465, 1.0
    %v2474 = vadd.f32 %v2466, 1.0
    %v2475 = vadd.f32 %v2467, 1.0
    %v2476 = vmul.f32 %v2468, %v2472
    %v2477 = vmul.f32 %v2469, %v2473
    %v2478 = vmul.f32 %v2470, %v2474
    %v2479 = vmul.f32 %v2471, %v2475
    %v2480 = vpack.c.bf16 %v2477, %v2476
    %v2481 = vpack.c.bf16 %v2479, %v2478
    %v2490 = vunpack.c.l.b16 %v1483
    %v2491 = vunpack.c.l.b16 %v1484
    %v2492 = vunpack.c.l.b16 %v1485
    %v2493 = vunpack.c.l.b16 %v1486
    %v2494 = vunpack.c.l.b16 %v1487
    %v2495 = vunpack.c.l.b16 %v1488
    %v2496 = vunpack.c.l.b16 %v1489
    %v2497 = vunpack.c.l.b16 %v1490
    %v2498 = vpack.c.b16 %v2491, %v2490
    %v2499 = vpack.c.b16 %v2493, %v2492
    %v2500 = vpack.c.b16 %v2495, %v2494
    %v2501 = vpack.c.b16 %v2497, %v2496
    %v2507 = vsel %vm213, %v2480, 0
    %v2510 = vsel %vm213, %v2481, 0
    %2512 = vmatprep.subr.bf16.mxu0 0
    %2513 = vmatpush1.bf16.msra.mxu0 %v2498
    %2514 = vmatprep.subr.bf16.mxu0 0
    %2515 = vmatpush1.bf16.msra.mxu0 %v2499
    %2516 = vmatprep.subr.bf16.mxu0 0
    %2517 = vmatpush1.bf16.msra.mxu0 %v2500
    %2518 = vmatprep.subr.bf16.mxu0 0
    %2519 = vmatpush1.bf16.msra.mxu0 %v2501
    %2520 = vmatprep.subr.bf16.mxu0 0
    %2521 = vmatpush1.bf16.msra.mxu0 0
    %2522 = vmatprep.subr.bf16.mxu0 0
    %2523 = vmatpush1.bf16.msra.mxu0 0
    %2524 = vmatprep.subr.bf16.mxu0 0
    %2525 = vmatpush1.bf16.msra.mxu0 0
    %2526 = vmatprep.subr.bf16.mxu0 0
    %2527 = vmatpush1.bf16.msra.mxu0 0
    %2528 = vmatprep.subr.bf16.mxu0 0
    %2529 = vmatpush1.bf16.msra.mxu0 0
    %2530 = vmatprep.subr.bf16.mxu0 0
    %2531 = vmatpush1.bf16.msra.mxu0 0
    %2532 = vmatprep.subr.bf16.mxu0 0
    %2533 = vmatpush1.bf16.msra.mxu0 0
    %2534 = vmatprep.subr.bf16.mxu0 0
    %2535 = vmatpush1.bf16.msra.mxu0 0
    %2536 = vmatprep.subr.bf16.mxu0 0
    %2537 = vmatpush1.bf16.msra.mxu0 0
    %2538 = vmatprep.subr.bf16.mxu0 0
    %2539 = vmatpush1.bf16.msra.mxu0 0
    %2540 = vmatprep.subr.bf16.mxu0 0
    %2541 = vmatpush1.bf16.msra.mxu0 0
    %2542 = vmatprep.subr.bf16.mxu0 0
    %2543 = vmatpush1.bf16.msra.mxu0 0
    %2544 = vmatprep.mubr.bf16.mxu0 0
    %2545 = vmatmul.mubr.bf16.gmra.mrb[0].mxu0 %v2507
    %v2546 = vpop.f32.mrb[0].mxu0
    %v2547 = vadd.f32 0.0, %v2546
    %v2548 = vpop.f32.mrb[0].mxu0
    %v2549 = vpop.f32.mrb[0].mxu0
    %v2550 = vadd.f32 0.0, %v2549
    %v2551 = vpop.f32.mrb[0].mxu0
    %2552 = vmatprep.mubr.bf16.mxu0 0
    %2553 = vmatmul.mubr.bf16.gmra.mrb[0].mxu0 %v2510
    %v2554 = vpop.f32.mrb[0].mxu0
    %v2555 = vadd.f32 0.0, %v2554
    %v2556 = vpop.f32.mrb[0].mxu0
    %v2557 = vpop.f32.mrb[0].mxu0
    %v2558 = vadd.f32 0.0, %v2557
    %v2559 = vpop.f32.mrb[0].mxu0
    %2560 = vdwg.mxu0
    %v2561 = vadd.f32 %v2227, %v2547
    %v2562 = vadd.f32 %v2228, %v2550
    %v2563 = vadd.f32 %v2229, %v2555
    %v2564 = vadd.f32 %v2230, %v2558
    %v2566 = vlaneseq
    %v2567 = vshrl.u32 %v2566, 7
    %v2568 = vsub.s32 0, %v2567
    %v2569 = vrot.slane %v1492, %v2568
    %v2571 = vadd.f32 %v2561, %v2569
    %v2572 = vadd.f32 %v2562, %v2569
    %v2573 = vadd.f32 %v2563, %v2569
    %v2574 = vadd.f32 %v2564, %v2569
    %v2575 = vld [vmem:[%s37] sm:$0xff]
    %v2576 = vld [vmem:[%s37 + $0x8] sm:$0xff]
    %v2577 = vld [vmem:[%s37 + $0x10] sm:$0xff]
    %v2578 = vld [vmem:[%s37 + $0x18] sm:$0xff]
    %vm2579 = vcmask 261120
    %v2581 = vsel %vm2579, %v2575, 0
    %2583 = vmatprep.subr.mxu0 0.0
    %2584 = vmatpush1.msra.mxu0 %v2571
    %2585 = vmatprep.subr.mxu0 0.0
    %2586 = vmatpush1.msra.mxu0 %v2572
    %2587 = vmatprep.subr.mxu0 0.0
    %2588 = vmatpush1.msra.mxu0 %v2573
    %2589 = vmatprep.subr.mxu0 0.0
    %2590 = vmatpush1.msra.mxu0 %v2574
    %2591 = vmatprep.subr.mxu0 0.0
    %2592 = vmatpush1.msra.mxu0 0.0
    %2593 = vmatprep.subr.mxu0 0.0
    %2594 = vmatpush1.msra.mxu0 0.0
    %2595 = vmatprep.subr.mxu0 0.0
    %2596 = vmatpush1.msra.mxu0 0.0
    %2597 = vmatprep.subr.mxu0 0.0
    %2598 = vmatpush1.msra.mxu0 0.0
    %2599 = vmatprep.subr.mxu0 0.0
    %2600 = vmatpush1.msra.mxu0 0.0
    %2601 = vmatprep.subr.mxu0 0.0
    %2602 = vmatpush1.msra.mxu0 0.0
    %2603 = vmatprep.subr.mxu0 0.0
    %2604 = vmatpush1.msra.mxu0 0.0
    %2605 = vmatprep.subr.mxu0 0.0
    %2606 = vmatpush1.msra.mxu0 0.0
    %2607 = vmatprep.subr.mxu0 0.0
    %2608 = vmatpush1.msra.mxu0 0.0
    %2609 = vmatprep.subr.mxu0 0.0
    %2610 = vmatpush1.msra.mxu0 0.0
    %2611 = vmatprep.subr.mxu0 0.0
    %2612 = vmatpush1.msra.mxu0 0.0
    %2613 = vmatprep.subr.mxu0 0.0
    %2614 = vmatpush1.msra.mxu0 0.0
    %2615 = vmatprep.subr.mxu0 0.0
    %2616 = vmatpush1.msra.mxu0 0.0
    %2617 = vmatprep.subr.mxu0 0.0
    %2618 = vmatpush1.msra.mxu0 0.0
    %2619 = vmatprep.subr.mxu0 0.0
    %2620 = vmatpush1.msra.mxu0 0.0
    %2621 = vmatprep.subr.mxu0 0.0
    %2622 = vmatpush1.msra.mxu0 0.0
    %2623 = vmatprep.subr.mxu0 0.0
    %2624 = vmatpush1.msra.mxu0 0.0
    %2625 = vmatprep.subr.mxu0 0.0
    %2626 = vmatpush1.msra.mxu0 0.0
    %2627 = vmatprep.subr.mxu0 0.0
    %2628 = vmatpush1.msra.mxu0 0.0
    %2629 = vmatprep.subr.mxu0 0.0
    %2630 = vmatpush1.msra.mxu0 0.0
    %2631 = vmatprep.subr.mxu0 0.0
    %2632 = vmatpush1.msra.mxu0 0.0
    %2633 = vmatprep.subr.mxu0 0.0
    %2634 = vmatpush1.msra.mxu0 0.0
    %2635 = vmatprep.subr.mxu0 0.0
    %2636 = vmatpush1.msra.mxu0 0.0
    %2637 = vmatprep.subr.mxu0 0.0
    %2638 = vmatpush1.msra.mxu0 0.0
    %2639 = vmatprep.subr.mxu0 0.0
    %2640 = vmatpush1.msra.mxu0 0.0
    %2641 = vmatprep.subr.mxu0 0.0
    %2642 = vmatpush1.msra.mxu0 0.0
    %2643 = vmatprep.subr.mxu0 0.0
    %2644 = vmatpush1.msra.mxu0 0.0
    %2645 = vmatprep.subr.mxu0 0.0
    %2646 = vmatpush1.msra.mxu0 0.0
    %2647 = vmatprep.mubr.f32.mxu0 0.0
    %2648 = vmatmul.mubr.f32.gmra.mrb[0].mxu0 %v2581
    %v2649 = vpop.f32.mrb[0].mxu0
    %v2650 = vadd.f32 0.0, %v2649
    %v2651 = vpop.f32.mrb[0].mxu0
    %2652 = vdwg.mxu0
    %v2654 = vsel %vm2579, %v2576, 0
    %2656 = vmatprep.subr.mxu0 0.0
    %2657 = vmatpush1.msra.mxu0 %v2571
    %2658 = vmatprep.subr.mxu0 0.0
    %2659 = vmatpush1.msra.mxu0 %v2572
    %2660 = vmatprep.subr.mxu0 0.0
    %2661 = vmatpush1.msra.mxu0 %v2573
    %2662 = vmatprep.subr.mxu0 0.0
    %2663 = vmatpush1.msra.mxu0 %v2574
    %2664 = vmatprep.subr.mxu0 0.0
    %2665 = vmatpush1.msra.mxu0 0.0
    %2666 = vmatprep.subr.mxu0 0.0
    %2667 = vmatpush1.msra.mxu0 0.0
    %2668 = vmatprep.subr.mxu0 0.0
    %2669 = vmatpush1.msra.mxu0 0.0
    %2670 = vmatprep.subr.mxu0 0.0
    %2671 = vmatpush1.msra.mxu0 0.0
    %2672 = vmatprep.subr.mxu0 0.0
    %2673 = vmatpush1.msra.mxu0 0.0
    %2674 = vmatprep.subr.mxu0 0.0
    %2675 = vmatpush1.msra.mxu0 0.0
    %2676 = vmatprep.subr.mxu0 0.0
    %2677 = vmatpush1.msra.mxu0 0.0
    %2678 = vmatprep.subr.mxu0 0.0
    %2679 = vmatpush1.msra.mxu0 0.0
    %2680 = vmatprep.subr.mxu0 0.0
    %2681 = vmatpush1.msra.mxu0 0.0
    %2682 = vmatprep.subr.mxu0 0.0
    %2683 = vmatpush1.msra.mxu0 0.0
    %2684 = vmatprep.subr.mxu0 0.0
    %2685 = vmatpush1.msra.mxu0 0.0
    %2686 = vmatprep.subr.mxu0 0.0
    %2687 = vmatpush1.msra.mxu0 0.0
    %2688 = vmatprep.subr.mxu0 0.0
    %2689 = vmatpush1.msra.mxu0 0.0
    %2690 = vmatprep.subr.mxu0 0.0
    %2691 = vmatpush1.msra.mxu0 0.0
    %2692 = vmatprep.subr.mxu0 0.0
    %2693 = vmatpush1.msra.mxu0 0.0
    %2694 = vmatprep.subr.mxu0 0.0
    %2695 = vmatpush1.msra.mxu0 0.0
    %2696 = vmatprep.subr.mxu0 0.0
    %2697 = vmatpush1.msra.mxu0 0.0
    %2698 = vmatprep.subr.mxu0 0.0
    %2699 = vmatpush1.msra.mxu0 0.0
    %2700 = vmatprep.subr.mxu0 0.0
    %2701 = vmatpush1.msra.mxu0 0.0
    %2702 = vmatprep.subr.mxu0 0.0
    %2703 = vmatpush1.msra.mxu0 0.0
    %2704 = vmatprep.subr.mxu0 0.0
    %2705 = vmatpush1.msra.mxu0 0.0
    %2706 = vmatprep.subr.mxu0 0.0
    %2707 = vmatpush1.msra.mxu0 0.0
    %2708 = vmatprep.subr.mxu0 0.0
    %2709 = vmatpush1.msra.mxu0 0.0
    %2710 = vmatprep.subr.mxu0 0.0
    %2711 = vmatpush1.msra.mxu0 0.0
    %2712 = vmatprep.subr.mxu0 0.0
    %2713 = vmatpush1.msra.mxu0 0.0
    %2714 = vmatprep.subr.mxu0 0.0
    %2715 = vmatpush1.msra.mxu0 0.0
    %2716 = vmatprep.subr.mxu0 0.0
    %2717 = vmatpush1.msra.mxu0 0.0
    %2718 = vmatprep.subr.mxu0 0.0
    %2719 = vmatpush1.msra.mxu0 0.0
    %2720 = vmatprep.mubr.f32.mxu0 0.0
    %2721 = vmatmul.mubr.f32.gmra.mrb[0].mxu0 %v2654
    %v2722 = vpop.f32.mrb[0].mxu0
    %v2723 = vadd.f32 0.0, %v2722
    %v2724 = vpop.f32.mrb[0].mxu0
    %2725 = vdwg.mxu0
    %v2727 = vsel %vm2579, %v2577, 0
    %2729 = vmatprep.subr.mxu0 0.0
    %2730 = vmatpush1.msra.mxu0 %v2571
    %2731 = vmatprep.subr.mxu0 0.0
    %2732 = vmatpush1.msra.mxu0 %v2572
    %2733 = vmatprep.subr.mxu0 0.0
    %2734 = vmatpush1.msra.mxu0 %v2573
    %2735 = vmatprep.subr.mxu0 0.0
    %2736 = vmatpush1.msra.mxu0 %v2574
    %2737 = vmatprep.subr.mxu0 0.0
    %2738 = vmatpush1.msra.mxu0 0.0
    %2739 = vmatprep.subr.mxu0 0.0
    %2740 = vmatpush1.msra.mxu0 0.0
    %2741 = vmatprep.subr.mxu0 0.0
    %2742 = vmatpush1.msra.mxu0 0.0
    %2743 = vmatprep.subr.mxu0 0.0
    %2744 = vmatpush1.msra.mxu0 0.0
    %2745 = vmatprep.subr.mxu0 0.0
    %2746 = vmatpush1.msra.mxu0 0.0
    %2747 = vmatprep.subr.mxu0 0.0
    %2748 = vmatpush1.msra.mxu0 0.0
    %2749 = vmatprep.subr.mxu0 0.0
    %2750 = vmatpush1.msra.mxu0 0.0
    %2751 = vmatprep.subr.mxu0 0.0
    %2752 = vmatpush1.msra.mxu0 0.0
    %2753 = vmatprep.subr.mxu0 0.0
    %2754 = vmatpush1.msra.mxu0 0.0
    %2755 = vmatprep.subr.mxu0 0.0
    %2756 = vmatpush1.msra.mxu0 0.0
    %2757 = vmatprep.subr.mxu0 0.0
    %2758 = vmatpush1.msra.mxu0 0.0
    %2759 = vmatprep.subr.mxu0 0.0
    %2760 = vmatpush1.msra.mxu0 0.0
    %2761 = vmatprep.subr.mxu0 0.0
    %2762 = vmatpush1.msra.mxu0 0.0
    %2763 = vmatprep.subr.mxu0 0.0
    %2764 = vmatpush1.msra.mxu0 0.0
    %2765 = vmatprep.subr.mxu0 0.0
    %2766 = vmatpush1.msra.mxu0 0.0
    %2767 = vmatprep.subr.mxu0 0.0
    %2768 = vmatpush1.msra.mxu0 0.0
    %2769 = vmatprep.subr.mxu0 0.0
    %2770 = vmatpush1.msra.mxu0 0.0
    %2771 = vmatprep.subr.mxu0 0.0
    %2772 = vmatpush1.msra.mxu0 0.0
    %2773 = vmatprep.subr.mxu0 0.0
    %2774 = vmatpush1.msra.mxu0 0.0
    %2775 = vmatprep.subr.mxu0 0.0
    %2776 = vmatpush1.msra.mxu0 0.0
    %2777 = vmatprep.subr.mxu0 0.0
    %2778 = vmatpush1.msra.mxu0 0.0
    %2779 = vmatprep.subr.mxu0 0.0
    %2780 = vmatpush1.msra.mxu0 0.0
    %2781 = vmatprep.subr.mxu0 0.0
    %2782 = vmatpush1.msra.mxu0 0.0
    %2783 = vmatprep.subr.mxu0 0.0
    %2784 = vmatpush1.msra.mxu0 0.0
    %2785 = vmatprep.subr.mxu0 0.0
    %2786 = vmatpush1.msra.mxu0 0.0
    %2787 = vmatprep.subr.mxu0 0.0
    %2788 = vmatpush1.msra.mxu0 0.0
    %2789 = vmatprep.subr.mxu0 0.0
    %2790 = vmatpush1.msra.mxu0 0.0
    %2791 = vmatprep.subr.mxu0 0.0
    %2792 = vmatpush1.msra.mxu0 0.0
    %2793 = vmatprep.mubr.f32.mxu0 0.0
    %2794 = vmatmul.mubr.f32.gmra.mrb[0].mxu0 %v2727
    %v2795 = vpop.f32.mrb[0].mxu0
    %v2796 = vadd.f32 0.0, %v2795
    %v2797 = vpop.f32.mrb[0].mxu0
    %2798 = vdwg.mxu0
    %v2800 = vsel %vm2579, %v2578, 0
    %2802 = vmatprep.subr.mxu0 0.0
    %2803 = vmatpush1.msra.mxu0 %v2571
    %2804 = vmatprep.subr.mxu0 0.0
    %2805 = vmatpush1.msra.mxu0 %v2572
    %2806 = vmatprep.subr.mxu0 0.0
    %2807 = vmatpush1.msra.mxu0 %v2573
    %2808 = vmatprep.subr.mxu0 0.0
    %2809 = vmatpush1.msra.mxu0 %v2574
    %2810 = vmatprep.subr.mxu0 0.0
    %2811 = vmatpush1.msra.mxu0 0.0
    %2812 = vmatprep.subr.mxu0 0.0
    %2813 = vmatpush1.msra.mxu0 0.0
    %2814 = vmatprep.subr.mxu0 0.0
    %2815 = vmatpush1.msra.mxu0 0.0
    %2816 = vmatprep.subr.mxu0 0.0
    %2817 = vmatpush1.msra.mxu0 0.0
    %2818 = vmatprep.subr.mxu0 0.0
    %2819 = vmatpush1.msra.mxu0 0.0
    %2820 = vmatprep.subr.mxu0 0.0
    %2821 = vmatpush1.msra.mxu0 0.0
    %2822 = vmatprep.subr.mxu0 0.0
    %2823 = vmatpush1.msra.mxu0 0.0
    %2824 = vmatprep.subr.mxu0 0.0
    %2825 = vmatpush1.msra.mxu0 0.0
    %2826 = vmatprep.subr.mxu0 0.0
    %2827 = vmatpush1.msra.mxu0 0.0
    %2828 = vmatprep.subr.mxu0 0.0
    %2829 = vmatpush1.msra.mxu0 0.0
    %2830 = vmatprep.subr.mxu0 0.0
    %2831 = vmatpush1.msra.mxu0 0.0
    %2832 = vmatprep.subr.mxu0 0.0
    %2833 = vmatpush1.msra.mxu0 0.0
    %2834 = vmatprep.subr.mxu0 0.0
    %2835 = vmatpush1.msra.mxu0 0.0
    %2836 = vmatprep.subr.mxu0 0.0
    %2837 = vmatpush1.msra.mxu0 0.0
    %2838 = vmatprep.subr.mxu0 0.0
    %2839 = vmatpush1.msra.mxu0 0.0
    %2840 = vmatprep.subr.mxu0 0.0
    %2841 = vmatpush1.msra.mxu0 0.0
    %2842 = vmatprep.subr.mxu0 0.0
    %2843 = vmatpush1.msra.mxu0 0.0
    %2844 = vmatprep.subr.mxu0 0.0
    %2845 = vmatpush1.msra.mxu0 0.0
    %2846 = vmatprep.subr.mxu0 0.0
    %2847 = vmatpush1.msra.mxu0 0.0
    %2848 = vmatprep.subr.mxu0 0.0
    %2849 = vmatpush1.msra.mxu0 0.0
    %2850 = vmatprep.subr.mxu0 0.0
    %2851 = vmatpush1.msra.mxu0 0.0
    %2852 = vmatprep.subr.mxu0 0.0
    %2853 = vmatpush1.msra.mxu0 0.0
    %2854 = vmatprep.subr.mxu0 0.0
    %2855 = vmatpush1.msra.mxu0 0.0
    %2856 = vmatprep.subr.mxu0 0.0
    %2857 = vmatpush1.msra.mxu0 0.0
    %2858 = vmatprep.subr.mxu0 0.0
    %2859 = vmatpush1.msra.mxu0 0.0
    %2860 = vmatprep.subr.mxu0 0.0
    %2861 = vmatpush1.msra.mxu0 0.0
    %2862 = vmatprep.subr.mxu0 0.0
    %2863 = vmatpush1.msra.mxu0 0.0
    %2864 = vmatprep.subr.mxu0 0.0
    %2865 = vmatpush1.msra.mxu0 0.0
    %2866 = vmatprep.mubr.f32.mxu0 0.0
    %2867 = vmatmul.mubr.f32.gmra.mrb[0].mxu0 %v2800
    %v2868 = vpop.f32.mrb[0].mxu0
    %v2869 = vadd.f32 0.0, %v2868
    %v2870 = vpop.f32.mrb[0].mxu0
    %2871 = vdwg.mxu0
    %2873 = vrot.lane.b32.xlu0 %v2723, 16
    %v2874 = vpop.permute.xlu0 %2873
    %2877 = vrot.lane.b32.xlu0 %v2796, 32
    %v2878 = vpop.permute.xlu0 %2877
    %2881 = vrot.lane.b32.xlu0 %v2869, 48
    %v2882 = vpop.permute.xlu0 %2881
    %v2884 = vsel %vm271, %v2650, %v2874
    %v2885 = vsel %vm2579, %v2884, %v2878
    %vm2886 = vcmask 392192
    %v2887 = vsel %vm2886, %v2885, %v2882
    %v2888 = vld [vmem:[%s39] sm:$0x1]
    %v2889 = vld [vmem:[%s41] sm:$0x1]
    %v2890 = vsel %vm213, %v2887, 0.0
    %2891 = vadd.xlane.f32.xlu0 %v2890
    %v2892 = vpop.xlane.xlu0 %2891
    %v2893 = vrcp.pop 64.0
    %v2894 = vmul.f32 %v2892, %v2893
    %v2895 = vsub.f32 %v2887, %v2894
    %v2896 = vmul.f32 %v2895, %v2895
    %v2897 = vsel %vm213, %v2896, 0.0
    %2898 = vadd.xlane.f32.xlu0 %v2897
    %v2899 = vpop.xlane.xlu0 %2898
    %v2900 = vmul.f32 %v2899, %v2893
    %v2901 = vadd.f32 %v2900, 1e-05
    %v2902 = vrsqrt.pop %v2901
    %v2903 = vmul.f32 %v2895, %v2902
    %v2905 = vlaneseq
    %v2906 = vshrl.u32 %v2905, 7
    %v2907 = vsub.s32 0, %v2906
    %v2908 = vrot.slane %v2888, %v2907
    %v2910 = vmul.f32 %v2903, %v2908
    %v2912 = vlaneseq
    %v2913 = vshrl.u32 %v2912, 7
    %v2914 = vsub.s32 0, %v2913
    %v2915 = vrot.slane %v2889, %v2914
    %v2917 = vadd.f32 %v2910, %v2915
    %v2918 = vld [vmem:[%s43] sm:$0xf]
    %v2919 = vld [vmem:[%s43 + $0x4] sm:$0xf]
    %v2920 = vld [vmem:[%s43 + $0x8] sm:$0xf]
    %v2921 = vld [vmem:[%s43 + $0xc] sm:$0xf]
    %v2922 = vld [vmem:[%s43 + $0x10] sm:$0xf]
    %v2923 = vld [vmem:[%s43 + $0x14] sm:$0xf]
    %v2924 = vld [vmem:[%s43 + $0x18] sm:$0xf]
    %v2925 = vld [vmem:[%s43 + $0x1c] sm:$0xf]
    %v2926 = vpack.c.bf16 %v2917, %v2917
    %v2935 = vunpack.c.l.b16 %v2918
    %v2936 = vunpack.c.l.b16 %v2919
    %v2937 = vunpack.c.l.b16 %v2920
    %v2938 = vunpack.c.l.b16 %v2921
    %v2939 = vunpack.c.l.b16 %v2922
    %v2940 = vunpack.c.l.b16 %v2923
    %v2941 = vunpack.c.l.b16 %v2924
    %v2942 = vunpack.c.l.b16 %v2925
    %v2943 = vpack.c.b16 %v2936, %v2935
    %v2944 = vpack.c.b16 %v2938, %v2937
    %v2945 = vpack.c.b16 %v2940, %v2939
    %v2946 = vpack.c.b16 %v2942, %v2941
    %v2952 = vsel %vm213, %v2926, 0
    %2954 = vmatprep.subr.bf16.mxu0 0
    %2955 = vmatpush1.bf16.msra.mxu0 %v2943
    %2956 = vmatprep.subr.bf16.mxu0 0
    %2957 = vmatpush1.bf16.msra.mxu0 %v2944
    %2958 = vmatprep.subr.bf16.mxu0 0
    %2959 = vmatpush1.bf16.msra.mxu0 %v2945
    %2960 = vmatprep.subr.bf16.mxu0 0
    %2961 = vmatpush1.bf16.msra.mxu0 %v2946
    %2962 = vmatprep.subr.bf16.mxu0 0
    %2963 = vmatpush1.bf16.msra.mxu0 0
    %2964 = vmatprep.subr.bf16.mxu0 0
    %2965 = vmatpush1.bf16.msra.mxu0 0
    %2966 = vmatprep.subr.bf16.mxu0 0
    %2967 = vmatpush1.bf16.msra.mxu0 0
    %2968 = vmatprep.subr.bf16.mxu0 0
    %2969 = vmatpush1.bf16.msra.mxu0 0
    %2970 = vmatprep.subr.bf16.mxu0 0
    %2971 = vmatpush1.bf16.msra.mxu0 0
    %2972 = vmatprep.subr.bf16.mxu0 0
    %2973 = vmatpush1.bf16.msra.mxu0 0
    %2974 = vmatprep.subr.bf16.mxu0 0
    %2975 = vmatpush1.bf16.msra.mxu0 0
    %2976 = vmatprep.subr.bf16.mxu0 0
    %2977 = vmatpush1.bf16.msra.mxu0 0
    %2978 = vmatprep.subr.bf16.mxu0 0
    %2979 = vmatpush1.bf16.msra.mxu0 0
    %2980 = vmatprep.subr.bf16.mxu0 0
    %2981 = vmatpush1.bf16.msra.mxu0 0
    %2982 = vmatprep.subr.bf16.mxu0 0
    %2983 = vmatpush1.bf16.msra.mxu0 0
    %2984 = vmatprep.subr.bf16.mxu0 0
    %2985 = vmatpush1.bf16.msra.mxu0 0
    %2986 = vmatprep.mubr.bf16.mxu0 0
    %2987 = vmatmul.mubr.bf16.gmra.mrb[0].mxu0 %v2952
    %v2988 = vpop.f32.mrb[0].mxu0
    %v2989 = vadd.f32 0.0, %v2988
    %v2990 = vpop.f32.mrb[0].mxu0
    %v2991 = vpop.f32.mrb[0].mxu0
    %v2992 = vpop.f32.mrb[0].mxu0
    %2993 = vdwg.mxu0
    %v2994 = vld [vmem:[%s53] sm:$0xf]
    %v2995 = vld [vmem:[%s53 + $0x4] sm:$0xf]
    %v2996 = vld [vmem:[%s53 + $0x8] sm:$0xf]
    %v2997 = vld [vmem:[%s53 + $0xc] sm:$0xf]
    %v2998 = vld [vmem:[%s45] sm:$0x1]
    %v2999 = vld [vmem:[%s47] sm:$0x1]
    %v3000 = vld [vmem:[%s49] sm:$0xf]
    %v3001 = vld [vmem:[%s49 + $0x4] sm:$0xf]
    %v3002 = vld [vmem:[%s49 + $0x8] sm:$0xf]
    %v3003 = vld [vmem:[%s49 + $0xc] sm:$0xf]
    %v3004 = vld [vmem:[%s51] sm:$0x1]
    %v3005 = vld [vmem:[%s55] sm:$0xf]
    %v3006 = vld [vmem:[%s55 + $0x4] sm:$0xf]
    %v3007 = vld [vmem:[%s55 + $0x8] sm:$0xf]
    %v3008 = vld [vmem:[%s55 + $0xc] sm:$0xf]
    %v3009 = vld [vmem:[%s57] sm:$0x1]
    %v3010 = vld [vmem:[%s59] sm:$0x1]
    %v3011 = vld [vmem:[%s61] sm:$0x1]
    %v3012 = vld [vmem:[%s63] sm:$0xf]
    %v3013 = vld [vmem:[%s63 + $0x4] sm:$0xf]
    %v3014 = vld [vmem:[%s63 + $0x8] sm:$0xf]
    %v3015 = vld [vmem:[%s63 + $0xc] sm:$0xf]
    %v3016 = vld [vmem:[%s65] sm:$0x1]
    %v3017 = vld [vmem:[%s67] sm:$0xf]
    %v3018 = vld [vmem:[%s67 + $0x4] sm:$0xf]
    %v3019 = vld [vmem:[%s67 + $0x8] sm:$0xf]
    %v3020 = vld [vmem:[%s67 + $0xc] sm:$0xf]
    %v3021 = vld [vmem:[%s67 + $0x10] sm:$0xf]
    %v3022 = vld [vmem:[%s67 + $0x14] sm:$0xf]
    %v3023 = vld [vmem:[%s67 + $0x18] sm:$0xf]
    %v3024 = vld [vmem:[%s67 + $0x1c] sm:$0xf]
    %v3025 = vld [vmem:[%s67 + $0x20] sm:$0xf]
    %v3026 = vld [vmem:[%s67 + $0x24] sm:$0xf]
    %v3027 = vld [vmem:[%s67 + $0x28] sm:$0xf]
    %v3028 = vld [vmem:[%s67 + $0x2c] sm:$0xf]
    %v3029 = vld [vmem:[%s67 + $0x30] sm:$0xf]
    %v3030 = vld [vmem:[%s67 + $0x34] sm:$0xf]
    %v3031 = vld [vmem:[%s67 + $0x38] sm:$0xf]
    %v3032 = vld [vmem:[%s67 + $0x3c] sm:$0xf]
    %v3033 = vld [vmem:[%s69] sm:$0x1]
    %v3034 = vsel %vm2579, %v2989, 0.0
    %3035 = vadd.xlane.f32.xlu0 %v3034
    %v3036 = vpop.xlane.xlu0 %3035
    %v3037 = vrcp.pop 32.0
    %v3038 = vmul.f32 %v3036, %v3037
    %v3039 = vsub.f32 %v2989, %v3038
    %v3040 = vmul.f32 %v3039, %v3039
    %v3041 = vsel %vm2579, %v3040, 0.0
    %3042 = vadd.xlane.f32.xlu0 %v3041
    %v3043 = vpop.xlane.xlu0 %3042
    %v3044 = vmul.f32 %v3043, %v3037
    %v3045 = vadd.f32 %v3044, 1e-05
    %v3046 = vrsqrt.pop %v3045
    %v3047 = vmul.f32 %v3039, %v3046
    %v3049 = vlaneseq
    %v3050 = vshrl.u32 %v3049, 7
    %v3051 = vsub.s32 0, %v3050
    %v3052 = vrot.slane %v2998, %v3051
    %v3054 = vmul.f32 %v3047, %v3052
    %v3056 = vlaneseq
    %v3057 = vshrl.u32 %v3056, 7
    %v3058 = vsub.s32 0, %v3057
    %v3059 = vrot.slane %v2999, %v3058
    %v3061 = vadd.f32 %v3054, %v3059
    %v3062 = vpack.c.bf16 %v3061, %v3061
    %v3064 = vlaneseq
    %v3065 = vshrl.u32 %v3064, 7
    %v3066 = vsub.s32 0, %v3065
    %v3067 = vrot.slane %v3004, %v3066
    %v3073 = vunpack.c.l.b16 %v3000
    %v3074 = vunpack.c.l.b16 %v3001
    %v3075 = vunpack.c.l.b16 %v3002
    %v3076 = vunpack.c.l.b16 %v3003
    %v3077 = vpack.c.b16 %v3074, %v3073
    %v3078 = vpack.c.b16 %v3076, %v3075
    %v3082 = vsel %vm2579, %v3062, 0
    %3084 = vmatprep.subr.bf16.mxu0 0
    %3085 = vmatpush1.bf16.msra.mxu0 %v3077
    %3086 = vmatprep.subr.bf16.mxu0 0
    %3087 = vmatpush1.bf16.msra.mxu0 %v3078
    %3088 = vmatprep.subr.bf16.mxu0 0
    %3089 = vmatpush1.bf16.msra.mxu0 0
    %3090 = vmatprep.subr.bf16.mxu0 0
    %3091 = vmatpush1.bf16.msra.mxu0 0
    %3092 = vmatprep.subr.bf16.mxu0 0
    %3093 = vmatpush1.bf16.msra.mxu0 0
    %3094 = vmatprep.subr.bf16.mxu0 0
    %3095 = vmatpush1.bf16.msra.mxu0 0
    %3096 = vmatprep.subr.bf16.mxu0 0
    %3097 = vmatpush1.bf16.msra.mxu0 0
    %3098 = vmatprep.subr.bf16.mxu0 0
    %3099 = vmatpush1.bf16.msra.mxu0 0
    %3100 = vmatprep.subr.bf16.mxu0 0
    %3101 = vmatpush1.bf16.msra.mxu0 0
    %3102 = vmatprep.subr.bf16.mxu0 0
    %3103 = vmatpush1.bf16.msra.mxu0 0
    %3104 = vmatprep.subr.bf16.mxu0 0
    %3105 = vmatpush1.bf16.msra.mxu0 0
    %3106 = vmatprep.subr.bf16.mxu0 0
    %3107 = vmatpush1.bf16.msra.mxu0 0
    %3108 = vmatprep.subr.bf16.mxu0 0
    %3109 = vmatpush1.bf16.msra.mxu0 0
    %3110 = vmatprep.subr.bf16.mxu0 0
    %3111 = vmatpush1.bf16.msra.mxu0 0
    %3112 = vmatprep.subr.bf16.mxu0 0
    %3113 = vmatpush1.bf16.msra.mxu0 0
    %3114 = vmatprep.subr.bf16.mxu0 0
    %3115 = vmatpush1.bf16.msra.mxu0 0
    %3116 = vmatprep.mubr.bf16.mxu0 0
    %3117 = vmatmul.mubr.bf16.gmra.mrb[0].mxu0 %v3082
    %v3118 = vpop.f32.mrb[0].mxu0
    %v3119 = vadd.f32 %v3067, %v3118
    %v3120 = vpop.f32.mrb[0].mxu0
    %v3121 = vpop.f32.mrb[0].mxu0
    %v3122 = vpop.f32.mrb[0].mxu0
    %3123 = vdwg.mxu0
    %v3125 = vcombine.high %v3119, %v3119
    %v3127 = vpack.c.bf16 %v3119, %v3119
    %v3128 = vpack.c.bf16 %v3125, %v3125
    %3130 = vrot.lane.b32.xlu0 %v3127, 96
    %v3131 = vpop.permute.xlu0 %3130
    %v3133 = vsel %vm517, %v3127, 0
    %v3136 = vsel %vm517, %v3131, 0
    %3138 = vmatprep.subr.bf16.mxu0 0
    %3139 = vmatpush1.bf16.xpose.msra.mxu0 %v3136
    %3140 = vmatprep.subr.bf16.mxu0 0
    %3141 = vmatpush1.bf16.xpose.msra.mxu0 0
    %3142 = vmatprep.subr.bf16.mxu0 0
    %3143 = vmatpush1.bf16.xpose.msra.mxu0 0
    %3144 = vmatprep.subr.bf16.mxu0 0
    %3145 = vmatpush1.bf16.xpose.msra.mxu0 0
    %3146 = vmatprep.subr.bf16.mxu0 0
    %3147 = vmatpush1.bf16.xpose.msra.mxu0 0
    %3148 = vmatprep.subr.bf16.mxu0 0
    %3149 = vmatpush1.bf16.xpose.msra.mxu0 0
    %3150 = vmatprep.subr.bf16.mxu0 0
    %3151 = vmatpush1.bf16.xpose.msra.mxu0 0
    %3152 = vmatprep.subr.bf16.mxu0 0
    %3153 = vmatpush1.bf16.xpose.msra.mxu0 0
    %3154 = vmatprep.subr.bf16.mxu0 0
    %3155 = vmatpush1.bf16.xpose.msra.mxu0 0
    %3156 = vmatprep.subr.bf16.mxu0 0
    %3157 = vmatpush1.bf16.xpose.msra.mxu0 0
    %3158 = vmatprep.subr.bf16.mxu0 0
    %3159 = vmatpush1.bf16.xpose.msra.mxu0 0
    %3160 = vmatprep.subr.bf16.mxu0 0
    %3161 = vmatpush1.bf16.xpose.msra.mxu0 0
    %3162 = vmatprep.subr.bf16.mxu0 0
    %3163 = vmatpush1.bf16.xpose.msra.mxu0 0
    %3164 = vmatprep.subr.bf16.mxu0 0
    %3165 = vmatpush1.bf16.xpose.msra.mxu0 0
    %3166 = vmatprep.subr.bf16.mxu0 0
    %3167 = vmatpush1.bf16.xpose.msra.mxu0 0
    %3168 = vmatprep.subr.bf16.mxu0 0
    %3169 = vmatpush1.bf16.xpose.msra.mxu0 0
    %3170 = vmatprep.mubr.bf16.mxu0 0
    %3171 = vmatmul.mubr.bf16.gmra.mrb[0].mxu0 %v3133
    %v3172 = vpop.f32.mrb[0].mxu0
    %v3173 = vadd.f32 0.0, %v3172
    %v3174 = vpop.f32.mrb[0].mxu0
    %v3175 = vpop.f32.mrb[0].mxu0
    %v3176 = vpop.f32.mrb[0].mxu0
    %3177 = vdwg.mxu0
    %3179 = vrot.lane.b32.xlu0 %v3128, 96
    %v3180 = vpop.permute.xlu0 %3179
    %v3182 = vsel %vm517, %v3128, 0
    %v3185 = vsel %vm517, %v3180, 0
    %3187 = vmatprep.subr.bf16.mxu0 0
    %3188 = vmatpush1.bf16.xpose.msra.mxu0 %v3185
    %3189 = vmatprep.subr.bf16.mxu0 0
    %3190 = vmatpush1.bf16.xpose.msra.mxu0 0
    %3191 = vmatprep.subr.bf16.mxu0 0
    %3192 = vmatpush1.bf16.xpose.msra.mxu0 0
    %3193 = vmatprep.subr.bf16.mxu0 0
    %3194 = vmatpush1.bf16.xpose.msra.mxu0 0
    %3195 = vmatprep.subr.bf16.mxu0 0
    %3196 = vmatpush1.bf16.xpose.msra.mxu0 0
    %3197 = vmatprep.subr.bf16.mxu0 0
    %3198 = vmatpush1.bf16.xpose.msra.mxu0 0
    %3199 = vmatprep.subr.bf16.mxu0 0
    %3200 = vmatpush1.bf16.xpose.msra.mxu0 0
    %3201 = vmatprep.subr.bf16.mxu0 0
    %3202 = vmatpush1.bf16.xpose.msra.mxu0 0
    %3203 = vmatprep.subr.bf16.mxu0 0
    %3204 = vmatpush1.bf16.xpose.msra.mxu0 0
    %3205 = vmatprep.subr.bf16.mxu0 0
    %3206 = vmatpush1.bf16.xpose.msra.mxu0 0
    %3207 = vmatprep.subr.bf16.mxu0 0
    %3208 = vmatpush1.bf16.xpose.msra.mxu0 0
    %3209 = vmatprep.subr.bf16.mxu0 0
    %3210 = vmatpush1.bf16.xpose.msra.mxu0 0
    %3211 = vmatprep.subr.bf16.mxu0 0
    %3212 = vmatpush1.bf16.xpose.msra.mxu0 0
    %3213 = vmatprep.subr.bf16.mxu0 0
    %3214 = vmatpush1.bf16.xpose.msra.mxu0 0
    %3215 = vmatprep.subr.bf16.mxu0 0
    %3216 = vmatpush1.bf16.xpose.msra.mxu0 0
    %3217 = vmatprep.subr.bf16.mxu0 0
    %3218 = vmatpush1.bf16.xpose.msra.mxu0 0
    %3219 = vmatprep.mubr.bf16.mxu0 0
    %3220 = vmatmul.mubr.bf16.gmra.mrb[0].mxu0 %v3182
    %v3221 = vpop.f32.mrb[0].mxu0
    %v3222 = vadd.f32 0.0, %v3221
    %v3223 = vpop.f32.mrb[0].mxu0
    %v3224 = vpop.f32.mrb[0].mxu0
    %v3225 = vpop.f32.mrb[0].mxu0
    %3226 = vdwg.mxu0
    %v3227 = vmul.f32 %v3173, 0.35355338
    %v3228 = vmul.f32 %v3222, 0.35355338
    %v3229 = vadd.f32 %v3227, %v2994
    %v3230 = vadd.f32 %v3228, %v2994
    %vm3231 = vcmask 27648
    %v3232 = vsel %vm3231, %v3229, -inf
    %3233 = vmax.xlane.f32.xlu0 %v3232
    %v3234 = vpop.xlane.xlu0 %3233
    %v3235 = vsel %vm3231, %v3230, -inf
    %3236 = vmax.xlane.f32.xlu0 %v3235
    %v3237 = vpop.xlane.xlu0 %3236
    %v3238 = vsub.f32 %v3229, %v3234
    %v3239 = vsub.f32 %v3230, %v3237
    %v3240 = vmul.f32 %v3238, 1.442695
    %v3241 = vpow.pop %v3240
    %v3242 = vmul.f32 %v3239, 1.442695
    %v3243 = vpow.pop %v3242
    %v3244 = vsel %vm3231, %v3241, 0.0
    %3245 = vadd.xlane.f32.xlu0 %v3244
    %v3246 = vpop.xlane.xlu0 %3245
    %v3247 = vsel %vm3231, %v3243, 0.0
    %3248 = vadd.xlane.f32.xlu0 %v3247
    %v3249 = vpop.xlane.xlu0 %3248
    %v3250 = vrcp.pop %v3246
    %v3251 = vrcp.pop %v3249
    %v3252 = vmul.f32 %v3241, %v3250
    %v3253 = vmul.f32 %v3243, %v3251
    %v3254 = vpack.c.bf16 %v3252, %v3252
    %v3255 = vpack.c.bf16 %v3253, %v3253
    %3256 = vrot.lane.b32.xlu0 %v3127, 64
    %v3257 = vpop.permute.xlu0 %3256
    %vm3258 = vcmask 31744
    %v3260 = vsel %vm3258, %v3254, 0
    %vm3262 = vcmask 1041408
    %v3264 = vsel %vm3262, %v3257, 0
    %3266 = vmatprep.subr.bf16.mxu0 0
    %3267 = vmatpush1.bf16.msra.mxu0 %v3264
    %3268 = vmatprep.subr.bf16.mxu0 0
    %3269 = vmatpush1.bf16.msra.mxu0 0
    %3270 = vmatprep.subr.bf16.mxu0 0
    %3271 = vmatpush1.bf16.msra.mxu0 0
    %3272 = vmatprep.subr.bf16.mxu0 0
    %3273 = vmatpush1.bf16.msra.mxu0 0
    %3274 = vmatprep.subr.bf16.mxu0 0
    %3275 = vmatpush1.bf16.msra.mxu0 0
    %3276 = vmatprep.subr.bf16.mxu0 0
    %3277 = vmatpush1.bf16.msra.mxu0 0
    %3278 = vmatprep.subr.bf16.mxu0 0
    %3279 = vmatpush1.bf16.msra.mxu0 0
    %3280 = vmatprep.subr.bf16.mxu0 0
    %3281 = vmatpush1.bf16.msra.mxu0 0
    %3282 = vmatprep.subr.bf16.mxu0 0
    %3283 = vmatpush1.bf16.msra.mxu0 0
    %3284 = vmatprep.subr.bf16.mxu0 0
    %3285 = vmatpush1.bf16.msra.mxu0 0
    %3286 = vmatprep.subr.bf16.mxu0 0
    %3287 = vmatpush1.bf16.msra.mxu0 0
    %3288 = vmatprep.subr.bf16.mxu0 0
    %3289 = vmatpush1.bf16.msra.mxu0 0
    %3290 = vmatprep.subr.bf16.mxu0 0
    %3291 = vmatpush1.bf16.msra.mxu0 0
    %3292 = vmatprep.subr.bf16.mxu0 0
    %3293 = vmatpush1.bf16.msra.mxu0 0
    %3294 = vmatprep.subr.bf16.mxu0 0
    %3295 = vmatpush1.bf16.msra.mxu0 0
    %3296 = vmatprep.subr.bf16.mxu0 0
    %3297 = vmatpush1.bf16.msra.mxu0 0
    %3298 = vmatprep.mubr.bf16.mxu0 0
    %3299 = vmatmul.mubr.bf16.gmra.mrb[0].mxu0 %v3260
    %v3300 = vpop.f32.mrb[0].mxu0
    %v3301 = vadd.f32 0.0, %v3300
    %v3302 = vpop.f32.mrb[0].mxu0
    %v3303 = vpop.f32.mrb[0].mxu0
    %v3304 = vpop.f32.mrb[0].mxu0
    %3305 = vdwg.mxu0
    %3306 = vrot.lane.b32.xlu0 %v3128, 64
    %v3307 = vpop.permute.xlu0 %3306
    %v3309 = vsel %vm3258, %v3255, 0
    %v3312 = vsel %vm3262, %v3307, 0
    %3314 = vmatprep.subr.bf16.mxu0 0
    %3315 = vmatpush1.bf16.msra.mxu0 %v3312
    %3316 = vmatprep.subr.bf16.mxu0 0
    %3317 = vmatpush1.bf16.msra.mxu0 0
    %3318 = vmatprep.subr.bf16.mxu0 0
    %3319 = vmatpush1.bf16.msra.mxu0 0
    %3320 = vmatprep.subr.bf16.mxu0 0
    %3321 = vmatpush1.bf16.msra.mxu0 0
    %3322 = vmatprep.subr.bf16.mxu0 0
    %3323 = vmatpush1.bf16.msra.mxu0 0
    %3324 = vmatprep.subr.bf16.mxu0 0
    %3325 = vmatpush1.bf16.msra.mxu0 0
    %3326 = vmatprep.subr.bf16.mxu0 0
    %3327 = vmatpush1.bf16.msra.mxu0 0
    %3328 = vmatprep.subr.bf16.mxu0 0
    %3329 = vmatpush1.bf16.msra.mxu0 0
    %3330 = vmatprep.subr.bf16.mxu0 0
    %3331 = vmatpush1.bf16.msra.mxu0 0
    %3332 = vmatprep.subr.bf16.mxu0 0
    %3333 = vmatpush1.bf16.msra.mxu0 0
    %3334 = vmatprep.subr.bf16.mxu0 0
    %3335 = vmatpush1.bf16.msra.mxu0 0
    %3336 = vmatprep.subr.bf16.mxu0 0
    %3337 = vmatpush1.bf16.msra.mxu0 0
    %3338 = vmatprep.subr.bf16.mxu0 0
    %3339 = vmatpush1.bf16.msra.mxu0 0
    %3340 = vmatprep.subr.bf16.mxu0 0
    %3341 = vmatpush1.bf16.msra.mxu0 0
    %3342 = vmatprep.subr.bf16.mxu0 0
    %3343 = vmatpush1.bf16.msra.mxu0 0
    %3344 = vmatprep.subr.bf16.mxu0 0
    %3345 = vmatpush1.bf16.msra.mxu0 0
    %3346 = vmatprep.mubr.bf16.mxu0 0
    %3347 = vmatmul.mubr.bf16.gmra.mrb[0].mxu0 %v3309
    %v3348 = vpop.f32.mrb[0].mxu0
    %v3349 = vadd.f32 0.0, %v3348
    %v3350 = vpop.f32.mrb[0].mxu0
    %v3351 = vpop.f32.mrb[0].mxu0
    %v3352 = vpop.f32.mrb[0].mxu0
    %3353 = vdwg.mxu0
    %3354 = vrot.lane.b32.xlu0 %v3127, 120
    %v3355 = vpop.permute.xlu0 %3354
    %3356 = vrot.lane.b32.xlu0 %v3127, 88
    %v3357 = vpop.permute.xlu0 %3356
    %v3359 = vsel %vm517, %v3355, 0
    %v3362 = vsel %vm517, %v3357, 0
    %3364 = vmatprep.subr.bf16.mxu0 0
    %3365 = vmatpush1.bf16.xpose.msra.mxu0 %v3362
    %3366 = vmatprep.subr.bf16.mxu0 0
    %3367 = vmatpush1.bf16.xpose.msra.mxu0 0
    %3368 = vmatprep.subr.bf16.mxu0 0
    %3369 = vmatpush1.bf16.xpose.msra.mxu0 0
    %3370 = vmatprep.subr.bf16.mxu0 0
    %3371 = vmatpush1.bf16.xpose.msra.mxu0 0
    %3372 = vmatprep.subr.bf16.mxu0 0
    %3373 = vmatpush1.bf16.xpose.msra.mxu0 0
    %3374 = vmatprep.subr.bf16.mxu0 0
    %3375 = vmatpush1.bf16.xpose.msra.mxu0 0
    %3376 = vmatprep.subr.bf16.mxu0 0
    %3377 = vmatpush1.bf16.xpose.msra.mxu0 0
    %3378 = vmatprep.subr.bf16.mxu0 0
    %3379 = vmatpush1.bf16.xpose.msra.mxu0 0
    %3380 = vmatprep.subr.bf16.mxu0 0
    %3381 = vmatpush1.bf16.xpose.msra.mxu0 0
    %3382 = vmatprep.subr.bf16.mxu0 0
    %3383 = vmatpush1.bf16.xpose.msra.mxu0 0
    %3384 = vmatprep.subr.bf16.mxu0 0
    %3385 = vmatpush1.bf16.xpose.msra.mxu0 0
    %3386 = vmatprep.subr.bf16.mxu0 0
    %3387 = vmatpush1.bf16.xpose.msra.mxu0 0
    %3388 = vmatprep.subr.bf16.mxu0 0
    %3389 = vmatpush1.bf16.xpose.msra.mxu0 0
    %3390 = vmatprep.subr.bf16.mxu0 0
    %3391 = vmatpush1.bf16.xpose.msra.mxu0 0
    %3392 = vmatprep.subr.bf16.mxu0 0
    %3393 = vmatpush1.bf16.xpose.msra.mxu0 0
    %3394 = vmatprep.subr.bf16.mxu0 0
    %3395 = vmatpush1.bf16.xpose.msra.mxu0 0
    %3396 = vmatprep.mubr.bf16.mxu0 0
    %3397 = vmatmul.mubr.bf16.gmra.mrb[0].mxu0 %v3359
    %v3398 = vpop.f32.mrb[0].mxu0
    %v3399 = vadd.f32 0.0, %v3398
    %v3400 = vpop.f32.mrb[0].mxu0
    %v3401 = vpop.f32.mrb[0].mxu0
    %v3402 = vpop.f32.mrb[0].mxu0
    %3403 = vdwg.mxu0
    %3404 = vrot.lane.b32.xlu0 %v3128, 120
    %v3405 = vpop.permute.xlu0 %3404
    %3406 = vrot.lane.b32.xlu0 %v3128, 88
    %v3407 = vpop.permute.xlu0 %3406
    %v3409 = vsel %vm517, %v3405, 0
    %v3412 = vsel %vm517, %v3407, 0
    %3414 = vmatprep.subr.bf16.mxu0 0
    %3415 = vmatpush1.bf16.xpose.msra.mxu0 %v3412
    %3416 = vmatprep.subr.bf16.mxu0 0
    %3417 = vmatpush1.bf16.xpose.msra.mxu0 0
    %3418 = vmatprep.subr.bf16.mxu0 0
    %3419 = vmatpush1.bf16.xpose.msra.mxu0 0
    %3420 = vmatprep.subr.bf16.mxu0 0
    %3421 = vmatpush1.bf16.xpose.msra.mxu0 0
    %3422 = vmatprep.subr.bf16.mxu0 0
    %3423 = vmatpush1.bf16.xpose.msra.mxu0 0
    %3424 = vmatprep.subr.bf16.mxu0 0
    %3425 = vmatpush1.bf16.xpose.msra.mxu0 0
    %3426 = vmatprep.subr.bf16.mxu0 0
    %3427 = vmatpush1.bf16.xpose.msra.mxu0 0
    %3428 = vmatprep.subr.bf16.mxu0 0
    %3429 = vmatpush1.bf16.xpose.msra.mxu0 0
    %3430 = vmatprep.subr.bf16.mxu0 0
    %3431 = vmatpush1.bf16.xpose.msra.mxu0 0
    %3432 = vmatprep.subr.bf16.mxu0 0
    %3433 = vmatpush1.bf16.xpose.msra.mxu0 0
    %3434 = vmatprep.subr.bf16.mxu0 0
    %3435 = vmatpush1.bf16.xpose.msra.mxu0 0
    %3436 = vmatprep.subr.bf16.mxu0 0
    %3437 = vmatpush1.bf16.xpose.msra.mxu0 0
    %3438 = vmatprep.subr.bf16.mxu0 0
    %3439 = vmatpush1.bf16.xpose.msra.mxu0 0
    %3440 = vmatprep.subr.bf16.mxu0 0
    %3441 = vmatpush1.bf16.xpose.msra.mxu0 0
    %3442 = vmatprep.subr.bf16.mxu0 0
    %3443 = vmatpush1.bf16.xpose.msra.mxu0 0
    %3444 = vmatprep.subr.bf16.mxu0 0
    %3445 = vmatpush1.bf16.xpose.msra.mxu0 0
    %3446 = vmatprep.mubr.bf16.mxu0 0
    %3447 = vmatmul.mubr.bf16.gmra.mrb[0].mxu0 %v3409
    %v3448 = vpop.f32.mrb[0].mxu0
    %v3449 = vadd.f32 0.0, %v3448
    %v3450 = vpop.f32.mrb[0].mxu0
    %v3451 = vpop.f32.mrb[0].mxu0
    %v3452 = vpop.f32.mrb[0].mxu0
    %3453 = vdwg.mxu0
    %v3454 = vmul.f32 %v3399, 0.35355338
    %v3455 = vmul.f32 %v3449, 0.35355338
    %v3456 = vadd.f32 %v3454, %v2995
    %v3457 = vadd.f32 %v3455, %v2995
    %v3458 = vsel %vm3231, %v3456, -inf
    %3459 = vmax.xlane.f32.xlu0 %v3458
    %v3460 = vpop.xlane.xlu0 %3459
    %v3461 = vsel %vm3231, %v3457, -inf
    %3462 = vmax.xlane.f32.xlu0 %v3461
    %v3463 = vpop.xlane.xlu0 %3462
    %v3464 = vsub.f32 %v3456, %v3460
    %v3465 = vsub.f32 %v3457, %v3463
    %v3466 = vmul.f32 %v3464, 1.442695
    %v3467 = vpow.pop %v3466
    %v3468 = vmul.f32 %v3465, 1.442695
    %v3469 = vpow.pop %v3468
    %v3470 = vsel %vm3231, %v3467, 0.0
    %3471 = vadd.xlane.f32.xlu0 %v3470
    %v3472 = vpop.xlane.xlu0 %3471
    %v3473 = vsel %vm3231, %v3469, 0.0
    %3474 = vadd.xlane.f32.xlu0 %v3473
    %v3475 = vpop.xlane.xlu0 %3474
    %v3476 = vrcp.pop %v3472
    %v3477 = vrcp.pop %v3475
    %v3478 = vmul.f32 %v3467, %v3476
    %v3479 = vmul.f32 %v3469, %v3477
    %v3480 = vpack.c.bf16 %v3478, %v3478
    %v3481 = vpack.c.bf16 %v3479, %v3479
    %3482 = vrot.lane.b32.xlu0 %v3127, 56
    %v3483 = vpop.permute.xlu0 %3482
    %v3485 = vsel %vm3258, %v3480, 0
    %v3488 = vsel %vm3262, %v3483, 0
    %3490 = vmatprep.subr.bf16.mxu0 0
    %3491 = vmatpush1.bf16.msra.mxu0 %v3488
    %3492 = vmatprep.subr.bf16.mxu0 0
    %3493 = vmatpush1.bf16.msra.mxu0 0
    %3494 = vmatprep.subr.bf16.mxu0 0
    %3495 = vmatpush1.bf16.msra.mxu0 0
    %3496 = vmatprep.subr.bf16.mxu0 0
    %3497 = vmatpush1.bf16.msra.mxu0 0
    %3498 = vmatprep.subr.bf16.mxu0 0
    %3499 = vmatpush1.bf16.msra.mxu0 0
    %3500 = vmatprep.subr.bf16.mxu0 0
    %3501 = vmatpush1.bf16.msra.mxu0 0
    %3502 = vmatprep.subr.bf16.mxu0 0
    %3503 = vmatpush1.bf16.msra.mxu0 0
    %3504 = vmatprep.subr.bf16.mxu0 0
    %3505 = vmatpush1.bf16.msra.mxu0 0
    %3506 = vmatprep.subr.bf16.mxu0 0
    %3507 = vmatpush1.bf16.msra.mxu0 0
    %3508 = vmatprep.subr.bf16.mxu0 0
    %3509 = vmatpush1.bf16.msra.mxu0 0
    %3510 = vmatprep.subr.bf16.mxu0 0
    %3511 = vmatpush1.bf16.msra.mxu0 0
    %3512 = vmatprep.subr.bf16.mxu0 0
    %3513 = vmatpush1.bf16.msra.mxu0 0
    %3514 = vmatprep.subr.bf16.mxu0 0
    %3515 = vmatpush1.bf16.msra.mxu0 0
    %3516 = vmatprep.subr.bf16.mxu0 0
    %3517 = vmatpush1.bf16.msra.mxu0 0
    %3518 = vmatprep.subr.bf16.mxu0 0
    %3519 = vmatpush1.bf16.msra.mxu0 0
    %3520 = vmatprep.subr.bf16.mxu0 0
    %3521 = vmatpush1.bf16.msra.mxu0 0
    %3522 = vmatprep.mubr.bf16.mxu0 0
    %3523 = vmatmul.mubr.bf16.gmra.mrb[0].mxu0 %v3485
    %v3524 = vpop.f32.mrb[0].mxu0
    %v3525 = vadd.f32 0.0, %v3524
    %v3526 = vpop.f32.mrb[0].mxu0
    %v3527 = vpop.f32.mrb[0].mxu0
    %v3528 = vpop.f32.mrb[0].mxu0
    %3529 = vdwg.mxu0
    %3530 = vrot.lane.b32.xlu0 %v3128, 56
    %v3531 = vpop.permute.xlu0 %3530
    %v3533 = vsel %vm3258, %v3481, 0
    %v3536 = vsel %vm3262, %v3531, 0
    %3538 = vmatprep.subr.bf16.mxu0 0
    %3539 = vmatpush1.bf16.msra.mxu0 %v3536
    %3540 = vmatprep.subr.bf16.mxu0 0
    %3541 = vmatpush1.bf16.msra.mxu0 0
    %3542 = vmatprep.subr.bf16.mxu0 0
    %3543 = vmatpush1.bf16.msra.mxu0 0
    %3544 = vmatprep.subr.bf16.mxu0 0
    %3545 = vmatpush1.bf16.msra.mxu0 0
    %3546 = vmatprep.subr.bf16.mxu0 0
    %3547 = vmatpush1.bf16.msra.mxu0 0
    %3548 = vmatprep.subr.bf16.mxu0 0
    %3549 = vmatpush1.bf16.msra.mxu0 0
    %3550 = vmatprep.subr.bf16.mxu0 0
    %3551 = vmatpush1.bf16.msra.mxu0 0
    %3552 = vmatprep.subr.bf16.mxu0 0
    %3553 = vmatpush1.bf16.msra.mxu0 0
    %3554 = vmatprep.subr.bf16.mxu0 0
    %3555 = vmatpush1.bf16.msra.mxu0 0
    %3556 = vmatprep.subr.bf16.mxu0 0
    %3557 = vmatpush1.bf16.msra.mxu0 0
    %3558 = vmatprep.subr.bf16.mxu0 0
    %3559 = vmatpush1.bf16.msra.mxu0 0
    %3560 = vmatprep.subr.bf16.mxu0 0
    %3561 = vmatpush1.bf16.msra.mxu0 0
    %3562 = vmatprep.subr.bf16.mxu0 0
    %3563 = vmatpush1.bf16.msra.mxu0 0
    %3564 = vmatprep.subr.bf16.mxu0 0
    %3565 = vmatpush1.bf16.msra.mxu0 0
    %3566 = vmatprep.subr.bf16.mxu0 0
    %3567 = vmatpush1.bf16.msra.mxu0 0
    %3568 = vmatprep.subr.bf16.mxu0 0
    %3569 = vmatpush1.bf16.msra.mxu0 0
    %3570 = vmatprep.mubr.bf16.mxu0 0
    %3571 = vmatmul.mubr.bf16.gmra.mrb[0].mxu0 %v3533
    %v3572 = vpop.f32.mrb[0].mxu0
    %v3573 = vadd.f32 0.0, %v3572
    %v3574 = vpop.f32.mrb[0].mxu0
    %v3575 = vpop.f32.mrb[0].mxu0
    %v3576 = vpop.f32.mrb[0].mxu0
    %3577 = vdwg.mxu0
    %3578 = vrot.lane.b32.xlu0 %v3127, 112
    %v3579 = vpop.permute.xlu0 %3578
    %3580 = vrot.lane.b32.xlu0 %v3127, 80
    %v3581 = vpop.permute.xlu0 %3580
    %v3583 = vsel %vm517, %v3579, 0
    %v3586 = vsel %vm517, %v3581, 0
    %3588 = vmatprep.subr.bf16.mxu0 0
    %3589 = vmatpush1.bf16.xpose.msra.mxu0 %v3586
    %3590 = vmatprep.subr.bf16.mxu0 0
    %3591 = vmatpush1.bf16.xpose.msra.mxu0 0
    %3592 = vmatprep.subr.bf16.mxu0 0
    %3593 = vmatpush1.bf16.xpose.msra.mxu0 0
    %3594 = vmatprep.subr.bf16.mxu0 0
    %3595 = vmatpush1.bf16.xpose.msra.mxu0 0
    %3596 = vmatprep.subr.bf16.mxu0 0
    %3597 = vmatpush1.bf16.xpose.msra.mxu0 0
    %3598 = vmatprep.subr.bf16.mxu0 0
    %3599 = vmatpush1.bf16.xpose.msra.mxu0 0
    %3600 = vmatprep.subr.bf16.mxu0 0
    %3601 = vmatpush1.bf16.xpose.msra.mxu0 0
    %3602 = vmatprep.subr.bf16.mxu0 0
    %3603 = vmatpush1.bf16.xpose.msra.mxu0 0
    %3604 = vmatprep.subr.bf16.mxu0 0
    %3605 = vmatpush1.bf16.xpose.msra.mxu0 0
    %3606 = vmatprep.subr.bf16.mxu0 0
    %3607 = vmatpush1.bf16.xpose.msra.mxu0 0
    %3608 = vmatprep.subr.bf16.mxu0 0
    %3609 = vmatpush1.bf16.xpose.msra.mxu0 0
    %3610 = vmatprep.subr.bf16.mxu0 0
    %3611 = vmatpush1.bf16.xpose.msra.mxu0 0
    %3612 = vmatprep.subr.bf16.mxu0 0
    %3613 = vmatpush1.bf16.xpose.msra.mxu0 0
    %3614 = vmatprep.subr.bf16.mxu0 0
    %3615 = vmatpush1.bf16.xpose.msra.mxu0 0
    %3616 = vmatprep.subr.bf16.mxu0 0
    %3617 = vmatpush1.bf16.xpose.msra.mxu0 0
    %3618 = vmatprep.subr.bf16.mxu0 0
    %3619 = vmatpush1.bf16.xpose.msra.mxu0 0
    %3620 = vmatprep.mubr.bf16.mxu0 0
    %3621 = vmatmul.mubr.bf16.gmra.mrb[0].mxu0 %v3583
    %v3622 = vpop.f32.mrb[0].mxu0
    %v3623 = vadd.f32 0.0, %v3622
    %v3624 = vpop.f32.mrb[0].mxu0
    %v3625 = vpop.f32.mrb[0].mxu0
    %v3626 = vpop.f32.mrb[0].mxu0
    %3627 = vdwg.mxu0
    %3628 = vrot.lane.b32.xlu0 %v3128, 112
    %v3629 = vpop.permute.xlu0 %3628
    %3630 = vrot.lane.b32.xlu0 %v3128, 80
    %v3631 = vpop.permute.xlu0 %3630
    %v3633 = vsel %vm517, %v3629, 0
    %v3636 = vsel %vm517, %v3631, 0
    %3638 = vmatprep.subr.bf16.mxu0 0
    %3639 = vmatpush1.bf16.xpose.msra.mxu0 %v3636
    %3640 = vmatprep.subr.bf16.mxu0 0
    %3641 = vmatpush1.bf16.xpose.msra.mxu0 0
    %3642 = vmatprep.subr.bf16.mxu0 0
    %3643 = vmatpush1.bf16.xpose.msra.mxu0 0
    %3644 = vmatprep.subr.bf16.mxu0 0
    %3645 = vmatpush1.bf16.xpose.msra.mxu0 0
    %3646 = vmatprep.subr.bf16.mxu0 0
    %3647 = vmatpush1.bf16.xpose.msra.mxu0 0
    %3648 = vmatprep.subr.bf16.mxu0 0
    %3649 = vmatpush1.bf16.xpose.msra.mxu0 0
    %3650 = vmatprep.subr.bf16.mxu0 0
    %3651 = vmatpush1.bf16.xpose.msra.mxu0 0
    %3652 = vmatprep.subr.bf16.mxu0 0
    %3653 = vmatpush1.bf16.xpose.msra.mxu0 0
    %3654 = vmatprep.subr.bf16.mxu0 0
    %3655 = vmatpush1.bf16.xpose.msra.mxu0 0
    %3656 = vmatprep.subr.bf16.mxu0 0
    %3657 = vmatpush1.bf16.xpose.msra.mxu0 0
    %3658 = vmatprep.subr.bf16.mxu0 0
    %3659 = vmatpush1.bf16.xpose.msra.mxu0 0
    %3660 = vmatprep.subr.bf16.mxu0 0
    %3661 = vmatpush1.bf16.xpose.msra.mxu0 0
    %3662 = vmatprep.subr.bf16.mxu0 0
    %3663 = vmatpush1.bf16.xpose.msra.mxu0 0
    %3664 = vmatprep.subr.bf16.mxu0 0
    %3665 = vmatpush1.bf16.xpose.msra.mxu0 0
    %3666 = vmatprep.subr.bf16.mxu0 0
    %3667 = vmatpush1.bf16.xpose.msra.mxu0 0
    %3668 = vmatprep.subr.bf16.mxu0 0
    %3669 = vmatpush1.bf16.xpose.msra.mxu0 0
    %3670 = vmatprep.mubr.bf16.mxu0 0
    %3671 = vmatmul.mubr.bf16.gmra.mrb[0].mxu0 %v3633
    %v3672 = vpop.f32.mrb[0].mxu0
    %v3673 = vadd.f32 0.0, %v3672
    %v3674 = vpop.f32.mrb[0].mxu0
    %v3675 = vpop.f32.mrb[0].mxu0
    %v3676 = vpop.f32.mrb[0].mxu0
    %3677 = vdwg.mxu0
    %v3678 = vmul.f32 %v3623, 0.35355338
    %v3679 = vmul.f32 %v3673, 0.35355338
    %v3680 = vadd.f32 %v3678, %v2996
    %v3681 = vadd.f32 %v3679, %v2996
    %v3682 = vsel %vm3231, %v3680, -inf
    %3683 = vmax.xlane.f32.xlu0 %v3682
    %v3684 = vpop.xlane.xlu0 %3683
    %v3685 = vsel %vm3231, %v3681, -inf
    %3686 = vmax.xlane.f32.xlu0 %v3685
    %v3687 = vpop.xlane.xlu0 %3686
    %v3688 = vsub.f32 %v3680, %v3684
    %v3689 = vsub.f32 %v3681, %v3687
    %v3690 = vmul.f32 %v3688, 1.442695
    %v3691 = vpow.pop %v3690
    %v3692 = vmul.f32 %v3689, 1.442695
    %v3693 = vpow.pop %v3692
    %v3694 = vsel %vm3231, %v3691, 0.0
    %3695 = vadd.xlane.f32.xlu0 %v3694
    %v3696 = vpop.xlane.xlu0 %3695
    %v3697 = vsel %vm3231, %v3693, 0.0
    %3698 = vadd.xlane.f32.xlu0 %v3697
    %v3699 = vpop.xlane.xlu0 %3698
    %v3700 = vrcp.pop %v3696
    %v3701 = vrcp.pop %v3699
    %v3702 = vmul.f32 %v3691, %v3700
    %v3703 = vmul.f32 %v3693, %v3701
    %v3704 = vpack.c.bf16 %v3702, %v3702
    %v3705 = vpack.c.bf16 %v3703, %v3703
    %3706 = vrot.lane.b32.xlu0 %v3127, 48
    %v3707 = vpop.permute.xlu0 %3706
    %v3709 = vsel %vm3258, %v3704, 0
    %v3712 = vsel %vm3262, %v3707, 0
    %3714 = vmatprep.subr.bf16.mxu0 0
    %3715 = vmatpush1.bf16.msra.mxu0 %v3712
    %3716 = vmatprep.subr.bf16.mxu0 0
    %3717 = vmatpush1.bf16.msra.mxu0 0
    %3718 = vmatprep.subr.bf16.mxu0 0
    %3719 = vmatpush1.bf16.msra.mxu0 0
    %3720 = vmatprep.subr.bf16.mxu0 0
    %3721 = vmatpush1.bf16.msra.mxu0 0
    %3722 = vmatprep.subr.bf16.mxu0 0
    %3723 = vmatpush1.bf16.msra.mxu0 0
    %3724 = vmatprep.subr.bf16.mxu0 0
    %3725 = vmatpush1.bf16.msra.mxu0 0
    %3726 = vmatprep.subr.bf16.mxu0 0
    %3727 = vmatpush1.bf16.msra.mxu0 0
    %3728 = vmatprep.subr.bf16.mxu0 0
    %3729 = vmatpush1.bf16.msra.mxu0 0
    %3730 = vmatprep.subr.bf16.mxu0 0
    %3731 = vmatpush1.bf16.msra.mxu0 0
    %3732 = vmatprep.subr.bf16.mxu0 0
    %3733 = vmatpush1.bf16.msra.mxu0 0
    %3734 = vmatprep.subr.bf16.mxu0 0
    %3735 = vmatpush1.bf16.msra.mxu0 0
    %3736 = vmatprep.subr.bf16.mxu0 0
    %3737 = vmatpush1.bf16.msra.mxu0 0
    %3738 = vmatprep.subr.bf16.mxu0 0
    %3739 = vmatpush1.bf16.msra.mxu0 0
    %3740 = vmatprep.subr.bf16.mxu0 0
    %3741 = vmatpush1.bf16.msra.mxu0 0
    %3742 = vmatprep.subr.bf16.mxu0 0
    %3743 = vmatpush1.bf16.msra.mxu0 0
    %3744 = vmatprep.subr.bf16.mxu0 0
    %3745 = vmatpush1.bf16.msra.mxu0 0
    %3746 = vmatprep.mubr.bf16.mxu0 0
    %3747 = vmatmul.mubr.bf16.gmra.mrb[0].mxu0 %v3709
    %v3748 = vpop.f32.mrb[0].mxu0
    %v3749 = vadd.f32 0.0, %v3748
    %v3750 = vpop.f32.mrb[0].mxu0
    %v3751 = vpop.f32.mrb[0].mxu0
    %v3752 = vpop.f32.mrb[0].mxu0
    %3753 = vdwg.mxu0
    %3754 = vrot.lane.b32.xlu0 %v3128, 48
    %v3755 = vpop.permute.xlu0 %3754
    %v3757 = vsel %vm3258, %v3705, 0
    %v3760 = vsel %vm3262, %v3755, 0
    %3762 = vmatprep.subr.bf16.mxu0 0
    %3763 = vmatpush1.bf16.msra.mxu0 %v3760
    %3764 = vmatprep.subr.bf16.mxu0 0
    %3765 = vmatpush1.bf16.msra.mxu0 0
    %3766 = vmatprep.subr.bf16.mxu0 0
    %3767 = vmatpush1.bf16.msra.mxu0 0
    %3768 = vmatprep.subr.bf16.mxu0 0
    %3769 = vmatpush1.bf16.msra.mxu0 0
    %3770 = vmatprep.subr.bf16.mxu0 0
    %3771 = vmatpush1.bf16.msra.mxu0 0
    %3772 = vmatprep.subr.bf16.mxu0 0
    %3773 = vmatpush1.bf16.msra.mxu0 0
    %3774 = vmatprep.subr.bf16.mxu0 0
    %3775 = vmatpush1.bf16.msra.mxu0 0
    %3776 = vmatprep.subr.bf16.mxu0 0
    %3777 = vmatpush1.bf16.msra.mxu0 0
    %3778 = vmatprep.subr.bf16.mxu0 0
    %3779 = vmatpush1.bf16.msra.mxu0 0
    %3780 = vmatprep.subr.bf16.mxu0 0
    %3781 = vmatpush1.bf16.msra.mxu0 0
    %3782 = vmatprep.subr.bf16.mxu0 0
    %3783 = vmatpush1.bf16.msra.mxu0 0
    %3784 = vmatprep.subr.bf16.mxu0 0
    %3785 = vmatpush1.bf16.msra.mxu0 0
    %3786 = vmatprep.subr.bf16.mxu0 0
    %3787 = vmatpush1.bf16.msra.mxu0 0
    %3788 = vmatprep.subr.bf16.mxu0 0
    %3789 = vmatpush1.bf16.msra.mxu0 0
    %3790 = vmatprep.subr.bf16.mxu0 0
    %3791 = vmatpush1.bf16.msra.mxu0 0
    %3792 = vmatprep.subr.bf16.mxu0 0
    %3793 = vmatpush1.bf16.msra.mxu0 0
    %3794 = vmatprep.mubr.bf16.mxu0 0
    %3795 = vmatmul.mubr.bf16.gmra.mrb[0].mxu0 %v3757
    %v3796 = vpop.f32.mrb[0].mxu0
    %v3797 = vadd.f32 0.0, %v3796
    %v3798 = vpop.f32.mrb[0].mxu0
    %v3799 = vpop.f32.mrb[0].mxu0
    %v3800 = vpop.f32.mrb[0].mxu0
    %3801 = vdwg.mxu0
    %3802 = vrot.lane.b32.xlu0 %v3127, 104
    %v3803 = vpop.permute.xlu0 %3802
    %3804 = vrot.lane.b32.xlu0 %v3127, 72
    %v3805 = vpop.permute.xlu0 %3804
    %v3807 = vsel %vm517, %v3803, 0
    %v3810 = vsel %vm517, %v3805, 0
    %3812 = vmatprep.subr.bf16.mxu0 0
    %3813 = vmatpush1.bf16.xpose.msra.mxu0 %v3810
    %3814 = vmatprep.subr.bf16.mxu0 0
    %3815 = vmatpush1.bf16.xpose.msra.mxu0 0
    %3816 = vmatprep.subr.bf16.mxu0 0
    %3817 = vmatpush1.bf16.xpose.msra.mxu0 0
    %3818 = vmatprep.subr.bf16.mxu0 0
    %3819 = vmatpush1.bf16.xpose.msra.mxu0 0
    %3820 = vmatprep.subr.bf16.mxu0 0
    %3821 = vmatpush1.bf16.xpose.msra.mxu0 0
    %3822 = vmatprep.subr.bf16.mxu0 0
    %3823 = vmatpush1.bf16.xpose.msra.mxu0 0
    %3824 = vmatprep.subr.bf16.mxu0 0
    %3825 = vmatpush1.bf16.xpose.msra.mxu0 0
    %3826 = vmatprep.subr.bf16.mxu0 0
    %3827 = vmatpush1.bf16.xpose.msra.mxu0 0
    %3828 = vmatprep.subr.bf16.mxu0 0
    %3829 = vmatpush1.bf16.xpose.msra.mxu0 0
    %3830 = vmatprep.subr.bf16.mxu0 0
    %3831 = vmatpush1.bf16.xpose.msra.mxu0 0
    %3832 = vmatprep.subr.bf16.mxu0 0
    %3833 = vmatpush1.bf16.xpose.msra.mxu0 0
    %3834 = vmatprep.subr.bf16.mxu0 0
    %3835 = vmatpush1.bf16.xpose.msra.mxu0 0
    %3836 = vmatprep.subr.bf16.mxu0 0
    %3837 = vmatpush1.bf16.xpose.msra.mxu0 0
    %3838 = vmatprep.subr.bf16.mxu0 0
    %3839 = vmatpush1.bf16.xpose.msra.mxu0 0
    %3840 = vmatprep.subr.bf16.mxu0 0
    %3841 = vmatpush1.bf16.xpose.msra.mxu0 0
    %3842 = vmatprep.subr.bf16.mxu0 0
    %3843 = vmatpush1.bf16.xpose.msra.mxu0 0
    %3844 = vmatprep.mubr.bf16.mxu0 0
    %3845 = vmatmul.mubr.bf16.gmra.mrb[0].mxu0 %v3807
    %v3846 = vpop.f32.mrb[0].mxu0
    %v3847 = vadd.f32 0.0, %v3846
    %v3848 = vpop.f32.mrb[0].mxu0
    %v3849 = vpop.f32.mrb[0].mxu0
    %v3850 = vpop.f32.mrb[0].mxu0
    %3851 = vdwg.mxu0
    %3852 = vrot.lane.b32.xlu0 %v3128, 104
    %v3853 = vpop.permute.xlu0 %3852
    %3854 = vrot.lane.b32.xlu0 %v3128, 72
    %v3855 = vpop.permute.xlu0 %3854
    %v3857 = vsel %vm517, %v3853, 0
    %v3860 = vsel %vm517, %v3855, 0
    %3862 = vmatprep.subr.bf16.mxu0 0
    %3863 = vmatpush1.bf16.xpose.msra.mxu0 %v3860
    %3864 = vmatprep.subr.bf16.mxu0 0
    %3865 = vmatpush1.bf16.xpose.msra.mxu0 0
    %3866 = vmatprep.subr.bf16.mxu0 0
    %3867 = vmatpush1.bf16.xpose.msra.mxu0 0
    %3868 = vmatprep.subr.bf16.mxu0 0
    %3869 = vmatpush1.bf16.xpose.msra.mxu0 0
    %3870 = vmatprep.subr.bf16.mxu0 0
    %3871 = vmatpush1.bf16.xpose.msra.mxu0 0
    %3872 = vmatprep.subr.bf16.mxu0 0
    %3873 = vmatpush1.bf16.xpose.msra.mxu0 0
    %3874 = vmatprep.subr.bf16.mxu0 0
    %3875 = vmatpush1.bf16.xpose.msra.mxu0 0
    %3876 = vmatprep.subr.bf16.mxu0 0
    %3877 = vmatpush1.bf16.xpose.msra.mxu0 0
    %3878 = vmatprep.subr.bf16.mxu0 0
    %3879 = vmatpush1.bf16.xpose.msra.mxu0 0
    %3880 = vmatprep.subr.bf16.mxu0 0
    %3881 = vmatpush1.bf16.xpose.msra.mxu0 0
    %3882 = vmatprep.subr.bf16.mxu0 0
    %3883 = vmatpush1.bf16.xpose.msra.mxu0 0
    %3884 = vmatprep.subr.bf16.mxu0 0
    %3885 = vmatpush1.bf16.xpose.msra.mxu0 0
    %3886 = vmatprep.subr.bf16.mxu0 0
    %3887 = vmatpush1.bf16.xpose.msra.mxu0 0
    %3888 = vmatprep.subr.bf16.mxu0 0
    %3889 = vmatpush1.bf16.xpose.msra.mxu0 0
    %3890 = vmatprep.subr.bf16.mxu0 0
    %3891 = vmatpush1.bf16.xpose.msra.mxu0 0
    %3892 = vmatprep.subr.bf16.mxu0 0
    %3893 = vmatpush1.bf16.xpose.msra.mxu0 0
    %3894 = vmatprep.mubr.bf16.mxu0 0
    %3895 = vmatmul.mubr.bf16.gmra.mrb[0].mxu0 %v3857
    %v3896 = vpop.f32.mrb[0].mxu0
    %v3897 = vadd.f32 0.0, %v3896
    %v3898 = vpop.f32.mrb[0].mxu0
    %v3899 = vpop.f32.mrb[0].mxu0
    %v3900 = vpop.f32.mrb[0].mxu0
    %3901 = vdwg.mxu0
    %v3902 = vmul.f32 %v3847, 0.35355338
    %v3903 = vmul.f32 %v3897, 0.35355338
    %v3904 = vadd.f32 %v3902, %v2997
    %v3905 = vadd.f32 %v3903, %v2997
    %v3906 = vsel %vm3231, %v3904, -inf
    %3907 = vmax.xlane.f32.xlu0 %v3906
    %v3908 = vpop.xlane.xlu0 %3907
    %v3909 = vsel %vm3231, %v3905, -inf
    %3910 = vmax.xlane.f32.xlu0 %v3909
    %v3911 = vpop.xlane.xlu0 %3910
    %v3912 = vsub.f32 %v3904, %v3908
    %v3913 = vsub.f32 %v3905, %v3911
    %v3914 = vmul.f32 %v3912, 1.442695
    %v3915 = vpow.pop %v3914
    %v3916 = vmul.f32 %v3913, 1.442695
    %v3917 = vpow.pop %v3916
    %v3918 = vsel %vm3231, %v3915, 0.0
    %3919 = vadd.xlane.f32.xlu0 %v3918
    %v3920 = vpop.xlane.xlu0 %3919
    %v3921 = vsel %vm3231, %v3917, 0.0
    %3922 = vadd.xlane.f32.xlu0 %v3921
    %v3923 = vpop.xlane.xlu0 %3922
    %v3924 = vrcp.pop %v3920
    %v3925 = vrcp.pop %v3923
    %v3926 = vmul.f32 %v3915, %v3924
    %v3927 = vmul.f32 %v3917, %v3925
    %v3928 = vpack.c.bf16 %v3926, %v3926
    %v3929 = vpack.c.bf16 %v3927, %v3927
    %3930 = vrot.lane.b32.xlu0 %v3127, 40
    %v3931 = vpop.permute.xlu0 %3930
    %v3933 = vsel %vm3258, %v3928, 0
    %v3936 = vsel %vm3262, %v3931, 0
    %3938 = vmatprep.subr.bf16.mxu0 0
    %3939 = vmatpush1.bf16.msra.mxu0 %v3936
    %3940 = vmatprep.subr.bf16.mxu0 0
    %3941 = vmatpush1.bf16.msra.mxu0 0
    %3942 = vmatprep.subr.bf16.mxu0 0
    %3943 = vmatpush1.bf16.msra.mxu0 0
    %3944 = vmatprep.subr.bf16.mxu0 0
    %3945 = vmatpush1.bf16.msra.mxu0 0
    %3946 = vmatprep.subr.bf16.mxu0 0
    %3947 = vmatpush1.bf16.msra.mxu0 0
    %3948 = vmatprep.subr.bf16.mxu0 0
    %3949 = vmatpush1.bf16.msra.mxu0 0
    %3950 = vmatprep.subr.bf16.mxu0 0
    %3951 = vmatpush1.bf16.msra.mxu0 0
    %3952 = vmatprep.subr.bf16.mxu0 0
    %3953 = vmatpush1.bf16.msra.mxu0 0
    %3954 = vmatprep.subr.bf16.mxu0 0
    %3955 = vmatpush1.bf16.msra.mxu0 0
    %3956 = vmatprep.subr.bf16.mxu0 0
    %3957 = vmatpush1.bf16.msra.mxu0 0
    %3958 = vmatprep.subr.bf16.mxu0 0
    %3959 = vmatpush1.bf16.msra.mxu0 0
    %3960 = vmatprep.subr.bf16.mxu0 0
    %3961 = vmatpush1.bf16.msra.mxu0 0
    %3962 = vmatprep.subr.bf16.mxu0 0
    %3963 = vmatpush1.bf16.msra.mxu0 0
    %3964 = vmatprep.subr.bf16.mxu0 0
    %3965 = vmatpush1.bf16.msra.mxu0 0
    %3966 = vmatprep.subr.bf16.mxu0 0
    %3967 = vmatpush1.bf16.msra.mxu0 0
    %3968 = vmatprep.subr.bf16.mxu0 0
    %3969 = vmatpush1.bf16.msra.mxu0 0
    %3970 = vmatprep.mubr.bf16.mxu0 0
    %3971 = vmatmul.mubr.bf16.gmra.mrb[0].mxu0 %v3933
    %v3972 = vpop.f32.mrb[0].mxu0
    %v3973 = vadd.f32 0.0, %v3972
    %v3974 = vpop.f32.mrb[0].mxu0
    %v3975 = vpop.f32.mrb[0].mxu0
    %v3976 = vpop.f32.mrb[0].mxu0
    %3977 = vdwg.mxu0
    %3978 = vrot.lane.b32.xlu0 %v3128, 40
    %v3979 = vpop.permute.xlu0 %3978
    %v3981 = vsel %vm3258, %v3929, 0
    %v3984 = vsel %vm3262, %v3979, 0
    %3986 = vmatprep.subr.bf16.mxu0 0
    %3987 = vmatpush1.bf16.msra.mxu0 %v3984
    %3988 = vmatprep.subr.bf16.mxu0 0
    %3989 = vmatpush1.bf16.msra.mxu0 0
    %3990 = vmatprep.subr.bf16.mxu0 0
    %3991 = vmatpush1.bf16.msra.mxu0 0
    %3992 = vmatprep.subr.bf16.mxu0 0
    %3993 = vmatpush1.bf16.msra.mxu0 0
    %3994 = vmatprep.subr.bf16.mxu0 0
    %3995 = vmatpush1.bf16.msra.mxu0 0
    %3996 = vmatprep.subr.bf16.mxu0 0
    %3997 = vmatpush1.bf16.msra.mxu0 0
    %3998 = vmatprep.subr.bf16.mxu0 0
    %3999 = vmatpush1.bf16.msra.mxu0 0
    %4000 = vmatprep.subr.bf16.mxu0 0
    %4001 = vmatpush1.bf16.msra.mxu0 0
    %4002 = vmatprep.subr.bf16.mxu0 0
    %4003 = vmatpush1.bf16.msra.mxu0 0
    %4004 = vmatprep.subr.bf16.mxu0 0
    %4005 = vmatpush1.bf16.msra.mxu0 0
    %4006 = vmatprep.subr.bf16.mxu0 0
    %4007 = vmatpush1.bf16.msra.mxu0 0
    %4008 = vmatprep.subr.bf16.mxu0 0
    %4009 = vmatpush1.bf16.msra.mxu0 0
    %4010 = vmatprep.subr.bf16.mxu0 0
    %4011 = vmatpush1.bf16.msra.mxu0 0
    %4012 = vmatprep.subr.bf16.mxu0 0
    %4013 = vmatpush1.bf16.msra.mxu0 0
    %4014 = vmatprep.subr.bf16.mxu0 0
    %4015 = vmatpush1.bf16.msra.mxu0 0
    %4016 = vmatprep.subr.bf16.mxu0 0
    %4017 = vmatpush1.bf16.msra.mxu0 0
    %4018 = vmatprep.mubr.bf16.mxu0 0
    %4019 = vmatmul.mubr.bf16.gmra.mrb[0].mxu0 %v3981
    %v4020 = vpop.f32.mrb[0].mxu0
    %v4021 = vadd.f32 0.0, %v4020
    %v4022 = vpop.f32.mrb[0].mxu0
    %v4023 = vpop.f32.mrb[0].mxu0
    %v4024 = vpop.f32.mrb[0].mxu0
    %4025 = vdwg.mxu0
    %v4028 = vcombine.low %v3301, %v3349
    %v4032 = vcombine.low %v3525, %v3573
    %4033 = vrot.lane.b32.xlu0 %v4032, 8
    %v4034 = vpop.permute.xlu0 %4033
    %v4038 = vcombine.low %v3749, %v3797
    %4039 = vrot.lane.b32.xlu0 %v4038, 16
    %v4040 = vpop.permute.xlu0 %4039
    %v4044 = vcombine.low %v3973, %v4021
    %4045 = vrot.lane.b32.xlu0 %v4044, 24
    %v4046 = vpop.permute.xlu0 %4045
    %v4048 = vsel %vm517, %v4028, %v4034
    %v4049 = vsel %vm271, %v4048, %v4040
    %vm4050 = vcmask 195584
    %v4051 = vsel %vm4050, %v4049, %v4046
    %v4052 = vpack.c.bf16 %v4051, %v4051
    %v4057 = vunpack.c.l.b16 %v3005
    %v4058 = vunpack.c.l.b16 %v3006
    %v4059 = vunpack.c.l.b16 %v3007
    %v4060 = vunpack.c.l.b16 %v3008
    %v4061 = vpack.c.b16 %v4058, %v4057
    %v4062 = vpack.c.b16 %v4060, %v4059
    %v4066 = vsel %vm2579, %v4052, 0
    %4068 = vmatprep.subr.bf16.mxu0 0
    %4069 = vmatpush1.bf16.msra.mxu0 %v4061
    %4070 = vmatprep.subr.bf16.mxu0 0
    %4071 = vmatpush1.bf16.msra.mxu0 %v4062
    %4072 = vmatprep.subr.bf16.mxu0 0
    %4073 = vmatpush1.bf16.msra.mxu0 0
    %4074 = vmatprep.subr.bf16.mxu0 0
    %4075 = vmatpush1.bf16.msra.mxu0 0
    %4076 = vmatprep.subr.bf16.mxu0 0
    %4077 = vmatpush1.bf16.msra.mxu0 0
    %4078 = vmatprep.subr.bf16.mxu0 0
    %4079 = vmatpush1.bf16.msra.mxu0 0
    %4080 = vmatprep.subr.bf16.mxu0 0
    %4081 = vmatpush1.bf16.msra.mxu0 0
    %4082 = vmatprep.subr.bf16.mxu0 0
    %4083 = vmatpush1.bf16.msra.mxu0 0
    %4084 = vmatprep.subr.bf16.mxu0 0
    %4085 = vmatpush1.bf16.msra.mxu0 0
    %4086 = vmatprep.subr.bf16.mxu0 0
    %4087 = vmatpush1.bf16.msra.mxu0 0
    %4088 = vmatprep.subr.bf16.mxu0 0
    %4089 = vmatpush1.bf16.msra.mxu0 0
    %4090 = vmatprep.subr.bf16.mxu0 0
    %4091 = vmatpush1.bf16.msra.mxu0 0
    %4092 = vmatprep.subr.bf16.mxu0 0
    %4093 = vmatpush1.bf16.msra.mxu0 0
    %4094 = vmatprep.subr.bf16.mxu0 0
    %4095 = vmatpush1.bf16.msra.mxu0 0
    %4096 = vmatprep.subr.bf16.mxu0 0
    %4097 = vmatpush1.bf16.msra.mxu0 0
    %4098 = vmatprep.subr.bf16.mxu0 0
    %4099 = vmatpush1.bf16.msra.mxu0 0
    %4100 = vmatprep.mubr.bf16.mxu0 0
    %4101 = vmatmul.mubr.bf16.gmra.mrb[0].mxu0 %v4066
    %v4102 = vpop.f32.mrb[0].mxu0
    %v4103 = vadd.f32 0.0, %v4102
    %v4104 = vpop.f32.mrb[0].mxu0
    %v4105 = vpop.f32.mrb[0].mxu0
    %v4106 = vpop.f32.mrb[0].mxu0
    %4107 = vdwg.mxu0
    %v4108 = vadd.f32 %v2989, %v4103
    %v4110 = vlaneseq
    %v4111 = vshrl.u32 %v4110, 7
    %v4112 = vsub.s32 0, %v4111
    %v4113 = vrot.slane %v3009, %v4112
    %v4115 = vadd.f32 %v4108, %v4113
    %v4116 = vsel %vm2579, %v4115, 0.0
    %4117 = vadd.xlane.f32.xlu0 %v4116
    %v4118 = vpop.xlane.xlu0 %4117
    %v4119 = vmul.f32 %v4118, %v3037
    %v4120 = vsub.f32 %v4115, %v4119
    %v4121 = vmul.f32 %v4120, %v4120
    %v4122 = vsel %vm2579, %v4121, 0.0
    %4123 = vadd.xlane.f32.xlu0 %v4122
    %v4124 = vpop.xlane.xlu0 %4123
    %v4125 = vmul.f32 %v4124, %v3037
    %v4126 = vadd.f32 %v4125, 1e-05
    %v4127 = vrsqrt.pop %v4126
    %v4128 = vmul.f32 %v4120, %v4127
    %v4130 = vlaneseq
    %v4131 = vshrl.u32 %v4130, 7
    %v4132 = vsub.s32 0, %v4131
    %v4133 = vrot.slane %v3010, %v4132
    %v4135 = vmul.f32 %v4128, %v4133
    %v4137 = vlaneseq
    %v4138 = vshrl.u32 %v4137, 7
    %v4139 = vsub.s32 0, %v4138
    %v4140 = vrot.slane %v3011, %v4139
    %v4142 = vadd.f32 %v4135, %v4140
    %v4143 = vpack.c.bf16 %v4142, %v4142
    %v4145 = vlaneseq
    %v4146 = vshrl.u32 %v4145, 7
    %v4147 = vsub.s32 0, %v4146
    %v4148 = vrot.slane %v3016, %v4147
    %v4154 = vunpack.c.l.b16 %v3012
    %v4155 = vunpack.c.l.b16 %v3013
    %v4156 = vunpack.c.l.b16 %v3014
    %v4157 = vunpack.c.l.b16 %v3015
    %v4158 = vpack.c.b16 %v4155, %v4154
    %v4159 = vpack.c.b16 %v4157, %v4156
    %v4163 = vsel %vm2579, %v4143, 0
    %4165 = vmatprep.subr.bf16.mxu0 0
    %4166 = vmatpush1.bf16.msra.mxu0 %v4158
    %4167 = vmatprep.subr.bf16.mxu0 0
    %4168 = vmatpush1.bf16.msra.mxu0 %v4159
    %4169 = vmatprep.subr.bf16.mxu0 0
    %4170 = vmatpush1.bf16.msra.mxu0 0
    %4171 = vmatprep.subr.bf16.mxu0 0
    %4172 = vmatpush1.bf16.msra.mxu0 0
    %4173 = vmatprep.subr.bf16.mxu0 0
    %4174 = vmatpush1.bf16.msra.mxu0 0
    %4175 = vmatprep.subr.bf16.mxu0 0
    %4176 = vmatpush1.bf16.msra.mxu0 0
    %4177 = vmatprep.subr.bf16.mxu0 0
    %4178 = vmatpush1.bf16.msra.mxu0 0
    %4179 = vmatprep.subr.bf16.mxu0 0
    %4180 = vmatpush1.bf16.msra.mxu0 0
    %4181 = vmatprep.subr.bf16.mxu0 0
    %4182 = vmatpush1.bf16.msra.mxu0 0
    %4183 = vmatprep.subr.bf16.mxu0 0
    %4184 = vmatpush1.bf16.msra.mxu0 0
    %4185 = vmatprep.subr.bf16.mxu0 0
    %4186 = vmatpush1.bf16.msra.mxu0 0
    %4187 = vmatprep.subr.bf16.mxu0 0
    %4188 = vmatpush1.bf16.msra.mxu0 0
    %4189 = vmatprep.subr.bf16.mxu0 0
    %4190 = vmatpush1.bf16.msra.mxu0 0
    %4191 = vmatprep.subr.bf16.mxu0 0
    %4192 = vmatpush1.bf16.msra.mxu0 0
    %4193 = vmatprep.subr.bf16.mxu0 0
    %4194 = vmatpush1.bf16.msra.mxu0 0
    %4195 = vmatprep.subr.bf16.mxu0 0
    %4196 = vmatpush1.bf16.msra.mxu0 0
    %4197 = vmatprep.mubr.bf16.mxu0 0
    %4198 = vmatmul.mubr.bf16.gmra.mrb[0].mxu0 %v4163
    %v4199 = vpop.f32.mrb[0].mxu0
    %v4200 = vadd.f32 %v4148, %v4199
    %v4201 = vpop.f32.mrb[0].mxu0
    %v4202 = vpop.f32.mrb[0].mxu0
    %v4203 = vpop.f32.mrb[0].mxu0
    %4204 = vdwg.mxu0
    %v4205 = vmul.f32 %v4200, 0.70710677
    %v4206 = vand.u32 2147483647, %v4205
    %v4207 = vmul.f32 %v4206, 0.3275911
    %v4208 = vadd.f32 %v4207, 1.0
    %v4209 = vrcp.pop %v4208
    %v4210 = vmul.f32 1.0, %v4209
    %v4211 = vmul.f32 %v4210, 1.0614054
    %v4212 = vadd.f32 %v4211, -1.4531521
    %v4213 = vmul.f32 %v4212, %v4210
    %v4214 = vadd.f32 %v4213, 1.4214138
    %v4215 = vmul.f32 %v4214, %v4210
    %v4216 = vadd.f32 %v4215, -0.28449672
    %v4217 = vmul.f32 %v4216, %v4210
    %v4218 = vadd.f32 %v4217, 0.2548296
    %v4219 = vmul.f32 %v4218, %v4210
    %v4220 = vsub.f32 0.0, %v4206
    %v4221 = vmul.f32 %v4220, %v4206
    %v4222 = vmul.f32 %v4221, 1.442695
    %v4223 = vpow.pop %v4222
    %v4224 = vmul.f32 %v4219, %v4223
    %v4225 = vsub.f32 1.0, %v4224
    %vm4226 = vcmp.lt.f32.partialorder %v4205, 0.0
    %v4227 = vsub.f32 0.0, %v4225
    %v4228 = vsel %vm4226, %v4227, %v4225
    %v4229 = vmul.f32 %v4200, 0.5
    %v4230 = vadd.f32 %v4228, 1.0
    %v4231 = vmul.f32 %v4229, %v4230
    %v4232 = vpack.c.bf16 %v4231, %v4231
    %v4249 = vunpack.c.l.b16 %v3017
    %v4250 = vunpack.c.l.b16 %v3018
    %v4251 = vunpack.c.l.b16 %v3019
    %v4252 = vunpack.c.l.b16 %v3020
    %v4253 = vunpack.c.l.b16 %v3021
    %v4254 = vunpack.c.l.b16 %v3022
    %v4255 = vunpack.c.l.b16 %v3023
    %v4256 = vunpack.c.l.b16 %v3024
    %v4257 = vunpack.c.l.b16 %v3025
    %v4258 = vunpack.c.l.b16 %v3026
    %v4259 = vunpack.c.l.b16 %v3027
    %v4260 = vunpack.c.l.b16 %v3028
    %v4261 = vunpack.c.l.b16 %v3029
    %v4262 = vunpack.c.l.b16 %v3030
    %v4263 = vunpack.c.l.b16 %v3031
    %v4264 = vunpack.c.l.b16 %v3032
    %v4265 = vpack.c.b16 %v4250, %v4249
    %v4266 = vpack.c.b16 %v4252, %v4251
    %v4267 = vpack.c.b16 %v4254, %v4253
    %v4268 = vpack.c.b16 %v4256, %v4255
    %v4269 = vpack.c.b16 %v4258, %v4257
    %v4270 = vpack.c.b16 %v4260, %v4259
    %v4271 = vpack.c.b16 %v4262, %v4261
    %v4272 = vpack.c.b16 %v4264, %v4263
    %4281 = vmatprep.subr.bf16.mxu0 0
    %4282 = vmatpush1.bf16.msra.mxu0 %v4265
    %4283 = vmatprep.subr.bf16.mxu0 0
    %4284 = vmatpush1.bf16.msra.mxu0 %v4266
    %4285 = vmatprep.subr.bf16.mxu0 0
    %4286 = vmatpush1.bf16.msra.mxu0 %v4267
    %4287 = vmatprep.subr.bf16.mxu0 0
    %4288 = vmatpush1.bf16.msra.mxu0 %v4268
    %4289 = vmatprep.subr.bf16.mxu0 0
    %4290 = vmatpush1.bf16.msra.mxu0 %v4269
    %4291 = vmatprep.subr.bf16.mxu0 0
    %4292 = vmatpush1.bf16.msra.mxu0 %v4270
    %4293 = vmatprep.subr.bf16.mxu0 0
    %4294 = vmatpush1.bf16.msra.mxu0 %v4271
    %4295 = vmatprep.subr.bf16.mxu0 0
    %4296 = vmatpush1.bf16.msra.mxu0 %v4272
    %4297 = vmatprep.subr.bf16.mxu0 0
    %4298 = vmatpush1.bf16.msra.mxu0 0
    %4299 = vmatprep.subr.bf16.mxu0 0
    %4300 = vmatpush1.bf16.msra.mxu0 0
    %4301 = vmatprep.subr.bf16.mxu0 0
    %4302 = vmatpush1.bf16.msra.mxu0 0
    %4303 = vmatprep.subr.bf16.mxu0 0
    %4304 = vmatpush1.bf16.msra.mxu0 0
    %4305 = vmatprep.subr.bf16.mxu0 0
    %4306 = vmatpush1.bf16.msra.mxu0 0
    %4307 = vmatprep.subr.bf16.mxu0 0
    %4308 = vmatpush1.bf16.msra.mxu0 0
    %4309 = vmatprep.subr.bf16.mxu0 0
    %4310 = vmatpush1.bf16.msra.mxu0 0
    %4311 = vmatprep.subr.bf16.mxu0 0
    %4312 = vmatpush1.bf16.msra.mxu0 0
    %4313 = vmatprep.mubr.bf16.mxu0 0
    %4314 = vmatmul.mubr.bf16.gmra.mrb[0].mxu0 %v4232
    %v4315 = vpop.f32.mrb[0].mxu0
    %v4316 = vadd.f32 0.0, %v4315
    %v4317 = vpop.f32.mrb[0].mxu0
    %v4318 = vpop.f32.mrb[0].mxu0
    %v4319 = vpop.f32.mrb[0].mxu0
    %4320 = vdwg.mxu0
    %v4321 = vadd.f32 %v4115, %v4316
    %v4323 = vlaneseq
    %v4324 = vshrl.u32 %v4323, 7
    %v4325 = vsub.s32 0, %v4324
    %v4326 = vrot.slane %v3033, %v4325
    %v4328 = vadd.f32 %v4321, %v4326
    %s4329 = scalar_lea.vmem %s53, 16
    %v4330 = vld [vmem:[%s4329] sm:$0xf]
    %v4331 = vld [vmem:[%s4329 + $0x4] sm:$0xf]
    %v4332 = vld [vmem:[%s4329 + $0x8] sm:$0xf]
    %v4333 = vld [vmem:[%s4329 + $0xc] sm:$0xf]
    %s4334 = scalar_lea.vmem %s45, 1
    %v4335 = vld [vmem:[%s4334] sm:$0x1]
    %s4336 = scalar_lea.vmem %s47, 1
    %v4337 = vld [vmem:[%s4336] sm:$0x1]
    %s4338 = scalar_lea.vmem %s49, 16
    %v4339 = vld [vmem:[%s4338] sm:$0xf]
    %v4340 = vld [vmem:[%s4338 + $0x4] sm:$0xf]
    %v4341 = vld [vmem:[%s4338 + $0x8] sm:$0xf]
    %v4342 = vld [vmem:[%s4338 + $0xc] sm:$0xf]
    %s4343 = scalar_lea.vmem %s51, 1
    %v4344 = vld [vmem:[%s4343] sm:$0x1]
    %s4345 = scalar_lea.vmem %s55, 16
    %v4346 = vld [vmem:[%s4345] sm:$0xf]
    %v4347 = vld [vmem:[%s4345 + $0x4] sm:$0xf]
    %v4348 = vld [vmem:[%s4345 + $0x8] sm:$0xf]
    %v4349 = vld [vmem:[%s4345 + $0xc] sm:$0xf]
    %s4350 = scalar_lea.vmem %s57, 1
    %v4351 = vld [vmem:[%s4350] sm:$0x1]
    %s4352 = scalar_lea.vmem %s59, 1
    %v4353 = vld [vmem:[%s4352] sm:$0x1]
    %s4354 = scalar_lea.vmem %s61, 1
    %v4355 = vld [vmem:[%s4354] sm:$0x1]
    %s4356 = scalar_lea.vmem %s63, 16
    %v4357 = vld [vmem:[%s4356] sm:$0xf]
    %v4358 = vld [vmem:[%s4356 + $0x4] sm:$0xf]
    %v4359 = vld [vmem:[%s4356 + $0x8] sm:$0xf]
    %v4360 = vld [vmem:[%s4356 + $0xc] sm:$0xf]
    %s4361 = scalar_lea.vmem %s65, 1
    %v4362 = vld [vmem:[%s4361] sm:$0x1]
    %s4363 = scalar_lea.vmem %s67, 64
    %v4364 = vld [vmem:[%s4363] sm:$0xf]
    %v4365 = vld [vmem:[%s4363 + $0x4] sm:$0xf]
    %v4366 = vld [vmem:[%s4363 + $0x8] sm:$0xf]
    %v4367 = vld [vmem:[%s4363 + $0xc] sm:$0xf]
    %v4368 = vld [vmem:[%s4363 + $0x10] sm:$0xf]
    %v4369 = vld [vmem:[%s4363 + $0x14] sm:$0xf]
    %v4370 = vld [vmem:[%s4363 + $0x18] sm:$0xf]
    %v4371 = vld [vmem:[%s4363 + $0x1c] sm:$0xf]
    %v4372 = vld [vmem:[%s4363 + $0x20] sm:$0xf]
    %v4373 = vld [vmem:[%s4363 + $0x24] sm:$0xf]
    %v4374 = vld [vmem:[%s4363 + $0x28] sm:$0xf]
    %v4375 = vld [vmem:[%s4363 + $0x2c] sm:$0xf]
    %v4376 = vld [vmem:[%s4363 + $0x30] sm:$0xf]
    %v4377 = vld [vmem:[%s4363 + $0x34] sm:$0xf]
    %v4378 = vld [vmem:[%s4363 + $0x38] sm:$0xf]
    %v4379 = vld [vmem:[%s4363 + $0x3c] sm:$0xf]
    %s4380 = scalar_lea.vmem %s69, 1
    %v4381 = vld [vmem:[%s4380] sm:$0x1]
    %v4382 = vsel %vm2579, %v4328, 0.0
    %4383 = vadd.xlane.f32.xlu0 %v4382
    %v4384 = vpop.xlane.xlu0 %4383
    %v4385 = vmul.f32 %v4384, %v3037
    %v4386 = vsub.f32 %v4328, %v4385
    %v4387 = vmul.f32 %v4386, %v4386
    %v4388 = vsel %vm2579, %v4387, 0.0
    %4389 = vadd.xlane.f32.xlu0 %v4388
    %v4390 = vpop.xlane.xlu0 %4389
    %v4391 = vmul.f32 %v4390, %v3037
    %v4392 = vadd.f32 %v4391, 1e-05
    %v4393 = vrsqrt.pop %v4392
    %v4394 = vmul.f32 %v4386, %v4393
    %v4396 = vlaneseq
    %v4397 = vshrl.u32 %v4396, 7
    %v4398 = vsub.s32 0, %v4397
    %v4399 = vrot.slane %v4335, %v4398
    %v4401 = vmul.f32 %v4394, %v4399
    %v4403 = vlaneseq
    %v4404 = vshrl.u32 %v4403, 7
    %v4405 = vsub.s32 0, %v4404
    %v4406 = vrot.slane %v4337, %v4405
    %v4408 = vadd.f32 %v4401, %v4406
    %v4409 = vpack.c.bf16 %v4408, %v4408
    %v4411 = vlaneseq
    %v4412 = vshrl.u32 %v4411, 7
    %v4413 = vsub.s32 0, %v4412
    %v4414 = vrot.slane %v4344, %v4413
    %v4420 = vunpack.c.l.b16 %v4339
    %v4421 = vunpack.c.l.b16 %v4340
    %v4422 = vunpack.c.l.b16 %v4341
    %v4423 = vunpack.c.l.b16 %v4342
    %v4424 = vpack.c.b16 %v4421, %v4420
    %v4425 = vpack.c.b16 %v4423, %v4422
    %v4429 = vsel %vm2579, %v4409, 0
    %4431 = vmatprep.subr.bf16.mxu0 0
    %4432 = vmatpush1.bf16.msra.mxu0 %v4424
    %4433 = vmatprep.subr.bf16.mxu0 0
    %4434 = vmatpush1.bf16.msra.mxu0 %v4425
    %4435 = vmatprep.subr.bf16.mxu0 0
    %4436 = vmatpush1.bf16.msra.mxu0 0
    %4437 = vmatprep.subr.bf16.mxu0 0
    %4438 = vmatpush1.bf16.msra.mxu0 0
    %4439 = vmatprep.subr.bf16.mxu0 0
    %4440 = vmatpush1.bf16.msra.mxu0 0
    %4441 = vmatprep.subr.bf16.mxu0 0
    %4442 = vmatpush1.bf16.msra.mxu0 0
    %4443 = vmatprep.subr.bf16.mxu0 0
    %4444 = vmatpush1.bf16.msra.mxu0 0
    %4445 = vmatprep.subr.bf16.mxu0 0
    %4446 = vmatpush1.bf16.msra.mxu0 0
    %4447 = vmatprep.subr.bf16.mxu0 0
    %4448 = vmatpush1.bf16.msra.mxu0 0
    %4449 = vmatprep.subr.bf16.mxu0 0
    %4450 = vmatpush1.bf16.msra.mxu0 0
    %4451 = vmatprep.subr.bf16.mxu0 0
    %4452 = vmatpush1.bf16.msra.mxu0 0
    %4453 = vmatprep.subr.bf16.mxu0 0
    %4454 = vmatpush1.bf16.msra.mxu0 0
    %4455 = vmatprep.subr.bf16.mxu0 0
    %4456 = vmatpush1.bf16.msra.mxu0 0
    %4457 = vmatprep.subr.bf16.mxu0 0
    %4458 = vmatpush1.bf16.msra.mxu0 0
    %4459 = vmatprep.subr.bf16.mxu0 0
    %4460 = vmatpush1.bf16.msra.mxu0 0
    %4461 = vmatprep.subr.bf16.mxu0 0
    %4462 = vmatpush1.bf16.msra.mxu0 0
    %4463 = vmatprep.mubr.bf16.mxu0 0
    %4464 = vmatmul.mubr.bf16.gmra.mrb[0].mxu0 %v4429
    %v4465 = vpop.f32.mrb[0].mxu0
    %v4466 = vadd.f32 %v4414, %v4465
    %v4467 = vpop.f32.mrb[0].mxu0
    %v4468 = vpop.f32.mrb[0].mxu0
    %v4469 = vpop.f32.mrb[0].mxu0
    %4470 = vdwg.mxu0
    %v4472 = vcombine.high %v4466, %v4466
    %v4474 = vpack.c.bf16 %v4466, %v4466
    %v4475 = vpack.c.bf16 %v4472, %v4472
    %4477 = vrot.lane.b32.xlu0 %v4474, 96
    %v4478 = vpop.permute.xlu0 %4477
    %v4480 = vsel %vm517, %v4474, 0
    %v4483 = vsel %vm517, %v4478, 0
    %4485 = vmatprep.subr.bf16.mxu0 0
    %4486 = vmatpush1.bf16.xpose.msra.mxu0 %v4483
    %4487 = vmatprep.subr.bf16.mxu0 0
    %4488 = vmatpush1.bf16.xpose.msra.mxu0 0
    %4489 = vmatprep.subr.bf16.mxu0 0
    %4490 = vmatpush1.bf16.xpose.msra.mxu0 0
    %4491 = vmatprep.subr.bf16.mxu0 0
    %4492 = vmatpush1.bf16.xpose.msra.mxu0 0
    %4493 = vmatprep.subr.bf16.mxu0 0
    %4494 = vmatpush1.bf16.xpose.msra.mxu0 0
    %4495 = vmatprep.subr.bf16.mxu0 0
    %4496 = vmatpush1.bf16.xpose.msra.mxu0 0
    %4497 = vmatprep.subr.bf16.mxu0 0
    %4498 = vmatpush1.bf16.xpose.msra.mxu0 0
    %4499 = vmatprep.subr.bf16.mxu0 0
    %4500 = vmatpush1.bf16.xpose.msra.mxu0 0
    %4501 = vmatprep.subr.bf16.mxu0 0
    %4502 = vmatpush1.bf16.xpose.msra.mxu0 0
    %4503 = vmatprep.subr.bf16.mxu0 0
    %4504 = vmatpush1.bf16.xpose.msra.mxu0 0
    %4505 = vmatprep.subr.bf16.mxu0 0
    %4506 = vmatpush1.bf16.xpose.msra.mxu0 0
    %4507 = vmatprep.subr.bf16.mxu0 0
    %4508 = vmatpush1.bf16.xpose.msra.mxu0 0
    %4509 = vmatprep.subr.bf16.mxu0 0
    %4510 = vmatpush1.bf16.xpose.msra.mxu0 0
    %4511 = vmatprep.subr.bf16.mxu0 0
    %4512 = vmatpush1.bf16.xpose.msra.mxu0 0
    %4513 = vmatprep.subr.bf16.mxu0 0
    %4514 = vmatpush1.bf16.xpose.msra.mxu0 0
    %4515 = vmatprep.subr.bf16.mxu0 0
    %4516 = vmatpush1.bf16.xpose.msra.mxu0 0
    %4517 = vmatprep.mubr.bf16.mxu0 0
    %4518 = vmatmul.mubr.bf16.gmra.mrb[0].mxu0 %v4480
    %v4519 = vpop.f32.mrb[0].mxu0
    %v4520 = vadd.f32 0.0, %v4519
    %v4521 = vpop.f32.mrb[0].mxu0
    %v4522 = vpop.f32.mrb[0].mxu0
    %v4523 = vpop.f32.mrb[0].mxu0
    %4524 = vdwg.mxu0
    %4526 = vrot.lane.b32.xlu0 %v4475, 96
    %v4527 = vpop.permute.xlu0 %4526
    %v4529 = vsel %vm517, %v4475, 0
    %v4532 = vsel %vm517, %v4527, 0
    %4534 = vmatprep.subr.bf16.mxu0 0
    %4535 = vmatpush1.bf16.xpose.msra.mxu0 %v4532
    %4536 = vmatprep.subr.bf16.mxu0 0
    %4537 = vmatpush1.bf16.xpose.msra.mxu0 0
    %4538 = vmatprep.subr.bf16.mxu0 0
    %4539 = vmatpush1.bf16.xpose.msra.mxu0 0
    %4540 = vmatprep.subr.bf16.mxu0 0
    %4541 = vmatpush1.bf16.xpose.msra.mxu0 0
    %4542 = vmatprep.subr.bf16.mxu0 0
    %4543 = vmatpush1.bf16.xpose.msra.mxu0 0
    %4544 = vmatprep.subr.bf16.mxu0 0
    %4545 = vmatpush1.bf16.xpose.msra.mxu0 0
    %4546 = vmatprep.subr.bf16.mxu0 0
    %4547 = vmatpush1.bf16.xpose.msra.mxu0 0
    %4548 = vmatprep.subr.bf16.mxu0 0
    %4549 = vmatpush1.bf16.xpose.msra.mxu0 0
    %4550 = vmatprep.subr.bf16.mxu0 0
    %4551 = vmatpush1.bf16.xpose.msra.mxu0 0
    %4552 = vmatprep.subr.bf16.mxu0 0
    %4553 = vmatpush1.bf16.xpose.msra.mxu0 0
    %4554 = vmatprep.subr.bf16.mxu0 0
    %4555 = vmatpush1.bf16.xpose.msra.mxu0 0
    %4556 = vmatprep.subr.bf16.mxu0 0
    %4557 = vmatpush1.bf16.xpose.msra.mxu0 0
    %4558 = vmatprep.subr.bf16.mxu0 0
    %4559 = vmatpush1.bf16.xpose.msra.mxu0 0
    %4560 = vmatprep.subr.bf16.mxu0 0
    %4561 = vmatpush1.bf16.xpose.msra.mxu0 0
    %4562 = vmatprep.subr.bf16.mxu0 0
    %4563 = vmatpush1.bf16.xpose.msra.mxu0 0
    %4564 = vmatprep.subr.bf16.mxu0 0
    %4565 = vmatpush1.bf16.xpose.msra.mxu0 0
    %4566 = vmatprep.mubr.bf16.mxu0 0
    %4567 = vmatmul.mubr.bf16.gmra.mrb[0].mxu0 %v4529
    %v4568 = vpop.f32.mrb[0].mxu0
    %v4569 = vadd.f32 0.0, %v4568
    %v4570 = vpop.f32.mrb[0].mxu0
    %v4571 = vpop.f32.mrb[0].mxu0
    %v4572 = vpop.f32.mrb[0].mxu0
    %4573 = vdwg.mxu0
    %v4574 = vmul.f32 %v4520, 0.35355338
    %v4575 = vmul.f32 %v4569, 0.35355338
    %v4576 = vadd.f32 %v4574, %v4330
    %v4577 = vadd.f32 %v4575, %v4330
    %v4578 = vsel %vm3231, %v4576, -inf
    %4579 = vmax.xlane.f32.xlu0 %v4578
    %v4580 = vpop.xlane.xlu0 %4579
    %v4581 = vsel %vm3231, %v4577, -inf
    %4582 = vmax.xlane.f32.xlu0 %v4581
    %v4583 = vpop.xlane.xlu0 %4582
    %v4584 = vsub.f32 %v4576, %v4580
    %v4585 = vsub.f32 %v4577, %v4583
    %v4586 = vmul.f32 %v4584, 1.442695
    %v4587 = vpow.pop %v4586
    %v4588 = vmul.f32 %v4585, 1.442695
    %v4589 = vpow.pop %v4588
    %v4590 = vsel %vm3231, %v4587, 0.0
    %4591 = vadd.xlane.f32.xlu0 %v4590
    %v4592 = vpop.xlane.xlu0 %4591
    %v4593 = vsel %vm3231, %v4589, 0.0
    %4594 = vadd.xlane.f32.xlu0 %v4593
    %v4595 = vpop.xlane.xlu0 %4594
    %v4596 = vrcp.pop %v4592
    %v4597 = vrcp.pop %v4595
    %v4598 = vmul.f32 %v4587, %v4596
    %v4599 = vmul.f32 %v4589, %v4597
    %v4600 = vpack.c.bf16 %v4598, %v4598
    %v4601 = vpack.c.bf16 %v4599, %v4599
    %4602 = vrot.lane.b32.xlu0 %v4474, 64
    %v4603 = vpop.permute.xlu0 %4602
    %v4605 = vsel %vm3258, %v4600, 0
    %v4608 = vsel %vm3262, %v4603, 0
    %4610 = vmatprep.subr.bf16.mxu0 0
    %4611 = vmatpush1.bf16.msra.mxu0 %v4608
    %4612 = vmatprep.subr.bf16.mxu0 0
    %4613 = vmatpush1.bf16.msra.mxu0 0
    %4614 = vmatprep.subr.bf16.mxu0 0
    %4615 = vmatpush1.bf16.msra.mxu0 0
    %4616 = vmatprep.subr.bf16.mxu0 0
    %4617 = vmatpush1.bf16.msra.mxu0 0
    %4618 = vmatprep.subr.bf16.mxu0 0
    %4619 = vmatpush1.bf16.msra.mxu0 0
    %4620 = vmatprep.subr.bf16.mxu0 0
    %4621 = vmatpush1.bf16.msra.mxu0 0
    %4622 = vmatprep.subr.bf16.mxu0 0
    %4623 = vmatpush1.bf16.msra.mxu0 0
    %4624 = vmatprep.subr.bf16.mxu0 0
    %4625 = vmatpush1.bf16.msra.mxu0 0
    %4626 = vmatprep.subr.bf16.mxu0 0
    %4627 = vmatpush1.bf16.msra.mxu0 0
    %4628 = vmatprep.subr.bf16.mxu0 0
    %4629 = vmatpush1.bf16.msra.mxu0 0
    %4630 = vmatprep.subr.bf16.mxu0 0
    %4631 = vmatpush1.bf16.msra.mxu0 0
    %4632 = vmatprep.subr.bf16.mxu0 0
    %4633 = vmatpush1.bf16.msra.mxu0 0
    %4634 = vmatprep.subr.bf16.mxu0 0
    %4635 = vmatpush1.bf16.msra.mxu0 0
    %4636 = vmatprep.subr.bf16.mxu0 0
    %4637 = vmatpush1.bf16.msra.mxu0 0
    %4638 = vmatprep.subr.bf16.mxu0 0
    %4639 = vmatpush1.bf16.msra.mxu0 0
    %4640 = vmatprep.subr.bf16.mxu0 0
    %4641 = vmatpush1.bf16.msra.mxu0 0
    %4642 = vmatprep.mubr.bf16.mxu0 0
    %4643 = vmatmul.mubr.bf16.gmra.mrb[0].mxu0 %v4605
    %v4644 = vpop.f32.mrb[0].mxu0
    %v4645 = vadd.f32 0.0, %v4644
    %v4646 = vpop.f32.mrb[0].mxu0
    %v4647 = vpop.f32.mrb[0].mxu0
    %v4648 = vpop.f32.mrb[0].mxu0
    %4649 = vdwg.mxu0
    %4650 = vrot.lane.b32.xlu0 %v4475, 64
    %v4651 = vpop.permute.xlu0 %4650
    %v4653 = vsel %vm3258, %v4601, 0
    %v4656 = vsel %vm3262, %v4651, 0
    %4658 = vmatprep.subr.bf16.mxu0 0
    %4659 = vmatpush1.bf16.msra.mxu0 %v4656
    %4660 = vmatprep.subr.bf16.mxu0 0
    %4661 = vmatpush1.bf16.msra.mxu0 0
    %4662 = vmatprep.subr.bf16.mxu0 0
    %4663 = vmatpush1.bf16.msra.mxu0 0
    %4664 = vmatprep.subr.bf16.mxu0 0
    %4665 = vmatpush1.bf16.msra.mxu0 0
    %4666 = vmatprep.subr.bf16.mxu0 0
    %4667 = vmatpush1.bf16.msra.mxu0 0
    %4668 = vmatprep.subr.bf16.mxu0 0
    %4669 = vmatpush1.bf16.msra.mxu0 0
    %4670 = vmatprep.subr.bf16.mxu0 0
    %4671 = vmatpush1.bf16.msra.mxu0 0
    %4672 = vmatprep.subr.bf16.mxu0 0
    %4673 = vmatpush1.bf16.msra.mxu0 0
    %4674 = vmatprep.subr.bf16.mxu0 0
    %4675 = vmatpush1.bf16.msra.mxu0 0
    %4676 = vmatprep.subr.bf16.mxu0 0
    %4677 = vmatpush1.bf16.msra.mxu0 0
    %4678 = vmatprep.subr.bf16.mxu0 0
    %4679 = vmatpush1.bf16.msra.mxu0 0
    %4680 = vmatprep.subr.bf16.mxu0 0
    %4681 = vmatpush1.bf16.msra.mxu0 0
    %4682 = vmatprep.subr.bf16.mxu0 0
    %4683 = vmatpush1.bf16.msra.mxu0 0
    %4684 = vmatprep.subr.bf16.mxu0 0
    %4685 = vmatpush1.bf16.msra.mxu0 0
    %4686 = vmatprep.subr.bf16.mxu0 0
    %4687 = vmatpush1.bf16.msra.mxu0 0
    %4688 = vmatprep.subr.bf16.mxu0 0
    %4689 = vmatpush1.bf16.msra.mxu0 0
    %4690 = vmatprep.mubr.bf16.mxu0 0
    %4691 = vmatmul.mubr.bf16.gmra.mrb[0].mxu0 %v4653
    %v4692 = vpop.f32.mrb[0].mxu0
    %v4693 = vadd.f32 0.0, %v4692
    %v4694 = vpop.f32.mrb[0].mxu0
    %v4695 = vpop.f32.mrb[0].mxu0
    %v4696 = vpop.f32.mrb[0].mxu0
    %4697 = vdwg.mxu0
    %4698 = vrot.lane.b32.xlu0 %v4474, 120
    %v4699 = vpop.permute.xlu0 %4698
    %4700 = vrot.lane.b32.xlu0 %v4474, 88
    %v4701 = vpop.permute.xlu0 %4700
    %v4703 = vsel %vm517, %v4699, 0
    %v4706 = vsel %vm517, %v4701, 0
    %4708 = vmatprep.subr.bf16.mxu0 0
    %4709 = vmatpush1.bf16.xpose.msra.mxu0 %v4706
    %4710 = vmatprep.subr.bf16.mxu0 0
    %4711 = vmatpush1.bf16.xpose.msra.mxu0 0
    %4712 = vmatprep.subr.bf16.mxu0 0
    %4713 = vmatpush1.bf16.xpose.msra.mxu0 0
    %4714 = vmatprep.subr.bf16.mxu0 0
    %4715 = vmatpush1.bf16.xpose.msra.mxu0 0
    %4716 = vmatprep.subr.bf16.mxu0 0
    %4717 = vmatpush1.bf16.xpose.msra.mxu0 0
    %4718 = vmatprep.subr.bf16.mxu0 0
    %4719 = vmatpush1.bf16.xpose.msra.mxu0 0
    %4720 = vmatprep.subr.bf16.mxu0 0
    %4721 = vmatpush1.bf16.xpose.msra.mxu0 0
    %4722 = vmatprep.subr.bf16.mxu0 0
    %4723 = vmatpush1.bf16.xpose.msra.mxu0 0
    %4724 = vmatprep.subr.bf16.mxu0 0
    %4725 = vmatpush1.bf16.xpose.msra.mxu0 0
    %4726 = vmatprep.subr.bf16.mxu0 0
    %4727 = vmatpush1.bf16.xpose.msra.mxu0 0
    %4728 = vmatprep.subr.bf16.mxu0 0
    %4729 = vmatpush1.bf16.xpose.msra.mxu0 0
    %4730 = vmatprep.subr.bf16.mxu0 0
    %4731 = vmatpush1.bf16.xpose.msra.mxu0 0
    %4732 = vmatprep.subr.bf16.mxu0 0
    %4733 = vmatpush1.bf16.xpose.msra.mxu0 0
    %4734 = vmatprep.subr.bf16.mxu0 0
    %4735 = vmatpush1.bf16.xpose.msra.mxu0 0
    %4736 = vmatprep.subr.bf16.mxu0 0
    %4737 = vmatpush1.bf16.xpose.msra.mxu0 0
    %4738 = vmatprep.subr.bf16.mxu0 0
    %4739 = vmatpush1.bf16.xpose.msra.mxu0 0
    %4740 = vmatprep.mubr.bf16.mxu0 0
    %4741 = vmatmul.mubr.bf16.gmra.mrb[0].mxu0 %v4703
    %v4742 = vpop.f32.mrb[0].mxu0
    %v4743 = vadd.f32 0.0, %v4742
    %v4744 = vpop.f32.mrb[0].mxu0
    %v4745 = vpop.f32.mrb[0].mxu0
    %v4746 = vpop.f32.mrb[0].mxu0
    %4747 = vdwg.mxu0
    %4748 = vrot.lane.b32.xlu0 %v4475, 120
    %v4749 = vpop.permute.xlu0 %4748
    %4750 = vrot.lane.b32.xlu0 %v4475, 88
    %v4751 = vpop.permute.xlu0 %4750
    %v4753 = vsel %vm517, %v4749, 0
    %v4756 = vsel %vm517, %v4751, 0
    %4758 = vmatprep.subr.bf16.mxu0 0
    %4759 = vmatpush1.bf16.xpose.msra.mxu0 %v4756
    %4760 = vmatprep.subr.bf16.mxu0 0
    %4761 = vmatpush1.bf16.xpose.msra.mxu0 0
    %4762 = vmatprep.subr.bf16.mxu0 0
    %4763 = vmatpush1.bf16.xpose.msra.mxu0 0
    %4764 = vmatprep.subr.bf16.mxu0 0
    %4765 = vmatpush1.bf16.xpose.msra.mxu0 0
    %4766 = vmatprep.subr.bf16.mxu0 0
    %4767 = vmatpush1.bf16.xpose.msra.mxu0 0
    %4768 = vmatprep.subr.bf16.mxu0 0
    %4769 = vmatpush1.bf16.xpose.msra.mxu0 0
    %4770 = vmatprep.subr.bf16.mxu0 0
    %4771 = vmatpush1.bf16.xpose.msra.mxu0 0
    %4772 = vmatprep.subr.bf16.mxu0 0
    %4773 = vmatpush1.bf16.xpose.msra.mxu0 0
    %4774 = vmatprep.subr.bf16.mxu0 0
    %4775 = vmatpush1.bf16.xpose.msra.mxu0 0
    %4776 = vmatprep.subr.bf16.mxu0 0
    %4777 = vmatpush1.bf16.xpose.msra.mxu0 0
    %4778 = vmatprep.subr.bf16.mxu0 0
    %4779 = vmatpush1.bf16.xpose.msra.mxu0 0
    %4780 = vmatprep.subr.bf16.mxu0 0
    %4781 = vmatpush1.bf16.xpose.msra.mxu0 0
    %4782 = vmatprep.subr.bf16.mxu0 0
    %4783 = vmatpush1.bf16.xpose.msra.mxu0 0
    %4784 = vmatprep.subr.bf16.mxu0 0
    %4785 = vmatpush1.bf16.xpose.msra.mxu0 0
    %4786 = vmatprep.subr.bf16.mxu0 0
    %4787 = vmatpush1.bf16.xpose.msra.mxu0 0
    %4788 = vmatprep.subr.bf16.mxu0 0
    %4789 = vmatpush1.bf16.xpose.msra.mxu0 0
    %4790 = vmatprep.mubr.bf16.mxu0 0
    %4791 = vmatmul.mubr.bf16.gmra.mrb[0].mxu0 %v4753
    %v4792 = vpop.f32.mrb[0].mxu0
    %v4793 = vadd.f32 0.0, %v4792
    %v4794 = vpop.f32.mrb[0].mxu0
    %v4795 = vpop.f32.mrb[0].mxu0
    %v4796 = vpop.f32.mrb[0].mxu0
    %4797 = vdwg.mxu0
    %v4798 = vmul.f32 %v4743, 0.35355338
    %v4799 = vmul.f32 %v4793, 0.35355338
    %v4800 = vadd.f32 %v4798, %v4331
    %v4801 = vadd.f32 %v4799, %v4331
    %v4802 = vsel %vm3231, %v4800, -inf
    %4803 = vmax.xlane.f32.xlu0 %v4802
    %v4804 = vpop.xlane.xlu0 %4803
    %v4805 = vsel %vm3231, %v4801, -inf
    %4806 = vmax.xlane.f32.xlu0 %v4805
    %v4807 = vpop.xlane.xlu0 %4806
    %v4808 = vsub.f32 %v4800, %v4804
    %v4809 = vsub.f32 %v4801, %v4807
    %v4810 = vmul.f32 %v4808, 1.442695
    %v4811 = vpow.pop %v4810
    %v4812 = vmul.f32 %v4809, 1.442695
    %v4813 = vpow.pop %v4812
    %v4814 = vsel %vm3231, %v4811, 0.0
    %4815 = vadd.xlane.f32.xlu0 %v4814
    %v4816 = vpop.xlane.xlu0 %4815
    %v4817 = vsel %vm3231, %v4813, 0.0
    %4818 = vadd.xlane.f32.xlu0 %v4817
    %v4819 = vpop.xlane.xlu0 %4818
    %v4820 = vrcp.pop %v4816
    %v4821 = vrcp.pop %v4819
    %v4822 = vmul.f32 %v4811, %v4820
    %v4823 = vmul.f32 %v4813, %v4821
    %v4824 = vpack.c.bf16 %v4822, %v4822
    %v4825 = vpack.c.bf16 %v4823, %v4823
    %4826 = vrot.lane.b32.xlu0 %v4474, 56
    %v4827 = vpop.permute.xlu0 %4826
    %v4829 = vsel %vm3258, %v4824, 0
    %v4832 = vsel %vm3262, %v4827, 0
    %4834 = vmatprep.subr.bf16.mxu0 0
    %4835 = vmatpush1.bf16.msra.mxu0 %v4832
    %4836 = vmatprep.subr.bf16.mxu0 0
    %4837 = vmatpush1.bf16.msra.mxu0 0
    %4838 = vmatprep.subr.bf16.mxu0 0
    %4839 = vmatpush1.bf16.msra.mxu0 0
    %4840 = vmatprep.subr.bf16.mxu0 0
    %4841 = vmatpush1.bf16.msra.mxu0 0
    %4842 = vmatprep.subr.bf16.mxu0 0
    %4843 = vmatpush1.bf16.msra.mxu0 0
    %4844 = vmatprep.subr.bf16.mxu0 0
    %4845 = vmatpush1.bf16.msra.mxu0 0
    %4846 = vmatprep.subr.bf16.mxu0 0
    %4847 = vmatpush1.bf16.msra.mxu0 0
    %4848 = vmatprep.subr.bf16.mxu0 0
    %4849 = vmatpush1.bf16.msra.mxu0 0
    %4850 = vmatprep.subr.bf16.mxu0 0
    %4851 = vmatpush1.bf16.msra.mxu0 0
    %4852 = vmatprep.subr.bf16.mxu0 0
    %4853 = vmatpush1.bf16.msra.mxu0 0
    %4854 = vmatprep.subr.bf16.mxu0 0
    %4855 = vmatpush1.bf16.msra.mxu0 0
    %4856 = vmatprep.subr.bf16.mxu0 0
    %4857 = vmatpush1.bf16.msra.mxu0 0
    %4858 = vmatprep.subr.bf16.mxu0 0
    %4859 = vmatpush1.bf16.msra.mxu0 0
    %4860 = vmatprep.subr.bf16.mxu0 0
    %4861 = vmatpush1.bf16.msra.mxu0 0
    %4862 = vmatprep.subr.bf16.mxu0 0
    %4863 = vmatpush1.bf16.msra.mxu0 0
    %4864 = vmatprep.subr.bf16.mxu0 0
    %4865 = vmatpush1.bf16.msra.mxu0 0
    %4866 = vmatprep.mubr.bf16.mxu0 0
    %4867 = vmatmul.mubr.bf16.gmra.mrb[0].mxu0 %v4829
    %v4868 = vpop.f32.mrb[0].mxu0
    %v4869 = vadd.f32 0.0, %v4868
    %v4870 = vpop.f32.mrb[0].mxu0
    %v4871 = vpop.f32.mrb[0].mxu0
    %v4872 = vpop.f32.mrb[0].mxu0
    %4873 = vdwg.mxu0
    %4874 = vrot.lane.b32.xlu0 %v4475, 56
    %v4875 = vpop.permute.xlu0 %4874
    %v4877 = vsel %vm3258, %v4825, 0
    %v4880 = vsel %vm3262, %v4875, 0
    %4882 = vmatprep.subr.bf16.mxu0 0
    %4883 = vmatpush1.bf16.msra.mxu0 %v4880
    %4884 = vmatprep.subr.bf16.mxu0 0
    %4885 = vmatpush1.bf16.msra.mxu0 0
    %4886 = vmatprep.subr.bf16.mxu0 0
    %4887 = vmatpush1.bf16.msra.mxu0 0
    %4888 = vmatprep.subr.bf16.mxu0 0
    %4889 = vmatpush1.bf16.msra.mxu0 0
    %4890 = vmatprep.subr.bf16.mxu0 0
    %4891 = vmatpush1.bf16.msra.mxu0 0
    %4892 = vmatprep.subr.bf16.mxu0 0
    %4893 = vmatpush1.bf16.msra.mxu0 0
    %4894 = vmatprep.subr.bf16.mxu0 0
    %4895 = vmatpush1.bf16.msra.mxu0 0
    %4896 = vmatprep.subr.bf16.mxu0 0
    %4897 = vmatpush1.bf16.msra.mxu0 0
    %4898 = vmatprep.subr.bf16.mxu0 0
    %4899 = vmatpush1.bf16.msra.mxu0 0
    %4900 = vmatprep.subr.bf16.mxu0 0
    %4901 = vmatpush1.bf16.msra.mxu0 0
    %4902 = vmatprep.subr.bf16.mxu0 0
    %4903 = vmatpush1.bf16.msra.mxu0 0
    %4904 = vmatprep.subr.bf16.mxu0 0
    %4905 = vmatpush1.bf16.msra.mxu0 0
    %4906 = vmatprep.subr.bf16.mxu0 0
    %4907 = vmatpush1.bf16.msra.mxu0 0
    %4908 = vmatprep.subr.bf16.mxu0 0
    %4909 = vmatpush1.bf16.msra.mxu0 0
    %4910 = vmatprep.subr.bf16.mxu0 0
    %4911 = vmatpush1.bf16.msra.mxu0 0
    %4912 = vmatprep.subr.bf16.mxu0 0
    %4913 = vmatpush1.bf16.msra.mxu0 0
    %4914 = vmatprep.mubr.bf16.mxu0 0
    %4915 = vmatmul.mubr.bf16.gmra.mrb[0].mxu0 %v4877
    %v4916 = vpop.f32.mrb[0].mxu0
    %v4917 = vadd.f32 0.0, %v4916
    %v4918 = vpop.f32.mrb[0].mxu0
    %v4919 = vpop.f32.mrb[0].mxu0
    %v4920 = vpop.f32.mrb[0].mxu0
    %4921 = vdwg.mxu0
    %4922 = vrot.lane.b32.xlu0 %v4474, 112
    %v4923 = vpop.permute.xlu0 %4922
    %4924 = vrot.lane.b32.xlu0 %v4474, 80
    %v4925 = vpop.permute.xlu0 %4924
    %v4927 = vsel %vm517, %v4923, 0
    %v4930 = vsel %vm517, %v4925, 0
    %4932 = vmatprep.subr.bf16.mxu0 0
    %4933 = vmatpush1.bf16.xpose.msra.mxu0 %v4930
    %4934 = vmatprep.subr.bf16.mxu0 0
    %4935 = vmatpush1.bf16.xpose.msra.mxu0 0
    %4936 = vmatprep.subr.bf16.mxu0 0
    %4937 = vmatpush1.bf16.xpose.msra.mxu0 0
    %4938 = vmatprep.subr.bf16.mxu0 0
    %4939 = vmatpush1.bf16.xpose.msra.mxu0 0
    %4940 = vmatprep.subr.bf16.mxu0 0
    %4941 = vmatpush1.bf16.xpose.msra.mxu0 0
    %4942 = vmatprep.subr.bf16.mxu0 0
    %4943 = vmatpush1.bf16.xpose.msra.mxu0 0
    %4944 = vmatprep.subr.bf16.mxu0 0
    %4945 = vmatpush1.bf16.xpose.msra.mxu0 0
    %4946 = vmatprep.subr.bf16.mxu0 0
    %4947 = vmatpush1.bf16.xpose.msra.mxu0 0
    %4948 = vmatprep.subr.bf16.mxu0 0
    %4949 = vmatpush1.bf16.xpose.msra.mxu0 0
    %4950 = vmatprep.subr.bf16.mxu0 0
    %4951 = vmatpush1.bf16.xpose.msra.mxu0 0
    %4952 = vmatprep.subr.bf16.mxu0 0
    %4953 = vmatpush1.bf16.xpose.msra.mxu0 0
    %4954 = vmatprep.subr.bf16.mxu0 0
    %4955 = vmatpush1.bf16.xpose.msra.mxu0 0
    %4956 = vmatprep.subr.bf16.mxu0 0
    %4957 = vmatpush1.bf16.xpose.msra.mxu0 0
    %4958 = vmatprep.subr.bf16.mxu0 0
    %4959 = vmatpush1.bf16.xpose.msra.mxu0 0
    %4960 = vmatprep.subr.bf16.mxu0 0
    %4961 = vmatpush1.bf16.xpose.msra.mxu0 0
    %4962 = vmatprep.subr.bf16.mxu0 0
    %4963 = vmatpush1.bf16.xpose.msra.mxu0 0
    %4964 = vmatprep.mubr.bf16.mxu0 0
    %4965 = vmatmul.mubr.bf16.gmra.mrb[0].mxu0 %v4927
    %v4966 = vpop.f32.mrb[0].mxu0
    %v4967 = vadd.f32 0.0, %v4966
    %v4968 = vpop.f32.mrb[0].mxu0
    %v4969 = vpop.f32.mrb[0].mxu0
    %v4970 = vpop.f32.mrb[0].mxu0
    %4971 = vdwg.mxu0
    %4972 = vrot.lane.b32.xlu0 %v4475, 112
    %v4973 = vpop.permute.xlu0 %4972
    %4974 = vrot.lane.b32.xlu0 %v4475, 80
    %v4975 = vpop.permute.xlu0 %4974
    %v4977 = vsel %vm517, %v4973, 0
    %v4980 = vsel %vm517, %v4975, 0
    %4982 = vmatprep.subr.bf16.mxu0 0
    %4983 = vmatpush1.bf16.xpose.msra.mxu0 %v4980
    %4984 = vmatprep.subr.bf16.mxu0 0
    %4985 = vmatpush1.bf16.xpose.msra.mxu0 0
    %4986 = vmatprep.subr.bf16.mxu0 0
    %4987 = vmatpush1.bf16.xpose.msra.mxu0 0
    %4988 = vmatprep.subr.bf16.mxu0 0
    %4989 = vmatpush1.bf16.xpose.msra.mxu0 0
    %4990 = vmatprep.subr.bf16.mxu0 0
    %4991 = vmatpush1.bf16.xpose.msra.mxu0 0
    %4992 = vmatprep.subr.bf16.mxu0 0
    %4993 = vmatpush1.bf16.xpose.msra.mxu0 0
    %4994 = vmatprep.subr.bf16.mxu0 0
    %4995 = vmatpush1.bf16.xpose.msra.mxu0 0
    %4996 = vmatprep.subr.bf16.mxu0 0
    %4997 = vmatpush1.bf16.xpose.msra.mxu0 0
    %4998 = vmatprep.subr.bf16.mxu0 0
    %4999 = vmatpush1.bf16.xpose.msra.mxu0 0
    %5000 = vmatprep.subr.bf16.mxu0 0
    %5001 = vmatpush1.bf16.xpose.msra.mxu0 0
    %5002 = vmatprep.subr.bf16.mxu0 0
    %5003 = vmatpush1.bf16.xpose.msra.mxu0 0
    %5004 = vmatprep.subr.bf16.mxu0 0
    %5005 = vmatpush1.bf16.xpose.msra.mxu0 0
    %5006 = vmatprep.subr.bf16.mxu0 0
    %5007 = vmatpush1.bf16.xpose.msra.mxu0 0
    %5008 = vmatprep.subr.bf16.mxu0 0
    %5009 = vmatpush1.bf16.xpose.msra.mxu0 0
    %5010 = vmatprep.subr.bf16.mxu0 0
    %5011 = vmatpush1.bf16.xpose.msra.mxu0 0
    %5012 = vmatprep.subr.bf16.mxu0 0
    %5013 = vmatpush1.bf16.xpose.msra.mxu0 0
    %5014 = vmatprep.mubr.bf16.mxu0 0
    %5015 = vmatmul.mubr.bf16.gmra.mrb[0].mxu0 %v4977
    %v5016 = vpop.f32.mrb[0].mxu0
    %v5017 = vadd.f32 0.0, %v5016
    %v5018 = vpop.f32.mrb[0].mxu0
    %v5019 = vpop.f32.mrb[0].mxu0
    %v5020 = vpop.f32.mrb[0].mxu0
    %5021 = vdwg.mxu0
    %v5022 = vmul.f32 %v4967, 0.35355338
    %v5023 = vmul.f32 %v5017, 0.35355338
    %v5024 = vadd.f32 %v5022, %v4332
    %v5025 = vadd.f32 %v5023, %v4332
    %v5026 = vsel %vm3231, %v5024, -inf
    %5027 = vmax.xlane.f32.xlu0 %v5026
    %v5028 = vpop.xlane.xlu0 %5027
    %v5029 = vsel %vm3231, %v5025, -inf
    %5030 = vmax.xlane.f32.xlu0 %v5029
    %v5031 = vpop.xlane.xlu0 %5030
    %v5032 = vsub.f32 %v5024, %v5028
    %v5033 = vsub.f32 %v5025, %v5031
    %v5034 = vmul.f32 %v5032, 1.442695
    %v5035 = vpow.pop %v5034
    %v5036 = vmul.f32 %v5033, 1.442695
    %v5037 = vpow.pop %v5036
    %v5038 = vsel %vm3231, %v5035, 0.0
    %5039 = vadd.xlane.f32.xlu0 %v5038
    %v5040 = vpop.xlane.xlu0 %5039
    %v5041 = vsel %vm3231, %v5037, 0.0
    %5042 = vadd.xlane.f32.xlu0 %v5041
    %v5043 = vpop.xlane.xlu0 %5042
    %v5044 = vrcp.pop %v5040
    %v5045 = vrcp.pop %v5043
    %v5046 = vmul.f32 %v5035, %v5044
    %v5047 = vmul.f32 %v5037, %v5045
    %v5048 = vpack.c.bf16 %v5046, %v5046
    %v5049 = vpack.c.bf16 %v5047, %v5047
    %5050 = vrot.lane.b32.xlu0 %v4474, 48
    %v5051 = vpop.permute.xlu0 %5050
    %v5053 = vsel %vm3258, %v5048, 0
    %v5056 = vsel %vm3262, %v5051, 0
    %5058 = vmatprep.subr.bf16.mxu0 0
    %5059 = vmatpush1.bf16.msra.mxu0 %v5056
    %5060 = vmatprep.subr.bf16.mxu0 0
    %5061 = vmatpush1.bf16.msra.mxu0 0
    %5062 = vmatprep.subr.bf16.mxu0 0
    %5063 = vmatpush1.bf16.msra.mxu0 0
    %5064 = vmatprep.subr.bf16.mxu0 0
    %5065 = vmatpush1.bf16.msra.mxu0 0
    %5066 = vmatprep.subr.bf16.mxu0 0
    %5067 = vmatpush1.bf16.msra.mxu0 0
    %5068 = vmatprep.subr.bf16.mxu0 0
    %5069 = vmatpush1.bf16.msra.mxu0 0
    %5070 = vmatprep.subr.bf16.mxu0 0
    %5071 = vmatpush1.bf16.msra.mxu0 0
    %5072 = vmatprep.subr.bf16.mxu0 0
    %5073 = vmatpush1.bf16.msra.mxu0 0
    %5074 = vmatprep.subr.bf16.mxu0 0
    %5075 = vmatpush1.bf16.msra.mxu0 0
    %5076 = vmatprep.subr.bf16.mxu0 0
    %5077 = vmatpush1.bf16.msra.mxu0 0
    %5078 = vmatprep.subr.bf16.mxu0 0
    %5079 = vmatpush1.bf16.msra.mxu0 0
    %5080 = vmatprep.subr.bf16.mxu0 0
    %5081 = vmatpush1.bf16.msra.mxu0 0
    %5082 = vmatprep.subr.bf16.mxu0 0
    %5083 = vmatpush1.bf16.msra.mxu0 0
    %5084 = vmatprep.subr.bf16.mxu0 0
    %5085 = vmatpush1.bf16.msra.mxu0 0
    %5086 = vmatprep.subr.bf16.mxu0 0
    %5087 = vmatpush1.bf16.msra.mxu0 0
    %5088 = vmatprep.subr.bf16.mxu0 0
    %5089 = vmatpush1.bf16.msra.mxu0 0
    %5090 = vmatprep.mubr.bf16.mxu0 0
    %5091 = vmatmul.mubr.bf16.gmra.mrb[0].mxu0 %v5053
    %v5092 = vpop.f32.mrb[0].mxu0
    %v5093 = vadd.f32 0.0, %v5092
    %v5094 = vpop.f32.mrb[0].mxu0
    %v5095 = vpop.f32.mrb[0].mxu0
    %v5096 = vpop.f32.mrb[0].mxu0
    %5097 = vdwg.mxu0
    %5098 = vrot.lane.b32.xlu0 %v4475, 48
    %v5099 = vpop.permute.xlu0 %5098
    %v5101 = vsel %vm3258, %v5049, 0
    %v5104 = vsel %vm3262, %v5099, 0
    %5106 = vmatprep.subr.bf16.mxu0 0
    %5107 = vmatpush1.bf16.msra.mxu0 %v5104
    %5108 = vmatprep.subr.bf16.mxu0 0
    %5109 = vmatpush1.bf16.msra.mxu0 0
    %5110 = vmatprep.subr.bf16.mxu0 0
    %5111 = vmatpush1.bf16.msra.mxu0 0
    %5112 = vmatprep.subr.bf16.mxu0 0
    %5113 = vmatpush1.bf16.msra.mxu0 0
    %5114 = vmatprep.subr.bf16.mxu0 0
    %5115 = vmatpush1.bf16.msra.mxu0 0
    %5116 = vmatprep.subr.bf16.mxu0 0
    %5117 = vmatpush1.bf16.msra.mxu0 0
    %5118 = vmatprep.subr.bf16.mxu0 0
    %5119 = vmatpush1.bf16.msra.mxu0 0
    %5120 = vmatprep.subr.bf16.mxu0 0
    %5121 = vmatpush1.bf16.msra.mxu0 0
    %5122 = vmatprep.subr.bf16.mxu0 0
    %5123 = vmatpush1.bf16.msra.mxu0 0
    %5124 = vmatprep.subr.bf16.mxu0 0
    %5125 = vmatpush1.bf16.msra.mxu0 0
    %5126 = vmatprep.subr.bf16.mxu0 0
    %5127 = vmatpush1.bf16.msra.mxu0 0
    %5128 = vmatprep.subr.bf16.mxu0 0
    %5129 = vmatpush1.bf16.msra.mxu0 0
    %5130 = vmatprep.subr.bf16.mxu0 0
    %5131 = vmatpush1.bf16.msra.mxu0 0
    %5132 = vmatprep.subr.bf16.mxu0 0
    %5133 = vmatpush1.bf16.msra.mxu0 0
    %5134 = vmatprep.subr.bf16.mxu0 0
    %5135 = vmatpush1.bf16.msra.mxu0 0
    %5136 = vmatprep.subr.bf16.mxu0 0
    %5137 = vmatpush1.bf16.msra.mxu0 0
    %5138 = vmatprep.mubr.bf16.mxu0 0
    %5139 = vmatmul.mubr.bf16.gmra.mrb[0].mxu0 %v5101
    %v5140 = vpop.f32.mrb[0].mxu0
    %v5141 = vadd.f32 0.0, %v5140
    %v5142 = vpop.f32.mrb[0].mxu0
    %v5143 = vpop.f32.mrb[0].mxu0
    %v5144 = vpop.f32.mrb[0].mxu0
    %5145 = vdwg.mxu0
    %5146 = vrot.lane.b32.xlu0 %v4474, 104
    %v5147 = vpop.permute.xlu0 %5146
    %5148 = vrot.lane.b32.xlu0 %v4474, 72
    %v5149 = vpop.permute.xlu0 %5148
    %v5151 = vsel %vm517, %v5147, 0
    %v5154 = vsel %vm517, %v5149, 0
    %5156 = vmatprep.subr.bf16.mxu0 0
    %5157 = vmatpush1.bf16.xpose.msra.mxu0 %v5154
    %5158 = vmatprep.subr.bf16.mxu0 0
    %5159 = vmatpush1.bf16.xpose.msra.mxu0 0
    %5160 = vmatprep.subr.bf16.mxu0 0
    %5161 = vmatpush1.bf16.xpose.msra.mxu0 0
    %5162 = vmatprep.subr.bf16.mxu0 0
    %5163 = vmatpush1.bf16.xpose.msra.mxu0 0
    %5164 = vmatprep.subr.bf16.mxu0 0
    %5165 = vmatpush1.bf16.xpose.msra.mxu0 0
    %5166 = vmatprep.subr.bf16.mxu0 0
    %5167 = vmatpush1.bf16.xpose.msra.mxu0 0
    %5168 = vmatprep.subr.bf16.mxu0 0
    %5169 = vmatpush1.bf16.xpose.msra.mxu0 0
    %5170 = vmatprep.subr.bf16.mxu0 0
    %5171 = vmatpush1.bf16.xpose.msra.mxu0 0
    %5172 = vmatprep.subr.bf16.mxu0 0
    %5173 = vmatpush1.bf16.xpose.msra.mxu0 0
    %5174 = vmatprep.subr.bf16.mxu0 0
    %5175 = vmatpush1.bf16.xpose.msra.mxu0 0
    %5176 = vmatprep.subr.bf16.mxu0 0
    %5177 = vmatpush1.bf16.xpose.msra.mxu0 0
    %5178 = vmatprep.subr.bf16.mxu0 0
    %5179 = vmatpush1.bf16.xpose.msra.mxu0 0
    %5180 = vmatprep.subr.bf16.mxu0 0
    %5181 = vmatpush1.bf16.xpose.msra.mxu0 0
    %5182 = vmatprep.subr.bf16.mxu0 0
    %5183 = vmatpush1.bf16.xpose.msra.mxu0 0
    %5184 = vmatprep.subr.bf16.mxu0 0
    %5185 = vmatpush1.bf16.xpose.msra.mxu0 0
    %5186 = vmatprep.subr.bf16.mxu0 0
    %5187 = vmatpush1.bf16.xpose.msra.mxu0 0
    %5188 = vmatprep.mubr.bf16.mxu0 0
    %5189 = vmatmul.mubr.bf16.gmra.mrb[0].mxu0 %v5151
    %v5190 = vpop.f32.mrb[0].mxu0
    %v5191 = vadd.f32 0.0, %v5190
    %v5192 = vpop.f32.mrb[0].mxu0
    %v5193 = vpop.f32.mrb[0].mxu0
    %v5194 = vpop.f32.mrb[0].mxu0
    %5195 = vdwg.mxu0
    %5196 = vrot.lane.b32.xlu0 %v4475, 104
    %v5197 = vpop.permute.xlu0 %5196
    %5198 = vrot.lane.b32.xlu0 %v4475, 72
    %v5199 = vpop.permute.xlu0 %5198
    %v5201 = vsel %vm517, %v5197, 0
    %v5204 = vsel %vm517, %v5199, 0
    %5206 = vmatprep.subr.bf16.mxu0 0
    %5207 = vmatpush1.bf16.xpose.msra.mxu0 %v5204
    %5208 = vmatprep.subr.bf16.mxu0 0
    %5209 = vmatpush1.bf16.xpose.msra.mxu0 0
    %5210 = vmatprep.subr.bf16.mxu0 0
    %5211 = vmatpush1.bf16.xpose.msra.mxu0 0
    %5212 = vmatprep.subr.bf16.mxu0 0
    %5213 = vmatpush1.bf16.xpose.msra.mxu0 0
    %5214 = vmatprep.subr.bf16.mxu0 0
    %5215 = vmatpush1.bf16.xpose.msra.mxu0 0
    %5216 = vmatprep.subr.bf16.mxu0 0
    %5217 = vmatpush1.bf16.xpose.msra.mxu0 0
    %5218 = vmatprep.subr.bf16.mxu0 0
    %5219 = vmatpush1.bf16.xpose.msra.mxu0 0
    %5220 = vmatprep.subr.bf16.mxu0 0
    %5221 = vmatpush1.bf16.xpose.msra.mxu0 0
    %5222 = vmatprep.subr.bf16.mxu0 0
    %5223 = vmatpush1.bf16.xpose.msra.mxu0 0
    %5224 = vmatprep.subr.bf16.mxu0 0
    %5225 = vmatpush1.bf16.xpose.msra.mxu0 0
    %5226 = vmatprep.subr.bf16.mxu0 0
    %5227 = vmatpush1.bf16.xpose.msra.mxu0 0
    %5228 = vmatprep.subr.bf16.mxu0 0
    %5229 = vmatpush1.bf16.xpose.msra.mxu0 0
    %5230 = vmatprep.subr.bf16.mxu0 0
    %5231 = vmatpush1.bf16.xpose.msra.mxu0 0
    %5232 = vmatprep.subr.bf16.mxu0 0
    %5233 = vmatpush1.bf16.xpose.msra.mxu0 0
    %5234 = vmatprep.subr.bf16.mxu0 0
    %5235 = vmatpush1.bf16.xpose.msra.mxu0 0
    %5236 = vmatprep.subr.bf16.mxu0 0
    %5237 = vmatpush1.bf16.xpose.msra.mxu0 0
    %5238 = vmatprep.mubr.bf16.mxu0 0
    %5239 = vmatmul.mubr.bf16.gmra.mrb[0].mxu0 %v5201
    %v5240 = vpop.f32.mrb[0].mxu0
    %v5241 = vadd.f32 0.0, %v5240
    %v5242 = vpop.f32.mrb[0].mxu0
    %v5243 = vpop.f32.mrb[0].mxu0
    %v5244 = vpop.f32.mrb[0].mxu0
    %5245 = vdwg.mxu0
    %v5246 = vmul.f32 %v5191, 0.35355338
    %v5247 = vmul.f32 %v5241, 0.35355338
    %v5248 = vadd.f32 %v5246, %v4333
    %v5249 = vadd.f32 %v5247, %v4333
    %v5250 = vsel %vm3231, %v5248, -inf
    %5251 = vmax.xlane.f32.xlu0 %v5250
    %v5252 = vpop.xlane.xlu0 %5251
    %v5253 = vsel %vm3231, %v5249, -inf
    %5254 = vmax.xlane.f32.xlu0 %v5253
    %v5255 = vpop.xlane.xlu0 %5254
    %v5256 = vsub.f32 %v5248, %v5252
    %v5257 = vsub.f32 %v5249, %v5255
    %v5258 = vmul.f32 %v5256, 1.442695
    %v5259 = vpow.pop %v5258
    %v5260 = vmul.f32 %v5257, 1.442695
    %v5261 = vpow.pop %v5260
    %v5262 = vsel %vm3231, %v5259, 0.0
    %5263 = vadd.xlane.f32.xlu0 %v5262
    %v5264 = vpop.xlane.xlu0 %5263
    %v5265 = vsel %vm3231, %v5261, 0.0
    %5266 = vadd.xlane.f32.xlu0 %v5265
    %v5267 = vpop.xlane.xlu0 %5266
    %v5268 = vrcp.pop %v5264
    %v5269 = vrcp.pop %v5267
    %v5270 = vmul.f32 %v5259, %v5268
    %v5271 = vmul.f32 %v5261, %v5269
    %v5272 = vpack.c.bf16 %v5270, %v5270
    %v5273 = vpack.c.bf16 %v5271, %v5271
    %5274 = vrot.lane.b32.xlu0 %v4474, 40
    %v5275 = vpop.permute.xlu0 %5274
    %v5277 = vsel %vm3258, %v5272, 0
    %v5280 = vsel %vm3262, %v5275, 0
    %5282 = vmatprep.subr.bf16.mxu0 0
    %5283 = vmatpush1.bf16.msra.mxu0 %v5280
    %5284 = vmatprep.subr.bf16.mxu0 0
    %5285 = vmatpush1.bf16.msra.mxu0 0
    %5286 = vmatprep.subr.bf16.mxu0 0
    %5287 = vmatpush1.bf16.msra.mxu0 0
    %5288 = vmatprep.subr.bf16.mxu0 0
    %5289 = vmatpush1.bf16.msra.mxu0 0
    %5290 = vmatprep.subr.bf16.mxu0 0
    %5291 = vmatpush1.bf16.msra.mxu0 0
    %5292 = vmatprep.subr.bf16.mxu0 0
    %5293 = vmatpush1.bf16.msra.mxu0 0
    %5294 = vmatprep.subr.bf16.mxu0 0
    %5295 = vmatpush1.bf16.msra.mxu0 0
    %5296 = vmatprep.subr.bf16.mxu0 0
    %5297 = vmatpush1.bf16.msra.mxu0 0
    %5298 = vmatprep.subr.bf16.mxu0 0
    %5299 = vmatpush1.bf16.msra.mxu0 0
    %5300 = vmatprep.subr.bf16.mxu0 0
    %5301 = vmatpush1.bf16.msra.mxu0 0
    %5302 = vmatprep.subr.bf16.mxu0 0
    %5303 = vmatpush1.bf16.msra.mxu0 0
    %5304 = vmatprep.subr.bf16.mxu0 0
    %5305 = vmatpush1.bf16.msra.mxu0 0
    %5306 = vmatprep.subr.bf16.mxu0 0
    %5307 = vmatpush1.bf16.msra.mxu0 0
    %5308 = vmatprep.subr.bf16.mxu0 0
    %5309 = vmatpush1.bf16.msra.mxu0 0
    %5310 = vmatprep.subr.bf16.mxu0 0
    %5311 = vmatpush1.bf16.msra.mxu0 0
    %5312 = vmatprep.subr.bf16.mxu0 0
    %5313 = vmatpush1.bf16.msra.mxu0 0
    %5314 = vmatprep.mubr.bf16.mxu0 0
    %5315 = vmatmul.mubr.bf16.gmra.mrb[0].mxu0 %v5277
    %v5316 = vpop.f32.mrb[0].mxu0
    %v5317 = vadd.f32 0.0, %v5316
    %v5318 = vpop.f32.mrb[0].mxu0
    %v5319 = vpop.f32.mrb[0].mxu0
    %v5320 = vpop.f32.mrb[0].mxu0
    %5321 = vdwg.mxu0
    %5322 = vrot.lane.b32.xlu0 %v4475, 40
    %v5323 = vpop.permute.xlu0 %5322
    %v5325 = vsel %vm3258, %v5273, 0
    %v5328 = vsel %vm3262, %v5323, 0
    %5330 = vmatprep.subr.bf16.mxu0 0
    %5331 = vmatpush1.bf16.msra.mxu0 %v5328
    %5332 = vmatprep.subr.bf16.mxu0 0
    %5333 = vmatpush1.bf16.msra.mxu0 0
    %5334 = vmatprep.subr.bf16.mxu0 0
    %5335 = vmatpush1.bf16.msra.mxu0 0
    %5336 = vmatprep.subr.bf16.mxu0 0
    %5337 = vmatpush1.bf16.msra.mxu0 0
    %5338 = vmatprep.subr.bf16.mxu0 0
    %5339 = vmatpush1.bf16.msra.mxu0 0
    %5340 = vmatprep.subr.bf16.mxu0 0
    %5341 = vmatpush1.bf16.msra.mxu0 0
    %5342 = vmatprep.subr.bf16.mxu0 0
    %5343 = vmatpush1.bf16.msra.mxu0 0
    %5344 = vmatprep.subr.bf16.mxu0 0
    %5345 = vmatpush1.bf16.msra.mxu0 0
    %5346 = vmatprep.subr.bf16.mxu0 0
    %5347 = vmatpush1.bf16.msra.mxu0 0
    %5348 = vmatprep.subr.bf16.mxu0 0
    %5349 = vmatpush1.bf16.msra.mxu0 0
    %5350 = vmatprep.subr.bf16.mxu0 0
    %5351 = vmatpush1.bf16.msra.mxu0 0
    %5352 = vmatprep.subr.bf16.mxu0 0
    %5353 = vmatpush1.bf16.msra.mxu0 0
    %5354 = vmatprep.subr.bf16.mxu0 0
    %5355 = vmatpush1.bf16.msra.mxu0 0
    %5356 = vmatprep.subr.bf16.mxu0 0
    %5357 = vmatpush1.bf16.msra.mxu0 0
    %5358 = vmatprep.subr.bf16.mxu0 0
    %5359 = vmatpush1.bf16.msra.mxu0 0
    %5360 = vmatprep.subr.bf16.mxu0 0
    %5361 = vmatpush1.bf16.msra.mxu0 0
    %5362 = vmatprep.mubr.bf16.mxu0 0
    %5363 = vmatmul.mubr.bf16.gmra.mrb[0].mxu0 %v5325
    %v5364 = vpop.f32.mrb[0].mxu0
    %v5365 = vadd.f32 0.0, %v5364
    %v5366 = vpop.f32.mrb[0].mxu0
    %v5367 = vpop.f32.mrb[0].mxu0
    %v5368 = vpop.f32.mrb[0].mxu0
    %5369 = vdwg.mxu0
    %v5372 = vcombine.low %v4645, %v4693
    %v5376 = vcombine.low %v4869, %v4917
    %5377 = vrot.lane.b32.xlu0 %v5376, 8
    %v5378 = vpop.permute.xlu0 %5377
    %v5382 = vcombine.low %v5093, %v5141
    %5383 = vrot.lane.b32.xlu0 %v5382, 16
    %v5384 = vpop.permute.xlu0 %5383
    %v5388 = vcombine.low %v5317, %v5365
    %5389 = vrot.lane.b32.xlu0 %v5388, 24
    %v5390 = vpop.permute.xlu0 %5389
    %v5392 = vsel %vm517, %v5372, %v5378
    %v5393 = vsel %vm271, %v5392, %v5384
    %v5394 = vsel %vm4050, %v5393, %v5390
    %v5395 = vpack.c.bf16 %v5394, %v5394
    %v5400 = vunpack.c.l.b16 %v4346
    %v5401 = vunpack.c.l.b16 %v4347
    %v5402 = vunpack.c.l.b16 %v4348
    %v5403 = vunpack.c.l.b16 %v4349
    %v5404 = vpack.c.b16 %v5401, %v5400
    %v5405 = vpack.c.b16 %v5403, %v5402
    %v5409 = vsel %vm2579, %v5395, 0
    %5411 = vmatprep.subr.bf16.mxu0 0
    %5412 = vmatpush1.bf16.msra.mxu0 %v5404
    %5413 = vmatprep.subr.bf16.mxu0 0
    %5414 = vmatpush1.bf16.msra.mxu0 %v5405
    %5415 = vmatprep.subr.bf16.mxu0 0
    %5416 = vmatpush1.bf16.msra.mxu0 0
    %5417 = vmatprep.subr.bf16.mxu0 0
    %5418 = vmatpush1.bf16.msra.mxu0 0
    %5419 = vmatprep.subr.bf16.mxu0 0
    %5420 = vmatpush1.bf16.msra.mxu0 0
    %5421 = vmatprep.subr.bf16.mxu0 0
    %5422 = vmatpush1.bf16.msra.mxu0 0
    %5423 = vmatprep.subr.bf16.mxu0 0
    %5424 = vmatpush1.bf16.msra.mxu0 0
    %5425 = vmatprep.subr.bf16.mxu0 0
    %5426 = vmatpush1.bf16.msra.mxu0 0
    %5427 = vmatprep.subr.bf16.mxu0 0
    %5428 = vmatpush1.bf16.msra.mxu0 0
    %5429 = vmatprep.subr.bf16.mxu0 0
    %5430 = vmatpush1.bf16.msra.mxu0 0
    %5431 = vmatprep.subr.bf16.mxu0 0
    %5432 = vmatpush1.bf16.msra.mxu0 0
    %5433 = vmatprep.subr.bf16.mxu0 0
    %5434 = vmatpush1.bf16.msra.mxu0 0
    %5435 = vmatprep.subr.bf16.mxu0 0
    %5436 = vmatpush1.bf16.msra.mxu0 0
    %5437 = vmatprep.subr.bf16.mxu0 0
    %5438 = vmatpush1.bf16.msra.mxu0 0
    %5439 = vmatprep.subr.bf16.mxu0 0
    %5440 = vmatpush1.bf16.msra.mxu0 0
    %5441 = vmatprep.subr.bf16.mxu0 0
    %5442 = vmatpush1.bf16.msra.mxu0 0
    %5443 = vmatprep.mubr.bf16.mxu0 0
    %5444 = vmatmul.mubr.bf16.gmra.mrb[0].mxu0 %v5409
    %v5445 = vpop.f32.mrb[0].mxu0
    %v5446 = vadd.f32 0.0, %v5445
    %v5447 = vpop.f32.mrb[0].mxu0
    %v5448 = vpop.f32.mrb[0].mxu0
    %v5449 = vpop.f32.mrb[0].mxu0
    %5450 = vdwg.mxu0
    %v5451 = vadd.f32 %v4328, %v5446
    %v5453 = vlaneseq
    %v5454 = vshrl.u32 %v5453, 7
    %v5455 = vsub.s32 0, %v5454
    %v5456 = vrot.slane %v4351, %v5455
    %v5458 = vadd.f32 %v5451, %v5456
    %v5459 = vsel %vm2579, %v5458, 0.0
    %5460 = vadd.xlane.f32.xlu0 %v5459
    %v5461 = vpop.xlane.xlu0 %5460
    %v5462 = vmul.f32 %v5461, %v3037
    %v5463 = vsub.f32 %v5458, %v5462
    %v5464 = vmul.f32 %v5463, %v5463
    %v5465 = vsel %vm2579, %v5464, 0.0
    %5466 = vadd.xlane.f32.xlu0 %v5465
    %v5467 = vpop.xlane.xlu0 %5466
    %v5468 = vmul.f32 %v5467, %v3037
    %v5469 = vadd.f32 %v5468, 1e-05
    %v5470 = vrsqrt.pop %v5469
    %v5471 = vmul.f32 %v5463, %v5470
    %v5473 = vlaneseq
    %v5474 = vshrl.u32 %v5473, 7
    %v5475 = vsub.s32 0, %v5474
    %v5476 = vrot.slane %v4353, %v5475
    %v5478 = vmul.f32 %v5471, %v5476
    %v5480 = vlaneseq
    %v5481 = vshrl.u32 %v5480, 7
    %v5482 = vsub.s32 0, %v5481
    %v5483 = vrot.slane %v4355, %v5482
    %v5485 = vadd.f32 %v5478, %v5483
    %v5486 = vpack.c.bf16 %v5485, %v5485
    %v5488 = vlaneseq
    %v5489 = vshrl.u32 %v5488, 7
    %v5490 = vsub.s32 0, %v5489
    %v5491 = vrot.slane %v4362, %v5490
    %v5497 = vunpack.c.l.b16 %v4357
    %v5498 = vunpack.c.l.b16 %v4358
    %v5499 = vunpack.c.l.b16 %v4359
    %v5500 = vunpack.c.l.b16 %v4360
    %v5501 = vpack.c.b16 %v5498, %v5497
    %v5502 = vpack.c.b16 %v5500, %v5499
    %v5506 = vsel %vm2579, %v5486, 0
    %5508 = vmatprep.subr.bf16.mxu0 0
    %5509 = vmatpush1.bf16.msra.mxu0 %v5501
    %5510 = vmatprep.subr.bf16.mxu0 0
    %5511 = vmatpush1.bf16.msra.mxu0 %v5502
    %5512 = vmatprep.subr.bf16.mxu0 0
    %5513 = vmatpush1.bf16.msra.mxu0 0
    %5514 = vmatprep.subr.bf16.mxu0 0
    %5515 = vmatpush1.bf16.msra.mxu0 0
    %5516 = vmatprep.subr.bf16.mxu0 0
    %5517 = vmatpush1.bf16.msra.mxu0 0
    %5518 = vmatprep.subr.bf16.mxu0 0
    %5519 = vmatpush1.bf16.msra.mxu0 0
    %5520 = vmatprep.subr.bf16.mxu0 0
    %5521 = vmatpush1.bf16.msra.mxu0 0
    %5522 = vmatprep.subr.bf16.mxu0 0
    %5523 = vmatpush1.bf16.msra.mxu0 0
    %5524 = vmatprep.subr.bf16.mxu0 0
    %5525 = vmatpush1.bf16.msra.mxu0 0
    %5526 = vmatprep.subr.bf16.mxu0 0
    %5527 = vmatpush1.bf16.msra.mxu0 0
    %5528 = vmatprep.subr.bf16.mxu0 0
    %5529 = vmatpush1.bf16.msra.mxu0 0
    %5530 = vmatprep.subr.bf16.mxu0 0
    %5531 = vmatpush1.bf16.msra.mxu0 0
    %5532 = vmatprep.subr.bf16.mxu0 0
    %5533 = vmatpush1.bf16.msra.mxu0 0
    %5534 = vmatprep.subr.bf16.mxu0 0
    %5535 = vmatpush1.bf16.msra.mxu0 0
    %5536 = vmatprep.subr.bf16.mxu0 0
    %5537 = vmatpush1.bf16.msra.mxu0 0
    %5538 = vmatprep.subr.bf16.mxu0 0
    %5539 = vmatpush1.bf16.msra.mxu0 0
    %5540 = vmatprep.mubr.bf16.mxu0 0
    %5541 = vmatmul.mubr.bf16.gmra.mrb[0].mxu0 %v5506
    %v5542 = vpop.f32.mrb[0].mxu0
    %v5543 = vadd.f32 %v5491, %v5542
    %v5544 = vpop.f32.mrb[0].mxu0
    %v5545 = vpop.f32.mrb[0].mxu0
    %v5546 = vpop.f32.mrb[0].mxu0
    %5547 = vdwg.mxu0
    %v5548 = vmul.f32 %v5543, 0.70710677
    %v5549 = vand.u32 2147483647, %v5548
    %v5550 = vmul.f32 %v5549, 0.3275911
    %v5551 = vadd.f32 %v5550, 1.0
    %v5552 = vrcp.pop %v5551
    %v5553 = vmul.f32 1.0, %v5552
    %v5554 = vmul.f32 %v5553, 1.0614054
    %v5555 = vadd.f32 %v5554, -1.4531521
    %v5556 = vmul.f32 %v5555, %v5553
    %v5557 = vadd.f32 %v5556, 1.4214138
    %v5558 = vmul.f32 %v5557, %v5553
    %v5559 = vadd.f32 %v5558, -0.28449672
    %v5560 = vmul.f32 %v5559, %v5553
    %v5561 = vadd.f32 %v5560, 0.2548296
    %v5562 = vmul.f32 %v5561, %v5553
    %v5563 = vsub.f32 0.0, %v5549
    %v5564 = vmul.f32 %v5563, %v5549
    %v5565 = vmul.f32 %v5564, 1.442695
    %v5566 = vpow.pop %v5565
    %v5567 = vmul.f32 %v5562, %v5566
    %v5568 = vsub.f32 1.0, %v5567
    %vm5569 = vcmp.lt.f32.partialorder %v5548, 0.0
    %v5570 = vsub.f32 0.0, %v5568
    %v5571 = vsel %vm5569, %v5570, %v5568
    %v5572 = vmul.f32 %v5543, 0.5
    %v5573 = vadd.f32 %v5571, 1.0
    %v5574 = vmul.f32 %v5572, %v5573
    %v5575 = vpack.c.bf16 %v5574, %v5574
    %v5592 = vunpack.c.l.b16 %v4364
    %v5593 = vunpack.c.l.b16 %v4365
    %v5594 = vunpack.c.l.b16 %v4366
    %v5595 = vunpack.c.l.b16 %v4367
    %v5596 = vunpack.c.l.b16 %v4368
    %v5597 = vunpack.c.l.b16 %v4369
    %v5598 = vunpack.c.l.b16 %v4370
    %v5599 = vunpack.c.l.b16 %v4371
    %v5600 = vunpack.c.l.b16 %v4372
    %v5601 = vunpack.c.l.b16 %v4373
    %v5602 = vunpack.c.l.b16 %v4374
    %v5603 = vunpack.c.l.b16 %v4375
    %v5604 = vunpack.c.l.b16 %v4376
    %v5605 = vunpack.c.l.b16 %v4377
    %v5606 = vunpack.c.l.b16 %v4378
    %v5607 = vunpack.c.l.b16 %v4379
    %v5608 = vpack.c.b16 %v5593, %v5592
    %v5609 = vpack.c.b16 %v5595, %v5594
    %v5610 = vpack.c.b16 %v5597, %v5596
    %v5611 = vpack.c.b16 %v5599, %v5598
    %v5612 = vpack.c.b16 %v5601, %v5600
    %v5613 = vpack.c.b16 %v5603, %v5602
    %v5614 = vpack.c.b16 %v5605, %v5604
    %v5615 = vpack.c.b16 %v5607, %v5606
    %5624 = vmatprep.subr.bf16.mxu0 0
    %5625 = vmatpush1.bf16.msra.mxu0 %v5608
    %5626 = vmatprep.subr.bf16.mxu0 0
    %5627 = vmatpush1.bf16.msra.mxu0 %v5609
    %5628 = vmatprep.subr.bf16.mxu0 0
    %5629 = vmatpush1.bf16.msra.mxu0 %v5610
    %5630 = vmatprep.subr.bf16.mxu0 0
    %5631 = vmatpush1.bf16.msra.mxu0 %v5611
    %5632 = vmatprep.subr.bf16.mxu0 0
    %5633 = vmatpush1.bf16.msra.mxu0 %v5612
    %5634 = vmatprep.subr.bf16.mxu0 0
    %5635 = vmatpush1.bf16.msra.mxu0 %v5613
    %5636 = vmatprep.subr.bf16.mxu0 0
    %5637 = vmatpush1.bf16.msra.mxu0 %v5614
    %5638 = vmatprep.subr.bf16.mxu0 0
    %5639 = vmatpush1.bf16.msra.mxu0 %v5615
    %5640 = vmatprep.subr.bf16.mxu0 0
    %5641 = vmatpush1.bf16.msra.mxu0 0
    %5642 = vmatprep.subr.bf16.mxu0 0
    %5643 = vmatpush1.bf16.msra.mxu0 0
    %5644 = vmatprep.subr.bf16.mxu0 0
    %5645 = vmatpush1.bf16.msra.mxu0 0
    %5646 = vmatprep.subr.bf16.mxu0 0
    %5647 = vmatpush1.bf16.msra.mxu0 0
    %5648 = vmatprep.subr.bf16.mxu0 0
    %5649 = vmatpush1.bf16.msra.mxu0 0
    %5650 = vmatprep.subr.bf16.mxu0 0
    %5651 = vmatpush1.bf16.msra.mxu0 0
    %5652 = vmatprep.subr.bf16.mxu0 0
    %5653 = vmatpush1.bf16.msra.mxu0 0
    %5654 = vmatprep.subr.bf16.mxu0 0
    %5655 = vmatpush1.bf16.msra.mxu0 0
    %5656 = vmatprep.mubr.bf16.mxu0 0
    %5657 = vmatmul.mubr.bf16.gmra.mrb[0].mxu0 %v5575
    %v5658 = vpop.f32.mrb[0].mxu0
    %v5659 = vadd.f32 0.0, %v5658
    %v5660 = vpop.f32.mrb[0].mxu0
    %v5661 = vpop.f32.mrb[0].mxu0
    %v5662 = vpop.f32.mrb[0].mxu0
    %5663 = vdwg.mxu0
    %v5664 = vadd.f32 %v5458, %v5659
    %v5666 = vlaneseq
    %v5667 = vshrl.u32 %v5666, 7
    %v5668 = vsub.s32 0, %v5667
    %v5669 = vrot.slane %v4381, %v5668
    %v5671 = vadd.f32 %v5664, %v5669
    %v5672 = vld [vmem:[%s71] sm:$0x1]
    %v5673 = vld [vmem:[%s73] sm:$0x1]
    %v5674 = vsel %vm2579, %v5671, 0.0
    %5675 = vadd.xlane.f32.xlu0 %v5674
    %v5676 = vpop.xlane.xlu0 %5675
    %v5677 = vmul.f32 %v5676, %v3037
    %v5678 = vsub.f32 %v5671, %v5677
    %v5679 = vmul.f32 %v5678, %v5678
    %v5680 = vsel %vm2579, %v5679, 0.0
    %5681 = vadd.xlane.f32.xlu0 %v5680
    %v5682 = vpop.xlane.xlu0 %5681
    %v5683 = vmul.f32 %v5682, %v3037
    %v5684 = vadd.f32 %v5683, 1e-05
    %v5685 = vrsqrt.pop %v5684
    %v5686 = vmul.f32 %v5678, %v5685
    %v5688 = vlaneseq
    %v5689 = vshrl.u32 %v5688, 7
    %v5690 = vsub.s32 0, %v5689
    %v5691 = vrot.slane %v5672, %v5690
    %v5693 = vmul.f32 %v5686, %v5691
    %v5695 = vlaneseq
    %v5696 = vshrl.u32 %v5695, 7
    %v5697 = vsub.s32 0, %v5696
    %v5698 = vrot.slane %v5673, %v5697
    %v5700 = vadd.f32 %v5693, %v5698
    %5701 = vst.msk [vmem:[#allocation2] sm:$0xff] %vm2579, %v5700
    %v5703 = vcombine.high %v5700, %v5700
    %vm5705 = vcmask 257024
    %v5706 = vsel %vm5705, %v5700, 0.0
    %v5707 = vrot.slane %v5706, 4
    %v5708 = vadd.f32 %v5706, %v5707
    %v5709 = vrot.slane %v5708, 2
    %v5710 = vadd.f32 %v5708, %v5709
    %v5711 = vrot.slane %v5710, 1
    %v5712 = vadd.f32 %v5710, %v5711
    %v5713 = vsel %vm5705, %v5703, 0.0
    %v5714 = vrot.slane %v5713, 4
    %v5715 = vadd.f32 %v5713, %v5714
    %v5716 = vrot.slane %v5715, 2
    %v5717 = vadd.f32 %v5715, %v5716
    %v5718 = vrot.slane %v5717, 1
    %v5719 = vadd.f32 %v5717, %v5718
    %v5720 = vrcp.pop 4.0
    %v5721 = vmul.f32 %v5712, %v5720
    %v5722 = vmul.f32 %v5719, %v5720
    %vm5725 = vcmask 1041409
    %v5726 = vsel %vm5725, %v5722, %v5721
    %vm5728 = vcmask 254976
    %5729 = vst.msk [vmem:[#allocation4] sm:$0x3] %vm5728, %v5726
    // Predicated region
    $region150: #{swin_forward.1} parent=1 // pred_check
      _
    $region151: #{swin_forward.1} parent=1 // pred_check_branch
      %5731 = sbr.rel (0) target = $region153
    $region152: #{swin_forward.1} parent=1 // pred_region
      %s5733 = ssub.s32 128, 128
      %5734 = vsyncadd [#allocation3], %s5733
      %s5736 = sshll.u32 [#allocation2], 4
      %s5737 = int_to_ptr.vmem [resolvable:$true] %s5736
      %5739 = dma.vmem_to_hbm [thread:$0]  %s5737, 128, %s75, [#allocation3]
    $region153: #{swin_forward.1} parent=1 // pred_fallthru
      _
    // Predicated region
    $region154: #{swin_forward.1} parent=1 // pred_check
      _
    $region155: #{swin_forward.1} parent=1 // pred_check_branch
      %5741 = sbr.rel (0) target = $region157
    $region156: #{swin_forward.1} parent=1 // pred_region
      %s5743 = ssub.s32 32, 32
      %5744 = vsyncadd [#allocation5], %s5743
      %s5746 = sshll.u32 [#allocation4], 4
      %s5747 = int_to_ptr.vmem [resolvable:$true] %s5746
      %5749 = dma.vmem_to_hbm [thread:$0]  %s5747, 32, %s77, [#allocation5]
    $region157: #{swin_forward.1} parent=1 // pred_fallthru
      _
    // Predicated region
    $region158: #{swin_forward.1} parent=1 // pred_check
      _
    $region159: #{swin_forward.1} parent=1 // pred_check_branch
      %5751 = sbr.rel (0) target = $region161
    $region160: #{swin_forward.1} parent=1 // pred_region
      %5752 = dma.done [#allocation3], 128
    $region161: #{swin_forward.1} parent=1 // pred_fallthru
      _
    // Predicated region
    $region162: #{swin_forward.1} parent=1 // pred_check
      _
    $region163: #{swin_forward.1} parent=1 // pred_check_branch
      %5754 = sbr.rel (0) target = $region165
    $region164: #{swin_forward.1} parent=1 // pred_region
      %5755 = dma.done [#allocation5], 32
    $region165: #{swin_forward.1} parent=1 // pred_fallthru
      _
    %5756 = vsyncpa [#allocation3], 1
    %5757 = vsyncpa [#allocation5], 1

</llo_original>
